<compile_context>
chip_gen: v7x
topology: tpu7x:2x2x1
jax: 0.10.0
libtpu: 0.0.40
codegen_flags: <defaults>
</compile_context>

<pallas_src>
import jax
import jax.numpy as jnp
from jax.experimental import pallas as pl
from jax.experimental.pallas import tpu as pltpu

K1_PAD = 896  # 784 zero-padded up to 7*128 for lane-aligned layer-1 contraction


# ---------------------------------------------------------------------------
# Generation-aware VMEM budget / layer-2 tile selection
# ---------------------------------------------------------------------------
def _vmem_capacity_bytes():
    try:
        return int(pltpu.get_tpu_info().vmem_capacity_bytes)
    except Exception:
        return 64 << 20  # conservative default (v7x: 64 MiB per TC)


_VMEM_CAP = _vmem_capacity_bytes()

if _VMEM_CAP >= (100 << 20):
    # v5e / v6e: 128 MiB VMEM per TC -> big layer-2 tiles, 4 grid steps.
    TN2 = 2304
    VMEM_LIMIT_L2 = 96 << 20
else:
    # v7x: 64 MiB VMEM per TC -> 1152-wide tiles, 8 grid steps (4 per TC).
    TN2 = 1152
    VMEM_LIMIT_L2 = 48 << 20

TN1 = 4096                 # layer-1: 2 grid steps (one per TC on v7x)
VMEM_LIMIT = 48 << 20      # safe everywhere for the non-layer-2 calls


# ---------------------------------------------------------------------------
# Linear + ReLU, tiled over output features (bf16 weights + activations,
# f32 MXU accumulation). Activations stay resident; weight tiles stream.
# ---------------------------------------------------------------------------
def _linear_relu_kernel(x_ref, w_ref, b_ref, o_ref):
    y = jnp.dot(x_ref[...], w_ref[...], preferred_element_type=jnp.float32)
    o_ref[...] = jnp.maximum(y + b_ref[...], 0.0).astype(o_ref.dtype)


def linear_relu(x, w, b, *, tn, vmem_limit):
    B, K = x.shape
    Kw, N = w.shape
    assert K == Kw and N % tn == 0
    return pl.pallas_call(
        _linear_relu_kernel,
        out_shape=jax.ShapeDtypeStruct((B, N), jnp.bfloat16),
        grid_spec=pltpu.PrefetchScalarGridSpec(
            num_scalar_prefetch=0,
            grid=(N // tn,),
            in_specs=[
                pl.BlockSpec((B, K), lambda j: (0, 0)),    # resident bf16 activations
                pl.BlockSpec((K, tn), lambda j: (0, j)),   # bf16 weight column tile
                pl.BlockSpec((1, tn), lambda j: (0, j)),   # f32 bias tile
            ],
            out_specs=pl.BlockSpec((B, tn), lambda j: (0, j)),
        ),
        compiler_params=pltpu.CompilerParams(
            dimension_semantics=("parallel",),             # shards across TCs on v7x
            vmem_limit_bytes=vmem_limit,
        ),
    )(x, w, b.reshape(1, -1))


# ---------------------------------------------------------------------------
# Fused tail: Linear(9216,128)+ReLU -> Linear(128,10) -> LogSoftmax
# Single grid step: w3 is only ~2.4 MB bf16, so there is nothing to pipeline.
# ---------------------------------------------------------------------------
def _tail_kernel(x_ref, w3_ref, b3_ref, w4_ref, b4_ref, o_ref):
    h = jnp.dot(x_ref[...], w3_ref[...], preferred_element_type=jnp.float32)
    h = jnp.maximum(h + b3_ref[...], 0.0)                        # ReLU(x @ w3 + b3)
    y = jnp.dot(h.astype(jnp.bfloat16), w4_ref[...],
                preferred_element_type=jnp.float32) + b4_ref[...]
    m = jnp.max(y, axis=-1, keepdims=True)
    s = y - m
    lse = jnp.log(jnp.sum(jnp.exp(s), axis=-1, keepdims=True))
    o_ref[...] = s - lse                                         # log_softmax


def linear_relu_linear_logsoftmax(x, w3, b3, w4, b4):
    B, K = x.shape
    Kw3, H = w3.shape
    Hw4, N = w4.shape
    assert K == Kw3 and H == Hw4
    return pl.pallas_call(
        _tail_kernel,
        out_shape=jax.ShapeDtypeStruct((B, N), jnp.float32),
        grid_spec=pltpu.PrefetchScalarGridSpec(
            num_scalar_prefetch=0,
            grid=(1,),
            in_specs=[
                pl.BlockSpec((B, K), lambda i: (0, 0)),    # (B, 9216) bf16 activations
                pl.BlockSpec((K, H), lambda i: (0, 0)),    # w3, fetched once (~2.4 MB)
                pl.BlockSpec((1, H), lambda i: (0, 0)),
                pl.BlockSpec((H, N), lambda i: (0, 0)),    # tiny w4
                pl.BlockSpec((1, N), lambda i: (0, 0)),
            ],
            out_specs=pl.BlockSpec((B, N), lambda i: (0, 0)),
        ),
        compiler_params=pltpu.CompilerParams(
            dimension_semantics=("arbitrary",),
            vmem_limit_bytes=VMEM_LIMIT,
        ),
    )(x, w3, b3.reshape(1, -1), w4, b4.reshape(1, -1))


# ---------------------------------------------------------------------------
# Params / forward / reference
# ---------------------------------------------------------------------------
def init_params(key):
    """PyTorch-Linear-style init; weights stored (in, out), bf16; biases f32.

    w1 is zero-padded along K from 784 to K1_PAD for lane alignment.
    """
    dims = [(784, 8192), (8192, 9216), (9216, 128), (128, 10)]
    params = []
    for i, (fan_in, fan_out) in enumerate(dims):
        kw, kb = jax.random.split(jax.random.fold_in(key, i))
        bound = 1.0 / jnp.sqrt(float(fan_in))
        w = jax.random.uniform(kw, (fan_in, fan_out), jnp.float32, -bound, bound)
        b = jax.random.uniform(kb, (fan_out,), jnp.float32, -bound, bound)
        w = w.astype(jnp.bfloat16)
        if i == 0:
            w = jnp.pad(w, ((0, K1_PAD - fan_in), (0, 0)))  # zero rows: no effect
        params.append((w, b))
    return params


def _flatten_pad(x_nchw):
    B = x_nchw.shape[0]
    x = x_nchw.reshape(B, -1).astype(jnp.bfloat16)          # nn.Flatten -> (B, 784) bf16
    return jnp.pad(x, ((0, 0), (0, K1_PAD - x.shape[1])))   # lane-align K -> (B, 896)


def dnn_forward(x_nchw, params):
    x = _flatten_pad(x_nchw)
    (w1, b1), (w2, b2), (w3, b3), (w4, b4) = params
    h = linear_relu(x, w1, b1, tn=TN1, vmem_limit=VMEM_LIMIT)       # 784 -> 8192, ReLU
    h = linear_relu(h, w2, b2, tn=TN2, vmem_limit=VMEM_LIMIT_L2)    # 8192 -> 9216, ReLU
    # Dropout(0.25), Dropout(0.5): identity in eval mode
    return linear_relu_linear_logsoftmax(h, w3, b3, w4, b4)


def dnn_reference(x_nchw, params):
    x = _flatten_pad(x_nchw)
    (w1, b1), (w2, b2), (w3, b3), (w4, b4) = params

    def dot(a, w):
        return jnp.dot(a.astype(jnp.bfloat16), w,
                       preferred_element_type=jnp.float32)

    h = jnp.maximum(dot(x, w1) + b1, 0.0)
    h = jnp.maximum(dot(h, w2) + b2, 0.0)
    h = jnp.maximum(dot(h, w3) + b3, 0.0)
    y = dot(h, w4) + b4
    return jax.nn.log_softmax(y, axis=1)


if __name__ == "__main__":
    key = jax.random.PRNGKey(0)
    k_x, k_p = jax.random.split(key)

    # MNIST-like input shape implied by Linear(784, ...): (B, 1, 28, 28)
    x = jax.random.normal(k_x, (8, 1, 28, 28), jnp.float32)
    params = init_params(k_p)

    out = dnn_forward(x, params)
    out = jax.block_until_ready(out)

    ref = dnn_reference(x, params)
    assert out.shape == (8, 10)
    assert jnp.allclose(out, ref, atol=5e-3, rtol=5e-3), "mismatch vs reference"

    print("KERNEL_OK")
</pallas_src>

<mosaic_0001>
module attributes {stable_mosaic.version = 11 : i64} {
  func.func @_linear_relu_kernel(%arg0: i32, %arg1: memref<8x896xbf16, #tpu.memory_space<vmem>>, %arg2: memref<896x4096xbf16, #tpu.memory_space<vmem>>, %arg3: memref<1x4096xf32, #tpu.memory_space<vmem>>, %arg4: memref<8x4096xbf16, #tpu.memory_space<vmem>>) attributes {dimension_semantics = [#tpu.dimension_semantics<parallel>], iteration_bounds = array<i64: 2>, scalar_prefetch = 0 : i64, scratch_operands = 0 : i64, tpu.core_type = #tpu.core_type<tc>, window_params = [{pipeline_mode = #tpu.pipeline_mode<synchronous>, transform_indices = @transform_0, window_bounds = array<i64: 8, 896>}, {transform_indices = @transform_1, window_bounds = array<i64: 896, 4096>}, {transform_indices = @transform_2, window_bounds = array<i64: 1, 4096>}, {transform_indices = @transform_3, window_bounds = array<i64: 8, 4096>}]} {
    %c0 = arith.constant 0 : index
    %c0_0 = arith.constant 0 : index
    %0 = vector.load %arg1[%c0, %c0_0] : memref<8x896xbf16, #tpu.memory_space<vmem>>, vector<8x896xbf16>
    %c0_1 = arith.constant 0 : index
    %c0_2 = arith.constant 0 : index
    %1 = vector.load %arg2[%c0_1, %c0_2] : memref<896x4096xbf16, #tpu.memory_space<vmem>>, vector<896x4096xbf16>
    %cst = arith.constant dense<0.000000e+00> : vector<8x4096xf32>
    %2 = tpu.matmul %0, %1, %cst {dimension_numbers = #tpu.dot_dimension_numbers<[1], [0], [0], [1], [0, 0, 1, 1], [], []>} : vector<8x896xbf16>, vector<896x4096xbf16>, vector<8x4096xf32> -> vector<8x4096xf32>
    %c0_3 = arith.constant 0 : index
    %c0_4 = arith.constant 0 : index
    %3 = vector.load %arg3[%c0_3, %c0_4] : memref<1x4096xf32, #tpu.memory_space<vmem>>, vector<1x4096xf32>
    %4 = vector.broadcast %3 : vector<1x4096xf32> to vector<8x4096xf32>
    %5 = arith.addf %2, %4 : vector<8x4096xf32>
    %cst_5 = arith.constant 0.000000e+00 : f32
    %6 = vector.broadcast %cst_5 : f32 to vector<8x4096xf32>
    %7 = arith.maximumf %5, %6 : vector<8x4096xf32>
    %8 = arith.truncf %7 : vector<8x4096xf32> to vector<8x4096xbf16>
    %c0_6 = arith.constant 0 : index
    %c0_7 = arith.constant 0 : index
    %9 = vector.load %arg4[%c0_6, %c0_7] : memref<8x4096xbf16, #tpu.memory_space<vmem>>, vector<8x4096xbf16>
    tpu.vector_store %arg4[%c0_6, %c0_7], %8 {strides = array<i32>} : memref<8x4096xbf16, #tpu.memory_space<vmem>>, vector<8x4096xbf16>,
    return
  }
  func.func @transform_0(%arg0: i32) -> (i32, i32) {
    %c0_i32 = arith.constant 0 : i32
    %c0_i32_0 = arith.constant 0 : i32
    %c0_i32_1 = arith.constant 0 : i32
    return %c0_i32, %c0_i32_0 : i32, i32
  }
  func.func @transform_1(%arg0: i32) -> (i32, i32) {
    %c0_i32 = arith.constant 0 : i32
    %c0_i32_0 = arith.constant 0 : i32
    return %c0_i32, %arg0 : i32, i32
  }
  func.func @transform_2(%arg0: i32) -> (i32, i32) {
    %c0_i32 = arith.constant 0 : i32
    %c0_i32_0 = arith.constant 0 : i32
    return %c0_i32, %arg0 : i32, i32
  }
  func.func @transform_3(%arg0: i32) -> (i32, i32) {
    %c0_i32 = arith.constant 0 : i32
    %c0_i32_0 = arith.constant 0 : i32
    return %c0_i32, %arg0 : i32, i32
  }
}

</mosaic_0001>

<llo_original>
// kernel: tpu_custom_call.1
$region0: #{tpu_custom_call.1}
  #allocation0 [shape = 'u32[]', space=smem, size = 0x4, offset = 0x4, fixed_abs, tag = 'smem constant byte address 0x4 - core index']
  #allocation1 [shape = 'u32[144,128]{1,0:T(1,128)}', space=vmem, size = 0x12000, scoped, tag = 'internal scratch']
  %s0 = inlined_call_operand.hbm [shape: bf16[8,896], index: 0, kind: input, shape index: {}]
  %s1 = inlined_call_operand.hbm [shape: bf16[896,8192], index: 1, kind: input, shape index: {}]
  %s2 = inlined_call_operand.hbm [shape: f32[1,8192], index: 2, kind: input, shape index: {}]
  %s3 = inlined_call_operand.hbm [shape: bf16[8,8192], index: 3, kind: output, shape index: {}]
  %s4 = sld [smem:[#allocation0]]
  $region57: #{tpu_custom_call.1} parent=0
    _
  %s6 = ssub.s32 1, %s4
  %s7 = scalar_select 0, %s6, %s4
  $region1: #{tpu_custom_call.1} parent=0
    #allocation2 [shape = 'u8[14336]{0}', space=vmem, size = 0x3800, scoped, tag = 'input window, operand 0, single buffered']
    #allocation3 [shape = 's32[2]{0}', space=sflag, size = 0x8, scoped, tag = 'scoped memory for tpu_custom_call.1']
    #allocation4 [shape = 's32[2]{0}', space=sflag, size = 0x8, scoped, tag = 'scoped memory for tpu_custom_call.1']
    #allocation5 [shape = 'u8[14680064]{0}', space=vmem, size = 0xe00000, scoped, tag = 'input window, operand 1']
    #allocation6 [shape = 's32[2]{0}', space=sflag, size = 0x8, scoped, tag = 'scoped memory for tpu_custom_call.1']
    #allocation7 [shape = 'u8[32768]{0}', space=vmem, size = 0x8000, scoped, tag = 'input window, operand 2']
    #allocation8 [shape = 'u8[131072]{0}', space=vmem, size = 0x20000, scoped, tag = 'output window, operand 0']
    %8 = vsyncpa [#allocation3], 0
    %9 = vsyncpa [#allocation6], 0
    %s10 = scalar_lea.sflag [#allocation6], 1
    %11 = vsyncpa %s10, 0
    %12 = vsyncpa [#allocation4], 0
    %s13 = scalar_lea.sflag [#allocation4], 1
    %14 = vsyncpa %s13, 0
    loop: start=0, step=1, limit=4
    $region2: #{tpu_custom_call.1} parent=1 // loop_pre_header
      _
    $region3: #{tpu_custom_call.1} parent=1 // loop_header
      %s16 = sphi 0, %s20
      %p17 = scmp.ge.s32.totalorder %s16, 4
      %s24 = sphi 0, %s24
      %s26 = sphi 0, %s24
      %s27 = sphi 0, %s26
      %s41 = sphi 0, %s27
      %s47 = sphi 0, %s49
      %s50 = sphi 0, %s47
      %s51 = sphi 0, %s50
      %s67 = sphi 0, %s51
      %s73 = sphi 0, %s75
      %s76 = sphi 0, %s73
      %s77 = sphi 0, %s76
      %s93 = sphi 0, %s77
      %s99 = sphi 0, %s101
      %s102 = sphi 0, %s99
      %s103 = sphi 0, %s102
      %s119 = sphi 0, %s103
    $region4: #{tpu_custom_call.1} parent=1 // loop_header_branch
      %19 = sbr.rel (%p17) target = $region8
    $region5: #{tpu_custom_call.1} parent=1 // loop_body
      %s21 = ssub.s32 %s16, 1
      %s22 = ssub.s32 %s16, 2
      %s23 = sadd.s32 %s16, 1
      %s25 = sadd.s32 %s24, 1
      %p28 = scmp.eq.s32.totalorder %s16, 1
      %p29 = scmp.ne.s32.totalorder %s24, %s26
      %p30 = scmp.eq.s32.totalorder %s16, 0
      %p31 = por %p29, %p30
      %p32 = scmp.ne.s32.totalorder %s24, %s26
      %p33 = scmp.eq.s32.totalorder %s21, 1
      %p34 = por %p32, %p33
      %p35 = scmp.ne.s32.totalorder %s26, %s27
      %p36 = scmp.eq.s32.totalorder %s21, 0
      %p37 = por %p35, %p36
      %p38 = scmp.ne.s32.totalorder %s26, %s27
      %p39 = scmp.eq.s32.totalorder %s22, 1
      %p40 = por %p38, %p39
      %p42 = scmp.ne.s32.totalorder %s27, %s41
      %p43 = scmp.eq.s32.totalorder %s22, 0
      %p44 = por %p42, %p43
      %s45 = ssub.s32 %s16, %s23
      %p46 = scmp.eq.s32.totalorder %s45, 0
      %s48 = sadd.s32 %s47, 1
      %s49 = scalar_select %p46, %s47, %s48
      %p52 = pneg %p46
      %p53 = scmp.eq.s32.totalorder %s16, 1
      %p54 = por %p52, %p53
      %p55 = scmp.ne.s32.totalorder %s47, %s50
      %p56 = scmp.eq.s32.totalorder %s16, 0
      %p57 = por %p55, %p56
      %p58 = scmp.ne.s32.totalorder %s47, %s50
      %p59 = scmp.eq.s32.totalorder %s21, 1
      %p60 = por %p58, %p59
      %p61 = scmp.ne.s32.totalorder %s50, %s51
      %p62 = scmp.eq.s32.totalorder %s21, 0
      %p63 = por %p61, %p62
      %p64 = scmp.ne.s32.totalorder %s50, %s51
      %p65 = scmp.eq.s32.totalorder %s22, 1
      %p66 = por %p64, %p65
      %p68 = scmp.ne.s32.totalorder %s51, %s67
      %p69 = scmp.eq.s32.totalorder %s22, 0
      %p70 = por %p68, %p69
      %s71 = ssub.s32 %s16, %s23
      %p72 = scmp.eq.s32.totalorder %s71, 0
      %s74 = sadd.s32 %s73, 1
      %s75 = scalar_select %p72, %s73, %s74
      %p78 = pneg %p72
      %p79 = scmp.eq.s32.totalorder %s16, 1
      %p80 = por %p78, %p79
      %p81 = scmp.ne.s32.totalorder %s73, %s76
      %p82 = scmp.eq.s32.totalorder %s16, 0
      %p83 = por %p81, %p82
      %p84 = scmp.ne.s32.totalorder %s73, %s76
      %p85 = scmp.eq.s32.totalorder %s21, 1
      %p86 = por %p84, %p85
      %p87 = scmp.ne.s32.totalorder %s76, %s77
      %p88 = scmp.eq.s32.totalorder %s21, 0
      %p89 = por %p87, %p88
      %p90 = scmp.ne.s32.totalorder %s76, %s77
      %p91 = scmp.eq.s32.totalorder %s22, 1
      %p92 = por %p90, %p91
      %p94 = scmp.ne.s32.totalorder %s77, %s93
      %p95 = scmp.eq.s32.totalorder %s22, 0
      %p96 = por %p94, %p95
      %s97 = ssub.s32 %s16, %s23
      %p98 = scmp.eq.s32.totalorder %s97, 0
      %s100 = sadd.s32 %s99, 1
      %s101 = scalar_select %p98, %s99, %s100
      %p104 = pneg %p98
      %p105 = scmp.eq.s32.totalorder %s16, 1
      %p106 = por %p104, %p105
      %p107 = scmp.ne.s32.totalorder %s99, %s102
      %p108 = scmp.eq.s32.totalorder %s16, 0
      %p109 = por %p107, %p108
      %p110 = scmp.ne.s32.totalorder %s99, %s102
      %p111 = scmp.eq.s32.totalorder %s21, 1
      %p112 = por %p110, %p111
      %p113 = scmp.ne.s32.totalorder %s102, %s103
      %p114 = scmp.eq.s32.totalorder %s21, 0
      %p115 = por %p113, %p114
      %p116 = scmp.ne.s32.totalorder %s102, %s103
      %p117 = scmp.eq.s32.totalorder %s22, 1
      %p118 = por %p116, %p117
      %p120 = scmp.ne.s32.totalorder %s103, %s119
      %p121 = scmp.eq.s32.totalorder %s22, 0
      %p122 = por %p120, %p121
      %p123 = scmp.le.s32.totalorder 1, %s16
      %p124 = scmp.lt.s32.totalorder %s16, 3
      %p125 = pnand %p123, %p124
      %p126 = pneg %p125
      // Predicated region
      $region9: #{tpu_custom_call.1} parent=5 // pred_check
        _
      $region10: #{tpu_custom_call.1} parent=5 // pred_check_branch
        %128 = sbr.rel (%p125) target = $region12
      $region11: #{tpu_custom_call.1} parent=5 // pred_region
        %s129 = ssub.s32 %s16, 1
        // Predicated region
        $region13: #{tpu_custom_call.1} parent=11 // pred_check
          %p130 = pneg %p37
        $region14: #{tpu_custom_call.1} parent=11 // pred_check_branch
          %132 = sbr.rel (%p130) target = $region16
        $region15: #{tpu_custom_call.1} parent=11 // pred_region
          %s134 = ssub.s32 448, 448
          %135 = vsyncadd [#allocation3], %s134
          %s137 = sshll.u32 [#allocation2], 4
          %s138 = int_to_ptr.vmem [resolvable:$true] %s137
          %140 = dma.hbm_to_vmem [thread:$0]  %s0, 448, %s138, [#allocation3]
        $region16: #{tpu_custom_call.1} parent=11 // pred_fallthru
          _
      $region12: #{tpu_custom_call.1} parent=5 // pred_fallthru
        _
      %p141 = scmp.lt.s32.totalorder %s16, 2
      // Predicated region
      $region17: #{tpu_custom_call.1} parent=5 // pred_check
        %p142 = pneg %p141
      $region18: #{tpu_custom_call.1} parent=5 // pred_check_branch
        %144 = sbr.rel (%p142) target = $region20
      $region19: #{tpu_custom_call.1} parent=5 // pred_region
        // Predicated region
        $region21: #{tpu_custom_call.1} parent=19 // pred_check
          %p145 = pneg %p57
        $region22: #{tpu_custom_call.1} parent=19 // pred_check_branch
          %147 = sbr.rel (%p145) target = $region24
        $region23: #{tpu_custom_call.1} parent=19 // pred_region
          %s148 = sand.u32 %s16, 1
          %s149 = scalar_lea.sflag [#allocation6], %s148
          %s150 = sand.u32 %s47, 1
          %s151 = smul.addr %s150, 14336
          %s152 = scalar_lea.vmem [#allocation5], %s151
          %s153 = smul.u32 32, %s16
          %s155 = ssub.s32 229376, 229376
          %156 = vsyncadd %s149, %s155
          %s157 = smul.addr %s153, 64
          %s158 = scalar_lea.hbm %s1, %s157
          %s159 = sshll.u32 %s152, 4
          %s160 = int_to_ptr.vmem [resolvable:$true] %s159
          %165 = dma.hbm_to_vmem [thread:$0]  %s158, 229376, %s160, %s149, 4096, 2048, 128
        $region24: #{tpu_custom_call.1} parent=19 // pred_fallthru
          _
        // Predicated region
        $region25: #{tpu_custom_call.1} parent=19 // pred_check
          %p166 = pneg %p83
        $region26: #{tpu_custom_call.1} parent=19 // pred_check_branch
          %168 = sbr.rel (%p166) target = $region28
        $region27: #{tpu_custom_call.1} parent=19 // pred_region
          %s169 = sand.u32 %s16, 1
          %s170 = scalar_lea.sflag [#allocation6], %s169
          %s171 = sand.u32 %s73, 1
          %s172 = smul.addr %s171, 32
          %s173 = scalar_lea.vmem [#allocation7], %s172
          %s174 = smul.u32 32, %s16
          %s176 = ssub.s32 512, 512
          %177 = vsyncadd %s170, %s176
          %s178 = smul.addr %s174, 16
          %s179 = scalar_lea.hbm %s2, %s178
          %s181 = sshll.u32 %s173, 4
          %s182 = int_to_ptr.vmem [resolvable:$true] %s181
          %184 = dma.hbm_to_vmem [thread:$0]  %s179, 512, %s182, %s170
        $region28: #{tpu_custom_call.1} parent=19 // pred_fallthru
          _
      $region20: #{tpu_custom_call.1} parent=5 // pred_fallthru
        _
      %p185 = scmp.le.s32.totalorder 1, %s16
      %p186 = scmp.lt.s32.totalorder %s16, 3
      %p187 = pnand %p185, %p186
      %p188 = pneg %p187
      // Predicated region
      $region29: #{tpu_custom_call.1} parent=5 // pred_check
        _
      $region30: #{tpu_custom_call.1} parent=5 // pred_check_branch
        %190 = sbr.rel (%p187) target = $region32
      $region31: #{tpu_custom_call.1} parent=5 // pred_region
        %s191 = ssub.s32 %s16, 1
        // Predicated region
        $region33: #{tpu_custom_call.1} parent=31 // pred_check
          %p192 = pneg %p37
        $region34: #{tpu_custom_call.1} parent=31 // pred_check_branch
          %194 = sbr.rel (%p192) target = $region36
        $region35: #{tpu_custom_call.1} parent=31 // pred_region
          %195 = dma.done [#allocation3], 448
        $region36: #{tpu_custom_call.1} parent=31 // pred_fallthru
          _
        %s196 = sand.u32 %s21, 1
        %s197 = scalar_lea.sflag [#allocation6], %s196
        %s198 = sand.u32 %s50, 1
        %s199 = smul.addr %s198, 14336
        %s200 = scalar_lea.vmem [#allocation5], %s199
        // Predicated region
        $region37: #{tpu_custom_call.1} parent=31 // pred_check
          %p201 = pneg %p63
        $region38: #{tpu_custom_call.1} parent=31 // pred_check_branch
          %203 = sbr.rel (%p201) target = $region40
        $region39: #{tpu_custom_call.1} parent=31 // pred_region
          %204 = dma.done %s197, 229376
        $region40: #{tpu_custom_call.1} parent=31 // pred_fallthru
          _
        %s205 = sand.u32 %s21, 1
        %s206 = scalar_lea.sflag [#allocation6], %s205
        %s207 = sand.u32 %s76, 1
        %s208 = smul.addr %s207, 32
        %s209 = scalar_lea.vmem [#allocation7], %s208
        // Predicated region
        $region41: #{tpu_custom_call.1} parent=31 // pred_check
          %p210 = pneg %p89
        $region42: #{tpu_custom_call.1} parent=31 // pred_check_branch
          %212 = sbr.rel (%p210) target = $region44
        $region43: #{tpu_custom_call.1} parent=31 // pred_region
          %213 = dma.done %s206, 512
        $region44: #{tpu_custom_call.1} parent=31 // pred_fallthru
          _
        %p214 = pneg %p37
        %p215 = pneg %p34
        %s216 = sand.u32 %s21, 1
        %s217 = scalar_lea.sflag [#allocation6], %s216
        %s218 = sand.u32 %s50, 1
        %s219 = smul.addr %s218, 14336
        %s220 = scalar_lea.vmem [#allocation5], %s219
        %p221 = pneg %p63
        %p222 = pneg %p60
        %s223 = sand.u32 %s21, 1
        %s224 = scalar_lea.sflag [#allocation6], %s223
        %s225 = sand.u32 %s76, 1
        %s226 = smul.addr %s225, 32
        %s227 = scalar_lea.vmem [#allocation7], %s226
        %p228 = pneg %p89
        %p229 = pneg %p86
        %p230 = pneg %p115
        %p231 = pneg %p112
        %s232 = sand.u32 %s102, 1
        %s233 = scalar_lea.sflag [#allocation4], %s232
        %s234 = sand.u32 %s102, 1
        %s235 = smul.addr %s234, 128
        %s236 = scalar_lea.vmem [#allocation8], %s235
        %s237 = smul.u32 32, %s21
        %s238 = smul.u32 32, %s21
        %s239 = smul.u32 32, %s21
        %v241 = vld [vmem:[#allocation2] sm:$0xff]
        %v242 = vld [vmem:[#allocation2 + $0x8] sm:$0xff]
        %v243 = vld [vmem:[#allocation2 + $0x10] sm:$0xff]
        %v244 = vld [vmem:[#allocation2 + $0x18] sm:$0xf]
        %v245 = vld [vmem:[%s200] sm:$0xff]
        %v246 = vld [vmem:[%s200 + $0x8] sm:$0xff]
        %v247 = vld [vmem:[%s200 + $0x10] sm:$0xff]
        %v248 = vld [vmem:[%s200 + $0x18] sm:$0xff]
        %v249 = vld [vmem:[%s200 + $0x20] sm:$0xff]
        %v250 = vld [vmem:[%s200 + $0x28] sm:$0xff]
        %v251 = vld [vmem:[%s200 + $0x30] sm:$0xff]
        %v252 = vld [vmem:[%s200 + $0x38] sm:$0xff]
        %v253 = vld [vmem:[%s200 + $0x40] sm:$0xff]
        %v254 = vld [vmem:[%s200 + $0x48] sm:$0xff]
        %v255 = vld [vmem:[%s200 + $0x50] sm:$0xff]
        %v256 = vld [vmem:[%s200 + $0x58] sm:$0xff]
        %v257 = vld [vmem:[%s200 + $0x60] sm:$0xff]
        %v258 = vld [vmem:[%s200 + $0x68] sm:$0xff]
        %v259 = vld [vmem:[%s200 + $0x70] sm:$0xff]
        %v260 = vld [vmem:[%s200 + $0x78] sm:$0xff]
        %v261 = vld [vmem:[%s200 + $0x80] sm:$0xff]
        %v262 = vld [vmem:[%s200 + $0x88] sm:$0xff]
        %v263 = vld [vmem:[%s200 + $0x90] sm:$0xff]
        %v264 = vld [vmem:[%s200 + $0x98] sm:$0xff]
        %v265 = vld [vmem:[%s200 + $0xa0] sm:$0xff]
        %v266 = vld [vmem:[%s200 + $0xa8] sm:$0xff]
        %v267 = vld [vmem:[%s200 + $0xb0] sm:$0xff]
        %v268 = vld [vmem:[%s200 + $0xb8] sm:$0xff]
        %v269 = vld [vmem:[%s200 + $0xc0] sm:$0xff]
        %v270 = vld [vmem:[%s200 + $0xc8] sm:$0xff]
        %v271 = vld [vmem:[%s200 + $0xd0] sm:$0xff]
        %v272 = vld [vmem:[%s200 + $0xd8] sm:$0xff]
        %v273 = vld [vmem:[%s200 + $0xe0] sm:$0xff]
        %v274 = vld [vmem:[%s200 + $0xe8] sm:$0xff]
        %v275 = vld [vmem:[%s200 + $0xf0] sm:$0xff]
        %v276 = vld [vmem:[%s200 + $0xf8] sm:$0xff]
        %v277 = vld [vmem:[%s200 + $0x100] sm:$0xff]
        %v278 = vld [vmem:[%s200 + $0x108] sm:$0xff]
        %v279 = vld [vmem:[%s200 + $0x110] sm:$0xff]
        %v280 = vld [vmem:[%s200 + $0x118] sm:$0xff]
        %v281 = vld [vmem:[%s200 + $0x120] sm:$0xff]
        %v282 = vld [vmem:[%s200 + $0x128] sm:$0xff]
        %v283 = vld [vmem:[%s200 + $0x130] sm:$0xff]
        %v284 = vld [vmem:[%s200 + $0x138] sm:$0xff]
        %v285 = vld [vmem:[%s200 + $0x140] sm:$0xff]
        %v286 = vld [vmem:[%s200 + $0x148] sm:$0xff]
        %v287 = vld [vmem:[%s200 + $0x150] sm:$0xff]
        %v288 = vld [vmem:[%s200 + $0x158] sm:$0xff]
        %v289 = vld [vmem:[%s200 + $0x160] sm:$0xff]
        %v290 = vld [vmem:[%s200 + $0x168] sm:$0xff]
        %v291 = vld [vmem:[%s200 + $0x170] sm:$0xff]
        %v292 = vld [vmem:[%s200 + $0x178] sm:$0xff]
        %v293 = vld [vmem:[%s200 + $0x180] sm:$0xff]
        %v294 = vld [vmem:[%s200 + $0x188] sm:$0xff]
        %v295 = vld [vmem:[%s200 + $0x190] sm:$0xff]
        %v296 = vld [vmem:[%s200 + $0x198] sm:$0xff]
        %v297 = vld [vmem:[%s200 + $0x1a0] sm:$0xff]
        %v298 = vld [vmem:[%s200 + $0x1a8] sm:$0xff]
        %v299 = vld [vmem:[%s200 + $0x1b0] sm:$0xff]
        %v300 = vld [vmem:[%s200 + $0x1b8] sm:$0xff]
        %v301 = vld [vmem:[%s200 + $0x1c0] sm:$0xff]
        %v302 = vld [vmem:[%s200 + $0x1c8] sm:$0xff]
        %v303 = vld [vmem:[%s200 + $0x1d0] sm:$0xff]
        %v304 = vld [vmem:[%s200 + $0x1d8] sm:$0xff]
        %v305 = vld [vmem:[%s200 + $0x1e0] sm:$0xff]
        %v306 = vld [vmem:[%s200 + $0x1e8] sm:$0xff]
        %v307 = vld [vmem:[%s200 + $0x1f0] sm:$0xff]
        %v308 = vld [vmem:[%s200 + $0x1f8] sm:$0xff]
        %v309 = vld [vmem:[%s200 + $0x200] sm:$0xff]
        %v310 = vld [vmem:[%s200 + $0x208] sm:$0xff]
        %v311 = vld [vmem:[%s200 + $0x210] sm:$0xff]
        %v312 = vld [vmem:[%s200 + $0x218] sm:$0xff]
        %v313 = vld [vmem:[%s200 + $0x220] sm:$0xff]
        %v314 = vld [vmem:[%s200 + $0x228] sm:$0xff]
        %v315 = vld [vmem:[%s200 + $0x230] sm:$0xff]
        %v316 = vld [vmem:[%s200 + $0x238] sm:$0xff]
        %v317 = vld [vmem:[%s200 + $0x240] sm:$0xff]
        %v318 = vld [vmem:[%s200 + $0x248] sm:$0xff]
        %v319 = vld [vmem:[%s200 + $0x250] sm:$0xff]
        %v320 = vld [vmem:[%s200 + $0x258] sm:$0xff]
        %v321 = vld [vmem:[%s200 + $0x260] sm:$0xff]
        %v322 = vld [vmem:[%s200 + $0x268] sm:$0xff]
        %v323 = vld [vmem:[%s200 + $0x270] sm:$0xff]
        %v324 = vld [vmem:[%s200 + $0x278] sm:$0xff]
        %v325 = vld [vmem:[%s200 + $0x280] sm:$0xff]
        %v326 = vld [vmem:[%s200 + $0x288] sm:$0xff]
        %v327 = vld [vmem:[%s200 + $0x290] sm:$0xff]
        %v328 = vld [vmem:[%s200 + $0x298] sm:$0xff]
        %v329 = vld [vmem:[%s200 + $0x2a0] sm:$0xff]
        %v330 = vld [vmem:[%s200 + $0x2a8] sm:$0xff]
        %v331 = vld [vmem:[%s200 + $0x2b0] sm:$0xff]
        %v332 = vld [vmem:[%s200 + $0x2b8] sm:$0xff]
        %v333 = vld [vmem:[%s200 + $0x2c0] sm:$0xff]
        %v334 = vld [vmem:[%s200 + $0x2c8] sm:$0xff]
        %v335 = vld [vmem:[%s200 + $0x2d0] sm:$0xff]
        %v336 = vld [vmem:[%s200 + $0x2d8] sm:$0xff]
        %v337 = vld [vmem:[%s200 + $0x2e0] sm:$0xff]
        %v338 = vld [vmem:[%s200 + $0x2e8] sm:$0xff]
        %v339 = vld [vmem:[%s200 + $0x2f0] sm:$0xff]
        %v340 = vld [vmem:[%s200 + $0x2f8] sm:$0xff]
        %v341 = vld [vmem:[%s200 + $0x300] sm:$0xff]
        %v342 = vld [vmem:[%s200 + $0x308] sm:$0xff]
        %v343 = vld [vmem:[%s200 + $0x310] sm:$0xff]
        %v344 = vld [vmem:[%s200 + $0x318] sm:$0xff]
        %v345 = vld [vmem:[%s200 + $0x320] sm:$0xff]
        %v346 = vld [vmem:[%s200 + $0x328] sm:$0xff]
        %v347 = vld [vmem:[%s200 + $0x330] sm:$0xff]
        %v348 = vld [vmem:[%s200 + $0x338] sm:$0xff]
        %v349 = vld [vmem:[%s200 + $0x340] sm:$0xff]
        %v350 = vld [vmem:[%s200 + $0x348] sm:$0xff]
        %v351 = vld [vmem:[%s200 + $0x350] sm:$0xff]
        %v352 = vld [vmem:[%s200 + $0x358] sm:$0xff]
        %v353 = vld [vmem:[%s200 + $0x360] sm:$0xff]
        %v354 = vld [vmem:[%s200 + $0x368] sm:$0xff]
        %v355 = vld [vmem:[%s200 + $0x370] sm:$0xff]
        %v356 = vld [vmem:[%s200 + $0x378] sm:$0xff]
        %v357 = vld [vmem:[%s200 + $0x380] sm:$0xff]
        %v358 = vld [vmem:[%s200 + $0x388] sm:$0xff]
        %v359 = vld [vmem:[%s200 + $0x390] sm:$0xff]
        %v360 = vld [vmem:[%s200 + $0x398] sm:$0xff]
        %v361 = vld [vmem:[%s200 + $0x3a0] sm:$0xff]
        %v362 = vld [vmem:[%s200 + $0x3a8] sm:$0xff]
        %v363 = vld [vmem:[%s200 + $0x3b0] sm:$0xff]
        %v364 = vld [vmem:[%s200 + $0x3b8] sm:$0xff]
        %v365 = vld [vmem:[%s200 + $0x3c0] sm:$0xff]
        %v366 = vld [vmem:[%s200 + $0x3c8] sm:$0xff]
        %v367 = vld [vmem:[%s200 + $0x3d0] sm:$0xff]
        %v368 = vld [vmem:[%s200 + $0x3d8] sm:$0xff]
        %v369 = vld [vmem:[%s200 + $0x3e0] sm:$0xff]
        %v370 = vld [vmem:[%s200 + $0x3e8] sm:$0xff]
        %v371 = vld [vmem:[%s200 + $0x3f0] sm:$0xff]
        %v372 = vld [vmem:[%s200 + $0x3f8] sm:$0xff]
        %v373 = vld [vmem:[%s200 + $0x400] sm:$0xff]
        %v374 = vld [vmem:[%s200 + $0x408] sm:$0xff]
        %v375 = vld [vmem:[%s200 + $0x410] sm:$0xff]
        %v376 = vld [vmem:[%s200 + $0x418] sm:$0xff]
        %v377 = vld [vmem:[%s200 + $0x420] sm:$0xff]
        %v378 = vld [vmem:[%s200 + $0x428] sm:$0xff]
        %v379 = vld [vmem:[%s200 + $0x430] sm:$0xff]
        %v380 = vld [vmem:[%s200 + $0x438] sm:$0xff]
        %v381 = vld [vmem:[%s200 + $0x440] sm:$0xff]
        %v382 = vld [vmem:[%s200 + $0x448] sm:$0xff]
        %v383 = vld [vmem:[%s200 + $0x450] sm:$0xff]
        %v384 = vld [vmem:[%s200 + $0x458] sm:$0xff]
        %v385 = vld [vmem:[%s200 + $0x460] sm:$0xff]
        %v386 = vld [vmem:[%s200 + $0x468] sm:$0xff]
        %v387 = vld [vmem:[%s200 + $0x470] sm:$0xff]
        %v388 = vld [vmem:[%s200 + $0x478] sm:$0xff]
        %v389 = vld [vmem:[%s200 + $0x480] sm:$0xff]
        %v390 = vld [vmem:[%s200 + $0x488] sm:$0xff]
        %v391 = vld [vmem:[%s200 + $0x490] sm:$0xff]
        %v392 = vld [vmem:[%s200 + $0x498] sm:$0xff]
        %v393 = vld [vmem:[%s200 + $0x4a0] sm:$0xff]
        %v394 = vld [vmem:[%s200 + $0x4a8] sm:$0xff]
        %v395 = vld [vmem:[%s200 + $0x4b0] sm:$0xff]
        %v396 = vld [vmem:[%s200 + $0x4b8] sm:$0xff]
        %v397 = vld [vmem:[%s200 + $0x4c0] sm:$0xff]
        %v398 = vld [vmem:[%s200 + $0x4c8] sm:$0xff]
        %v399 = vld [vmem:[%s200 + $0x4d0] sm:$0xff]
        %v400 = vld [vmem:[%s200 + $0x4d8] sm:$0xff]
        %v401 = vld [vmem:[%s200 + $0x4e0] sm:$0xff]
        %v402 = vld [vmem:[%s200 + $0x4e8] sm:$0xff]
        %v403 = vld [vmem:[%s200 + $0x4f0] sm:$0xff]
        %v404 = vld [vmem:[%s200 + $0x4f8] sm:$0xff]
        %v405 = vld [vmem:[%s200 + $0x500] sm:$0xff]
        %v406 = vld [vmem:[%s200 + $0x508] sm:$0xff]
        %v407 = vld [vmem:[%s200 + $0x510] sm:$0xff]
        %v408 = vld [vmem:[%s200 + $0x518] sm:$0xff]
        %v409 = vld [vmem:[%s200 + $0x520] sm:$0xff]
        %v410 = vld [vmem:[%s200 + $0x528] sm:$0xff]
        %v411 = vld [vmem:[%s200 + $0x530] sm:$0xff]
        %v412 = vld [vmem:[%s200 + $0x538] sm:$0xff]
        %v413 = vld [vmem:[%s200 + $0x540] sm:$0xff]
        %v414 = vld [vmem:[%s200 + $0x548] sm:$0xff]
        %v415 = vld [vmem:[%s200 + $0x550] sm:$0xff]
        %v416 = vld [vmem:[%s200 + $0x558] sm:$0xff]
        %v417 = vld [vmem:[%s200 + $0x560] sm:$0xff]
        %v418 = vld [vmem:[%s200 + $0x568] sm:$0xff]
        %v419 = vld [vmem:[%s200 + $0x570] sm:$0xff]
        %v420 = vld [vmem:[%s200 + $0x578] sm:$0xff]
        %v421 = vld [vmem:[%s200 + $0x580] sm:$0xff]
        %v422 = vld [vmem:[%s200 + $0x588] sm:$0xff]
        %v423 = vld [vmem:[%s200 + $0x590] sm:$0xff]
        %v424 = vld [vmem:[%s200 + $0x598] sm:$0xff]
        %v425 = vld [vmem:[%s200 + $0x5a0] sm:$0xff]
        %v426 = vld [vmem:[%s200 + $0x5a8] sm:$0xff]
        %v427 = vld [vmem:[%s200 + $0x5b0] sm:$0xff]
        %v428 = vld [vmem:[%s200 + $0x5b8] sm:$0xff]
        %v429 = vld [vmem:[%s200 + $0x5c0] sm:$0xff]
        %v430 = vld [vmem:[%s200 + $0x5c8] sm:$0xff]
        %v431 = vld [vmem:[%s200 + $0x5d0] sm:$0xff]
        %v432 = vld [vmem:[%s200 + $0x5d8] sm:$0xff]
        %v433 = vld [vmem:[%s200 + $0x5e0] sm:$0xff]
        %v434 = vld [vmem:[%s200 + $0x5e8] sm:$0xff]
        %v435 = vld [vmem:[%s200 + $0x5f0] sm:$0xff]
        %v436 = vld [vmem:[%s200 + $0x5f8] sm:$0xff]
        %v437 = vld [vmem:[%s200 + $0x600] sm:$0xff]
        %v438 = vld [vmem:[%s200 + $0x608] sm:$0xff]
        %v439 = vld [vmem:[%s200 + $0x610] sm:$0xff]
        %v440 = vld [vmem:[%s200 + $0x618] sm:$0xff]
        %v441 = vld [vmem:[%s200 + $0x620] sm:$0xff]
        %v442 = vld [vmem:[%s200 + $0x628] sm:$0xff]
        %v443 = vld [vmem:[%s200 + $0x630] sm:$0xff]
        %v444 = vld [vmem:[%s200 + $0x638] sm:$0xff]
        %v445 = vld [vmem:[%s200 + $0x640] sm:$0xff]
        %v446 = vld [vmem:[%s200 + $0x648] sm:$0xff]
        %v447 = vld [vmem:[%s200 + $0x650] sm:$0xff]
        %v448 = vld [vmem:[%s200 + $0x658] sm:$0xff]
        %v449 = vld [vmem:[%s200 + $0x660] sm:$0xff]
        %v450 = vld [vmem:[%s200 + $0x668] sm:$0xff]
        %v451 = vld [vmem:[%s200 + $0x670] sm:$0xff]
        %v452 = vld [vmem:[%s200 + $0x678] sm:$0xff]
        %v453 = vld [vmem:[%s200 + $0x680] sm:$0xff]
        %v454 = vld [vmem:[%s200 + $0x688] sm:$0xff]
        %v455 = vld [vmem:[%s200 + $0x690] sm:$0xff]
        %v456 = vld [vmem:[%s200 + $0x698] sm:$0xff]
        %v457 = vld [vmem:[%s200 + $0x6a0] sm:$0xff]
        %v458 = vld [vmem:[%s200 + $0x6a8] sm:$0xff]
        %v459 = vld [vmem:[%s200 + $0x6b0] sm:$0xff]
        %v460 = vld [vmem:[%s200 + $0x6b8] sm:$0xff]
        %v461 = vld [vmem:[%s200 + $0x6c0] sm:$0xff]
        %v462 = vld [vmem:[%s200 + $0x6c8] sm:$0xff]
        %v463 = vld [vmem:[%s200 + $0x6d0] sm:$0xff]
        %v464 = vld [vmem:[%s200 + $0x6d8] sm:$0xff]
        %v465 = vld [vmem:[%s200 + $0x6e0] sm:$0xff]
        %v466 = vld [vmem:[%s200 + $0x6e8] sm:$0xff]
        %v467 = vld [vmem:[%s200 + $0x6f0] sm:$0xff]
        %v468 = vld [vmem:[%s200 + $0x6f8] sm:$0xff]
        %v469 = vld [vmem:[%s200 + $0x700] sm:$0xff]
        %v470 = vld [vmem:[%s200 + $0x708] sm:$0xff]
        %v471 = vld [vmem:[%s200 + $0x710] sm:$0xff]
        %v472 = vld [vmem:[%s200 + $0x718] sm:$0xff]
        %v473 = vld [vmem:[%s200 + $0x720] sm:$0xff]
        %v474 = vld [vmem:[%s200 + $0x728] sm:$0xff]
        %v475 = vld [vmem:[%s200 + $0x730] sm:$0xff]
        %v476 = vld [vmem:[%s200 + $0x738] sm:$0xff]
        %v477 = vld [vmem:[%s200 + $0x740] sm:$0xff]
        %v478 = vld [vmem:[%s200 + $0x748] sm:$0xff]
        %v479 = vld [vmem:[%s200 + $0x750] sm:$0xff]
        %v480 = vld [vmem:[%s200 + $0x758] sm:$0xff]
        %v481 = vld [vmem:[%s200 + $0x760] sm:$0xff]
        %v482 = vld [vmem:[%s200 + $0x768] sm:$0xff]
        %v483 = vld [vmem:[%s200 + $0x770] sm:$0xff]
        %v484 = vld [vmem:[%s200 + $0x778] sm:$0xff]
        %v485 = vld [vmem:[%s200 + $0x780] sm:$0xff]
        %v486 = vld [vmem:[%s200 + $0x788] sm:$0xff]
        %v487 = vld [vmem:[%s200 + $0x790] sm:$0xff]
        %v488 = vld [vmem:[%s200 + $0x798] sm:$0xff]
        %v489 = vld [vmem:[%s200 + $0x7a0] sm:$0xff]
        %v490 = vld [vmem:[%s200 + $0x7a8] sm:$0xff]
        %v491 = vld [vmem:[%s200 + $0x7b0] sm:$0xff]
        %v492 = vld [vmem:[%s200 + $0x7b8] sm:$0xff]
        %v493 = vld [vmem:[%s200 + $0x7c0] sm:$0xff]
        %v494 = vld [vmem:[%s200 + $0x7c8] sm:$0xff]
        %v495 = vld [vmem:[%s200 + $0x7d0] sm:$0xff]
        %v496 = vld [vmem:[%s200 + $0x7d8] sm:$0xff]
        %v497 = vld [vmem:[%s200 + $0x7e0] sm:$0xff]
        %v498 = vld [vmem:[%s200 + $0x7e8] sm:$0xff]
        %v499 = vld [vmem:[%s200 + $0x7f0] sm:$0xff]
        %v500 = vld [vmem:[%s200 + $0x7f8] sm:$0xff]
        %v501 = vld [vmem:[%s200 + $0x800] sm:$0xff]
        %v502 = vld [vmem:[%s200 + $0x808] sm:$0xff]
        %v503 = vld [vmem:[%s200 + $0x810] sm:$0xff]
        %v504 = vld [vmem:[%s200 + $0x818] sm:$0xff]
        %v505 = vld [vmem:[%s200 + $0x820] sm:$0xff]
        %v506 = vld [vmem:[%s200 + $0x828] sm:$0xff]
        %v507 = vld [vmem:[%s200 + $0x830] sm:$0xff]
        %v508 = vld [vmem:[%s200 + $0x838] sm:$0xff]
        %v509 = vld [vmem:[%s200 + $0x840] sm:$0xff]
        %v510 = vld [vmem:[%s200 + $0x848] sm:$0xff]
        %v511 = vld [vmem:[%s200 + $0x850] sm:$0xff]
        %v512 = vld [vmem:[%s200 + $0x858] sm:$0xff]
        %v513 = vld [vmem:[%s200 + $0x860] sm:$0xff]
        %v514 = vld [vmem:[%s200 + $0x868] sm:$0xff]
        %v515 = vld [vmem:[%s200 + $0x870] sm:$0xff]
        %v516 = vld [vmem:[%s200 + $0x878] sm:$0xff]
        %v517 = vld [vmem:[%s200 + $0x880] sm:$0xff]
        %v518 = vld [vmem:[%s200 + $0x888] sm:$0xff]
        %v519 = vld [vmem:[%s200 + $0x890] sm:$0xff]
        %v520 = vld [vmem:[%s200 + $0x898] sm:$0xff]
        %v521 = vld [vmem:[%s200 + $0x8a0] sm:$0xff]
        %v522 = vld [vmem:[%s200 + $0x8a8] sm:$0xff]
        %v523 = vld [vmem:[%s200 + $0x8b0] sm:$0xff]
        %v524 = vld [vmem:[%s200 + $0x8b8] sm:$0xff]
        %v525 = vld [vmem:[%s200 + $0x8c0] sm:$0xff]
        %v526 = vld [vmem:[%s200 + $0x8c8] sm:$0xff]
        %v527 = vld [vmem:[%s200 + $0x8d0] sm:$0xff]
        %v528 = vld [vmem:[%s200 + $0x8d8] sm:$0xff]
        %v529 = vld [vmem:[%s200 + $0x8e0] sm:$0xff]
        %v530 = vld [vmem:[%s200 + $0x8e8] sm:$0xff]
        %v531 = vld [vmem:[%s200 + $0x8f0] sm:$0xff]
        %v532 = vld [vmem:[%s200 + $0x8f8] sm:$0xff]
        %v533 = vld [vmem:[%s200 + $0x900] sm:$0xff]
        %v534 = vld [vmem:[%s200 + $0x908] sm:$0xff]
        %v535 = vld [vmem:[%s200 + $0x910] sm:$0xff]
        %v536 = vld [vmem:[%s200 + $0x918] sm:$0xff]
        %v537 = vld [vmem:[%s200 + $0x920] sm:$0xff]
        %v538 = vld [vmem:[%s200 + $0x928] sm:$0xff]
        %v539 = vld [vmem:[%s200 + $0x930] sm:$0xff]
        %v540 = vld [vmem:[%s200 + $0x938] sm:$0xff]
        %v541 = vld [vmem:[%s200 + $0x940] sm:$0xff]
        %v542 = vld [vmem:[%s200 + $0x948] sm:$0xff]
        %v543 = vld [vmem:[%s200 + $0x950] sm:$0xff]
        %v544 = vld [vmem:[%s200 + $0x958] sm:$0xff]
        %v545 = vld [vmem:[%s200 + $0x960] sm:$0xff]
        %v546 = vld [vmem:[%s200 + $0x968] sm:$0xff]
        %v547 = vld [vmem:[%s200 + $0x970] sm:$0xff]
        %v548 = vld [vmem:[%s200 + $0x978] sm:$0xff]
        %v549 = vld [vmem:[%s200 + $0x980] sm:$0xff]
        %v550 = vld [vmem:[%s200 + $0x988] sm:$0xff]
        %v551 = vld [vmem:[%s200 + $0x990] sm:$0xff]
        %v552 = vld [vmem:[%s200 + $0x998] sm:$0xff]
        %v553 = vld [vmem:[%s200 + $0x9a0] sm:$0xff]
        %v554 = vld [vmem:[%s200 + $0x9a8] sm:$0xff]
        %v555 = vld [vmem:[%s200 + $0x9b0] sm:$0xff]
        %v556 = vld [vmem:[%s200 + $0x9b8] sm:$0xff]
        %v557 = vld [vmem:[%s200 + $0x9c0] sm:$0xff]
        %v558 = vld [vmem:[%s200 + $0x9c8] sm:$0xff]
        %v559 = vld [vmem:[%s200 + $0x9d0] sm:$0xff]
        %v560 = vld [vmem:[%s200 + $0x9d8] sm:$0xff]
        %v561 = vld [vmem:[%s200 + $0x9e0] sm:$0xff]
        %v562 = vld [vmem:[%s200 + $0x9e8] sm:$0xff]
        %v563 = vld [vmem:[%s200 + $0x9f0] sm:$0xff]
        %v564 = vld [vmem:[%s200 + $0x9f8] sm:$0xff]
        %v565 = vld [vmem:[%s200 + $0xa00] sm:$0xff]
        %v566 = vld [vmem:[%s200 + $0xa08] sm:$0xff]
        %v567 = vld [vmem:[%s200 + $0xa10] sm:$0xff]
        %v568 = vld [vmem:[%s200 + $0xa18] sm:$0xff]
        %v569 = vld [vmem:[%s200 + $0xa20] sm:$0xff]
        %v570 = vld [vmem:[%s200 + $0xa28] sm:$0xff]
        %v571 = vld [vmem:[%s200 + $0xa30] sm:$0xff]
        %v572 = vld [vmem:[%s200 + $0xa38] sm:$0xff]
        %v573 = vld [vmem:[%s200 + $0xa40] sm:$0xff]
        %v574 = vld [vmem:[%s200 + $0xa48] sm:$0xff]
        %v575 = vld [vmem:[%s200 + $0xa50] sm:$0xff]
        %v576 = vld [vmem:[%s200 + $0xa58] sm:$0xff]
        %v577 = vld [vmem:[%s200 + $0xa60] sm:$0xff]
        %v578 = vld [vmem:[%s200 + $0xa68] sm:$0xff]
        %v579 = vld [vmem:[%s200 + $0xa70] sm:$0xff]
        %v580 = vld [vmem:[%s200 + $0xa78] sm:$0xff]
        %v581 = vld [vmem:[%s200 + $0xa80] sm:$0xff]
        %v582 = vld [vmem:[%s200 + $0xa88] sm:$0xff]
        %v583 = vld [vmem:[%s200 + $0xa90] sm:$0xff]
        %v584 = vld [vmem:[%s200 + $0xa98] sm:$0xff]
        %v585 = vld [vmem:[%s200 + $0xaa0] sm:$0xff]
        %v586 = vld [vmem:[%s200 + $0xaa8] sm:$0xff]
        %v587 = vld [vmem:[%s200 + $0xab0] sm:$0xff]
        %v588 = vld [vmem:[%s200 + $0xab8] sm:$0xff]
        %v589 = vld [vmem:[%s200 + $0xac0] sm:$0xff]
        %v590 = vld [vmem:[%s200 + $0xac8] sm:$0xff]
        %v591 = vld [vmem:[%s200 + $0xad0] sm:$0xff]
        %v592 = vld [vmem:[%s200 + $0xad8] sm:$0xff]
        %v593 = vld [vmem:[%s200 + $0xae0] sm:$0xff]
        %v594 = vld [vmem:[%s200 + $0xae8] sm:$0xff]
        %v595 = vld [vmem:[%s200 + $0xaf0] sm:$0xff]
        %v596 = vld [vmem:[%s200 + $0xaf8] sm:$0xff]
        %v597 = vld [vmem:[%s200 + $0xb00] sm:$0xff]
        %v598 = vld [vmem:[%s200 + $0xb08] sm:$0xff]
        %v599 = vld [vmem:[%s200 + $0xb10] sm:$0xff]
        %v600 = vld [vmem:[%s200 + $0xb18] sm:$0xff]
        %v601 = vld [vmem:[%s200 + $0xb20] sm:$0xff]
        %v602 = vld [vmem:[%s200 + $0xb28] sm:$0xff]
        %v603 = vld [vmem:[%s200 + $0xb30] sm:$0xff]
        %v604 = vld [vmem:[%s200 + $0xb38] sm:$0xff]
        %v605 = vld [vmem:[%s200 + $0xb40] sm:$0xff]
        %v606 = vld [vmem:[%s200 + $0xb48] sm:$0xff]
        %v607 = vld [vmem:[%s200 + $0xb50] sm:$0xff]
        %v608 = vld [vmem:[%s200 + $0xb58] sm:$0xff]
        %v609 = vld [vmem:[%s200 + $0xb60] sm:$0xff]
        %v610 = vld [vmem:[%s200 + $0xb68] sm:$0xff]
        %v611 = vld [vmem:[%s200 + $0xb70] sm:$0xff]
        %v612 = vld [vmem:[%s200 + $0xb78] sm:$0xff]
        %v613 = vld [vmem:[%s200 + $0xb80] sm:$0xff]
        %v614 = vld [vmem:[%s200 + $0xb88] sm:$0xff]
        %v615 = vld [vmem:[%s200 + $0xb90] sm:$0xff]
        %v616 = vld [vmem:[%s200 + $0xb98] sm:$0xff]
        %v617 = vld [vmem:[%s200 + $0xba0] sm:$0xff]
        %v618 = vld [vmem:[%s200 + $0xba8] sm:$0xff]
        %v619 = vld [vmem:[%s200 + $0xbb0] sm:$0xff]
        %v620 = vld [vmem:[%s200 + $0xbb8] sm:$0xff]
        %v621 = vld [vmem:[%s200 + $0xbc0] sm:$0xff]
        %v622 = vld [vmem:[%s200 + $0xbc8] sm:$0xff]
        %v623 = vld [vmem:[%s200 + $0xbd0] sm:$0xff]
        %v624 = vld [vmem:[%s200 + $0xbd8] sm:$0xff]
        %v625 = vld [vmem:[%s200 + $0xbe0] sm:$0xff]
        %v626 = vld [vmem:[%s200 + $0xbe8] sm:$0xff]
        %v627 = vld [vmem:[%s200 + $0xbf0] sm:$0xff]
        %v628 = vld [vmem:[%s200 + $0xbf8] sm:$0xff]
        %v629 = vld [vmem:[%s200 + $0xc00] sm:$0xff]
        %v630 = vld [vmem:[%s200 + $0xc08] sm:$0xff]
        %v631 = vld [vmem:[%s200 + $0xc10] sm:$0xff]
        %v632 = vld [vmem:[%s200 + $0xc18] sm:$0xff]
        %v633 = vld [vmem:[%s200 + $0xc20] sm:$0xff]
        %v634 = vld [vmem:[%s200 + $0xc28] sm:$0xff]
        %v635 = vld [vmem:[%s200 + $0xc30] sm:$0xff]
        %v636 = vld [vmem:[%s200 + $0xc38] sm:$0xff]
        %v637 = vld [vmem:[%s200 + $0xc40] sm:$0xff]
        %v638 = vld [vmem:[%s200 + $0xc48] sm:$0xff]
        %v639 = vld [vmem:[%s200 + $0xc50] sm:$0xff]
        %v640 = vld [vmem:[%s200 + $0xc58] sm:$0xff]
        %v641 = vld [vmem:[%s200 + $0xc60] sm:$0xff]
        %v642 = vld [vmem:[%s200 + $0xc68] sm:$0xff]
        %v643 = vld [vmem:[%s200 + $0xc70] sm:$0xff]
        %v644 = vld [vmem:[%s200 + $0xc78] sm:$0xff]
        %v645 = vld [vmem:[%s200 + $0xc80] sm:$0xff]
        %v646 = vld [vmem:[%s200 + $0xc88] sm:$0xff]
        %v647 = vld [vmem:[%s200 + $0xc90] sm:$0xff]
        %v648 = vld [vmem:[%s200 + $0xc98] sm:$0xff]
        %v649 = vld [vmem:[%s200 + $0xca0] sm:$0xff]
        %v650 = vld [vmem:[%s200 + $0xca8] sm:$0xff]
        %v651 = vld [vmem:[%s200 + $0xcb0] sm:$0xff]
        %v652 = vld [vmem:[%s200 + $0xcb8] sm:$0xff]
        %v653 = vld [vmem:[%s200 + $0xcc0] sm:$0xff]
        %v654 = vld [vmem:[%s200 + $0xcc8] sm:$0xff]
        %v655 = vld [vmem:[%s200 + $0xcd0] sm:$0xff]
        %v656 = vld [vmem:[%s200 + $0xcd8] sm:$0xff]
        %v657 = vld [vmem:[%s200 + $0xce0] sm:$0xff]
        %v658 = vld [vmem:[%s200 + $0xce8] sm:$0xff]
        %v659 = vld [vmem:[%s200 + $0xcf0] sm:$0xff]
        %v660 = vld [vmem:[%s200 + $0xcf8] sm:$0xff]
        %v661 = vld [vmem:[%s200 + $0xd00] sm:$0xff]
        %v662 = vld [vmem:[%s200 + $0xd08] sm:$0xff]
        %v663 = vld [vmem:[%s200 + $0xd10] sm:$0xff]
        %v664 = vld [vmem:[%s200 + $0xd18] sm:$0xff]
        %v665 = vld [vmem:[%s200 + $0xd20] sm:$0xff]
        %v666 = vld [vmem:[%s200 + $0xd28] sm:$0xff]
        %v667 = vld [vmem:[%s200 + $0xd30] sm:$0xff]
        %v668 = vld [vmem:[%s200 + $0xd38] sm:$0xff]
        %v669 = vld [vmem:[%s200 + $0xd40] sm:$0xff]
        %v670 = vld [vmem:[%s200 + $0xd48] sm:$0xff]
        %v671 = vld [vmem:[%s200 + $0xd50] sm:$0xff]
        %v672 = vld [vmem:[%s200 + $0xd58] sm:$0xff]
        %v673 = vld [vmem:[%s200 + $0xd60] sm:$0xff]
        %v674 = vld [vmem:[%s200 + $0xd68] sm:$0xff]
        %v675 = vld [vmem:[%s200 + $0xd70] sm:$0xff]
        %v676 = vld [vmem:[%s200 + $0xd78] sm:$0xff]
        %v677 = vld [vmem:[%s200 + $0xd80] sm:$0xff]
        %v678 = vld [vmem:[%s200 + $0xd88] sm:$0xff]
        %v679 = vld [vmem:[%s200 + $0xd90] sm:$0xff]
        %v680 = vld [vmem:[%s200 + $0xd98] sm:$0xff]
        %v681 = vld [vmem:[%s200 + $0xda0] sm:$0xff]
        %v682 = vld [vmem:[%s200 + $0xda8] sm:$0xff]
        %v683 = vld [vmem:[%s200 + $0xdb0] sm:$0xff]
        %v684 = vld [vmem:[%s200 + $0xdb8] sm:$0xff]
        %v685 = vld [vmem:[%s200 + $0xdc0] sm:$0xff]
        %v686 = vld [vmem:[%s200 + $0xdc8] sm:$0xff]
        %v687 = vld [vmem:[%s200 + $0xdd0] sm:$0xff]
        %v688 = vld [vmem:[%s200 + $0xdd8] sm:$0xff]
        %v689 = vld [vmem:[%s200 + $0xde0] sm:$0xff]
        %v690 = vld [vmem:[%s200 + $0xde8] sm:$0xff]
        %v691 = vld [vmem:[%s200 + $0xdf0] sm:$0xff]
        %v692 = vld [vmem:[%s200 + $0xdf8] sm:$0xff]
        %v693 = vld [vmem:[%s200 + $0xe00] sm:$0xff]
        %v694 = vld [vmem:[%s200 + $0xe08] sm:$0xff]
        %v695 = vld [vmem:[%s200 + $0xe10] sm:$0xff]
        %v696 = vld [vmem:[%s200 + $0xe18] sm:$0xff]
        %v697 = vld [vmem:[%s200 + $0xe20] sm:$0xff]
        %v698 = vld [vmem:[%s200 + $0xe28] sm:$0xff]
        %v699 = vld [vmem:[%s200 + $0xe30] sm:$0xff]
        %v700 = vld [vmem:[%s200 + $0xe38] sm:$0xff]
        %v701 = vld [vmem:[%s200 + $0xe40] sm:$0xff]
        %v702 = vld [vmem:[%s200 + $0xe48] sm:$0xff]
        %v703 = vld [vmem:[%s200 + $0xe50] sm:$0xff]
        %v704 = vld [vmem:[%s200 + $0xe58] sm:$0xff]
        %v705 = vld [vmem:[%s200 + $0xe60] sm:$0xff]
        %v706 = vld [vmem:[%s200 + $0xe68] sm:$0xff]
        %v707 = vld [vmem:[%s200 + $0xe70] sm:$0xff]
        %v708 = vld [vmem:[%s200 + $0xe78] sm:$0xff]
        %v709 = vld [vmem:[%s200 + $0xe80] sm:$0xff]
        %v710 = vld [vmem:[%s200 + $0xe88] sm:$0xff]
        %v711 = vld [vmem:[%s200 + $0xe90] sm:$0xff]
        %v712 = vld [vmem:[%s200 + $0xe98] sm:$0xff]
        %v713 = vld [vmem:[%s200 + $0xea0] sm:$0xff]
        %v714 = vld [vmem:[%s200 + $0xea8] sm:$0xff]
        %v715 = vld [vmem:[%s200 + $0xeb0] sm:$0xff]
        %v716 = vld [vmem:[%s200 + $0xeb8] sm:$0xff]
        %v717 = vld [vmem:[%s200 + $0xec0] sm:$0xff]
        %v718 = vld [vmem:[%s200 + $0xec8] sm:$0xff]
        %v719 = vld [vmem:[%s200 + $0xed0] sm:$0xff]
        %v720 = vld [vmem:[%s200 + $0xed8] sm:$0xff]
        %v721 = vld [vmem:[%s200 + $0xee0] sm:$0xff]
        %v722 = vld [vmem:[%s200 + $0xee8] sm:$0xff]
        %v723 = vld [vmem:[%s200 + $0xef0] sm:$0xff]
        %v724 = vld [vmem:[%s200 + $0xef8] sm:$0xff]
        %v725 = vld [vmem:[%s200 + $0xf00] sm:$0xff]
        %v726 = vld [vmem:[%s200 + $0xf08] sm:$0xff]
        %v727 = vld [vmem:[%s200 + $0xf10] sm:$0xff]
        %v728 = vld [vmem:[%s200 + $0xf18] sm:$0xff]
        %v729 = vld [vmem:[%s200 + $0xf20] sm:$0xff]
        %v730 = vld [vmem:[%s200 + $0xf28] sm:$0xff]
        %v731 = vld [vmem:[%s200 + $0xf30] sm:$0xff]
        %v732 = vld [vmem:[%s200 + $0xf38] sm:$0xff]
        %v733 = vld [vmem:[%s200 + $0xf40] sm:$0xff]
        %v734 = vld [vmem:[%s200 + $0xf48] sm:$0xff]
        %v735 = vld [vmem:[%s200 + $0xf50] sm:$0xff]
        %v736 = vld [vmem:[%s200 + $0xf58] sm:$0xff]
        %v737 = vld [vmem:[%s200 + $0xf60] sm:$0xff]
        %v738 = vld [vmem:[%s200 + $0xf68] sm:$0xff]
        %v739 = vld [vmem:[%s200 + $0xf70] sm:$0xff]
        %v740 = vld [vmem:[%s200 + $0xf78] sm:$0xff]
        %v741 = vld [vmem:[%s200 + $0xf80] sm:$0xff]
        %v742 = vld [vmem:[%s200 + $0xf88] sm:$0xff]
        %v743 = vld [vmem:[%s200 + $0xf90] sm:$0xff]
        %v744 = vld [vmem:[%s200 + $0xf98] sm:$0xff]
        %v745 = vld [vmem:[%s200 + $0xfa0] sm:$0xff]
        %v746 = vld [vmem:[%s200 + $0xfa8] sm:$0xff]
        %v747 = vld [vmem:[%s200 + $0xfb0] sm:$0xff]
        %v748 = vld [vmem:[%s200 + $0xfb8] sm:$0xff]
        %v749 = vld [vmem:[%s200 + $0xfc0] sm:$0xff]
        %v750 = vld [vmem:[%s200 + $0xfc8] sm:$0xff]
        %v751 = vld [vmem:[%s200 + $0xfd0] sm:$0xff]
        %v752 = vld [vmem:[%s200 + $0xfd8] sm:$0xff]
        %v753 = vld [vmem:[%s200 + $0xfe0] sm:$0xff]
        %v754 = vld [vmem:[%s200 + $0xfe8] sm:$0xff]
        %v755 = vld [vmem:[%s200 + $0xff0] sm:$0xff]
        %v756 = vld [vmem:[%s200 + $0xff8] sm:$0xff]
        %v757 = vld [vmem:[%s200 + $0x1000] sm:$0xff]
        %v758 = vld [vmem:[%s200 + $0x1008] sm:$0xff]
        %v759 = vld [vmem:[%s200 + $0x1010] sm:$0xff]
        %v760 = vld [vmem:[%s200 + $0x1018] sm:$0xff]
        %v761 = vld [vmem:[%s200 + $0x1020] sm:$0xff]
        %v762 = vld [vmem:[%s200 + $0x1028] sm:$0xff]
        %v763 = vld [vmem:[%s200 + $0x1030] sm:$0xff]
        %v764 = vld [vmem:[%s200 + $0x1038] sm:$0xff]
        %v765 = vld [vmem:[%s200 + $0x1040] sm:$0xff]
        %v766 = vld [vmem:[%s200 + $0x1048] sm:$0xff]
        %v767 = vld [vmem:[%s200 + $0x1050] sm:$0xff]
        %v768 = vld [vmem:[%s200 + $0x1058] sm:$0xff]
        %v769 = vld [vmem:[%s200 + $0x1060] sm:$0xff]
        %v770 = vld [vmem:[%s200 + $0x1068] sm:$0xff]
        %v771 = vld [vmem:[%s200 + $0x1070] sm:$0xff]
        %v772 = vld [vmem:[%s200 + $0x1078] sm:$0xff]
        %v773 = vld [vmem:[%s200 + $0x1080] sm:$0xff]
        %v774 = vld [vmem:[%s200 + $0x1088] sm:$0xff]
        %v775 = vld [vmem:[%s200 + $0x1090] sm:$0xff]
        %v776 = vld [vmem:[%s200 + $0x1098] sm:$0xff]
        %v777 = vld [vmem:[%s200 + $0x10a0] sm:$0xff]
        %v778 = vld [vmem:[%s200 + $0x10a8] sm:$0xff]
        %v779 = vld [vmem:[%s200 + $0x10b0] sm:$0xff]
        %v780 = vld [vmem:[%s200 + $0x10b8] sm:$0xff]
        %v781 = vld [vmem:[%s200 + $0x10c0] sm:$0xff]
        %v782 = vld [vmem:[%s200 + $0x10c8] sm:$0xff]
        %v783 = vld [vmem:[%s200 + $0x10d0] sm:$0xff]
        %v784 = vld [vmem:[%s200 + $0x10d8] sm:$0xff]
        %v785 = vld [vmem:[%s200 + $0x10e0] sm:$0xff]
        %v786 = vld [vmem:[%s200 + $0x10e8] sm:$0xff]
        %v787 = vld [vmem:[%s200 + $0x10f0] sm:$0xff]
        %v788 = vld [vmem:[%s200 + $0x10f8] sm:$0xff]
        %v789 = vld [vmem:[%s200 + $0x1100] sm:$0xff]
        %v790 = vld [vmem:[%s200 + $0x1108] sm:$0xff]
        %v791 = vld [vmem:[%s200 + $0x1110] sm:$0xff]
        %v792 = vld [vmem:[%s200 + $0x1118] sm:$0xff]
        %v793 = vld [vmem:[%s200 + $0x1120] sm:$0xff]
        %v794 = vld [vmem:[%s200 + $0x1128] sm:$0xff]
        %v795 = vld [vmem:[%s200 + $0x1130] sm:$0xff]
        %v796 = vld [vmem:[%s200 + $0x1138] sm:$0xff]
        %v797 = vld [vmem:[%s200 + $0x1140] sm:$0xff]
        %v798 = vld [vmem:[%s200 + $0x1148] sm:$0xff]
        %v799 = vld [vmem:[%s200 + $0x1150] sm:$0xff]
        %v800 = vld [vmem:[%s200 + $0x1158] sm:$0xff]
        %v801 = vld [vmem:[%s200 + $0x1160] sm:$0xff]
        %v802 = vld [vmem:[%s200 + $0x1168] sm:$0xff]
        %v803 = vld [vmem:[%s200 + $0x1170] sm:$0xff]
        %v804 = vld [vmem:[%s200 + $0x1178] sm:$0xff]
        %v805 = vld [vmem:[%s200 + $0x1180] sm:$0xff]
        %v806 = vld [vmem:[%s200 + $0x1188] sm:$0xff]
        %v807 = vld [vmem:[%s200 + $0x1190] sm:$0xff]
        %v808 = vld [vmem:[%s200 + $0x1198] sm:$0xff]
        %v809 = vld [vmem:[%s200 + $0x11a0] sm:$0xff]
        %v810 = vld [vmem:[%s200 + $0x11a8] sm:$0xff]
        %v811 = vld [vmem:[%s200 + $0x11b0] sm:$0xff]
        %v812 = vld [vmem:[%s200 + $0x11b8] sm:$0xff]
        %v813 = vld [vmem:[%s200 + $0x11c0] sm:$0xff]
        %v814 = vld [vmem:[%s200 + $0x11c8] sm:$0xff]
        %v815 = vld [vmem:[%s200 + $0x11d0] sm:$0xff]
        %v816 = vld [vmem:[%s200 + $0x11d8] sm:$0xff]
        %v817 = vld [vmem:[%s200 + $0x11e0] sm:$0xff]
        %v818 = vld [vmem:[%s200 + $0x11e8] sm:$0xff]
        %v819 = vld [vmem:[%s200 + $0x11f0] sm:$0xff]
        %v820 = vld [vmem:[%s200 + $0x11f8] sm:$0xff]
        %v821 = vld [vmem:[%s200 + $0x1200] sm:$0xff]
        %v822 = vld [vmem:[%s200 + $0x1208] sm:$0xff]
        %v823 = vld [vmem:[%s200 + $0x1210] sm:$0xff]
        %v824 = vld [vmem:[%s200 + $0x1218] sm:$0xff]
        %v825 = vld [vmem:[%s200 + $0x1220] sm:$0xff]
        %v826 = vld [vmem:[%s200 + $0x1228] sm:$0xff]
        %v827 = vld [vmem:[%s200 + $0x1230] sm:$0xff]
        %v828 = vld [vmem:[%s200 + $0x1238] sm:$0xff]
        %v829 = vld [vmem:[%s200 + $0x1240] sm:$0xff]
        %v830 = vld [vmem:[%s200 + $0x1248] sm:$0xff]
        %v831 = vld [vmem:[%s200 + $0x1250] sm:$0xff]
        %v832 = vld [vmem:[%s200 + $0x1258] sm:$0xff]
        %v833 = vld [vmem:[%s200 + $0x1260] sm:$0xff]
        %v834 = vld [vmem:[%s200 + $0x1268] sm:$0xff]
        %v835 = vld [vmem:[%s200 + $0x1270] sm:$0xff]
        %v836 = vld [vmem:[%s200 + $0x1278] sm:$0xff]
        %v837 = vld [vmem:[%s200 + $0x1280] sm:$0xff]
        %v838 = vld [vmem:[%s200 + $0x1288] sm:$0xff]
        %v839 = vld [vmem:[%s200 + $0x1290] sm:$0xff]
        %v840 = vld [vmem:[%s200 + $0x1298] sm:$0xff]
        %v841 = vld [vmem:[%s200 + $0x12a0] sm:$0xff]
        %v842 = vld [vmem:[%s200 + $0x12a8] sm:$0xff]
        %v843 = vld [vmem:[%s200 + $0x12b0] sm:$0xff]
        %v844 = vld [vmem:[%s200 + $0x12b8] sm:$0xff]
        %v845 = vld [vmem:[%s200 + $0x12c0] sm:$0xff]
        %v846 = vld [vmem:[%s200 + $0x12c8] sm:$0xff]
        %v847 = vld [vmem:[%s200 + $0x12d0] sm:$0xff]
        %v848 = vld [vmem:[%s200 + $0x12d8] sm:$0xff]
        %v849 = vld [vmem:[%s200 + $0x12e0] sm:$0xff]
        %v850 = vld [vmem:[%s200 + $0x12e8] sm:$0xff]
        %v851 = vld [vmem:[%s200 + $0x12f0] sm:$0xff]
        %v852 = vld [vmem:[%s200 + $0x12f8] sm:$0xff]
        %v853 = vld [vmem:[%s200 + $0x1300] sm:$0xff]
        %v854 = vld [vmem:[%s200 + $0x1308] sm:$0xff]
        %v855 = vld [vmem:[%s200 + $0x1310] sm:$0xff]
        %v856 = vld [vmem:[%s200 + $0x1318] sm:$0xff]
        %v857 = vld [vmem:[%s200 + $0x1320] sm:$0xff]
        %v858 = vld [vmem:[%s200 + $0x1328] sm:$0xff]
        %v859 = vld [vmem:[%s200 + $0x1330] sm:$0xff]
        %v860 = vld [vmem:[%s200 + $0x1338] sm:$0xff]
        %v861 = vld [vmem:[%s200 + $0x1340] sm:$0xff]
        %v862 = vld [vmem:[%s200 + $0x1348] sm:$0xff]
        %v863 = vld [vmem:[%s200 + $0x1350] sm:$0xff]
        %v864 = vld [vmem:[%s200 + $0x1358] sm:$0xff]
        %v865 = vld [vmem:[%s200 + $0x1360] sm:$0xff]
        %v866 = vld [vmem:[%s200 + $0x1368] sm:$0xff]
        %v867 = vld [vmem:[%s200 + $0x1370] sm:$0xff]
        %v868 = vld [vmem:[%s200 + $0x1378] sm:$0xff]
        %v869 = vld [vmem:[%s200 + $0x1380] sm:$0xff]
        %v870 = vld [vmem:[%s200 + $0x1388] sm:$0xff]
        %v871 = vld [vmem:[%s200 + $0x1390] sm:$0xff]
        %v872 = vld [vmem:[%s200 + $0x1398] sm:$0xff]
        %v873 = vld [vmem:[%s200 + $0x13a0] sm:$0xff]
        %v874 = vld [vmem:[%s200 + $0x13a8] sm:$0xff]
        %v875 = vld [vmem:[%s200 + $0x13b0] sm:$0xff]
        %v876 = vld [vmem:[%s200 + $0x13b8] sm:$0xff]
        %v877 = vld [vmem:[%s200 + $0x13c0] sm:$0xff]
        %v878 = vld [vmem:[%s200 + $0x13c8] sm:$0xff]
        %v879 = vld [vmem:[%s200 + $0x13d0] sm:$0xff]
        %v880 = vld [vmem:[%s200 + $0x13d8] sm:$0xff]
        %v881 = vld [vmem:[%s200 + $0x13e0] sm:$0xff]
        %v882 = vld [vmem:[%s200 + $0x13e8] sm:$0xff]
        %v883 = vld [vmem:[%s200 + $0x13f0] sm:$0xff]
        %v884 = vld [vmem:[%s200 + $0x13f8] sm:$0xff]
        %v885 = vld [vmem:[%s200 + $0x1400] sm:$0xff]
        %v886 = vld [vmem:[%s200 + $0x1408] sm:$0xff]
        %v887 = vld [vmem:[%s200 + $0x1410] sm:$0xff]
        %v888 = vld [vmem:[%s200 + $0x1418] sm:$0xff]
        %v889 = vld [vmem:[%s200 + $0x1420] sm:$0xff]
        %v890 = vld [vmem:[%s200 + $0x1428] sm:$0xff]
        %v891 = vld [vmem:[%s200 + $0x1430] sm:$0xff]
        %v892 = vld [vmem:[%s200 + $0x1438] sm:$0xff]
        %v893 = vld [vmem:[%s200 + $0x1440] sm:$0xff]
        %v894 = vld [vmem:[%s200 + $0x1448] sm:$0xff]
        %v895 = vld [vmem:[%s200 + $0x1450] sm:$0xff]
        %v896 = vld [vmem:[%s200 + $0x1458] sm:$0xff]
        %v897 = vld [vmem:[%s200 + $0x1460] sm:$0xff]
        %v898 = vld [vmem:[%s200 + $0x1468] sm:$0xff]
        %v899 = vld [vmem:[%s200 + $0x1470] sm:$0xff]
        %v900 = vld [vmem:[%s200 + $0x1478] sm:$0xff]
        %v901 = vld [vmem:[%s200 + $0x1480] sm:$0xff]
        %v902 = vld [vmem:[%s200 + $0x1488] sm:$0xff]
        %v903 = vld [vmem:[%s200 + $0x1490] sm:$0xff]
        %v904 = vld [vmem:[%s200 + $0x1498] sm:$0xff]
        %v905 = vld [vmem:[%s200 + $0x14a0] sm:$0xff]
        %v906 = vld [vmem:[%s200 + $0x14a8] sm:$0xff]
        %v907 = vld [vmem:[%s200 + $0x14b0] sm:$0xff]
        %v908 = vld [vmem:[%s200 + $0x14b8] sm:$0xff]
        %v909 = vld [vmem:[%s200 + $0x14c0] sm:$0xff]
        %v910 = vld [vmem:[%s200 + $0x14c8] sm:$0xff]
        %v911 = vld [vmem:[%s200 + $0x14d0] sm:$0xff]
        %v912 = vld [vmem:[%s200 + $0x14d8] sm:$0xff]
        %v913 = vld [vmem:[%s200 + $0x14e0] sm:$0xff]
        %v914 = vld [vmem:[%s200 + $0x14e8] sm:$0xff]
        %v915 = vld [vmem:[%s200 + $0x14f0] sm:$0xff]
        %v916 = vld [vmem:[%s200 + $0x14f8] sm:$0xff]
        %v917 = vld [vmem:[%s200 + $0x1500] sm:$0xff]
        %v918 = vld [vmem:[%s200 + $0x1508] sm:$0xff]
        %v919 = vld [vmem:[%s200 + $0x1510] sm:$0xff]
        %v920 = vld [vmem:[%s200 + $0x1518] sm:$0xff]
        %v921 = vld [vmem:[%s200 + $0x1520] sm:$0xff]
        %v922 = vld [vmem:[%s200 + $0x1528] sm:$0xff]
        %v923 = vld [vmem:[%s200 + $0x1530] sm:$0xff]
        %v924 = vld [vmem:[%s200 + $0x1538] sm:$0xff]
        %v925 = vld [vmem:[%s200 + $0x1540] sm:$0xff]
        %v926 = vld [vmem:[%s200 + $0x1548] sm:$0xff]
        %v927 = vld [vmem:[%s200 + $0x1550] sm:$0xff]
        %v928 = vld [vmem:[%s200 + $0x1558] sm:$0xff]
        %v929 = vld [vmem:[%s200 + $0x1560] sm:$0xff]
        %v930 = vld [vmem:[%s200 + $0x1568] sm:$0xff]
        %v931 = vld [vmem:[%s200 + $0x1570] sm:$0xff]
        %v932 = vld [vmem:[%s200 + $0x1578] sm:$0xff]
        %v933 = vld [vmem:[%s200 + $0x1580] sm:$0xff]
        %v934 = vld [vmem:[%s200 + $0x1588] sm:$0xff]
        %v935 = vld [vmem:[%s200 + $0x1590] sm:$0xff]
        %v936 = vld [vmem:[%s200 + $0x1598] sm:$0xff]
        %v937 = vld [vmem:[%s200 + $0x15a0] sm:$0xff]
        %v938 = vld [vmem:[%s200 + $0x15a8] sm:$0xff]
        %v939 = vld [vmem:[%s200 + $0x15b0] sm:$0xff]
        %v940 = vld [vmem:[%s200 + $0x15b8] sm:$0xff]
        %v941 = vld [vmem:[%s200 + $0x15c0] sm:$0xff]
        %v942 = vld [vmem:[%s200 + $0x15c8] sm:$0xff]
        %v943 = vld [vmem:[%s200 + $0x15d0] sm:$0xff]
        %v944 = vld [vmem:[%s200 + $0x15d8] sm:$0xff]
        %v945 = vld [vmem:[%s200 + $0x15e0] sm:$0xff]
        %v946 = vld [vmem:[%s200 + $0x15e8] sm:$0xff]
        %v947 = vld [vmem:[%s200 + $0x15f0] sm:$0xff]
        %v948 = vld [vmem:[%s200 + $0x15f8] sm:$0xff]
        %v949 = vld [vmem:[%s200 + $0x1600] sm:$0xff]
        %v950 = vld [vmem:[%s200 + $0x1608] sm:$0xff]
        %v951 = vld [vmem:[%s200 + $0x1610] sm:$0xff]
        %v952 = vld [vmem:[%s200 + $0x1618] sm:$0xff]
        %v953 = vld [vmem:[%s200 + $0x1620] sm:$0xff]
        %v954 = vld [vmem:[%s200 + $0x1628] sm:$0xff]
        %v955 = vld [vmem:[%s200 + $0x1630] sm:$0xff]
        %v956 = vld [vmem:[%s200 + $0x1638] sm:$0xff]
        %v957 = vld [vmem:[%s200 + $0x1640] sm:$0xff]
        %v958 = vld [vmem:[%s200 + $0x1648] sm:$0xff]
        %v959 = vld [vmem:[%s200 + $0x1650] sm:$0xff]
        %v960 = vld [vmem:[%s200 + $0x1658] sm:$0xff]
        %v961 = vld [vmem:[%s200 + $0x1660] sm:$0xff]
        %v962 = vld [vmem:[%s200 + $0x1668] sm:$0xff]
        %v963 = vld [vmem:[%s200 + $0x1670] sm:$0xff]
        %v964 = vld [vmem:[%s200 + $0x1678] sm:$0xff]
        %v965 = vld [vmem:[%s200 + $0x1680] sm:$0xff]
        %v966 = vld [vmem:[%s200 + $0x1688] sm:$0xff]
        %v967 = vld [vmem:[%s200 + $0x1690] sm:$0xff]
        %v968 = vld [vmem:[%s200 + $0x1698] sm:$0xff]
        %v969 = vld [vmem:[%s200 + $0x16a0] sm:$0xff]
        %v970 = vld [vmem:[%s200 + $0x16a8] sm:$0xff]
        %v971 = vld [vmem:[%s200 + $0x16b0] sm:$0xff]
        %v972 = vld [vmem:[%s200 + $0x16b8] sm:$0xff]
        %v973 = vld [vmem:[%s200 + $0x16c0] sm:$0xff]
        %v974 = vld [vmem:[%s200 + $0x16c8] sm:$0xff]
        %v975 = vld [vmem:[%s200 + $0x16d0] sm:$0xff]
        %v976 = vld [vmem:[%s200 + $0x16d8] sm:$0xff]
        %v977 = vld [vmem:[%s200 + $0x16e0] sm:$0xff]
        %v978 = vld [vmem:[%s200 + $0x16e8] sm:$0xff]
        %v979 = vld [vmem:[%s200 + $0x16f0] sm:$0xff]
        %v980 = vld [vmem:[%s200 + $0x16f8] sm:$0xff]
        %v981 = vld [vmem:[%s200 + $0x1700] sm:$0xff]
        %v982 = vld [vmem:[%s200 + $0x1708] sm:$0xff]
        %v983 = vld [vmem:[%s200 + $0x1710] sm:$0xff]
        %v984 = vld [vmem:[%s200 + $0x1718] sm:$0xff]
        %v985 = vld [vmem:[%s200 + $0x1720] sm:$0xff]
        %v986 = vld [vmem:[%s200 + $0x1728] sm:$0xff]
        %v987 = vld [vmem:[%s200 + $0x1730] sm:$0xff]
        %v988 = vld [vmem:[%s200 + $0x1738] sm:$0xff]
        %v989 = vld [vmem:[%s200 + $0x1740] sm:$0xff]
        %v990 = vld [vmem:[%s200 + $0x1748] sm:$0xff]
        %v991 = vld [vmem:[%s200 + $0x1750] sm:$0xff]
        %v992 = vld [vmem:[%s200 + $0x1758] sm:$0xff]
        %v993 = vld [vmem:[%s200 + $0x1760] sm:$0xff]
        %v994 = vld [vmem:[%s200 + $0x1768] sm:$0xff]
        %v995 = vld [vmem:[%s200 + $0x1770] sm:$0xff]
        %v996 = vld [vmem:[%s200 + $0x1778] sm:$0xff]
        %v997 = vld [vmem:[%s200 + $0x1780] sm:$0xff]
        %v998 = vld [vmem:[%s200 + $0x1788] sm:$0xff]
        %v999 = vld [vmem:[%s200 + $0x1790] sm:$0xff]
        %v1000 = vld [vmem:[%s200 + $0x1798] sm:$0xff]
        %v1001 = vld [vmem:[%s200 + $0x17a0] sm:$0xff]
        %v1002 = vld [vmem:[%s200 + $0x17a8] sm:$0xff]
        %v1003 = vld [vmem:[%s200 + $0x17b0] sm:$0xff]
        %v1004 = vld [vmem:[%s200 + $0x17b8] sm:$0xff]
        %v1005 = vld [vmem:[%s200 + $0x17c0] sm:$0xff]
        %v1006 = vld [vmem:[%s200 + $0x17c8] sm:$0xff]
        %v1007 = vld [vmem:[%s200 + $0x17d0] sm:$0xff]
        %v1008 = vld [vmem:[%s200 + $0x17d8] sm:$0xff]
        %v1009 = vld [vmem:[%s200 + $0x17e0] sm:$0xff]
        %v1010 = vld [vmem:[%s200 + $0x17e8] sm:$0xff]
        %v1011 = vld [vmem:[%s200 + $0x17f0] sm:$0xff]
        %v1012 = vld [vmem:[%s200 + $0x17f8] sm:$0xff]
        %v1013 = vld [vmem:[%s200 + $0x1800] sm:$0xff]
        %v1014 = vld [vmem:[%s200 + $0x1808] sm:$0xff]
        %v1015 = vld [vmem:[%s200 + $0x1810] sm:$0xff]
        %v1016 = vld [vmem:[%s200 + $0x1818] sm:$0xff]
        %v1017 = vld [vmem:[%s200 + $0x1820] sm:$0xff]
        %v1018 = vld [vmem:[%s200 + $0x1828] sm:$0xff]
        %v1019 = vld [vmem:[%s200 + $0x1830] sm:$0xff]
        %v1020 = vld [vmem:[%s200 + $0x1838] sm:$0xff]
        %v1021 = vld [vmem:[%s200 + $0x1840] sm:$0xff]
        %v1022 = vld [vmem:[%s200 + $0x1848] sm:$0xff]
        %v1023 = vld [vmem:[%s200 + $0x1850] sm:$0xff]
        %v1024 = vld [vmem:[%s200 + $0x1858] sm:$0xff]
        %v1025 = vld [vmem:[%s200 + $0x1860] sm:$0xff]
        %v1026 = vld [vmem:[%s200 + $0x1868] sm:$0xff]
        %v1027 = vld [vmem:[%s200 + $0x1870] sm:$0xff]
        %v1028 = vld [vmem:[%s200 + $0x1878] sm:$0xff]
        %v1029 = vld [vmem:[%s200 + $0x1880] sm:$0xff]
        %v1030 = vld [vmem:[%s200 + $0x1888] sm:$0xff]
        %v1031 = vld [vmem:[%s200 + $0x1890] sm:$0xff]
        %v1032 = vld [vmem:[%s200 + $0x1898] sm:$0xff]
        %v1033 = vld [vmem:[%s200 + $0x18a0] sm:$0xff]
        %v1034 = vld [vmem:[%s200 + $0x18a8] sm:$0xff]
        %v1035 = vld [vmem:[%s200 + $0x18b0] sm:$0xff]
        %v1036 = vld [vmem:[%s200 + $0x18b8] sm:$0xff]
        %v1037 = vld [vmem:[%s200 + $0x18c0] sm:$0xff]
        %v1038 = vld [vmem:[%s200 + $0x18c8] sm:$0xff]
        %v1039 = vld [vmem:[%s200 + $0x18d0] sm:$0xff]
        %v1040 = vld [vmem:[%s200 + $0x18d8] sm:$0xff]
        %v1041 = vld [vmem:[%s200 + $0x18e0] sm:$0xff]
        %v1042 = vld [vmem:[%s200 + $0x18e8] sm:$0xff]
        %v1043 = vld [vmem:[%s200 + $0x18f0] sm:$0xff]
        %v1044 = vld [vmem:[%s200 + $0x18f8] sm:$0xff]
        %v1045 = vld [vmem:[%s200 + $0x1900] sm:$0xff]
        %v1046 = vld [vmem:[%s200 + $0x1908] sm:$0xff]
        %v1047 = vld [vmem:[%s200 + $0x1910] sm:$0xff]
        %v1048 = vld [vmem:[%s200 + $0x1918] sm:$0xff]
        %v1049 = vld [vmem:[%s200 + $0x1920] sm:$0xff]
        %v1050 = vld [vmem:[%s200 + $0x1928] sm:$0xff]
        %v1051 = vld [vmem:[%s200 + $0x1930] sm:$0xff]
        %v1052 = vld [vmem:[%s200 + $0x1938] sm:$0xff]
        %v1053 = vld [vmem:[%s200 + $0x1940] sm:$0xff]
        %v1054 = vld [vmem:[%s200 + $0x1948] sm:$0xff]
        %v1055 = vld [vmem:[%s200 + $0x1950] sm:$0xff]
        %v1056 = vld [vmem:[%s200 + $0x1958] sm:$0xff]
        %v1057 = vld [vmem:[%s200 + $0x1960] sm:$0xff]
        %v1058 = vld [vmem:[%s200 + $0x1968] sm:$0xff]
        %v1059 = vld [vmem:[%s200 + $0x1970] sm:$0xff]
        %v1060 = vld [vmem:[%s200 + $0x1978] sm:$0xff]
        %v1061 = vld [vmem:[%s200 + $0x1980] sm:$0xff]
        %v1062 = vld [vmem:[%s200 + $0x1988] sm:$0xff]
        %v1063 = vld [vmem:[%s200 + $0x1990] sm:$0xff]
        %v1064 = vld [vmem:[%s200 + $0x1998] sm:$0xff]
        %v1065 = vld [vmem:[%s200 + $0x19a0] sm:$0xff]
        %v1066 = vld [vmem:[%s200 + $0x19a8] sm:$0xff]
        %v1067 = vld [vmem:[%s200 + $0x19b0] sm:$0xff]
        %v1068 = vld [vmem:[%s200 + $0x19b8] sm:$0xff]
        %v1069 = vld [vmem:[%s200 + $0x19c0] sm:$0xff]
        %v1070 = vld [vmem:[%s200 + $0x19c8] sm:$0xff]
        %v1071 = vld [vmem:[%s200 + $0x19d0] sm:$0xff]
        %v1072 = vld [vmem:[%s200 + $0x19d8] sm:$0xff]
        %v1073 = vld [vmem:[%s200 + $0x19e0] sm:$0xff]
        %v1074 = vld [vmem:[%s200 + $0x19e8] sm:$0xff]
        %v1075 = vld [vmem:[%s200 + $0x19f0] sm:$0xff]
        %v1076 = vld [vmem:[%s200 + $0x19f8] sm:$0xff]
        %v1077 = vld [vmem:[%s200 + $0x1a00] sm:$0xff]
        %v1078 = vld [vmem:[%s200 + $0x1a08] sm:$0xff]
        %v1079 = vld [vmem:[%s200 + $0x1a10] sm:$0xff]
        %v1080 = vld [vmem:[%s200 + $0x1a18] sm:$0xff]
        %v1081 = vld [vmem:[%s200 + $0x1a20] sm:$0xff]
        %v1082 = vld [vmem:[%s200 + $0x1a28] sm:$0xff]
        %v1083 = vld [vmem:[%s200 + $0x1a30] sm:$0xff]
        %v1084 = vld [vmem:[%s200 + $0x1a38] sm:$0xff]
        %v1085 = vld [vmem:[%s200 + $0x1a40] sm:$0xff]
        %v1086 = vld [vmem:[%s200 + $0x1a48] sm:$0xff]
        %v1087 = vld [vmem:[%s200 + $0x1a50] sm:$0xff]
        %v1088 = vld [vmem:[%s200 + $0x1a58] sm:$0xff]
        %v1089 = vld [vmem:[%s200 + $0x1a60] sm:$0xff]
        %v1090 = vld [vmem:[%s200 + $0x1a68] sm:$0xff]
        %v1091 = vld [vmem:[%s200 + $0x1a70] sm:$0xff]
        %v1092 = vld [vmem:[%s200 + $0x1a78] sm:$0xff]
        %v1093 = vld [vmem:[%s200 + $0x1a80] sm:$0xff]
        %v1094 = vld [vmem:[%s200 + $0x1a88] sm:$0xff]
        %v1095 = vld [vmem:[%s200 + $0x1a90] sm:$0xff]
        %v1096 = vld [vmem:[%s200 + $0x1a98] sm:$0xff]
        %v1097 = vld [vmem:[%s200 + $0x1aa0] sm:$0xff]
        %v1098 = vld [vmem:[%s200 + $0x1aa8] sm:$0xff]
        %v1099 = vld [vmem:[%s200 + $0x1ab0] sm:$0xff]
        %v1100 = vld [vmem:[%s200 + $0x1ab8] sm:$0xff]
        %v1101 = vld [vmem:[%s200 + $0x1ac0] sm:$0xff]
        %v1102 = vld [vmem:[%s200 + $0x1ac8] sm:$0xff]
        %v1103 = vld [vmem:[%s200 + $0x1ad0] sm:$0xff]
        %v1104 = vld [vmem:[%s200 + $0x1ad8] sm:$0xff]
        %v1105 = vld [vmem:[%s200 + $0x1ae0] sm:$0xff]
        %v1106 = vld [vmem:[%s200 + $0x1ae8] sm:$0xff]
        %v1107 = vld [vmem:[%s200 + $0x1af0] sm:$0xff]
        %v1108 = vld [vmem:[%s200 + $0x1af8] sm:$0xff]
        %v1109 = vld [vmem:[%s200 + $0x1b00] sm:$0xff]
        %v1110 = vld [vmem:[%s200 + $0x1b08] sm:$0xff]
        %v1111 = vld [vmem:[%s200 + $0x1b10] sm:$0xff]
        %v1112 = vld [vmem:[%s200 + $0x1b18] sm:$0xff]
        %v1113 = vld [vmem:[%s200 + $0x1b20] sm:$0xff]
        %v1114 = vld [vmem:[%s200 + $0x1b28] sm:$0xff]
        %v1115 = vld [vmem:[%s200 + $0x1b30] sm:$0xff]
        %v1116 = vld [vmem:[%s200 + $0x1b38] sm:$0xff]
        %v1117 = vld [vmem:[%s200 + $0x1b40] sm:$0xff]
        %v1118 = vld [vmem:[%s200 + $0x1b48] sm:$0xff]
        %v1119 = vld [vmem:[%s200 + $0x1b50] sm:$0xff]
        %v1120 = vld [vmem:[%s200 + $0x1b58] sm:$0xff]
        %v1121 = vld [vmem:[%s200 + $0x1b60] sm:$0xff]
        %v1122 = vld [vmem:[%s200 + $0x1b68] sm:$0xff]
        %v1123 = vld [vmem:[%s200 + $0x1b70] sm:$0xff]
        %v1124 = vld [vmem:[%s200 + $0x1b78] sm:$0xff]
        %v1125 = vld [vmem:[%s200 + $0x1b80] sm:$0xff]
        %v1126 = vld [vmem:[%s200 + $0x1b88] sm:$0xff]
        %v1127 = vld [vmem:[%s200 + $0x1b90] sm:$0xff]
        %v1128 = vld [vmem:[%s200 + $0x1b98] sm:$0xff]
        %v1129 = vld [vmem:[%s200 + $0x1ba0] sm:$0xff]
        %v1130 = vld [vmem:[%s200 + $0x1ba8] sm:$0xff]
        %v1131 = vld [vmem:[%s200 + $0x1bb0] sm:$0xff]
        %v1132 = vld [vmem:[%s200 + $0x1bb8] sm:$0xff]
        %v1133 = vld [vmem:[%s200 + $0x1bc0] sm:$0xff]
        %v1134 = vld [vmem:[%s200 + $0x1bc8] sm:$0xff]
        %v1135 = vld [vmem:[%s200 + $0x1bd0] sm:$0xff]
        %v1136 = vld [vmem:[%s200 + $0x1bd8] sm:$0xff]
        %v1137 = vld [vmem:[%s200 + $0x1be0] sm:$0xff]
        %v1138 = vld [vmem:[%s200 + $0x1be8] sm:$0xff]
        %v1139 = vld [vmem:[%s200 + $0x1bf0] sm:$0xff]
        %v1140 = vld [vmem:[%s200 + $0x1bf8] sm:$0xff]
        %v1141 = vld [vmem:[%s200 + $0x1c00] sm:$0xff]
        %v1142 = vld [vmem:[%s200 + $0x1c08] sm:$0xff]
        %v1143 = vld [vmem:[%s200 + $0x1c10] sm:$0xff]
        %v1144 = vld [vmem:[%s200 + $0x1c18] sm:$0xff]
        %v1145 = vld [vmem:[%s200 + $0x1c20] sm:$0xff]
        %v1146 = vld [vmem:[%s200 + $0x1c28] sm:$0xff]
        %v1147 = vld [vmem:[%s200 + $0x1c30] sm:$0xff]
        %v1148 = vld [vmem:[%s200 + $0x1c38] sm:$0xff]
        %v1149 = vld [vmem:[%s200 + $0x1c40] sm:$0xff]
        %v1150 = vld [vmem:[%s200 + $0x1c48] sm:$0xff]
        %v1151 = vld [vmem:[%s200 + $0x1c50] sm:$0xff]
        %v1152 = vld [vmem:[%s200 + $0x1c58] sm:$0xff]
        %v1153 = vld [vmem:[%s200 + $0x1c60] sm:$0xff]
        %v1154 = vld [vmem:[%s200 + $0x1c68] sm:$0xff]
        %v1155 = vld [vmem:[%s200 + $0x1c70] sm:$0xff]
        %v1156 = vld [vmem:[%s200 + $0x1c78] sm:$0xff]
        %v1157 = vld [vmem:[%s200 + $0x1c80] sm:$0xff]
        %v1158 = vld [vmem:[%s200 + $0x1c88] sm:$0xff]
        %v1159 = vld [vmem:[%s200 + $0x1c90] sm:$0xff]
        %v1160 = vld [vmem:[%s200 + $0x1c98] sm:$0xff]
        %v1161 = vld [vmem:[%s200 + $0x1ca0] sm:$0xff]
        %v1162 = vld [vmem:[%s200 + $0x1ca8] sm:$0xff]
        %v1163 = vld [vmem:[%s200 + $0x1cb0] sm:$0xff]
        %v1164 = vld [vmem:[%s200 + $0x1cb8] sm:$0xff]
        %v1165 = vld [vmem:[%s200 + $0x1cc0] sm:$0xff]
        %v1166 = vld [vmem:[%s200 + $0x1cc8] sm:$0xff]
        %v1167 = vld [vmem:[%s200 + $0x1cd0] sm:$0xff]
        %v1168 = vld [vmem:[%s200 + $0x1cd8] sm:$0xff]
        %v1169 = vld [vmem:[%s200 + $0x1ce0] sm:$0xff]
        %v1170 = vld [vmem:[%s200 + $0x1ce8] sm:$0xff]
        %v1171 = vld [vmem:[%s200 + $0x1cf0] sm:$0xff]
        %v1172 = vld [vmem:[%s200 + $0x1cf8] sm:$0xff]
        %v1173 = vld [vmem:[%s200 + $0x1d00] sm:$0xff]
        %v1174 = vld [vmem:[%s200 + $0x1d08] sm:$0xff]
        %v1175 = vld [vmem:[%s200 + $0x1d10] sm:$0xff]
        %v1176 = vld [vmem:[%s200 + $0x1d18] sm:$0xff]
        %v1177 = vld [vmem:[%s200 + $0x1d20] sm:$0xff]
        %v1178 = vld [vmem:[%s200 + $0x1d28] sm:$0xff]
        %v1179 = vld [vmem:[%s200 + $0x1d30] sm:$0xff]
        %v1180 = vld [vmem:[%s200 + $0x1d38] sm:$0xff]
        %v1181 = vld [vmem:[%s200 + $0x1d40] sm:$0xff]
        %v1182 = vld [vmem:[%s200 + $0x1d48] sm:$0xff]
        %v1183 = vld [vmem:[%s200 + $0x1d50] sm:$0xff]
        %v1184 = vld [vmem:[%s200 + $0x1d58] sm:$0xff]
        %v1185 = vld [vmem:[%s200 + $0x1d60] sm:$0xff]
        %v1186 = vld [vmem:[%s200 + $0x1d68] sm:$0xff]
        %v1187 = vld [vmem:[%s200 + $0x1d70] sm:$0xff]
        %v1188 = vld [vmem:[%s200 + $0x1d78] sm:$0xff]
        %v1189 = vld [vmem:[%s200 + $0x1d80] sm:$0xff]
        %v1190 = vld [vmem:[%s200 + $0x1d88] sm:$0xff]
        %v1191 = vld [vmem:[%s200 + $0x1d90] sm:$0xff]
        %v1192 = vld [vmem:[%s200 + $0x1d98] sm:$0xff]
        %v1193 = vld [vmem:[%s200 + $0x1da0] sm:$0xff]
        %v1194 = vld [vmem:[%s200 + $0x1da8] sm:$0xff]
        %v1195 = vld [vmem:[%s200 + $0x1db0] sm:$0xff]
        %v1196 = vld [vmem:[%s200 + $0x1db8] sm:$0xff]
        %v1197 = vld [vmem:[%s200 + $0x1dc0] sm:$0xff]
        %v1198 = vld [vmem:[%s200 + $0x1dc8] sm:$0xff]
        %v1199 = vld [vmem:[%s200 + $0x1dd0] sm:$0xff]
        %v1200 = vld [vmem:[%s200 + $0x1dd8] sm:$0xff]
        %v1201 = vld [vmem:[%s200 + $0x1de0] sm:$0xff]
        %v1202 = vld [vmem:[%s200 + $0x1de8] sm:$0xff]
        %v1203 = vld [vmem:[%s200 + $0x1df0] sm:$0xff]
        %v1204 = vld [vmem:[%s200 + $0x1df8] sm:$0xff]
        %v1205 = vld [vmem:[%s200 + $0x1e00] sm:$0xff]
        %v1206 = vld [vmem:[%s200 + $0x1e08] sm:$0xff]
        %v1207 = vld [vmem:[%s200 + $0x1e10] sm:$0xff]
        %v1208 = vld [vmem:[%s200 + $0x1e18] sm:$0xff]
        %v1209 = vld [vmem:[%s200 + $0x1e20] sm:$0xff]
        %v1210 = vld [vmem:[%s200 + $0x1e28] sm:$0xff]
        %v1211 = vld [vmem:[%s200 + $0x1e30] sm:$0xff]
        %v1212 = vld [vmem:[%s200 + $0x1e38] sm:$0xff]
        %v1213 = vld [vmem:[%s200 + $0x1e40] sm:$0xff]
        %v1214 = vld [vmem:[%s200 + $0x1e48] sm:$0xff]
        %v1215 = vld [vmem:[%s200 + $0x1e50] sm:$0xff]
        %v1216 = vld [vmem:[%s200 + $0x1e58] sm:$0xff]
        %v1217 = vld [vmem:[%s200 + $0x1e60] sm:$0xff]
        %v1218 = vld [vmem:[%s200 + $0x1e68] sm:$0xff]
        %v1219 = vld [vmem:[%s200 + $0x1e70] sm:$0xff]
        %v1220 = vld [vmem:[%s200 + $0x1e78] sm:$0xff]
        %v1221 = vld [vmem:[%s200 + $0x1e80] sm:$0xff]
        %v1222 = vld [vmem:[%s200 + $0x1e88] sm:$0xff]
        %v1223 = vld [vmem:[%s200 + $0x1e90] sm:$0xff]
        %v1224 = vld [vmem:[%s200 + $0x1e98] sm:$0xff]
        %v1225 = vld [vmem:[%s200 + $0x1ea0] sm:$0xff]
        %v1226 = vld [vmem:[%s200 + $0x1ea8] sm:$0xff]
        %v1227 = vld [vmem:[%s200 + $0x1eb0] sm:$0xff]
        %v1228 = vld [vmem:[%s200 + $0x1eb8] sm:$0xff]
        %v1229 = vld [vmem:[%s200 + $0x1ec0] sm:$0xff]
        %v1230 = vld [vmem:[%s200 + $0x1ec8] sm:$0xff]
        %v1231 = vld [vmem:[%s200 + $0x1ed0] sm:$0xff]
        %v1232 = vld [vmem:[%s200 + $0x1ed8] sm:$0xff]
        %v1233 = vld [vmem:[%s200 + $0x1ee0] sm:$0xff]
        %v1234 = vld [vmem:[%s200 + $0x1ee8] sm:$0xff]
        %v1235 = vld [vmem:[%s200 + $0x1ef0] sm:$0xff]
        %v1236 = vld [vmem:[%s200 + $0x1ef8] sm:$0xff]
        %v1237 = vld [vmem:[%s200 + $0x1f00] sm:$0xff]
        %v1238 = vld [vmem:[%s200 + $0x1f08] sm:$0xff]
        %v1239 = vld [vmem:[%s200 + $0x1f10] sm:$0xff]
        %v1240 = vld [vmem:[%s200 + $0x1f18] sm:$0xff]
        %v1241 = vld [vmem:[%s200 + $0x1f20] sm:$0xff]
        %v1242 = vld [vmem:[%s200 + $0x1f28] sm:$0xff]
        %v1243 = vld [vmem:[%s200 + $0x1f30] sm:$0xff]
        %v1244 = vld [vmem:[%s200 + $0x1f38] sm:$0xff]
        %v1245 = vld [vmem:[%s200 + $0x1f40] sm:$0xff]
        %v1246 = vld [vmem:[%s200 + $0x1f48] sm:$0xff]
        %v1247 = vld [vmem:[%s200 + $0x1f50] sm:$0xff]
        %v1248 = vld [vmem:[%s200 + $0x1f58] sm:$0xff]
        %v1249 = vld [vmem:[%s200 + $0x1f60] sm:$0xff]
        %v1250 = vld [vmem:[%s200 + $0x1f68] sm:$0xff]
        %v1251 = vld [vmem:[%s200 + $0x1f70] sm:$0xff]
        %v1252 = vld [vmem:[%s200 + $0x1f78] sm:$0xff]
        %v1253 = vld [vmem:[%s200 + $0x1f80] sm:$0xff]
        %v1254 = vld [vmem:[%s200 + $0x1f88] sm:$0xff]
        %v1255 = vld [vmem:[%s200 + $0x1f90] sm:$0xff]
        %v1256 = vld [vmem:[%s200 + $0x1f98] sm:$0xff]
        %v1257 = vld [vmem:[%s200 + $0x1fa0] sm:$0xff]
        %v1258 = vld [vmem:[%s200 + $0x1fa8] sm:$0xff]
        %v1259 = vld [vmem:[%s200 + $0x1fb0] sm:$0xff]
        %v1260 = vld [vmem:[%s200 + $0x1fb8] sm:$0xff]
        %v1261 = vld [vmem:[%s200 + $0x1fc0] sm:$0xff]
        %v1262 = vld [vmem:[%s200 + $0x1fc8] sm:$0xff]
        %v1263 = vld [vmem:[%s200 + $0x1fd0] sm:$0xff]
        %v1264 = vld [vmem:[%s200 + $0x1fd8] sm:$0xff]
        %v1265 = vld [vmem:[%s200 + $0x1fe0] sm:$0xff]
        %v1266 = vld [vmem:[%s200 + $0x1fe8] sm:$0xff]
        %v1267 = vld [vmem:[%s200 + $0x1ff0] sm:$0xff]
        %v1268 = vld [vmem:[%s200 + $0x1ff8] sm:$0xff]
        %v1269 = vld [vmem:[%s200 + $0x2000] sm:$0xff]
        %v1270 = vld [vmem:[%s200 + $0x2008] sm:$0xff]
        %v1271 = vld [vmem:[%s200 + $0x2010] sm:$0xff]
        %v1272 = vld [vmem:[%s200 + $0x2018] sm:$0xff]
        %v1273 = vld [vmem:[%s200 + $0x2020] sm:$0xff]
        %v1274 = vld [vmem:[%s200 + $0x2028] sm:$0xff]
        %v1275 = vld [vmem:[%s200 + $0x2030] sm:$0xff]
        %v1276 = vld [vmem:[%s200 + $0x2038] sm:$0xff]
        %v1277 = vld [vmem:[%s200 + $0x2040] sm:$0xff]
        %v1278 = vld [vmem:[%s200 + $0x2048] sm:$0xff]
        %v1279 = vld [vmem:[%s200 + $0x2050] sm:$0xff]
        %v1280 = vld [vmem:[%s200 + $0x2058] sm:$0xff]
        %v1281 = vld [vmem:[%s200 + $0x2060] sm:$0xff]
        %v1282 = vld [vmem:[%s200 + $0x2068] sm:$0xff]
        %v1283 = vld [vmem:[%s200 + $0x2070] sm:$0xff]
        %v1284 = vld [vmem:[%s200 + $0x2078] sm:$0xff]
        %v1285 = vld [vmem:[%s200 + $0x2080] sm:$0xff]
        %v1286 = vld [vmem:[%s200 + $0x2088] sm:$0xff]
        %v1287 = vld [vmem:[%s200 + $0x2090] sm:$0xff]
        %v1288 = vld [vmem:[%s200 + $0x2098] sm:$0xff]
        %v1289 = vld [vmem:[%s200 + $0x20a0] sm:$0xff]
        %v1290 = vld [vmem:[%s200 + $0x20a8] sm:$0xff]
        %v1291 = vld [vmem:[%s200 + $0x20b0] sm:$0xff]
        %v1292 = vld [vmem:[%s200 + $0x20b8] sm:$0xff]
        %v1293 = vld [vmem:[%s200 + $0x20c0] sm:$0xff]
        %v1294 = vld [vmem:[%s200 + $0x20c8] sm:$0xff]
        %v1295 = vld [vmem:[%s200 + $0x20d0] sm:$0xff]
        %v1296 = vld [vmem:[%s200 + $0x20d8] sm:$0xff]
        %v1297 = vld [vmem:[%s200 + $0x20e0] sm:$0xff]
        %v1298 = vld [vmem:[%s200 + $0x20e8] sm:$0xff]
        %v1299 = vld [vmem:[%s200 + $0x20f0] sm:$0xff]
        %v1300 = vld [vmem:[%s200 + $0x20f8] sm:$0xff]
        %v1301 = vld [vmem:[%s200 + $0x2100] sm:$0xff]
        %v1302 = vld [vmem:[%s200 + $0x2108] sm:$0xff]
        %v1303 = vld [vmem:[%s200 + $0x2110] sm:$0xff]
        %v1304 = vld [vmem:[%s200 + $0x2118] sm:$0xff]
        %v1305 = vld [vmem:[%s200 + $0x2120] sm:$0xff]
        %v1306 = vld [vmem:[%s200 + $0x2128] sm:$0xff]
        %v1307 = vld [vmem:[%s200 + $0x2130] sm:$0xff]
        %v1308 = vld [vmem:[%s200 + $0x2138] sm:$0xff]
        %v1309 = vld [vmem:[%s200 + $0x2140] sm:$0xff]
        %v1310 = vld [vmem:[%s200 + $0x2148] sm:$0xff]
        %v1311 = vld [vmem:[%s200 + $0x2150] sm:$0xff]
        %v1312 = vld [vmem:[%s200 + $0x2158] sm:$0xff]
        %v1313 = vld [vmem:[%s200 + $0x2160] sm:$0xff]
        %v1314 = vld [vmem:[%s200 + $0x2168] sm:$0xff]
        %v1315 = vld [vmem:[%s200 + $0x2170] sm:$0xff]
        %v1316 = vld [vmem:[%s200 + $0x2178] sm:$0xff]
        %v1317 = vld [vmem:[%s200 + $0x2180] sm:$0xff]
        %v1318 = vld [vmem:[%s200 + $0x2188] sm:$0xff]
        %v1319 = vld [vmem:[%s200 + $0x2190] sm:$0xff]
        %v1320 = vld [vmem:[%s200 + $0x2198] sm:$0xff]
        %v1321 = vld [vmem:[%s200 + $0x21a0] sm:$0xff]
        %v1322 = vld [vmem:[%s200 + $0x21a8] sm:$0xff]
        %v1323 = vld [vmem:[%s200 + $0x21b0] sm:$0xff]
        %v1324 = vld [vmem:[%s200 + $0x21b8] sm:$0xff]
        %v1325 = vld [vmem:[%s200 + $0x21c0] sm:$0xff]
        %v1326 = vld [vmem:[%s200 + $0x21c8] sm:$0xff]
        %v1327 = vld [vmem:[%s200 + $0x21d0] sm:$0xff]
        %v1328 = vld [vmem:[%s200 + $0x21d8] sm:$0xff]
        %v1329 = vld [vmem:[%s200 + $0x21e0] sm:$0xff]
        %v1330 = vld [vmem:[%s200 + $0x21e8] sm:$0xff]
        %v1331 = vld [vmem:[%s200 + $0x21f0] sm:$0xff]
        %v1332 = vld [vmem:[%s200 + $0x21f8] sm:$0xff]
        %v1333 = vld [vmem:[%s200 + $0x2200] sm:$0xff]
        %v1334 = vld [vmem:[%s200 + $0x2208] sm:$0xff]
        %v1335 = vld [vmem:[%s200 + $0x2210] sm:$0xff]
        %v1336 = vld [vmem:[%s200 + $0x2218] sm:$0xff]
        %v1337 = vld [vmem:[%s200 + $0x2220] sm:$0xff]
        %v1338 = vld [vmem:[%s200 + $0x2228] sm:$0xff]
        %v1339 = vld [vmem:[%s200 + $0x2230] sm:$0xff]
        %v1340 = vld [vmem:[%s200 + $0x2238] sm:$0xff]
        %v1341 = vld [vmem:[%s200 + $0x2240] sm:$0xff]
        %v1342 = vld [vmem:[%s200 + $0x2248] sm:$0xff]
        %v1343 = vld [vmem:[%s200 + $0x2250] sm:$0xff]
        %v1344 = vld [vmem:[%s200 + $0x2258] sm:$0xff]
        %v1345 = vld [vmem:[%s200 + $0x2260] sm:$0xff]
        %v1346 = vld [vmem:[%s200 + $0x2268] sm:$0xff]
        %v1347 = vld [vmem:[%s200 + $0x2270] sm:$0xff]
        %v1348 = vld [vmem:[%s200 + $0x2278] sm:$0xff]
        %v1349 = vld [vmem:[%s200 + $0x2280] sm:$0xff]
        %v1350 = vld [vmem:[%s200 + $0x2288] sm:$0xff]
        %v1351 = vld [vmem:[%s200 + $0x2290] sm:$0xff]
        %v1352 = vld [vmem:[%s200 + $0x2298] sm:$0xff]
        %v1353 = vld [vmem:[%s200 + $0x22a0] sm:$0xff]
        %v1354 = vld [vmem:[%s200 + $0x22a8] sm:$0xff]
        %v1355 = vld [vmem:[%s200 + $0x22b0] sm:$0xff]
        %v1356 = vld [vmem:[%s200 + $0x22b8] sm:$0xff]
        %v1357 = vld [vmem:[%s200 + $0x22c0] sm:$0xff]
        %v1358 = vld [vmem:[%s200 + $0x22c8] sm:$0xff]
        %v1359 = vld [vmem:[%s200 + $0x22d0] sm:$0xff]
        %v1360 = vld [vmem:[%s200 + $0x22d8] sm:$0xff]
        %v1361 = vld [vmem:[%s200 + $0x22e0] sm:$0xff]
        %v1362 = vld [vmem:[%s200 + $0x22e8] sm:$0xff]
        %v1363 = vld [vmem:[%s200 + $0x22f0] sm:$0xff]
        %v1364 = vld [vmem:[%s200 + $0x22f8] sm:$0xff]
        %v1365 = vld [vmem:[%s200 + $0x2300] sm:$0xff]
        %v1366 = vld [vmem:[%s200 + $0x2308] sm:$0xff]
        %v1367 = vld [vmem:[%s200 + $0x2310] sm:$0xff]
        %v1368 = vld [vmem:[%s200 + $0x2318] sm:$0xff]
        %v1369 = vld [vmem:[%s200 + $0x2320] sm:$0xff]
        %v1370 = vld [vmem:[%s200 + $0x2328] sm:$0xff]
        %v1371 = vld [vmem:[%s200 + $0x2330] sm:$0xff]
        %v1372 = vld [vmem:[%s200 + $0x2338] sm:$0xff]
        %v1373 = vld [vmem:[%s200 + $0x2340] sm:$0xff]
        %v1374 = vld [vmem:[%s200 + $0x2348] sm:$0xff]
        %v1375 = vld [vmem:[%s200 + $0x2350] sm:$0xff]
        %v1376 = vld [vmem:[%s200 + $0x2358] sm:$0xff]
        %v1377 = vld [vmem:[%s200 + $0x2360] sm:$0xff]
        %v1378 = vld [vmem:[%s200 + $0x2368] sm:$0xff]
        %v1379 = vld [vmem:[%s200 + $0x2370] sm:$0xff]
        %v1380 = vld [vmem:[%s200 + $0x2378] sm:$0xff]
        %v1381 = vld [vmem:[%s200 + $0x2380] sm:$0xff]
        %v1382 = vld [vmem:[%s200 + $0x2388] sm:$0xff]
        %v1383 = vld [vmem:[%s200 + $0x2390] sm:$0xff]
        %v1384 = vld [vmem:[%s200 + $0x2398] sm:$0xff]
        %v1385 = vld [vmem:[%s200 + $0x23a0] sm:$0xff]
        %v1386 = vld [vmem:[%s200 + $0x23a8] sm:$0xff]
        %v1387 = vld [vmem:[%s200 + $0x23b0] sm:$0xff]
        %v1388 = vld [vmem:[%s200 + $0x23b8] sm:$0xff]
        %v1389 = vld [vmem:[%s200 + $0x23c0] sm:$0xff]
        %v1390 = vld [vmem:[%s200 + $0x23c8] sm:$0xff]
        %v1391 = vld [vmem:[%s200 + $0x23d0] sm:$0xff]
        %v1392 = vld [vmem:[%s200 + $0x23d8] sm:$0xff]
        %v1393 = vld [vmem:[%s200 + $0x23e0] sm:$0xff]
        %v1394 = vld [vmem:[%s200 + $0x23e8] sm:$0xff]
        %v1395 = vld [vmem:[%s200 + $0x23f0] sm:$0xff]
        %v1396 = vld [vmem:[%s200 + $0x23f8] sm:$0xff]
        %v1397 = vld [vmem:[%s200 + $0x2400] sm:$0xff]
        %v1398 = vld [vmem:[%s200 + $0x2408] sm:$0xff]
        %v1399 = vld [vmem:[%s200 + $0x2410] sm:$0xff]
        %v1400 = vld [vmem:[%s200 + $0x2418] sm:$0xff]
        %v1401 = vld [vmem:[%s200 + $0x2420] sm:$0xff]
        %v1402 = vld [vmem:[%s200 + $0x2428] sm:$0xff]
        %v1403 = vld [vmem:[%s200 + $0x2430] sm:$0xff]
        %v1404 = vld [vmem:[%s200 + $0x2438] sm:$0xff]
        %v1405 = vld [vmem:[%s200 + $0x2440] sm:$0xff]
        %v1406 = vld [vmem:[%s200 + $0x2448] sm:$0xff]
        %v1407 = vld [vmem:[%s200 + $0x2450] sm:$0xff]
        %v1408 = vld [vmem:[%s200 + $0x2458] sm:$0xff]
        %v1409 = vld [vmem:[%s200 + $0x2460] sm:$0xff]
        %v1410 = vld [vmem:[%s200 + $0x2468] sm:$0xff]
        %v1411 = vld [vmem:[%s200 + $0x2470] sm:$0xff]
        %v1412 = vld [vmem:[%s200 + $0x2478] sm:$0xff]
        %v1413 = vld [vmem:[%s200 + $0x2480] sm:$0xff]
        %v1414 = vld [vmem:[%s200 + $0x2488] sm:$0xff]
        %v1415 = vld [vmem:[%s200 + $0x2490] sm:$0xff]
        %v1416 = vld [vmem:[%s200 + $0x2498] sm:$0xff]
        %v1417 = vld [vmem:[%s200 + $0x24a0] sm:$0xff]
        %v1418 = vld [vmem:[%s200 + $0x24a8] sm:$0xff]
        %v1419 = vld [vmem:[%s200 + $0x24b0] sm:$0xff]
        %v1420 = vld [vmem:[%s200 + $0x24b8] sm:$0xff]
        %v1421 = vld [vmem:[%s200 + $0x24c0] sm:$0xff]
        %v1422 = vld [vmem:[%s200 + $0x24c8] sm:$0xff]
        %v1423 = vld [vmem:[%s200 + $0x24d0] sm:$0xff]
        %v1424 = vld [vmem:[%s200 + $0x24d8] sm:$0xff]
        %v1425 = vld [vmem:[%s200 + $0x24e0] sm:$0xff]
        %v1426 = vld [vmem:[%s200 + $0x24e8] sm:$0xff]
        %v1427 = vld [vmem:[%s200 + $0x24f0] sm:$0xff]
        %v1428 = vld [vmem:[%s200 + $0x24f8] sm:$0xff]
        %v1429 = vld [vmem:[%s200 + $0x2500] sm:$0xff]
        %v1430 = vld [vmem:[%s200 + $0x2508] sm:$0xff]
        %v1431 = vld [vmem:[%s200 + $0x2510] sm:$0xff]
        %v1432 = vld [vmem:[%s200 + $0x2518] sm:$0xff]
        %v1433 = vld [vmem:[%s200 + $0x2520] sm:$0xff]
        %v1434 = vld [vmem:[%s200 + $0x2528] sm:$0xff]
        %v1435 = vld [vmem:[%s200 + $0x2530] sm:$0xff]
        %v1436 = vld [vmem:[%s200 + $0x2538] sm:$0xff]
        %v1437 = vld [vmem:[%s200 + $0x2540] sm:$0xff]
        %v1438 = vld [vmem:[%s200 + $0x2548] sm:$0xff]
        %v1439 = vld [vmem:[%s200 + $0x2550] sm:$0xff]
        %v1440 = vld [vmem:[%s200 + $0x2558] sm:$0xff]
        %v1441 = vld [vmem:[%s200 + $0x2560] sm:$0xff]
        %v1442 = vld [vmem:[%s200 + $0x2568] sm:$0xff]
        %v1443 = vld [vmem:[%s200 + $0x2570] sm:$0xff]
        %v1444 = vld [vmem:[%s200 + $0x2578] sm:$0xff]
        %v1445 = vld [vmem:[%s200 + $0x2580] sm:$0xff]
        %v1446 = vld [vmem:[%s200 + $0x2588] sm:$0xff]
        %v1447 = vld [vmem:[%s200 + $0x2590] sm:$0xff]
        %v1448 = vld [vmem:[%s200 + $0x2598] sm:$0xff]
        %v1449 = vld [vmem:[%s200 + $0x25a0] sm:$0xff]
        %v1450 = vld [vmem:[%s200 + $0x25a8] sm:$0xff]
        %v1451 = vld [vmem:[%s200 + $0x25b0] sm:$0xff]
        %v1452 = vld [vmem:[%s200 + $0x25b8] sm:$0xff]
        %v1453 = vld [vmem:[%s200 + $0x25c0] sm:$0xff]
        %v1454 = vld [vmem:[%s200 + $0x25c8] sm:$0xff]
        %v1455 = vld [vmem:[%s200 + $0x25d0] sm:$0xff]
        %v1456 = vld [vmem:[%s200 + $0x25d8] sm:$0xff]
        %v1457 = vld [vmem:[%s200 + $0x25e0] sm:$0xff]
        %v1458 = vld [vmem:[%s200 + $0x25e8] sm:$0xff]
        %v1459 = vld [vmem:[%s200 + $0x25f0] sm:$0xff]
        %v1460 = vld [vmem:[%s200 + $0x25f8] sm:$0xff]
        %v1461 = vld [vmem:[%s200 + $0x2600] sm:$0xff]
        %v1462 = vld [vmem:[%s200 + $0x2608] sm:$0xff]
        %v1463 = vld [vmem:[%s200 + $0x2610] sm:$0xff]
        %v1464 = vld [vmem:[%s200 + $0x2618] sm:$0xff]
        %v1465 = vld [vmem:[%s200 + $0x2620] sm:$0xff]
        %v1466 = vld [vmem:[%s200 + $0x2628] sm:$0xff]
        %v1467 = vld [vmem:[%s200 + $0x2630] sm:$0xff]
        %v1468 = vld [vmem:[%s200 + $0x2638] sm:$0xff]
        %v1469 = vld [vmem:[%s200 + $0x2640] sm:$0xff]
        %v1470 = vld [vmem:[%s200 + $0x2648] sm:$0xff]
        %v1471 = vld [vmem:[%s200 + $0x2650] sm:$0xff]
        %v1472 = vld [vmem:[%s200 + $0x2658] sm:$0xff]
        %v1473 = vld [vmem:[%s200 + $0x2660] sm:$0xff]
        %v1474 = vld [vmem:[%s200 + $0x2668] sm:$0xff]
        %v1475 = vld [vmem:[%s200 + $0x2670] sm:$0xff]
        %v1476 = vld [vmem:[%s200 + $0x2678] sm:$0xff]
        %v1477 = vld [vmem:[%s200 + $0x2680] sm:$0xff]
        %v1478 = vld [vmem:[%s200 + $0x2688] sm:$0xff]
        %v1479 = vld [vmem:[%s200 + $0x2690] sm:$0xff]
        %v1480 = vld [vmem:[%s200 + $0x2698] sm:$0xff]
        %v1481 = vld [vmem:[%s200 + $0x26a0] sm:$0xff]
        %v1482 = vld [vmem:[%s200 + $0x26a8] sm:$0xff]
        %v1483 = vld [vmem:[%s200 + $0x26b0] sm:$0xff]
        %v1484 = vld [vmem:[%s200 + $0x26b8] sm:$0xff]
        %v1485 = vld [vmem:[%s200 + $0x26c0] sm:$0xff]
        %v1486 = vld [vmem:[%s200 + $0x26c8] sm:$0xff]
        %v1487 = vld [vmem:[%s200 + $0x26d0] sm:$0xff]
        %v1488 = vld [vmem:[%s200 + $0x26d8] sm:$0xff]
        %v1489 = vld [vmem:[%s200 + $0x26e0] sm:$0xff]
        %v1490 = vld [vmem:[%s200 + $0x26e8] sm:$0xff]
        %v1491 = vld [vmem:[%s200 + $0x26f0] sm:$0xff]
        %v1492 = vld [vmem:[%s200 + $0x26f8] sm:$0xff]
        %v1493 = vld [vmem:[%s200 + $0x2700] sm:$0xff]
        %v1494 = vld [vmem:[%s200 + $0x2708] sm:$0xff]
        %v1495 = vld [vmem:[%s200 + $0x2710] sm:$0xff]
        %v1496 = vld [vmem:[%s200 + $0x2718] sm:$0xff]
        %v1497 = vld [vmem:[%s200 + $0x2720] sm:$0xff]
        %v1498 = vld [vmem:[%s200 + $0x2728] sm:$0xff]
        %v1499 = vld [vmem:[%s200 + $0x2730] sm:$0xff]
        %v1500 = vld [vmem:[%s200 + $0x2738] sm:$0xff]
        %v1501 = vld [vmem:[%s200 + $0x2740] sm:$0xff]
        %v1502 = vld [vmem:[%s200 + $0x2748] sm:$0xff]
        %v1503 = vld [vmem:[%s200 + $0x2750] sm:$0xff]
        %v1504 = vld [vmem:[%s200 + $0x2758] sm:$0xff]
        %v1505 = vld [vmem:[%s200 + $0x2760] sm:$0xff]
        %v1506 = vld [vmem:[%s200 + $0x2768] sm:$0xff]
        %v1507 = vld [vmem:[%s200 + $0x2770] sm:$0xff]
        %v1508 = vld [vmem:[%s200 + $0x2778] sm:$0xff]
        %v1509 = vld [vmem:[%s200 + $0x2780] sm:$0xff]
        %v1510 = vld [vmem:[%s200 + $0x2788] sm:$0xff]
        %v1511 = vld [vmem:[%s200 + $0x2790] sm:$0xff]
        %v1512 = vld [vmem:[%s200 + $0x2798] sm:$0xff]
        %v1513 = vld [vmem:[%s200 + $0x27a0] sm:$0xff]
        %v1514 = vld [vmem:[%s200 + $0x27a8] sm:$0xff]
        %v1515 = vld [vmem:[%s200 + $0x27b0] sm:$0xff]
        %v1516 = vld [vmem:[%s200 + $0x27b8] sm:$0xff]
        %v1517 = vld [vmem:[%s200 + $0x27c0] sm:$0xff]
        %v1518 = vld [vmem:[%s200 + $0x27c8] sm:$0xff]
        %v1519 = vld [vmem:[%s200 + $0x27d0] sm:$0xff]
        %v1520 = vld [vmem:[%s200 + $0x27d8] sm:$0xff]
        %v1521 = vld [vmem:[%s200 + $0x27e0] sm:$0xff]
        %v1522 = vld [vmem:[%s200 + $0x27e8] sm:$0xff]
        %v1523 = vld [vmem:[%s200 + $0x27f0] sm:$0xff]
        %v1524 = vld [vmem:[%s200 + $0x27f8] sm:$0xff]
        %v1525 = vld [vmem:[%s200 + $0x2800] sm:$0xff]
        %v1526 = vld [vmem:[%s200 + $0x2808] sm:$0xff]
        %v1527 = vld [vmem:[%s200 + $0x2810] sm:$0xff]
        %v1528 = vld [vmem:[%s200 + $0x2818] sm:$0xff]
        %v1529 = vld [vmem:[%s200 + $0x2820] sm:$0xff]
        %v1530 = vld [vmem:[%s200 + $0x2828] sm:$0xff]
        %v1531 = vld [vmem:[%s200 + $0x2830] sm:$0xff]
        %v1532 = vld [vmem:[%s200 + $0x2838] sm:$0xff]
        %v1533 = vld [vmem:[%s200 + $0x2840] sm:$0xff]
        %v1534 = vld [vmem:[%s200 + $0x2848] sm:$0xff]
        %v1535 = vld [vmem:[%s200 + $0x2850] sm:$0xff]
        %v1536 = vld [vmem:[%s200 + $0x2858] sm:$0xff]
        %v1537 = vld [vmem:[%s200 + $0x2860] sm:$0xff]
        %v1538 = vld [vmem:[%s200 + $0x2868] sm:$0xff]
        %v1539 = vld [vmem:[%s200 + $0x2870] sm:$0xff]
        %v1540 = vld [vmem:[%s200 + $0x2878] sm:$0xff]
        %v1541 = vld [vmem:[%s200 + $0x2880] sm:$0xff]
        %v1542 = vld [vmem:[%s200 + $0x2888] sm:$0xff]
        %v1543 = vld [vmem:[%s200 + $0x2890] sm:$0xff]
        %v1544 = vld [vmem:[%s200 + $0x2898] sm:$0xff]
        %v1545 = vld [vmem:[%s200 + $0x28a0] sm:$0xff]
        %v1546 = vld [vmem:[%s200 + $0x28a8] sm:$0xff]
        %v1547 = vld [vmem:[%s200 + $0x28b0] sm:$0xff]
        %v1548 = vld [vmem:[%s200 + $0x28b8] sm:$0xff]
        %v1549 = vld [vmem:[%s200 + $0x28c0] sm:$0xff]
        %v1550 = vld [vmem:[%s200 + $0x28c8] sm:$0xff]
        %v1551 = vld [vmem:[%s200 + $0x28d0] sm:$0xff]
        %v1552 = vld [vmem:[%s200 + $0x28d8] sm:$0xff]
        %v1553 = vld [vmem:[%s200 + $0x28e0] sm:$0xff]
        %v1554 = vld [vmem:[%s200 + $0x28e8] sm:$0xff]
        %v1555 = vld [vmem:[%s200 + $0x28f0] sm:$0xff]
        %v1556 = vld [vmem:[%s200 + $0x28f8] sm:$0xff]
        %v1557 = vld [vmem:[%s200 + $0x2900] sm:$0xff]
        %v1558 = vld [vmem:[%s200 + $0x2908] sm:$0xff]
        %v1559 = vld [vmem:[%s200 + $0x2910] sm:$0xff]
        %v1560 = vld [vmem:[%s200 + $0x2918] sm:$0xff]
        %v1561 = vld [vmem:[%s200 + $0x2920] sm:$0xff]
        %v1562 = vld [vmem:[%s200 + $0x2928] sm:$0xff]
        %v1563 = vld [vmem:[%s200 + $0x2930] sm:$0xff]
        %v1564 = vld [vmem:[%s200 + $0x2938] sm:$0xff]
        %v1565 = vld [vmem:[%s200 + $0x2940] sm:$0xff]
        %v1566 = vld [vmem:[%s200 + $0x2948] sm:$0xff]
        %v1567 = vld [vmem:[%s200 + $0x2950] sm:$0xff]
        %v1568 = vld [vmem:[%s200 + $0x2958] sm:$0xff]
        %v1569 = vld [vmem:[%s200 + $0x2960] sm:$0xff]
        %v1570 = vld [vmem:[%s200 + $0x2968] sm:$0xff]
        %v1571 = vld [vmem:[%s200 + $0x2970] sm:$0xff]
        %v1572 = vld [vmem:[%s200 + $0x2978] sm:$0xff]
        %v1573 = vld [vmem:[%s200 + $0x2980] sm:$0xff]
        %v1574 = vld [vmem:[%s200 + $0x2988] sm:$0xff]
        %v1575 = vld [vmem:[%s200 + $0x2990] sm:$0xff]
        %v1576 = vld [vmem:[%s200 + $0x2998] sm:$0xff]
        %v1577 = vld [vmem:[%s200 + $0x29a0] sm:$0xff]
        %v1578 = vld [vmem:[%s200 + $0x29a8] sm:$0xff]
        %v1579 = vld [vmem:[%s200 + $0x29b0] sm:$0xff]
        %v1580 = vld [vmem:[%s200 + $0x29b8] sm:$0xff]
        %v1581 = vld [vmem:[%s200 + $0x29c0] sm:$0xff]
        %v1582 = vld [vmem:[%s200 + $0x29c8] sm:$0xff]
        %v1583 = vld [vmem:[%s200 + $0x29d0] sm:$0xff]
        %v1584 = vld [vmem:[%s200 + $0x29d8] sm:$0xff]
        %v1585 = vld [vmem:[%s200 + $0x29e0] sm:$0xff]
        %v1586 = vld [vmem:[%s200 + $0x29e8] sm:$0xff]
        %v1587 = vld [vmem:[%s200 + $0x29f0] sm:$0xff]
        %v1588 = vld [vmem:[%s200 + $0x29f8] sm:$0xff]
        %v1589 = vld [vmem:[%s200 + $0x2a00] sm:$0xff]
        %v1590 = vld [vmem:[%s200 + $0x2a08] sm:$0xff]
        %v1591 = vld [vmem:[%s200 + $0x2a10] sm:$0xff]
        %v1592 = vld [vmem:[%s200 + $0x2a18] sm:$0xff]
        %v1593 = vld [vmem:[%s200 + $0x2a20] sm:$0xff]
        %v1594 = vld [vmem:[%s200 + $0x2a28] sm:$0xff]
        %v1595 = vld [vmem:[%s200 + $0x2a30] sm:$0xff]
        %v1596 = vld [vmem:[%s200 + $0x2a38] sm:$0xff]
        %v1597 = vld [vmem:[%s200 + $0x2a40] sm:$0xff]
        %v1598 = vld [vmem:[%s200 + $0x2a48] sm:$0xff]
        %v1599 = vld [vmem:[%s200 + $0x2a50] sm:$0xff]
        %v1600 = vld [vmem:[%s200 + $0x2a58] sm:$0xff]
        %v1601 = vld [vmem:[%s200 + $0x2a60] sm:$0xff]
        %v1602 = vld [vmem:[%s200 + $0x2a68] sm:$0xff]
        %v1603 = vld [vmem:[%s200 + $0x2a70] sm:$0xff]
        %v1604 = vld [vmem:[%s200 + $0x2a78] sm:$0xff]
        %v1605 = vld [vmem:[%s200 + $0x2a80] sm:$0xff]
        %v1606 = vld [vmem:[%s200 + $0x2a88] sm:$0xff]
        %v1607 = vld [vmem:[%s200 + $0x2a90] sm:$0xff]
        %v1608 = vld [vmem:[%s200 + $0x2a98] sm:$0xff]
        %v1609 = vld [vmem:[%s200 + $0x2aa0] sm:$0xff]
        %v1610 = vld [vmem:[%s200 + $0x2aa8] sm:$0xff]
        %v1611 = vld [vmem:[%s200 + $0x2ab0] sm:$0xff]
        %v1612 = vld [vmem:[%s200 + $0x2ab8] sm:$0xff]
        %v1613 = vld [vmem:[%s200 + $0x2ac0] sm:$0xff]
        %v1614 = vld [vmem:[%s200 + $0x2ac8] sm:$0xff]
        %v1615 = vld [vmem:[%s200 + $0x2ad0] sm:$0xff]
        %v1616 = vld [vmem:[%s200 + $0x2ad8] sm:$0xff]
        %v1617 = vld [vmem:[%s200 + $0x2ae0] sm:$0xff]
        %v1618 = vld [vmem:[%s200 + $0x2ae8] sm:$0xff]
        %v1619 = vld [vmem:[%s200 + $0x2af0] sm:$0xff]
        %v1620 = vld [vmem:[%s200 + $0x2af8] sm:$0xff]
        %v1621 = vld [vmem:[%s200 + $0x2b00] sm:$0xff]
        %v1622 = vld [vmem:[%s200 + $0x2b08] sm:$0xff]
        %v1623 = vld [vmem:[%s200 + $0x2b10] sm:$0xff]
        %v1624 = vld [vmem:[%s200 + $0x2b18] sm:$0xff]
        %v1625 = vld [vmem:[%s200 + $0x2b20] sm:$0xff]
        %v1626 = vld [vmem:[%s200 + $0x2b28] sm:$0xff]
        %v1627 = vld [vmem:[%s200 + $0x2b30] sm:$0xff]
        %v1628 = vld [vmem:[%s200 + $0x2b38] sm:$0xff]
        %v1629 = vld [vmem:[%s200 + $0x2b40] sm:$0xff]
        %v1630 = vld [vmem:[%s200 + $0x2b48] sm:$0xff]
        %v1631 = vld [vmem:[%s200 + $0x2b50] sm:$0xff]
        %v1632 = vld [vmem:[%s200 + $0x2b58] sm:$0xff]
        %v1633 = vld [vmem:[%s200 + $0x2b60] sm:$0xff]
        %v1634 = vld [vmem:[%s200 + $0x2b68] sm:$0xff]
        %v1635 = vld [vmem:[%s200 + $0x2b70] sm:$0xff]
        %v1636 = vld [vmem:[%s200 + $0x2b78] sm:$0xff]
        %v1637 = vld [vmem:[%s200 + $0x2b80] sm:$0xff]
        %v1638 = vld [vmem:[%s200 + $0x2b88] sm:$0xff]
        %v1639 = vld [vmem:[%s200 + $0x2b90] sm:$0xff]
        %v1640 = vld [vmem:[%s200 + $0x2b98] sm:$0xff]
        %v1641 = vld [vmem:[%s200 + $0x2ba0] sm:$0xff]
        %v1642 = vld [vmem:[%s200 + $0x2ba8] sm:$0xff]
        %v1643 = vld [vmem:[%s200 + $0x2bb0] sm:$0xff]
        %v1644 = vld [vmem:[%s200 + $0x2bb8] sm:$0xff]
        %v1645 = vld [vmem:[%s200 + $0x2bc0] sm:$0xff]
        %v1646 = vld [vmem:[%s200 + $0x2bc8] sm:$0xff]
        %v1647 = vld [vmem:[%s200 + $0x2bd0] sm:$0xff]
        %v1648 = vld [vmem:[%s200 + $0x2bd8] sm:$0xff]
        %v1649 = vld [vmem:[%s200 + $0x2be0] sm:$0xff]
        %v1650 = vld [vmem:[%s200 + $0x2be8] sm:$0xff]
        %v1651 = vld [vmem:[%s200 + $0x2bf0] sm:$0xff]
        %v1652 = vld [vmem:[%s200 + $0x2bf8] sm:$0xff]
        %v1653 = vld [vmem:[%s200 + $0x2c00] sm:$0xff]
        %v1654 = vld [vmem:[%s200 + $0x2c08] sm:$0xff]
        %v1655 = vld [vmem:[%s200 + $0x2c10] sm:$0xff]
        %v1656 = vld [vmem:[%s200 + $0x2c18] sm:$0xff]
        %v1657 = vld [vmem:[%s200 + $0x2c20] sm:$0xff]
        %v1658 = vld [vmem:[%s200 + $0x2c28] sm:$0xff]
        %v1659 = vld [vmem:[%s200 + $0x2c30] sm:$0xff]
        %v1660 = vld [vmem:[%s200 + $0x2c38] sm:$0xff]
        %v1661 = vld [vmem:[%s200 + $0x2c40] sm:$0xff]
        %v1662 = vld [vmem:[%s200 + $0x2c48] sm:$0xff]
        %v1663 = vld [vmem:[%s200 + $0x2c50] sm:$0xff]
        %v1664 = vld [vmem:[%s200 + $0x2c58] sm:$0xff]
        %v1665 = vld [vmem:[%s200 + $0x2c60] sm:$0xff]
        %v1666 = vld [vmem:[%s200 + $0x2c68] sm:$0xff]
        %v1667 = vld [vmem:[%s200 + $0x2c70] sm:$0xff]
        %v1668 = vld [vmem:[%s200 + $0x2c78] sm:$0xff]
        %v1669 = vld [vmem:[%s200 + $0x2c80] sm:$0xff]
        %v1670 = vld [vmem:[%s200 + $0x2c88] sm:$0xff]
        %v1671 = vld [vmem:[%s200 + $0x2c90] sm:$0xff]
        %v1672 = vld [vmem:[%s200 + $0x2c98] sm:$0xff]
        %v1673 = vld [vmem:[%s200 + $0x2ca0] sm:$0xff]
        %v1674 = vld [vmem:[%s200 + $0x2ca8] sm:$0xff]
        %v1675 = vld [vmem:[%s200 + $0x2cb0] sm:$0xff]
        %v1676 = vld [vmem:[%s200 + $0x2cb8] sm:$0xff]
        %v1677 = vld [vmem:[%s200 + $0x2cc0] sm:$0xff]
        %v1678 = vld [vmem:[%s200 + $0x2cc8] sm:$0xff]
        %v1679 = vld [vmem:[%s200 + $0x2cd0] sm:$0xff]
        %v1680 = vld [vmem:[%s200 + $0x2cd8] sm:$0xff]
        %v1681 = vld [vmem:[%s200 + $0x2ce0] sm:$0xff]
        %v1682 = vld [vmem:[%s200 + $0x2ce8] sm:$0xff]
        %v1683 = vld [vmem:[%s200 + $0x2cf0] sm:$0xff]
        %v1684 = vld [vmem:[%s200 + $0x2cf8] sm:$0xff]
        %v1685 = vld [vmem:[%s200 + $0x2d00] sm:$0xff]
        %v1686 = vld [vmem:[%s200 + $0x2d08] sm:$0xff]
        %v1687 = vld [vmem:[%s200 + $0x2d10] sm:$0xff]
        %v1688 = vld [vmem:[%s200 + $0x2d18] sm:$0xff]
        %v1689 = vld [vmem:[%s200 + $0x2d20] sm:$0xff]
        %v1690 = vld [vmem:[%s200 + $0x2d28] sm:$0xff]
        %v1691 = vld [vmem:[%s200 + $0x2d30] sm:$0xff]
        %v1692 = vld [vmem:[%s200 + $0x2d38] sm:$0xff]
        %v1693 = vld [vmem:[%s200 + $0x2d40] sm:$0xff]
        %v1694 = vld [vmem:[%s200 + $0x2d48] sm:$0xff]
        %v1695 = vld [vmem:[%s200 + $0x2d50] sm:$0xff]
        %v1696 = vld [vmem:[%s200 + $0x2d58] sm:$0xff]
        %v1697 = vld [vmem:[%s200 + $0x2d60] sm:$0xff]
        %v1698 = vld [vmem:[%s200 + $0x2d68] sm:$0xff]
        %v1699 = vld [vmem:[%s200 + $0x2d70] sm:$0xff]
        %v1700 = vld [vmem:[%s200 + $0x2d78] sm:$0xff]
        %v1701 = vld [vmem:[%s200 + $0x2d80] sm:$0xff]
        %v1702 = vld [vmem:[%s200 + $0x2d88] sm:$0xff]
        %v1703 = vld [vmem:[%s200 + $0x2d90] sm:$0xff]
        %v1704 = vld [vmem:[%s200 + $0x2d98] sm:$0xff]
        %v1705 = vld [vmem:[%s200 + $0x2da0] sm:$0xff]
        %v1706 = vld [vmem:[%s200 + $0x2da8] sm:$0xff]
        %v1707 = vld [vmem:[%s200 + $0x2db0] sm:$0xff]
        %v1708 = vld [vmem:[%s200 + $0x2db8] sm:$0xff]
        %v1709 = vld [vmem:[%s200 + $0x2dc0] sm:$0xff]
        %v1710 = vld [vmem:[%s200 + $0x2dc8] sm:$0xff]
        %v1711 = vld [vmem:[%s200 + $0x2dd0] sm:$0xff]
        %v1712 = vld [vmem:[%s200 + $0x2dd8] sm:$0xff]
        %v1713 = vld [vmem:[%s200 + $0x2de0] sm:$0xff]
        %v1714 = vld [vmem:[%s200 + $0x2de8] sm:$0xff]
        %v1715 = vld [vmem:[%s200 + $0x2df0] sm:$0xff]
        %v1716 = vld [vmem:[%s200 + $0x2df8] sm:$0xff]
        %v1717 = vld [vmem:[%s200 + $0x2e00] sm:$0xff]
        %v1718 = vld [vmem:[%s200 + $0x2e08] sm:$0xff]
        %v1719 = vld [vmem:[%s200 + $0x2e10] sm:$0xff]
        %v1720 = vld [vmem:[%s200 + $0x2e18] sm:$0xff]
        %v1721 = vld [vmem:[%s200 + $0x2e20] sm:$0xff]
        %v1722 = vld [vmem:[%s200 + $0x2e28] sm:$0xff]
        %v1723 = vld [vmem:[%s200 + $0x2e30] sm:$0xff]
        %v1724 = vld [vmem:[%s200 + $0x2e38] sm:$0xff]
        %v1725 = vld [vmem:[%s200 + $0x2e40] sm:$0xff]
        %v1726 = vld [vmem:[%s200 + $0x2e48] sm:$0xff]
        %v1727 = vld [vmem:[%s200 + $0x2e50] sm:$0xff]
        %v1728 = vld [vmem:[%s200 + $0x2e58] sm:$0xff]
        %v1729 = vld [vmem:[%s200 + $0x2e60] sm:$0xff]
        %v1730 = vld [vmem:[%s200 + $0x2e68] sm:$0xff]
        %v1731 = vld [vmem:[%s200 + $0x2e70] sm:$0xff]
        %v1732 = vld [vmem:[%s200 + $0x2e78] sm:$0xff]
        %v1733 = vld [vmem:[%s200 + $0x2e80] sm:$0xff]
        %v1734 = vld [vmem:[%s200 + $0x2e88] sm:$0xff]
        %v1735 = vld [vmem:[%s200 + $0x2e90] sm:$0xff]
        %v1736 = vld [vmem:[%s200 + $0x2e98] sm:$0xff]
        %v1737 = vld [vmem:[%s200 + $0x2ea0] sm:$0xff]
        %v1738 = vld [vmem:[%s200 + $0x2ea8] sm:$0xff]
        %v1739 = vld [vmem:[%s200 + $0x2eb0] sm:$0xff]
        %v1740 = vld [vmem:[%s200 + $0x2eb8] sm:$0xff]
        %v1741 = vld [vmem:[%s200 + $0x2ec0] sm:$0xff]
        %v1742 = vld [vmem:[%s200 + $0x2ec8] sm:$0xff]
        %v1743 = vld [vmem:[%s200 + $0x2ed0] sm:$0xff]
        %v1744 = vld [vmem:[%s200 + $0x2ed8] sm:$0xff]
        %v1745 = vld [vmem:[%s200 + $0x2ee0] sm:$0xff]
        %v1746 = vld [vmem:[%s200 + $0x2ee8] sm:$0xff]
        %v1747 = vld [vmem:[%s200 + $0x2ef0] sm:$0xff]
        %v1748 = vld [vmem:[%s200 + $0x2ef8] sm:$0xff]
        %v1749 = vld [vmem:[%s200 + $0x2f00] sm:$0xff]
        %v1750 = vld [vmem:[%s200 + $0x2f08] sm:$0xff]
        %v1751 = vld [vmem:[%s200 + $0x2f10] sm:$0xff]
        %v1752 = vld [vmem:[%s200 + $0x2f18] sm:$0xff]
        %v1753 = vld [vmem:[%s200 + $0x2f20] sm:$0xff]
        %v1754 = vld [vmem:[%s200 + $0x2f28] sm:$0xff]
        %v1755 = vld [vmem:[%s200 + $0x2f30] sm:$0xff]
        %v1756 = vld [vmem:[%s200 + $0x2f38] sm:$0xff]
        %v1757 = vld [vmem:[%s200 + $0x2f40] sm:$0xff]
        %v1758 = vld [vmem:[%s200 + $0x2f48] sm:$0xff]
        %v1759 = vld [vmem:[%s200 + $0x2f50] sm:$0xff]
        %v1760 = vld [vmem:[%s200 + $0x2f58] sm:$0xff]
        %v1761 = vld [vmem:[%s200 + $0x2f60] sm:$0xff]
        %v1762 = vld [vmem:[%s200 + $0x2f68] sm:$0xff]
        %v1763 = vld [vmem:[%s200 + $0x2f70] sm:$0xff]
        %v1764 = vld [vmem:[%s200 + $0x2f78] sm:$0xff]
        %v1765 = vld [vmem:[%s200 + $0x2f80] sm:$0xff]
        %v1766 = vld [vmem:[%s200 + $0x2f88] sm:$0xff]
        %v1767 = vld [vmem:[%s200 + $0x2f90] sm:$0xff]
        %v1768 = vld [vmem:[%s200 + $0x2f98] sm:$0xff]
        %v1769 = vld [vmem:[%s200 + $0x2fa0] sm:$0xff]
        %v1770 = vld [vmem:[%s200 + $0x2fa8] sm:$0xff]
        %v1771 = vld [vmem:[%s200 + $0x2fb0] sm:$0xff]
        %v1772 = vld [vmem:[%s200 + $0x2fb8] sm:$0xff]
        %v1773 = vld [vmem:[%s200 + $0x2fc0] sm:$0xff]
        %v1774 = vld [vmem:[%s200 + $0x2fc8] sm:$0xff]
        %v1775 = vld [vmem:[%s200 + $0x2fd0] sm:$0xff]
        %v1776 = vld [vmem:[%s200 + $0x2fd8] sm:$0xff]
        %v1777 = vld [vmem:[%s200 + $0x2fe0] sm:$0xff]
        %v1778 = vld [vmem:[%s200 + $0x2fe8] sm:$0xff]
        %v1779 = vld [vmem:[%s200 + $0x2ff0] sm:$0xff]
        %v1780 = vld [vmem:[%s200 + $0x2ff8] sm:$0xff]
        %v1781 = vld [vmem:[%s200 + $0x3000] sm:$0xff]
        %v1782 = vld [vmem:[%s200 + $0x3008] sm:$0xff]
        %v1783 = vld [vmem:[%s200 + $0x3010] sm:$0xff]
        %v1784 = vld [vmem:[%s200 + $0x3018] sm:$0xff]
        %v1785 = vld [vmem:[%s200 + $0x3020] sm:$0xff]
        %v1786 = vld [vmem:[%s200 + $0x3028] sm:$0xff]
        %v1787 = vld [vmem:[%s200 + $0x3030] sm:$0xff]
        %v1788 = vld [vmem:[%s200 + $0x3038] sm:$0xff]
        %v1789 = vld [vmem:[%s200 + $0x3040] sm:$0xff]
        %v1790 = vld [vmem:[%s200 + $0x3048] sm:$0xff]
        %v1791 = vld [vmem:[%s200 + $0x3050] sm:$0xff]
        %v1792 = vld [vmem:[%s200 + $0x3058] sm:$0xff]
        %v1793 = vld [vmem:[%s200 + $0x3060] sm:$0xff]
        %v1794 = vld [vmem:[%s200 + $0x3068] sm:$0xff]
        %v1795 = vld [vmem:[%s200 + $0x3070] sm:$0xff]
        %v1796 = vld [vmem:[%s200 + $0x3078] sm:$0xff]
        %v1797 = vld [vmem:[%s200 + $0x3080] sm:$0xff]
        %v1798 = vld [vmem:[%s200 + $0x3088] sm:$0xff]
        %v1799 = vld [vmem:[%s200 + $0x3090] sm:$0xff]
        %v1800 = vld [vmem:[%s200 + $0x3098] sm:$0xff]
        %v1801 = vld [vmem:[%s200 + $0x30a0] sm:$0xff]
        %v1802 = vld [vmem:[%s200 + $0x30a8] sm:$0xff]
        %v1803 = vld [vmem:[%s200 + $0x30b0] sm:$0xff]
        %v1804 = vld [vmem:[%s200 + $0x30b8] sm:$0xff]
        %v1805 = vld [vmem:[%s200 + $0x30c0] sm:$0xff]
        %v1806 = vld [vmem:[%s200 + $0x30c8] sm:$0xff]
        %v1807 = vld [vmem:[%s200 + $0x30d0] sm:$0xff]
        %v1808 = vld [vmem:[%s200 + $0x30d8] sm:$0xff]
        %v1809 = vld [vmem:[%s200 + $0x30e0] sm:$0xff]
        %v1810 = vld [vmem:[%s200 + $0x30e8] sm:$0xff]
        %v1811 = vld [vmem:[%s200 + $0x30f0] sm:$0xff]
        %v1812 = vld [vmem:[%s200 + $0x30f8] sm:$0xff]
        %v1813 = vld [vmem:[%s200 + $0x3100] sm:$0xff]
        %v1814 = vld [vmem:[%s200 + $0x3108] sm:$0xff]
        %v1815 = vld [vmem:[%s200 + $0x3110] sm:$0xff]
        %v1816 = vld [vmem:[%s200 + $0x3118] sm:$0xff]
        %v1817 = vld [vmem:[%s200 + $0x3120] sm:$0xff]
        %v1818 = vld [vmem:[%s200 + $0x3128] sm:$0xff]
        %v1819 = vld [vmem:[%s200 + $0x3130] sm:$0xff]
        %v1820 = vld [vmem:[%s200 + $0x3138] sm:$0xff]
        %v1821 = vld [vmem:[%s200 + $0x3140] sm:$0xff]
        %v1822 = vld [vmem:[%s200 + $0x3148] sm:$0xff]
        %v1823 = vld [vmem:[%s200 + $0x3150] sm:$0xff]
        %v1824 = vld [vmem:[%s200 + $0x3158] sm:$0xff]
        %v1825 = vld [vmem:[%s200 + $0x3160] sm:$0xff]
        %v1826 = vld [vmem:[%s200 + $0x3168] sm:$0xff]
        %v1827 = vld [vmem:[%s200 + $0x3170] sm:$0xff]
        %v1828 = vld [vmem:[%s200 + $0x3178] sm:$0xff]
        %v1829 = vld [vmem:[%s200 + $0x3180] sm:$0xff]
        %v1830 = vld [vmem:[%s200 + $0x3188] sm:$0xff]
        %v1831 = vld [vmem:[%s200 + $0x3190] sm:$0xff]
        %v1832 = vld [vmem:[%s200 + $0x3198] sm:$0xff]
        %v1833 = vld [vmem:[%s200 + $0x31a0] sm:$0xff]
        %v1834 = vld [vmem:[%s200 + $0x31a8] sm:$0xff]
        %v1835 = vld [vmem:[%s200 + $0x31b0] sm:$0xff]
        %v1836 = vld [vmem:[%s200 + $0x31b8] sm:$0xff]
        %v1837 = vld [vmem:[%s200 + $0x31c0] sm:$0xff]
        %v1838 = vld [vmem:[%s200 + $0x31c8] sm:$0xff]
        %v1839 = vld [vmem:[%s200 + $0x31d0] sm:$0xff]
        %v1840 = vld [vmem:[%s200 + $0x31d8] sm:$0xff]
        %v1841 = vld [vmem:[%s200 + $0x31e0] sm:$0xff]
        %v1842 = vld [vmem:[%s200 + $0x31e8] sm:$0xff]
        %v1843 = vld [vmem:[%s200 + $0x31f0] sm:$0xff]
        %v1844 = vld [vmem:[%s200 + $0x31f8] sm:$0xff]
        %v1845 = vld [vmem:[%s200 + $0x3200] sm:$0xff]
        %v1846 = vld [vmem:[%s200 + $0x3208] sm:$0xff]
        %v1847 = vld [vmem:[%s200 + $0x3210] sm:$0xff]
        %v1848 = vld [vmem:[%s200 + $0x3218] sm:$0xff]
        %v1849 = vld [vmem:[%s200 + $0x3220] sm:$0xff]
        %v1850 = vld [vmem:[%s200 + $0x3228] sm:$0xff]
        %v1851 = vld [vmem:[%s200 + $0x3230] sm:$0xff]
        %v1852 = vld [vmem:[%s200 + $0x3238] sm:$0xff]
        %v1853 = vld [vmem:[%s200 + $0x3240] sm:$0xff]
        %v1854 = vld [vmem:[%s200 + $0x3248] sm:$0xff]
        %v1855 = vld [vmem:[%s200 + $0x3250] sm:$0xff]
        %v1856 = vld [vmem:[%s200 + $0x3258] sm:$0xff]
        %v1857 = vld [vmem:[%s200 + $0x3260] sm:$0xff]
        %v1858 = vld [vmem:[%s200 + $0x3268] sm:$0xff]
        %v1859 = vld [vmem:[%s200 + $0x3270] sm:$0xff]
        %v1860 = vld [vmem:[%s200 + $0x3278] sm:$0xff]
        %v1861 = vld [vmem:[%s200 + $0x3280] sm:$0xff]
        %v1862 = vld [vmem:[%s200 + $0x3288] sm:$0xff]
        %v1863 = vld [vmem:[%s200 + $0x3290] sm:$0xff]
        %v1864 = vld [vmem:[%s200 + $0x3298] sm:$0xff]
        %v1865 = vld [vmem:[%s200 + $0x32a0] sm:$0xff]
        %v1866 = vld [vmem:[%s200 + $0x32a8] sm:$0xff]
        %v1867 = vld [vmem:[%s200 + $0x32b0] sm:$0xff]
        %v1868 = vld [vmem:[%s200 + $0x32b8] sm:$0xff]
        %v1869 = vld [vmem:[%s200 + $0x32c0] sm:$0xff]
        %v1870 = vld [vmem:[%s200 + $0x32c8] sm:$0xff]
        %v1871 = vld [vmem:[%s200 + $0x32d0] sm:$0xff]
        %v1872 = vld [vmem:[%s200 + $0x32d8] sm:$0xff]
        %v1873 = vld [vmem:[%s200 + $0x32e0] sm:$0xff]
        %v1874 = vld [vmem:[%s200 + $0x32e8] sm:$0xff]
        %v1875 = vld [vmem:[%s200 + $0x32f0] sm:$0xff]
        %v1876 = vld [vmem:[%s200 + $0x32f8] sm:$0xff]
        %v1877 = vld [vmem:[%s200 + $0x3300] sm:$0xff]
        %v1878 = vld [vmem:[%s200 + $0x3308] sm:$0xff]
        %v1879 = vld [vmem:[%s200 + $0x3310] sm:$0xff]
        %v1880 = vld [vmem:[%s200 + $0x3318] sm:$0xff]
        %v1881 = vld [vmem:[%s200 + $0x3320] sm:$0xff]
        %v1882 = vld [vmem:[%s200 + $0x3328] sm:$0xff]
        %v1883 = vld [vmem:[%s200 + $0x3330] sm:$0xff]
        %v1884 = vld [vmem:[%s200 + $0x3338] sm:$0xff]
        %v1885 = vld [vmem:[%s200 + $0x3340] sm:$0xff]
        %v1886 = vld [vmem:[%s200 + $0x3348] sm:$0xff]
        %v1887 = vld [vmem:[%s200 + $0x3350] sm:$0xff]
        %v1888 = vld [vmem:[%s200 + $0x3358] sm:$0xff]
        %v1889 = vld [vmem:[%s200 + $0x3360] sm:$0xff]
        %v1890 = vld [vmem:[%s200 + $0x3368] sm:$0xff]
        %v1891 = vld [vmem:[%s200 + $0x3370] sm:$0xff]
        %v1892 = vld [vmem:[%s200 + $0x3378] sm:$0xff]
        %v1893 = vld [vmem:[%s200 + $0x3380] sm:$0xff]
        %v1894 = vld [vmem:[%s200 + $0x3388] sm:$0xff]
        %v1895 = vld [vmem:[%s200 + $0x3390] sm:$0xff]
        %v1896 = vld [vmem:[%s200 + $0x3398] sm:$0xff]
        %v1897 = vld [vmem:[%s200 + $0x33a0] sm:$0xff]
        %v1898 = vld [vmem:[%s200 + $0x33a8] sm:$0xff]
        %v1899 = vld [vmem:[%s200 + $0x33b0] sm:$0xff]
        %v1900 = vld [vmem:[%s200 + $0x33b8] sm:$0xff]
        %v1901 = vld [vmem:[%s200 + $0x33c0] sm:$0xff]
        %v1902 = vld [vmem:[%s200 + $0x33c8] sm:$0xff]
        %v1903 = vld [vmem:[%s200 + $0x33d0] sm:$0xff]
        %v1904 = vld [vmem:[%s200 + $0x33d8] sm:$0xff]
        %v1905 = vld [vmem:[%s200 + $0x33e0] sm:$0xff]
        %v1906 = vld [vmem:[%s200 + $0x33e8] sm:$0xff]
        %v1907 = vld [vmem:[%s200 + $0x33f0] sm:$0xff]
        %v1908 = vld [vmem:[%s200 + $0x33f8] sm:$0xff]
        %v1909 = vld [vmem:[%s200 + $0x3400] sm:$0xff]
        %v1910 = vld [vmem:[%s200 + $0x3408] sm:$0xff]
        %v1911 = vld [vmem:[%s200 + $0x3410] sm:$0xff]
        %v1912 = vld [vmem:[%s200 + $0x3418] sm:$0xff]
        %v1913 = vld [vmem:[%s200 + $0x3420] sm:$0xff]
        %v1914 = vld [vmem:[%s200 + $0x3428] sm:$0xff]
        %v1915 = vld [vmem:[%s200 + $0x3430] sm:$0xff]
        %v1916 = vld [vmem:[%s200 + $0x3438] sm:$0xff]
        %v1917 = vld [vmem:[%s200 + $0x3440] sm:$0xff]
        %v1918 = vld [vmem:[%s200 + $0x3448] sm:$0xff]
        %v1919 = vld [vmem:[%s200 + $0x3450] sm:$0xff]
        %v1920 = vld [vmem:[%s200 + $0x3458] sm:$0xff]
        %v1921 = vld [vmem:[%s200 + $0x3460] sm:$0xff]
        %v1922 = vld [vmem:[%s200 + $0x3468] sm:$0xff]
        %v1923 = vld [vmem:[%s200 + $0x3470] sm:$0xff]
        %v1924 = vld [vmem:[%s200 + $0x3478] sm:$0xff]
        %v1925 = vld [vmem:[%s200 + $0x3480] sm:$0xff]
        %v1926 = vld [vmem:[%s200 + $0x3488] sm:$0xff]
        %v1927 = vld [vmem:[%s200 + $0x3490] sm:$0xff]
        %v1928 = vld [vmem:[%s200 + $0x3498] sm:$0xff]
        %v1929 = vld [vmem:[%s200 + $0x34a0] sm:$0xff]
        %v1930 = vld [vmem:[%s200 + $0x34a8] sm:$0xff]
        %v1931 = vld [vmem:[%s200 + $0x34b0] sm:$0xff]
        %v1932 = vld [vmem:[%s200 + $0x34b8] sm:$0xff]
        %v1933 = vld [vmem:[%s200 + $0x34c0] sm:$0xff]
        %v1934 = vld [vmem:[%s200 + $0x34c8] sm:$0xff]
        %v1935 = vld [vmem:[%s200 + $0x34d0] sm:$0xff]
        %v1936 = vld [vmem:[%s200 + $0x34d8] sm:$0xff]
        %v1937 = vld [vmem:[%s200 + $0x34e0] sm:$0xff]
        %v1938 = vld [vmem:[%s200 + $0x34e8] sm:$0xff]
        %v1939 = vld [vmem:[%s200 + $0x34f0] sm:$0xff]
        %v1940 = vld [vmem:[%s200 + $0x34f8] sm:$0xff]
        %v1941 = vld [vmem:[%s200 + $0x3500] sm:$0xff]
        %v1942 = vld [vmem:[%s200 + $0x3508] sm:$0xff]
        %v1943 = vld [vmem:[%s200 + $0x3510] sm:$0xff]
        %v1944 = vld [vmem:[%s200 + $0x3518] sm:$0xff]
        %v1945 = vld [vmem:[%s200 + $0x3520] sm:$0xff]
        %v1946 = vld [vmem:[%s200 + $0x3528] sm:$0xff]
        %v1947 = vld [vmem:[%s200 + $0x3530] sm:$0xff]
        %v1948 = vld [vmem:[%s200 + $0x3538] sm:$0xff]
        %v1949 = vld [vmem:[%s200 + $0x3540] sm:$0xff]
        %v1950 = vld [vmem:[%s200 + $0x3548] sm:$0xff]
        %v1951 = vld [vmem:[%s200 + $0x3550] sm:$0xff]
        %v1952 = vld [vmem:[%s200 + $0x3558] sm:$0xff]
        %v1953 = vld [vmem:[%s200 + $0x3560] sm:$0xff]
        %v1954 = vld [vmem:[%s200 + $0x3568] sm:$0xff]
        %v1955 = vld [vmem:[%s200 + $0x3570] sm:$0xff]
        %v1956 = vld [vmem:[%s200 + $0x3578] sm:$0xff]
        %v1957 = vld [vmem:[%s200 + $0x3580] sm:$0xff]
        %v1958 = vld [vmem:[%s200 + $0x3588] sm:$0xff]
        %v1959 = vld [vmem:[%s200 + $0x3590] sm:$0xff]
        %v1960 = vld [vmem:[%s200 + $0x3598] sm:$0xff]
        %v1961 = vld [vmem:[%s200 + $0x35a0] sm:$0xff]
        %v1962 = vld [vmem:[%s200 + $0x35a8] sm:$0xff]
        %v1963 = vld [vmem:[%s200 + $0x35b0] sm:$0xff]
        %v1964 = vld [vmem:[%s200 + $0x35b8] sm:$0xff]
        %v1965 = vld [vmem:[%s200 + $0x35c0] sm:$0xff]
        %v1966 = vld [vmem:[%s200 + $0x35c8] sm:$0xff]
        %v1967 = vld [vmem:[%s200 + $0x35d0] sm:$0xff]
        %v1968 = vld [vmem:[%s200 + $0x35d8] sm:$0xff]
        %v1969 = vld [vmem:[%s200 + $0x35e0] sm:$0xff]
        %v1970 = vld [vmem:[%s200 + $0x35e8] sm:$0xff]
        %v1971 = vld [vmem:[%s200 + $0x35f0] sm:$0xff]
        %v1972 = vld [vmem:[%s200 + $0x35f8] sm:$0xff]
        %v1973 = vld [vmem:[%s200 + $0x3600] sm:$0xff]
        %v1974 = vld [vmem:[%s200 + $0x3608] sm:$0xff]
        %v1975 = vld [vmem:[%s200 + $0x3610] sm:$0xff]
        %v1976 = vld [vmem:[%s200 + $0x3618] sm:$0xff]
        %v1977 = vld [vmem:[%s200 + $0x3620] sm:$0xff]
        %v1978 = vld [vmem:[%s200 + $0x3628] sm:$0xff]
        %v1979 = vld [vmem:[%s200 + $0x3630] sm:$0xff]
        %v1980 = vld [vmem:[%s200 + $0x3638] sm:$0xff]
        %v1981 = vld [vmem:[%s200 + $0x3640] sm:$0xff]
        %v1982 = vld [vmem:[%s200 + $0x3648] sm:$0xff]
        %v1983 = vld [vmem:[%s200 + $0x3650] sm:$0xff]
        %v1984 = vld [vmem:[%s200 + $0x3658] sm:$0xff]
        %v1985 = vld [vmem:[%s200 + $0x3660] sm:$0xff]
        %v1986 = vld [vmem:[%s200 + $0x3668] sm:$0xff]
        %v1987 = vld [vmem:[%s200 + $0x3670] sm:$0xff]
        %v1988 = vld [vmem:[%s200 + $0x3678] sm:$0xff]
        %v1989 = vld [vmem:[%s200 + $0x3680] sm:$0xff]
        %v1990 = vld [vmem:[%s200 + $0x3688] sm:$0xff]
        %v1991 = vld [vmem:[%s200 + $0x3690] sm:$0xff]
        %v1992 = vld [vmem:[%s200 + $0x3698] sm:$0xff]
        %v1993 = vld [vmem:[%s200 + $0x36a0] sm:$0xff]
        %v1994 = vld [vmem:[%s200 + $0x36a8] sm:$0xff]
        %v1995 = vld [vmem:[%s200 + $0x36b0] sm:$0xff]
        %v1996 = vld [vmem:[%s200 + $0x36b8] sm:$0xff]
        %v1997 = vld [vmem:[%s200 + $0x36c0] sm:$0xff]
        %v1998 = vld [vmem:[%s200 + $0x36c8] sm:$0xff]
        %v1999 = vld [vmem:[%s200 + $0x36d0] sm:$0xff]
        %v2000 = vld [vmem:[%s200 + $0x36d8] sm:$0xff]
        %v2001 = vld [vmem:[%s200 + $0x36e0] sm:$0xff]
        %v2002 = vld [vmem:[%s200 + $0x36e8] sm:$0xff]
        %v2003 = vld [vmem:[%s200 + $0x36f0] sm:$0xff]
        %v2004 = vld [vmem:[%s200 + $0x36f8] sm:$0xff]
        %v2005 = vld [vmem:[%s200 + $0x3700] sm:$0xff]
        %v2006 = vld [vmem:[%s200 + $0x3708] sm:$0xff]
        %v2007 = vld [vmem:[%s200 + $0x3710] sm:$0xff]
        %v2008 = vld [vmem:[%s200 + $0x3718] sm:$0xff]
        %v2009 = vld [vmem:[%s200 + $0x3720] sm:$0xff]
        %v2010 = vld [vmem:[%s200 + $0x3728] sm:$0xff]
        %v2011 = vld [vmem:[%s200 + $0x3730] sm:$0xff]
        %v2012 = vld [vmem:[%s200 + $0x3738] sm:$0xff]
        %v2013 = vld [vmem:[%s200 + $0x3740] sm:$0xff]
        %v2014 = vld [vmem:[%s200 + $0x3748] sm:$0xff]
        %v2015 = vld [vmem:[%s200 + $0x3750] sm:$0xff]
        %v2016 = vld [vmem:[%s200 + $0x3758] sm:$0xff]
        %v2017 = vld [vmem:[%s200 + $0x3760] sm:$0xff]
        %v2018 = vld [vmem:[%s200 + $0x3768] sm:$0xff]
        %v2019 = vld [vmem:[%s200 + $0x3770] sm:$0xff]
        %v2020 = vld [vmem:[%s200 + $0x3778] sm:$0xff]
        %v2021 = vld [vmem:[%s200 + $0x3780] sm:$0xff]
        %v2022 = vld [vmem:[%s200 + $0x3788] sm:$0xff]
        %v2023 = vld [vmem:[%s200 + $0x3790] sm:$0xff]
        %v2024 = vld [vmem:[%s200 + $0x3798] sm:$0xff]
        %v2025 = vld [vmem:[%s200 + $0x37a0] sm:$0xff]
        %v2026 = vld [vmem:[%s200 + $0x37a8] sm:$0xff]
        %v2027 = vld [vmem:[%s200 + $0x37b0] sm:$0xff]
        %v2028 = vld [vmem:[%s200 + $0x37b8] sm:$0xff]
        %v2029 = vld [vmem:[%s200 + $0x37c0] sm:$0xff]
        %v2030 = vld [vmem:[%s200 + $0x37c8] sm:$0xff]
        %v2031 = vld [vmem:[%s200 + $0x37d0] sm:$0xff]
        %v2032 = vld [vmem:[%s200 + $0x37d8] sm:$0xff]
        %v2033 = vld [vmem:[%s200 + $0x37e0] sm:$0xff]
        %v2034 = vld [vmem:[%s200 + $0x37e8] sm:$0xff]
        %v2035 = vld [vmem:[%s200 + $0x37f0] sm:$0xff]
        %v2036 = vld [vmem:[%s200 + $0x37f8] sm:$0xff]
        %v2037 = vld [vmem:[%s209] sm:$0xff]
        %v2038 = vld [vmem:[%s209 + $0x8] sm:$0xff]
        %v2039 = vld [vmem:[%s209 + $0x10] sm:$0xff]
        %v2040 = vld [vmem:[%s209 + $0x18] sm:$0xff]
        %v2045 = vlaneseq
        %v2046 = vshrl.u32 %v2045, 7
        %v2047 = vsub.s32 0, %v2046
        %v2048 = vrot.slane %v2037, %v2047
        %v2049 = vlaneseq
        %v2050 = vshrl.u32 %v2049, 7
        %v2051 = vsub.s32 1, %v2050
        %v2052 = vrot.slane %v2037, %v2051
        %v2053 = vlaneseq
        %v2054 = vshrl.u32 %v2053, 7
        %v2055 = vsub.s32 2, %v2054
        %v2056 = vrot.slane %v2037, %v2055
        %v2057 = vlaneseq
        %v2058 = vshrl.u32 %v2057, 7
        %v2059 = vsub.s32 3, %v2058
        %v2060 = vrot.slane %v2037, %v2059
        %v2061 = vlaneseq
        %v2062 = vshrl.u32 %v2061, 7
        %v2063 = vsub.s32 4, %v2062
        %v2064 = vrot.slane %v2037, %v2063
        %v2065 = vlaneseq
        %v2066 = vshrl.u32 %v2065, 7
        %v2067 = vsub.s32 5, %v2066
        %v2068 = vrot.slane %v2037, %v2067
        %v2069 = vlaneseq
        %v2070 = vshrl.u32 %v2069, 7
        %v2071 = vsub.s32 6, %v2070
        %v2072 = vrot.slane %v2037, %v2071
        %v2073 = vlaneseq
        %v2074 = vshrl.u32 %v2073, 7
        %v2075 = vsub.s32 7, %v2074
        %v2076 = vrot.slane %v2037, %v2075
        %v2077 = vlaneseq
        %v2078 = vshrl.u32 %v2077, 7
        %v2079 = vsub.s32 0, %v2078
        %v2080 = vrot.slane %v2038, %v2079
        %v2081 = vlaneseq
        %v2082 = vshrl.u32 %v2081, 7
        %v2083 = vsub.s32 1, %v2082
        %v2084 = vrot.slane %v2038, %v2083
        %v2085 = vlaneseq
        %v2086 = vshrl.u32 %v2085, 7
        %v2087 = vsub.s32 2, %v2086
        %v2088 = vrot.slane %v2038, %v2087
        %v2089 = vlaneseq
        %v2090 = vshrl.u32 %v2089, 7
        %v2091 = vsub.s32 3, %v2090
        %v2092 = vrot.slane %v2038, %v2091
        %v2093 = vlaneseq
        %v2094 = vshrl.u32 %v2093, 7
        %v2095 = vsub.s32 4, %v2094
        %v2096 = vrot.slane %v2038, %v2095
        %v2097 = vlaneseq
        %v2098 = vshrl.u32 %v2097, 7
        %v2099 = vsub.s32 5, %v2098
        %v2100 = vrot.slane %v2038, %v2099
        %v2101 = vlaneseq
        %v2102 = vshrl.u32 %v2101, 7
        %v2103 = vsub.s32 6, %v2102
        %v2104 = vrot.slane %v2038, %v2103
        %v2105 = vlaneseq
        %v2106 = vshrl.u32 %v2105, 7
        %v2107 = vsub.s32 7, %v2106
        %v2108 = vrot.slane %v2038, %v2107
        %v2109 = vlaneseq
        %v2110 = vshrl.u32 %v2109, 7
        %v2111 = vsub.s32 0, %v2110
        %v2112 = vrot.slane %v2039, %v2111
        %v2113 = vlaneseq
        %v2114 = vshrl.u32 %v2113, 7
        %v2115 = vsub.s32 1, %v2114
        %v2116 = vrot.slane %v2039, %v2115
        %v2117 = vlaneseq
        %v2118 = vshrl.u32 %v2117, 7
        %v2119 = vsub.s32 2, %v2118
        %v2120 = vrot.slane %v2039, %v2119
        %v2121 = vlaneseq
        %v2122 = vshrl.u32 %v2121, 7
        %v2123 = vsub.s32 3, %v2122
        %v2124 = vrot.slane %v2039, %v2123
        %v2125 = vlaneseq
        %v2126 = vshrl.u32 %v2125, 7
        %v2127 = vsub.s32 4, %v2126
        %v2128 = vrot.slane %v2039, %v2127
        %v2129 = vlaneseq
        %v2130 = vshrl.u32 %v2129, 7
        %v2131 = vsub.s32 5, %v2130
        %v2132 = vrot.slane %v2039, %v2131
        %v2133 = vlaneseq
        %v2134 = vshrl.u32 %v2133, 7
        %v2135 = vsub.s32 6, %v2134
        %v2136 = vrot.slane %v2039, %v2135
        %v2137 = vlaneseq
        %v2138 = vshrl.u32 %v2137, 7
        %v2139 = vsub.s32 7, %v2138
        %v2140 = vrot.slane %v2039, %v2139
        %v2141 = vlaneseq
        %v2142 = vshrl.u32 %v2141, 7
        %v2143 = vsub.s32 0, %v2142
        %v2144 = vrot.slane %v2040, %v2143
        %v2145 = vlaneseq
        %v2146 = vshrl.u32 %v2145, 7
        %v2147 = vsub.s32 1, %v2146
        %v2148 = vrot.slane %v2040, %v2147
        %v2149 = vlaneseq
        %v2150 = vshrl.u32 %v2149, 7
        %v2151 = vsub.s32 2, %v2150
        %v2152 = vrot.slane %v2040, %v2151
        %v2153 = vlaneseq
        %v2154 = vshrl.u32 %v2153, 7
        %v2155 = vsub.s32 3, %v2154
        %v2156 = vrot.slane %v2040, %v2155
        %v2157 = vlaneseq
        %v2158 = vshrl.u32 %v2157, 7
        %v2159 = vsub.s32 4, %v2158
        %v2160 = vrot.slane %v2040, %v2159
        %v2161 = vlaneseq
        %v2162 = vshrl.u32 %v2161, 7
        %v2163 = vsub.s32 5, %v2162
        %v2164 = vrot.slane %v2040, %v2163
        %v2165 = vlaneseq
        %v2166 = vshrl.u32 %v2165, 7
        %v2167 = vsub.s32 6, %v2166
        %v2168 = vrot.slane %v2040, %v2167
        %v2169 = vlaneseq
        %v2170 = vshrl.u32 %v2169, 7
        %v2171 = vsub.s32 7, %v2170
        %v2172 = vrot.slane %v2040, %v2171
        %v2209 = vunpack.c.l.b16 %v241
        %v2210 = vunpack.c.h.b16 %v241
        %v2211 = vunpack.c.l.b16 %v242
        %v2212 = vunpack.c.h.b16 %v242
        %v2213 = vunpack.c.l.b16 %v243
        %v2214 = vunpack.c.h.b16 %v243
        %v2215 = vunpack.c.l.b16 %v244
        %v2216 = vpack.c.b16 %v2209, %v2209
        %v2217 = vpack.c.b16 %v2210, %v2210
        %v2218 = vpack.c.b16 %v2211, %v2211
        %v2219 = vpack.c.b16 %v2212, %v2212
        %v2220 = vpack.c.b16 %v2213, %v2213
        %v2221 = vpack.c.b16 %v2214, %v2214
        %v2222 = vpack.c.b16 %v2215, %v2215
        %v4022 = vunpack.c.l.b16 %v245
        %v4023 = vunpack.c.h.b16 %v245
        %v4024 = vunpack.c.l.b16 %v246
        %v4025 = vunpack.c.h.b16 %v246
        %v4026 = vunpack.c.l.b16 %v247
        %v4027 = vunpack.c.h.b16 %v247
        %v4028 = vunpack.c.l.b16 %v248
        %v4029 = vunpack.c.h.b16 %v248
        %v4030 = vunpack.c.l.b16 %v249
        %v4031 = vunpack.c.h.b16 %v249
        %v4032 = vunpack.c.l.b16 %v250
        %v4033 = vunpack.c.h.b16 %v250
        %v4034 = vunpack.c.l.b16 %v251
        %v4035 = vunpack.c.h.b16 %v251
        %v4036 = vunpack.c.l.b16 %v252
        %v4037 = vunpack.c.h.b16 %v252
        %v4038 = vunpack.c.l.b16 %v253
        %v4039 = vunpack.c.h.b16 %v253
        %v4040 = vunpack.c.l.b16 %v254
        %v4041 = vunpack.c.h.b16 %v254
        %v4042 = vunpack.c.l.b16 %v255
        %v4043 = vunpack.c.h.b16 %v255
        %v4044 = vunpack.c.l.b16 %v256
        %v4045 = vunpack.c.h.b16 %v256
        %v4046 = vunpack.c.l.b16 %v257
        %v4047 = vunpack.c.h.b16 %v257
        %v4048 = vunpack.c.l.b16 %v258
        %v4049 = vunpack.c.h.b16 %v258
        %v4050 = vunpack.c.l.b16 %v259
        %v4051 = vunpack.c.h.b16 %v259
        %v4052 = vunpack.c.l.b16 %v260
        %v4053 = vunpack.c.h.b16 %v260
        %v4054 = vunpack.c.l.b16 %v261
        %v4055 = vunpack.c.h.b16 %v261
        %v4056 = vunpack.c.l.b16 %v262
        %v4057 = vunpack.c.h.b16 %v262
        %v4058 = vunpack.c.l.b16 %v263
        %v4059 = vunpack.c.h.b16 %v263
        %v4060 = vunpack.c.l.b16 %v264
        %v4061 = vunpack.c.h.b16 %v264
        %v4062 = vunpack.c.l.b16 %v265
        %v4063 = vunpack.c.h.b16 %v265
        %v4064 = vunpack.c.l.b16 %v266
        %v4065 = vunpack.c.h.b16 %v266
        %v4066 = vunpack.c.l.b16 %v267
        %v4067 = vunpack.c.h.b16 %v267
        %v4068 = vunpack.c.l.b16 %v268
        %v4069 = vunpack.c.h.b16 %v268
        %v4070 = vunpack.c.l.b16 %v269
        %v4071 = vunpack.c.h.b16 %v269
        %v4072 = vunpack.c.l.b16 %v270
        %v4073 = vunpack.c.h.b16 %v270
        %v4074 = vunpack.c.l.b16 %v271
        %v4075 = vunpack.c.h.b16 %v271
        %v4076 = vunpack.c.l.b16 %v272
        %v4077 = vunpack.c.h.b16 %v272
        %v4078 = vunpack.c.l.b16 %v273
        %v4079 = vunpack.c.h.b16 %v273
        %v4080 = vunpack.c.l.b16 %v274
        %v4081 = vunpack.c.h.b16 %v274
        %v4082 = vunpack.c.l.b16 %v275
        %v4083 = vunpack.c.h.b16 %v275
        %v4084 = vunpack.c.l.b16 %v276
        %v4085 = vunpack.c.h.b16 %v276
        %v4086 = vunpack.c.l.b16 %v277
        %v4087 = vunpack.c.h.b16 %v277
        %v4088 = vunpack.c.l.b16 %v278
        %v4089 = vunpack.c.h.b16 %v278
        %v4090 = vunpack.c.l.b16 %v279
        %v4091 = vunpack.c.h.b16 %v279
        %v4092 = vunpack.c.l.b16 %v280
        %v4093 = vunpack.c.h.b16 %v280
        %v4094 = vunpack.c.l.b16 %v281
        %v4095 = vunpack.c.h.b16 %v281
        %v4096 = vunpack.c.l.b16 %v282
        %v4097 = vunpack.c.h.b16 %v282
        %v4098 = vunpack.c.l.b16 %v283
        %v4099 = vunpack.c.h.b16 %v283
        %v4100 = vunpack.c.l.b16 %v284
        %v4101 = vunpack.c.h.b16 %v284
        %v4102 = vunpack.c.l.b16 %v285
        %v4103 = vunpack.c.h.b16 %v285
        %v4104 = vunpack.c.l.b16 %v286
        %v4105 = vunpack.c.h.b16 %v286
        %v4106 = vunpack.c.l.b16 %v287
        %v4107 = vunpack.c.h.b16 %v287
        %v4108 = vunpack.c.l.b16 %v288
        %v4109 = vunpack.c.h.b16 %v288
        %v4110 = vunpack.c.l.b16 %v289
        %v4111 = vunpack.c.h.b16 %v289
        %v4112 = vunpack.c.l.b16 %v290
        %v4113 = vunpack.c.h.b16 %v290
        %v4114 = vunpack.c.l.b16 %v291
        %v4115 = vunpack.c.h.b16 %v291
        %v4116 = vunpack.c.l.b16 %v292
        %v4117 = vunpack.c.h.b16 %v292
        %v4118 = vunpack.c.l.b16 %v293
        %v4119 = vunpack.c.h.b16 %v293
        %v4120 = vunpack.c.l.b16 %v294
        %v4121 = vunpack.c.h.b16 %v294
        %v4122 = vunpack.c.l.b16 %v295
        %v4123 = vunpack.c.h.b16 %v295
        %v4124 = vunpack.c.l.b16 %v296
        %v4125 = vunpack.c.h.b16 %v296
        %v4126 = vunpack.c.l.b16 %v297
        %v4127 = vunpack.c.h.b16 %v297
        %v4128 = vunpack.c.l.b16 %v298
        %v4129 = vunpack.c.h.b16 %v298
        %v4130 = vunpack.c.l.b16 %v299
        %v4131 = vunpack.c.h.b16 %v299
        %v4132 = vunpack.c.l.b16 %v300
        %v4133 = vunpack.c.h.b16 %v300
        %v4134 = vunpack.c.l.b16 %v301
        %v4135 = vunpack.c.h.b16 %v301
        %v4136 = vunpack.c.l.b16 %v302
        %v4137 = vunpack.c.h.b16 %v302
        %v4138 = vunpack.c.l.b16 %v303
        %v4139 = vunpack.c.h.b16 %v303
        %v4140 = vunpack.c.l.b16 %v304
        %v4141 = vunpack.c.h.b16 %v304
        %v4142 = vunpack.c.l.b16 %v305
        %v4143 = vunpack.c.h.b16 %v305
        %v4144 = vunpack.c.l.b16 %v306
        %v4145 = vunpack.c.h.b16 %v306
        %v4146 = vunpack.c.l.b16 %v307
        %v4147 = vunpack.c.h.b16 %v307
        %v4148 = vunpack.c.l.b16 %v308
        %v4149 = vunpack.c.h.b16 %v308
        %v4150 = vunpack.c.l.b16 %v309
        %v4151 = vunpack.c.h.b16 %v309
        %v4152 = vunpack.c.l.b16 %v310
        %v4153 = vunpack.c.h.b16 %v310
        %v4154 = vunpack.c.l.b16 %v311
        %v4155 = vunpack.c.h.b16 %v311
        %v4156 = vunpack.c.l.b16 %v312
        %v4157 = vunpack.c.h.b16 %v312
        %v4158 = vunpack.c.l.b16 %v313
        %v4159 = vunpack.c.h.b16 %v313
        %v4160 = vunpack.c.l.b16 %v314
        %v4161 = vunpack.c.h.b16 %v314
        %v4162 = vunpack.c.l.b16 %v315
        %v4163 = vunpack.c.h.b16 %v315
        %v4164 = vunpack.c.l.b16 %v316
        %v4165 = vunpack.c.h.b16 %v316
        %v4166 = vunpack.c.l.b16 %v317
        %v4167 = vunpack.c.h.b16 %v317
        %v4168 = vunpack.c.l.b16 %v318
        %v4169 = vunpack.c.h.b16 %v318
        %v4170 = vunpack.c.l.b16 %v319
        %v4171 = vunpack.c.h.b16 %v319
        %v4172 = vunpack.c.l.b16 %v320
        %v4173 = vunpack.c.h.b16 %v320
        %v4174 = vunpack.c.l.b16 %v321
        %v4175 = vunpack.c.h.b16 %v321
        %v4176 = vunpack.c.l.b16 %v322
        %v4177 = vunpack.c.h.b16 %v322
        %v4178 = vunpack.c.l.b16 %v323
        %v4179 = vunpack.c.h.b16 %v323
        %v4180 = vunpack.c.l.b16 %v324
        %v4181 = vunpack.c.h.b16 %v324
        %v4182 = vunpack.c.l.b16 %v325
        %v4183 = vunpack.c.h.b16 %v325
        %v4184 = vunpack.c.l.b16 %v326
        %v4185 = vunpack.c.h.b16 %v326
        %v4186 = vunpack.c.l.b16 %v327
        %v4187 = vunpack.c.h.b16 %v327
        %v4188 = vunpack.c.l.b16 %v328
        %v4189 = vunpack.c.h.b16 %v328
        %v4190 = vunpack.c.l.b16 %v329
        %v4191 = vunpack.c.h.b16 %v329
        %v4192 = vunpack.c.l.b16 %v330
        %v4193 = vunpack.c.h.b16 %v330
        %v4194 = vunpack.c.l.b16 %v331
        %v4195 = vunpack.c.h.b16 %v331
        %v4196 = vunpack.c.l.b16 %v332
        %v4197 = vunpack.c.h.b16 %v332
        %v4198 = vunpack.c.l.b16 %v333
        %v4199 = vunpack.c.h.b16 %v333
        %v4200 = vunpack.c.l.b16 %v334
        %v4201 = vunpack.c.h.b16 %v334
        %v4202 = vunpack.c.l.b16 %v335
        %v4203 = vunpack.c.h.b16 %v335
        %v4204 = vunpack.c.l.b16 %v336
        %v4205 = vunpack.c.h.b16 %v336
        %v4206 = vunpack.c.l.b16 %v337
        %v4207 = vunpack.c.h.b16 %v337
        %v4208 = vunpack.c.l.b16 %v338
        %v4209 = vunpack.c.h.b16 %v338
        %v4210 = vunpack.c.l.b16 %v339
        %v4211 = vunpack.c.h.b16 %v339
        %v4212 = vunpack.c.l.b16 %v340
        %v4213 = vunpack.c.h.b16 %v340
        %v4214 = vunpack.c.l.b16 %v341
        %v4215 = vunpack.c.h.b16 %v341
        %v4216 = vunpack.c.l.b16 %v342
        %v4217 = vunpack.c.h.b16 %v342
        %v4218 = vunpack.c.l.b16 %v343
        %v4219 = vunpack.c.h.b16 %v343
        %v4220 = vunpack.c.l.b16 %v344
        %v4221 = vunpack.c.h.b16 %v344
        %v4222 = vunpack.c.l.b16 %v345
        %v4223 = vunpack.c.h.b16 %v345
        %v4224 = vunpack.c.l.b16 %v346
        %v4225 = vunpack.c.h.b16 %v346
        %v4226 = vunpack.c.l.b16 %v347
        %v4227 = vunpack.c.h.b16 %v347
        %v4228 = vunpack.c.l.b16 %v348
        %v4229 = vunpack.c.h.b16 %v348
        %v4230 = vunpack.c.l.b16 %v349
        %v4231 = vunpack.c.h.b16 %v349
        %v4232 = vunpack.c.l.b16 %v350
        %v4233 = vunpack.c.h.b16 %v350
        %v4234 = vunpack.c.l.b16 %v351
        %v4235 = vunpack.c.h.b16 %v351
        %v4236 = vunpack.c.l.b16 %v352
        %v4237 = vunpack.c.h.b16 %v352
        %v4238 = vunpack.c.l.b16 %v353
        %v4239 = vunpack.c.h.b16 %v353
        %v4240 = vunpack.c.l.b16 %v354
        %v4241 = vunpack.c.h.b16 %v354
        %v4242 = vunpack.c.l.b16 %v355
        %v4243 = vunpack.c.h.b16 %v355
        %v4244 = vunpack.c.l.b16 %v356
        %v4245 = vunpack.c.h.b16 %v356
        %v4246 = vunpack.c.l.b16 %v357
        %v4247 = vunpack.c.h.b16 %v357
        %v4248 = vunpack.c.l.b16 %v358
        %v4249 = vunpack.c.h.b16 %v358
        %v4250 = vunpack.c.l.b16 %v359
        %v4251 = vunpack.c.h.b16 %v359
        %v4252 = vunpack.c.l.b16 %v360
        %v4253 = vunpack.c.h.b16 %v360
        %v4254 = vunpack.c.l.b16 %v361
        %v4255 = vunpack.c.h.b16 %v361
        %v4256 = vunpack.c.l.b16 %v362
        %v4257 = vunpack.c.h.b16 %v362
        %v4258 = vunpack.c.l.b16 %v363
        %v4259 = vunpack.c.h.b16 %v363
        %v4260 = vunpack.c.l.b16 %v364
        %v4261 = vunpack.c.h.b16 %v364
        %v4262 = vunpack.c.l.b16 %v365
        %v4263 = vunpack.c.h.b16 %v365
        %v4264 = vunpack.c.l.b16 %v366
        %v4265 = vunpack.c.h.b16 %v366
        %v4266 = vunpack.c.l.b16 %v367
        %v4267 = vunpack.c.h.b16 %v367
        %v4268 = vunpack.c.l.b16 %v368
        %v4269 = vunpack.c.h.b16 %v368
        %v4270 = vunpack.c.l.b16 %v369
        %v4271 = vunpack.c.h.b16 %v369
        %v4272 = vunpack.c.l.b16 %v370
        %v4273 = vunpack.c.h.b16 %v370
        %v4274 = vunpack.c.l.b16 %v371
        %v4275 = vunpack.c.h.b16 %v371
        %v4276 = vunpack.c.l.b16 %v372
        %v4277 = vunpack.c.h.b16 %v372
        %v4278 = vunpack.c.l.b16 %v373
        %v4279 = vunpack.c.h.b16 %v373
        %v4280 = vunpack.c.l.b16 %v374
        %v4281 = vunpack.c.h.b16 %v374
        %v4282 = vunpack.c.l.b16 %v375
        %v4283 = vunpack.c.h.b16 %v375
        %v4284 = vunpack.c.l.b16 %v376
        %v4285 = vunpack.c.h.b16 %v376
        %v4286 = vunpack.c.l.b16 %v377
        %v4287 = vunpack.c.h.b16 %v377
        %v4288 = vunpack.c.l.b16 %v378
        %v4289 = vunpack.c.h.b16 %v378
        %v4290 = vunpack.c.l.b16 %v379
        %v4291 = vunpack.c.h.b16 %v379
        %v4292 = vunpack.c.l.b16 %v380
        %v4293 = vunpack.c.h.b16 %v380
        %v4294 = vunpack.c.l.b16 %v381
        %v4295 = vunpack.c.h.b16 %v381
        %v4296 = vunpack.c.l.b16 %v382
        %v4297 = vunpack.c.h.b16 %v382
        %v4298 = vunpack.c.l.b16 %v383
        %v4299 = vunpack.c.h.b16 %v383
        %v4300 = vunpack.c.l.b16 %v384
        %v4301 = vunpack.c.h.b16 %v384
        %v4302 = vunpack.c.l.b16 %v385
        %v4303 = vunpack.c.h.b16 %v385
        %v4304 = vunpack.c.l.b16 %v386
        %v4305 = vunpack.c.h.b16 %v386
        %v4306 = vunpack.c.l.b16 %v387
        %v4307 = vunpack.c.h.b16 %v387
        %v4308 = vunpack.c.l.b16 %v388
        %v4309 = vunpack.c.h.b16 %v388
        %v4310 = vunpack.c.l.b16 %v389
        %v4311 = vunpack.c.h.b16 %v389
        %v4312 = vunpack.c.l.b16 %v390
        %v4313 = vunpack.c.h.b16 %v390
        %v4314 = vunpack.c.l.b16 %v391
        %v4315 = vunpack.c.h.b16 %v391
        %v4316 = vunpack.c.l.b16 %v392
        %v4317 = vunpack.c.h.b16 %v392
        %v4318 = vunpack.c.l.b16 %v393
        %v4319 = vunpack.c.h.b16 %v393
        %v4320 = vunpack.c.l.b16 %v394
        %v4321 = vunpack.c.h.b16 %v394
        %v4322 = vunpack.c.l.b16 %v395
        %v4323 = vunpack.c.h.b16 %v395
        %v4324 = vunpack.c.l.b16 %v396
        %v4325 = vunpack.c.h.b16 %v396
        %v4326 = vunpack.c.l.b16 %v397
        %v4327 = vunpack.c.h.b16 %v397
        %v4328 = vunpack.c.l.b16 %v398
        %v4329 = vunpack.c.h.b16 %v398
        %v4330 = vunpack.c.l.b16 %v399
        %v4331 = vunpack.c.h.b16 %v399
        %v4332 = vunpack.c.l.b16 %v400
        %v4333 = vunpack.c.h.b16 %v400
        %v4334 = vunpack.c.l.b16 %v401
        %v4335 = vunpack.c.h.b16 %v401
        %v4336 = vunpack.c.l.b16 %v402
        %v4337 = vunpack.c.h.b16 %v402
        %v4338 = vunpack.c.l.b16 %v403
        %v4339 = vunpack.c.h.b16 %v403
        %v4340 = vunpack.c.l.b16 %v404
        %v4341 = vunpack.c.h.b16 %v404
        %v4342 = vunpack.c.l.b16 %v405
        %v4343 = vunpack.c.h.b16 %v405
        %v4344 = vunpack.c.l.b16 %v406
        %v4345 = vunpack.c.h.b16 %v406
        %v4346 = vunpack.c.l.b16 %v407
        %v4347 = vunpack.c.h.b16 %v407
        %v4348 = vunpack.c.l.b16 %v408
        %v4349 = vunpack.c.h.b16 %v408
        %v4350 = vunpack.c.l.b16 %v409
        %v4351 = vunpack.c.h.b16 %v409
        %v4352 = vunpack.c.l.b16 %v410
        %v4353 = vunpack.c.h.b16 %v410
        %v4354 = vunpack.c.l.b16 %v411
        %v4355 = vunpack.c.h.b16 %v411
        %v4356 = vunpack.c.l.b16 %v412
        %v4357 = vunpack.c.h.b16 %v412
        %v4358 = vunpack.c.l.b16 %v413
        %v4359 = vunpack.c.h.b16 %v413
        %v4360 = vunpack.c.l.b16 %v414
        %v4361 = vunpack.c.h.b16 %v414
        %v4362 = vunpack.c.l.b16 %v415
        %v4363 = vunpack.c.h.b16 %v415
        %v4364 = vunpack.c.l.b16 %v416
        %v4365 = vunpack.c.h.b16 %v416
        %v4366 = vunpack.c.l.b16 %v417
        %v4367 = vunpack.c.h.b16 %v417
        %v4368 = vunpack.c.l.b16 %v418
        %v4369 = vunpack.c.h.b16 %v418
        %v4370 = vunpack.c.l.b16 %v419
        %v4371 = vunpack.c.h.b16 %v419
        %v4372 = vunpack.c.l.b16 %v420
        %v4373 = vunpack.c.h.b16 %v420
        %v4374 = vunpack.c.l.b16 %v421
        %v4375 = vunpack.c.h.b16 %v421
        %v4376 = vunpack.c.l.b16 %v422
        %v4377 = vunpack.c.h.b16 %v422
        %v4378 = vunpack.c.l.b16 %v423
        %v4379 = vunpack.c.h.b16 %v423
        %v4380 = vunpack.c.l.b16 %v424
        %v4381 = vunpack.c.h.b16 %v424
        %v4382 = vunpack.c.l.b16 %v425
        %v4383 = vunpack.c.h.b16 %v425
        %v4384 = vunpack.c.l.b16 %v426
        %v4385 = vunpack.c.h.b16 %v426
        %v4386 = vunpack.c.l.b16 %v427
        %v4387 = vunpack.c.h.b16 %v427
        %v4388 = vunpack.c.l.b16 %v428
        %v4389 = vunpack.c.h.b16 %v428
        %v4390 = vunpack.c.l.b16 %v429
        %v4391 = vunpack.c.h.b16 %v429
        %v4392 = vunpack.c.l.b16 %v430
        %v4393 = vunpack.c.h.b16 %v430
        %v4394 = vunpack.c.l.b16 %v431
        %v4395 = vunpack.c.h.b16 %v431
        %v4396 = vunpack.c.l.b16 %v432
        %v4397 = vunpack.c.h.b16 %v432
        %v4398 = vunpack.c.l.b16 %v433
        %v4399 = vunpack.c.h.b16 %v433
        %v4400 = vunpack.c.l.b16 %v434
        %v4401 = vunpack.c.h.b16 %v434
        %v4402 = vunpack.c.l.b16 %v435
        %v4403 = vunpack.c.h.b16 %v435
        %v4404 = vunpack.c.l.b16 %v436
        %v4405 = vunpack.c.h.b16 %v436
        %v4406 = vunpack.c.l.b16 %v437
        %v4407 = vunpack.c.h.b16 %v437
        %v4408 = vunpack.c.l.b16 %v438
        %v4409 = vunpack.c.h.b16 %v438
        %v4410 = vunpack.c.l.b16 %v439
        %v4411 = vunpack.c.h.b16 %v439
        %v4412 = vunpack.c.l.b16 %v440
        %v4413 = vunpack.c.h.b16 %v440
        %v4414 = vunpack.c.l.b16 %v441
        %v4415 = vunpack.c.h.b16 %v441
        %v4416 = vunpack.c.l.b16 %v442
        %v4417 = vunpack.c.h.b16 %v442
        %v4418 = vunpack.c.l.b16 %v443
        %v4419 = vunpack.c.h.b16 %v443
        %v4420 = vunpack.c.l.b16 %v444
        %v4421 = vunpack.c.h.b16 %v444
        %v4422 = vunpack.c.l.b16 %v445
        %v4423 = vunpack.c.h.b16 %v445
        %v4424 = vunpack.c.l.b16 %v446
        %v4425 = vunpack.c.h.b16 %v446
        %v4426 = vunpack.c.l.b16 %v447
        %v4427 = vunpack.c.h.b16 %v447
        %v4428 = vunpack.c.l.b16 %v448
        %v4429 = vunpack.c.h.b16 %v448
        %v4430 = vunpack.c.l.b16 %v449
        %v4431 = vunpack.c.h.b16 %v449
        %v4432 = vunpack.c.l.b16 %v450
        %v4433 = vunpack.c.h.b16 %v450
        %v4434 = vunpack.c.l.b16 %v451
        %v4435 = vunpack.c.h.b16 %v451
        %v4436 = vunpack.c.l.b16 %v452
        %v4437 = vunpack.c.h.b16 %v452
        %v4438 = vunpack.c.l.b16 %v453
        %v4439 = vunpack.c.h.b16 %v453
        %v4440 = vunpack.c.l.b16 %v454
        %v4441 = vunpack.c.h.b16 %v454
        %v4442 = vunpack.c.l.b16 %v455
        %v4443 = vunpack.c.h.b16 %v455
        %v4444 = vunpack.c.l.b16 %v456
        %v4445 = vunpack.c.h.b16 %v456
        %v4446 = vunpack.c.l.b16 %v457
        %v4447 = vunpack.c.h.b16 %v457
        %v4448 = vunpack.c.l.b16 %v458
        %v4449 = vunpack.c.h.b16 %v458
        %v4450 = vunpack.c.l.b16 %v459
        %v4451 = vunpack.c.h.b16 %v459
        %v4452 = vunpack.c.l.b16 %v460
        %v4453 = vunpack.c.h.b16 %v460
        %v4454 = vunpack.c.l.b16 %v461
        %v4455 = vunpack.c.h.b16 %v461
        %v4456 = vunpack.c.l.b16 %v462
        %v4457 = vunpack.c.h.b16 %v462
        %v4458 = vunpack.c.l.b16 %v463
        %v4459 = vunpack.c.h.b16 %v463
        %v4460 = vunpack.c.l.b16 %v464
        %v4461 = vunpack.c.h.b16 %v464
        %v4462 = vunpack.c.l.b16 %v465
        %v4463 = vunpack.c.h.b16 %v465
        %v4464 = vunpack.c.l.b16 %v466
        %v4465 = vunpack.c.h.b16 %v466
        %v4466 = vunpack.c.l.b16 %v467
        %v4467 = vunpack.c.h.b16 %v467
        %v4468 = vunpack.c.l.b16 %v468
        %v4469 = vunpack.c.h.b16 %v468
        %v4470 = vunpack.c.l.b16 %v469
        %v4471 = vunpack.c.h.b16 %v469
        %v4472 = vunpack.c.l.b16 %v470
        %v4473 = vunpack.c.h.b16 %v470
        %v4474 = vunpack.c.l.b16 %v471
        %v4475 = vunpack.c.h.b16 %v471
        %v4476 = vunpack.c.l.b16 %v472
        %v4477 = vunpack.c.h.b16 %v472
        %v4478 = vunpack.c.l.b16 %v473
        %v4479 = vunpack.c.h.b16 %v473
        %v4480 = vunpack.c.l.b16 %v474
        %v4481 = vunpack.c.h.b16 %v474
        %v4482 = vunpack.c.l.b16 %v475
        %v4483 = vunpack.c.h.b16 %v475
        %v4484 = vunpack.c.l.b16 %v476
        %v4485 = vunpack.c.h.b16 %v476
        %v4486 = vunpack.c.l.b16 %v477
        %v4487 = vunpack.c.h.b16 %v477
        %v4488 = vunpack.c.l.b16 %v478
        %v4489 = vunpack.c.h.b16 %v478
        %v4490 = vunpack.c.l.b16 %v479
        %v4491 = vunpack.c.h.b16 %v479
        %v4492 = vunpack.c.l.b16 %v480
        %v4493 = vunpack.c.h.b16 %v480
        %v4494 = vunpack.c.l.b16 %v481
        %v4495 = vunpack.c.h.b16 %v481
        %v4496 = vunpack.c.l.b16 %v482
        %v4497 = vunpack.c.h.b16 %v482
        %v4498 = vunpack.c.l.b16 %v483
        %v4499 = vunpack.c.h.b16 %v483
        %v4500 = vunpack.c.l.b16 %v484
        %v4501 = vunpack.c.h.b16 %v484
        %v4502 = vunpack.c.l.b16 %v485
        %v4503 = vunpack.c.h.b16 %v485
        %v4504 = vunpack.c.l.b16 %v486
        %v4505 = vunpack.c.h.b16 %v486
        %v4506 = vunpack.c.l.b16 %v487
        %v4507 = vunpack.c.h.b16 %v487
        %v4508 = vunpack.c.l.b16 %v488
        %v4509 = vunpack.c.h.b16 %v488
        %v4510 = vunpack.c.l.b16 %v489
        %v4511 = vunpack.c.h.b16 %v489
        %v4512 = vunpack.c.l.b16 %v490
        %v4513 = vunpack.c.h.b16 %v490
        %v4514 = vunpack.c.l.b16 %v491
        %v4515 = vunpack.c.h.b16 %v491
        %v4516 = vunpack.c.l.b16 %v492
        %v4517 = vunpack.c.h.b16 %v492
        %v4518 = vunpack.c.l.b16 %v493
        %v4519 = vunpack.c.h.b16 %v493
        %v4520 = vunpack.c.l.b16 %v494
        %v4521 = vunpack.c.h.b16 %v494
        %v4522 = vunpack.c.l.b16 %v495
        %v4523 = vunpack.c.h.b16 %v495
        %v4524 = vunpack.c.l.b16 %v496
        %v4525 = vunpack.c.h.b16 %v496
        %v4526 = vunpack.c.l.b16 %v497
        %v4527 = vunpack.c.h.b16 %v497
        %v4528 = vunpack.c.l.b16 %v498
        %v4529 = vunpack.c.h.b16 %v498
        %v4530 = vunpack.c.l.b16 %v499
        %v4531 = vunpack.c.h.b16 %v499
        %v4532 = vunpack.c.l.b16 %v500
        %v4533 = vunpack.c.h.b16 %v500
        %v4534 = vunpack.c.l.b16 %v501
        %v4535 = vunpack.c.h.b16 %v501
        %v4536 = vunpack.c.l.b16 %v502
        %v4537 = vunpack.c.h.b16 %v502
        %v4538 = vunpack.c.l.b16 %v503
        %v4539 = vunpack.c.h.b16 %v503
        %v4540 = vunpack.c.l.b16 %v504
        %v4541 = vunpack.c.h.b16 %v504
        %v4542 = vunpack.c.l.b16 %v505
        %v4543 = vunpack.c.h.b16 %v505
        %v4544 = vunpack.c.l.b16 %v506
        %v4545 = vunpack.c.h.b16 %v506
        %v4546 = vunpack.c.l.b16 %v507
        %v4547 = vunpack.c.h.b16 %v507
        %v4548 = vunpack.c.l.b16 %v508
        %v4549 = vunpack.c.h.b16 %v508
        %v4550 = vunpack.c.l.b16 %v509
        %v4551 = vunpack.c.h.b16 %v509
        %v4552 = vunpack.c.l.b16 %v510
        %v4553 = vunpack.c.h.b16 %v510
        %v4554 = vunpack.c.l.b16 %v511
        %v4555 = vunpack.c.h.b16 %v511
        %v4556 = vunpack.c.l.b16 %v512
        %v4557 = vunpack.c.h.b16 %v512
        %v4558 = vunpack.c.l.b16 %v513
        %v4559 = vunpack.c.h.b16 %v513
        %v4560 = vunpack.c.l.b16 %v514
        %v4561 = vunpack.c.h.b16 %v514
        %v4562 = vunpack.c.l.b16 %v515
        %v4563 = vunpack.c.h.b16 %v515
        %v4564 = vunpack.c.l.b16 %v516
        %v4565 = vunpack.c.h.b16 %v516
        %v4566 = vunpack.c.l.b16 %v517
        %v4567 = vunpack.c.h.b16 %v517
        %v4568 = vunpack.c.l.b16 %v518
        %v4569 = vunpack.c.h.b16 %v518
        %v4570 = vunpack.c.l.b16 %v519
        %v4571 = vunpack.c.h.b16 %v519
        %v4572 = vunpack.c.l.b16 %v520
        %v4573 = vunpack.c.h.b16 %v520
        %v4574 = vunpack.c.l.b16 %v521
        %v4575 = vunpack.c.h.b16 %v521
        %v4576 = vunpack.c.l.b16 %v522
        %v4577 = vunpack.c.h.b16 %v522
        %v4578 = vunpack.c.l.b16 %v523
        %v4579 = vunpack.c.h.b16 %v523
        %v4580 = vunpack.c.l.b16 %v524
        %v4581 = vunpack.c.h.b16 %v524
        %v4582 = vunpack.c.l.b16 %v525
        %v4583 = vunpack.c.h.b16 %v525
        %v4584 = vunpack.c.l.b16 %v526
        %v4585 = vunpack.c.h.b16 %v526
        %v4586 = vunpack.c.l.b16 %v527
        %v4587 = vunpack.c.h.b16 %v527
        %v4588 = vunpack.c.l.b16 %v528
        %v4589 = vunpack.c.h.b16 %v528
        %v4590 = vunpack.c.l.b16 %v529
        %v4591 = vunpack.c.h.b16 %v529
        %v4592 = vunpack.c.l.b16 %v530
        %v4593 = vunpack.c.h.b16 %v530
        %v4594 = vunpack.c.l.b16 %v531
        %v4595 = vunpack.c.h.b16 %v531
        %v4596 = vunpack.c.l.b16 %v532
        %v4597 = vunpack.c.h.b16 %v532
        %v4598 = vunpack.c.l.b16 %v533
        %v4599 = vunpack.c.h.b16 %v533
        %v4600 = vunpack.c.l.b16 %v534
        %v4601 = vunpack.c.h.b16 %v534
        %v4602 = vunpack.c.l.b16 %v535
        %v4603 = vunpack.c.h.b16 %v535
        %v4604 = vunpack.c.l.b16 %v536
        %v4605 = vunpack.c.h.b16 %v536
        %v4606 = vunpack.c.l.b16 %v537
        %v4607 = vunpack.c.h.b16 %v537
        %v4608 = vunpack.c.l.b16 %v538
        %v4609 = vunpack.c.h.b16 %v538
        %v4610 = vunpack.c.l.b16 %v539
        %v4611 = vunpack.c.h.b16 %v539
        %v4612 = vunpack.c.l.b16 %v540
        %v4613 = vunpack.c.h.b16 %v540
        %v4614 = vunpack.c.l.b16 %v541
        %v4615 = vunpack.c.h.b16 %v541
        %v4616 = vunpack.c.l.b16 %v542
        %v4617 = vunpack.c.h.b16 %v542
        %v4618 = vunpack.c.l.b16 %v543
        %v4619 = vunpack.c.h.b16 %v543
        %v4620 = vunpack.c.l.b16 %v544
        %v4621 = vunpack.c.h.b16 %v544
        %v4622 = vunpack.c.l.b16 %v545
        %v4623 = vunpack.c.h.b16 %v545
        %v4624 = vunpack.c.l.b16 %v546
        %v4625 = vunpack.c.h.b16 %v546
        %v4626 = vunpack.c.l.b16 %v547
        %v4627 = vunpack.c.h.b16 %v547
        %v4628 = vunpack.c.l.b16 %v548
        %v4629 = vunpack.c.h.b16 %v548
        %v4630 = vunpack.c.l.b16 %v549
        %v4631 = vunpack.c.h.b16 %v549
        %v4632 = vunpack.c.l.b16 %v550
        %v4633 = vunpack.c.h.b16 %v550
        %v4634 = vunpack.c.l.b16 %v551
        %v4635 = vunpack.c.h.b16 %v551
        %v4636 = vunpack.c.l.b16 %v552
        %v4637 = vunpack.c.h.b16 %v552
        %v4638 = vunpack.c.l.b16 %v553
        %v4639 = vunpack.c.h.b16 %v553
        %v4640 = vunpack.c.l.b16 %v554
        %v4641 = vunpack.c.h.b16 %v554
        %v4642 = vunpack.c.l.b16 %v555
        %v4643 = vunpack.c.h.b16 %v555
        %v4644 = vunpack.c.l.b16 %v556
        %v4645 = vunpack.c.h.b16 %v556
        %v4646 = vunpack.c.l.b16 %v557
        %v4647 = vunpack.c.h.b16 %v557
        %v4648 = vunpack.c.l.b16 %v558
        %v4649 = vunpack.c.h.b16 %v558
        %v4650 = vunpack.c.l.b16 %v559
        %v4651 = vunpack.c.h.b16 %v559
        %v4652 = vunpack.c.l.b16 %v560
        %v4653 = vunpack.c.h.b16 %v560
        %v4654 = vunpack.c.l.b16 %v561
        %v4655 = vunpack.c.h.b16 %v561
        %v4656 = vunpack.c.l.b16 %v562
        %v4657 = vunpack.c.h.b16 %v562
        %v4658 = vunpack.c.l.b16 %v563
        %v4659 = vunpack.c.h.b16 %v563
        %v4660 = vunpack.c.l.b16 %v564
        %v4661 = vunpack.c.h.b16 %v564
        %v4662 = vunpack.c.l.b16 %v565
        %v4663 = vunpack.c.h.b16 %v565
        %v4664 = vunpack.c.l.b16 %v566
        %v4665 = vunpack.c.h.b16 %v566
        %v4666 = vunpack.c.l.b16 %v567
        %v4667 = vunpack.c.h.b16 %v567
        %v4668 = vunpack.c.l.b16 %v568
        %v4669 = vunpack.c.h.b16 %v568
        %v4670 = vunpack.c.l.b16 %v569
        %v4671 = vunpack.c.h.b16 %v569
        %v4672 = vunpack.c.l.b16 %v570
        %v4673 = vunpack.c.h.b16 %v570
        %v4674 = vunpack.c.l.b16 %v571
        %v4675 = vunpack.c.h.b16 %v571
        %v4676 = vunpack.c.l.b16 %v572
        %v4677 = vunpack.c.h.b16 %v572
        %v4678 = vunpack.c.l.b16 %v573
        %v4679 = vunpack.c.h.b16 %v573
        %v4680 = vunpack.c.l.b16 %v574
        %v4681 = vunpack.c.h.b16 %v574
        %v4682 = vunpack.c.l.b16 %v575
        %v4683 = vunpack.c.h.b16 %v575
        %v4684 = vunpack.c.l.b16 %v576
        %v4685 = vunpack.c.h.b16 %v576
        %v4686 = vunpack.c.l.b16 %v577
        %v4687 = vunpack.c.h.b16 %v577
        %v4688 = vunpack.c.l.b16 %v578
        %v4689 = vunpack.c.h.b16 %v578
        %v4690 = vunpack.c.l.b16 %v579
        %v4691 = vunpack.c.h.b16 %v579
        %v4692 = vunpack.c.l.b16 %v580
        %v4693 = vunpack.c.h.b16 %v580
        %v4694 = vunpack.c.l.b16 %v581
        %v4695 = vunpack.c.h.b16 %v581
        %v4696 = vunpack.c.l.b16 %v582
        %v4697 = vunpack.c.h.b16 %v582
        %v4698 = vunpack.c.l.b16 %v583
        %v4699 = vunpack.c.h.b16 %v583
        %v4700 = vunpack.c.l.b16 %v584
        %v4701 = vunpack.c.h.b16 %v584
        %v4702 = vunpack.c.l.b16 %v585
        %v4703 = vunpack.c.h.b16 %v585
        %v4704 = vunpack.c.l.b16 %v586
        %v4705 = vunpack.c.h.b16 %v586
        %v4706 = vunpack.c.l.b16 %v587
        %v4707 = vunpack.c.h.b16 %v587
        %v4708 = vunpack.c.l.b16 %v588
        %v4709 = vunpack.c.h.b16 %v588
        %v4710 = vunpack.c.l.b16 %v589
        %v4711 = vunpack.c.h.b16 %v589
        %v4712 = vunpack.c.l.b16 %v590
        %v4713 = vunpack.c.h.b16 %v590
        %v4714 = vunpack.c.l.b16 %v591
        %v4715 = vunpack.c.h.b16 %v591
        %v4716 = vunpack.c.l.b16 %v592
        %v4717 = vunpack.c.h.b16 %v592
        %v4718 = vunpack.c.l.b16 %v593
        %v4719 = vunpack.c.h.b16 %v593
        %v4720 = vunpack.c.l.b16 %v594
        %v4721 = vunpack.c.h.b16 %v594
        %v4722 = vunpack.c.l.b16 %v595
        %v4723 = vunpack.c.h.b16 %v595
        %v4724 = vunpack.c.l.b16 %v596
        %v4725 = vunpack.c.h.b16 %v596
        %v4726 = vunpack.c.l.b16 %v597
        %v4727 = vunpack.c.h.b16 %v597
        %v4728 = vunpack.c.l.b16 %v598
        %v4729 = vunpack.c.h.b16 %v598
        %v4730 = vunpack.c.l.b16 %v599
        %v4731 = vunpack.c.h.b16 %v599
        %v4732 = vunpack.c.l.b16 %v600
        %v4733 = vunpack.c.h.b16 %v600
        %v4734 = vunpack.c.l.b16 %v601
        %v4735 = vunpack.c.h.b16 %v601
        %v4736 = vunpack.c.l.b16 %v602
        %v4737 = vunpack.c.h.b16 %v602
        %v4738 = vunpack.c.l.b16 %v603
        %v4739 = vunpack.c.h.b16 %v603
        %v4740 = vunpack.c.l.b16 %v604
        %v4741 = vunpack.c.h.b16 %v604
        %v4742 = vunpack.c.l.b16 %v605
        %v4743 = vunpack.c.h.b16 %v605
        %v4744 = vunpack.c.l.b16 %v606
        %v4745 = vunpack.c.h.b16 %v606
        %v4746 = vunpack.c.l.b16 %v607
        %v4747 = vunpack.c.h.b16 %v607
        %v4748 = vunpack.c.l.b16 %v608
        %v4749 = vunpack.c.h.b16 %v608
        %v4750 = vunpack.c.l.b16 %v609
        %v4751 = vunpack.c.h.b16 %v609
        %v4752 = vunpack.c.l.b16 %v610
        %v4753 = vunpack.c.h.b16 %v610
        %v4754 = vunpack.c.l.b16 %v611
        %v4755 = vunpack.c.h.b16 %v611
        %v4756 = vunpack.c.l.b16 %v612
        %v4757 = vunpack.c.h.b16 %v612
        %v4758 = vunpack.c.l.b16 %v613
        %v4759 = vunpack.c.h.b16 %v613
        %v4760 = vunpack.c.l.b16 %v614
        %v4761 = vunpack.c.h.b16 %v614
        %v4762 = vunpack.c.l.b16 %v615
        %v4763 = vunpack.c.h.b16 %v615
        %v4764 = vunpack.c.l.b16 %v616
        %v4765 = vunpack.c.h.b16 %v616
        %v4766 = vunpack.c.l.b16 %v617
        %v4767 = vunpack.c.h.b16 %v617
        %v4768 = vunpack.c.l.b16 %v618
        %v4769 = vunpack.c.h.b16 %v618
        %v4770 = vunpack.c.l.b16 %v619
        %v4771 = vunpack.c.h.b16 %v619
        %v4772 = vunpack.c.l.b16 %v620
        %v4773 = vunpack.c.h.b16 %v620
        %v4774 = vunpack.c.l.b16 %v621
        %v4775 = vunpack.c.h.b16 %v621
        %v4776 = vunpack.c.l.b16 %v622
        %v4777 = vunpack.c.h.b16 %v622
        %v4778 = vunpack.c.l.b16 %v623
        %v4779 = vunpack.c.h.b16 %v623
        %v4780 = vunpack.c.l.b16 %v624
        %v4781 = vunpack.c.h.b16 %v624
        %v4782 = vunpack.c.l.b16 %v625
        %v4783 = vunpack.c.h.b16 %v625
        %v4784 = vunpack.c.l.b16 %v626
        %v4785 = vunpack.c.h.b16 %v626
        %v4786 = vunpack.c.l.b16 %v627
        %v4787 = vunpack.c.h.b16 %v627
        %v4788 = vunpack.c.l.b16 %v628
        %v4789 = vunpack.c.h.b16 %v628
        %v4790 = vunpack.c.l.b16 %v629
        %v4791 = vunpack.c.h.b16 %v629
        %v4792 = vunpack.c.l.b16 %v630
        %v4793 = vunpack.c.h.b16 %v630
        %v4794 = vunpack.c.l.b16 %v631
        %v4795 = vunpack.c.h.b16 %v631
        %v4796 = vunpack.c.l.b16 %v632
        %v4797 = vunpack.c.h.b16 %v632
        %v4798 = vunpack.c.l.b16 %v633
        %v4799 = vunpack.c.h.b16 %v633
        %v4800 = vunpack.c.l.b16 %v634
        %v4801 = vunpack.c.h.b16 %v634
        %v4802 = vunpack.c.l.b16 %v635
        %v4803 = vunpack.c.h.b16 %v635
        %v4804 = vunpack.c.l.b16 %v636
        %v4805 = vunpack.c.h.b16 %v636
        %v4806 = vunpack.c.l.b16 %v637
        %v4807 = vunpack.c.h.b16 %v637
        %v4808 = vunpack.c.l.b16 %v638
        %v4809 = vunpack.c.h.b16 %v638
        %v4810 = vunpack.c.l.b16 %v639
        %v4811 = vunpack.c.h.b16 %v639
        %v4812 = vunpack.c.l.b16 %v640
        %v4813 = vunpack.c.h.b16 %v640
        %v4814 = vunpack.c.l.b16 %v641
        %v4815 = vunpack.c.h.b16 %v641
        %v4816 = vunpack.c.l.b16 %v642
        %v4817 = vunpack.c.h.b16 %v642
        %v4818 = vunpack.c.l.b16 %v643
        %v4819 = vunpack.c.h.b16 %v643
        %v4820 = vunpack.c.l.b16 %v644
        %v4821 = vunpack.c.h.b16 %v644
        %v4822 = vunpack.c.l.b16 %v645
        %v4823 = vunpack.c.h.b16 %v645
        %v4824 = vunpack.c.l.b16 %v646
        %v4825 = vunpack.c.h.b16 %v646
        %v4826 = vunpack.c.l.b16 %v647
        %v4827 = vunpack.c.h.b16 %v647
        %v4828 = vunpack.c.l.b16 %v648
        %v4829 = vunpack.c.h.b16 %v648
        %v4830 = vunpack.c.l.b16 %v649
        %v4831 = vunpack.c.h.b16 %v649
        %v4832 = vunpack.c.l.b16 %v650
        %v4833 = vunpack.c.h.b16 %v650
        %v4834 = vunpack.c.l.b16 %v651
        %v4835 = vunpack.c.h.b16 %v651
        %v4836 = vunpack.c.l.b16 %v652
        %v4837 = vunpack.c.h.b16 %v652
        %v4838 = vunpack.c.l.b16 %v653
        %v4839 = vunpack.c.h.b16 %v653
        %v4840 = vunpack.c.l.b16 %v654
        %v4841 = vunpack.c.h.b16 %v654
        %v4842 = vunpack.c.l.b16 %v655
        %v4843 = vunpack.c.h.b16 %v655
        %v4844 = vunpack.c.l.b16 %v656
        %v4845 = vunpack.c.h.b16 %v656
        %v4846 = vunpack.c.l.b16 %v657
        %v4847 = vunpack.c.h.b16 %v657
        %v4848 = vunpack.c.l.b16 %v658
        %v4849 = vunpack.c.h.b16 %v658
        %v4850 = vunpack.c.l.b16 %v659
        %v4851 = vunpack.c.h.b16 %v659
        %v4852 = vunpack.c.l.b16 %v660
        %v4853 = vunpack.c.h.b16 %v660
        %v4854 = vunpack.c.l.b16 %v661
        %v4855 = vunpack.c.h.b16 %v661
        %v4856 = vunpack.c.l.b16 %v662
        %v4857 = vunpack.c.h.b16 %v662
        %v4858 = vunpack.c.l.b16 %v663
        %v4859 = vunpack.c.h.b16 %v663
        %v4860 = vunpack.c.l.b16 %v664
        %v4861 = vunpack.c.h.b16 %v664
        %v4862 = vunpack.c.l.b16 %v665
        %v4863 = vunpack.c.h.b16 %v665
        %v4864 = vunpack.c.l.b16 %v666
        %v4865 = vunpack.c.h.b16 %v666
        %v4866 = vunpack.c.l.b16 %v667
        %v4867 = vunpack.c.h.b16 %v667
        %v4868 = vunpack.c.l.b16 %v668
        %v4869 = vunpack.c.h.b16 %v668
        %v4870 = vunpack.c.l.b16 %v669
        %v4871 = vunpack.c.h.b16 %v669
        %v4872 = vunpack.c.l.b16 %v670
        %v4873 = vunpack.c.h.b16 %v670
        %v4874 = vunpack.c.l.b16 %v671
        %v4875 = vunpack.c.h.b16 %v671
        %v4876 = vunpack.c.l.b16 %v672
        %v4877 = vunpack.c.h.b16 %v672
        %v4878 = vunpack.c.l.b16 %v673
        %v4879 = vunpack.c.h.b16 %v673
        %v4880 = vunpack.c.l.b16 %v674
        %v4881 = vunpack.c.h.b16 %v674
        %v4882 = vunpack.c.l.b16 %v675
        %v4883 = vunpack.c.h.b16 %v675
        %v4884 = vunpack.c.l.b16 %v676
        %v4885 = vunpack.c.h.b16 %v676
        %v4886 = vunpack.c.l.b16 %v677
        %v4887 = vunpack.c.h.b16 %v677
        %v4888 = vunpack.c.l.b16 %v678
        %v4889 = vunpack.c.h.b16 %v678
        %v4890 = vunpack.c.l.b16 %v679
        %v4891 = vunpack.c.h.b16 %v679
        %v4892 = vunpack.c.l.b16 %v680
        %v4893 = vunpack.c.h.b16 %v680
        %v4894 = vunpack.c.l.b16 %v681
        %v4895 = vunpack.c.h.b16 %v681
        %v4896 = vunpack.c.l.b16 %v682
        %v4897 = vunpack.c.h.b16 %v682
        %v4898 = vunpack.c.l.b16 %v683
        %v4899 = vunpack.c.h.b16 %v683
        %v4900 = vunpack.c.l.b16 %v684
        %v4901 = vunpack.c.h.b16 %v684
        %v4902 = vunpack.c.l.b16 %v685
        %v4903 = vunpack.c.h.b16 %v685
        %v4904 = vunpack.c.l.b16 %v686
        %v4905 = vunpack.c.h.b16 %v686
        %v4906 = vunpack.c.l.b16 %v687
        %v4907 = vunpack.c.h.b16 %v687
        %v4908 = vunpack.c.l.b16 %v688
        %v4909 = vunpack.c.h.b16 %v688
        %v4910 = vunpack.c.l.b16 %v689
        %v4911 = vunpack.c.h.b16 %v689
        %v4912 = vunpack.c.l.b16 %v690
        %v4913 = vunpack.c.h.b16 %v690
        %v4914 = vunpack.c.l.b16 %v691
        %v4915 = vunpack.c.h.b16 %v691
        %v4916 = vunpack.c.l.b16 %v692
        %v4917 = vunpack.c.h.b16 %v692
        %v4918 = vunpack.c.l.b16 %v693
        %v4919 = vunpack.c.h.b16 %v693
        %v4920 = vunpack.c.l.b16 %v694
        %v4921 = vunpack.c.h.b16 %v694
        %v4922 = vunpack.c.l.b16 %v695
        %v4923 = vunpack.c.h.b16 %v695
        %v4924 = vunpack.c.l.b16 %v696
        %v4925 = vunpack.c.h.b16 %v696
        %v4926 = vunpack.c.l.b16 %v697
        %v4927 = vunpack.c.h.b16 %v697
        %v4928 = vunpack.c.l.b16 %v698
        %v4929 = vunpack.c.h.b16 %v698
        %v4930 = vunpack.c.l.b16 %v699
        %v4931 = vunpack.c.h.b16 %v699
        %v4932 = vunpack.c.l.b16 %v700
        %v4933 = vunpack.c.h.b16 %v700
        %v4934 = vunpack.c.l.b16 %v701
        %v4935 = vunpack.c.h.b16 %v701
        %v4936 = vunpack.c.l.b16 %v702
        %v4937 = vunpack.c.h.b16 %v702
        %v4938 = vunpack.c.l.b16 %v703
        %v4939 = vunpack.c.h.b16 %v703
        %v4940 = vunpack.c.l.b16 %v704
        %v4941 = vunpack.c.h.b16 %v704
        %v4942 = vunpack.c.l.b16 %v705
        %v4943 = vunpack.c.h.b16 %v705
        %v4944 = vunpack.c.l.b16 %v706
        %v4945 = vunpack.c.h.b16 %v706
        %v4946 = vunpack.c.l.b16 %v707
        %v4947 = vunpack.c.h.b16 %v707
        %v4948 = vunpack.c.l.b16 %v708
        %v4949 = vunpack.c.h.b16 %v708
        %v4950 = vunpack.c.l.b16 %v709
        %v4951 = vunpack.c.h.b16 %v709
        %v4952 = vunpack.c.l.b16 %v710
        %v4953 = vunpack.c.h.b16 %v710
        %v4954 = vunpack.c.l.b16 %v711
        %v4955 = vunpack.c.h.b16 %v711
        %v4956 = vunpack.c.l.b16 %v712
        %v4957 = vunpack.c.h.b16 %v712
        %v4958 = vunpack.c.l.b16 %v713
        %v4959 = vunpack.c.h.b16 %v713
        %v4960 = vunpack.c.l.b16 %v714
        %v4961 = vunpack.c.h.b16 %v714
        %v4962 = vunpack.c.l.b16 %v715
        %v4963 = vunpack.c.h.b16 %v715
        %v4964 = vunpack.c.l.b16 %v716
        %v4965 = vunpack.c.h.b16 %v716
        %v4966 = vunpack.c.l.b16 %v717
        %v4967 = vunpack.c.h.b16 %v717
        %v4968 = vunpack.c.l.b16 %v718
        %v4969 = vunpack.c.h.b16 %v718
        %v4970 = vunpack.c.l.b16 %v719
        %v4971 = vunpack.c.h.b16 %v719
        %v4972 = vunpack.c.l.b16 %v720
        %v4973 = vunpack.c.h.b16 %v720
        %v4974 = vunpack.c.l.b16 %v721
        %v4975 = vunpack.c.h.b16 %v721
        %v4976 = vunpack.c.l.b16 %v722
        %v4977 = vunpack.c.h.b16 %v722
        %v4978 = vunpack.c.l.b16 %v723
        %v4979 = vunpack.c.h.b16 %v723
        %v4980 = vunpack.c.l.b16 %v724
        %v4981 = vunpack.c.h.b16 %v724
        %v4982 = vunpack.c.l.b16 %v725
        %v4983 = vunpack.c.h.b16 %v725
        %v4984 = vunpack.c.l.b16 %v726
        %v4985 = vunpack.c.h.b16 %v726
        %v4986 = vunpack.c.l.b16 %v727
        %v4987 = vunpack.c.h.b16 %v727
        %v4988 = vunpack.c.l.b16 %v728
        %v4989 = vunpack.c.h.b16 %v728
        %v4990 = vunpack.c.l.b16 %v729
        %v4991 = vunpack.c.h.b16 %v729
        %v4992 = vunpack.c.l.b16 %v730
        %v4993 = vunpack.c.h.b16 %v730
        %v4994 = vunpack.c.l.b16 %v731
        %v4995 = vunpack.c.h.b16 %v731
        %v4996 = vunpack.c.l.b16 %v732
        %v4997 = vunpack.c.h.b16 %v732
        %v4998 = vunpack.c.l.b16 %v733
        %v4999 = vunpack.c.h.b16 %v733
        %v5000 = vunpack.c.l.b16 %v734
        %v5001 = vunpack.c.h.b16 %v734
        %v5002 = vunpack.c.l.b16 %v735
        %v5003 = vunpack.c.h.b16 %v735
        %v5004 = vunpack.c.l.b16 %v736
        %v5005 = vunpack.c.h.b16 %v736
        %v5006 = vunpack.c.l.b16 %v737
        %v5007 = vunpack.c.h.b16 %v737
        %v5008 = vunpack.c.l.b16 %v738
        %v5009 = vunpack.c.h.b16 %v738
        %v5010 = vunpack.c.l.b16 %v739
        %v5011 = vunpack.c.h.b16 %v739
        %v5012 = vunpack.c.l.b16 %v740
        %v5013 = vunpack.c.h.b16 %v740
        %v5014 = vunpack.c.l.b16 %v741
        %v5015 = vunpack.c.h.b16 %v741
        %v5016 = vunpack.c.l.b16 %v742
        %v5017 = vunpack.c.h.b16 %v742
        %v5018 = vunpack.c.l.b16 %v743
        %v5019 = vunpack.c.h.b16 %v743
        %v5020 = vunpack.c.l.b16 %v744
        %v5021 = vunpack.c.h.b16 %v744
        %v5022 = vunpack.c.l.b16 %v745
        %v5023 = vunpack.c.h.b16 %v745
        %v5024 = vunpack.c.l.b16 %v746
        %v5025 = vunpack.c.h.b16 %v746
        %v5026 = vunpack.c.l.b16 %v747
        %v5027 = vunpack.c.h.b16 %v747
        %v5028 = vunpack.c.l.b16 %v748
        %v5029 = vunpack.c.h.b16 %v748
        %v5030 = vunpack.c.l.b16 %v749
        %v5031 = vunpack.c.h.b16 %v749
        %v5032 = vunpack.c.l.b16 %v750
        %v5033 = vunpack.c.h.b16 %v750
        %v5034 = vunpack.c.l.b16 %v751
        %v5035 = vunpack.c.h.b16 %v751
        %v5036 = vunpack.c.l.b16 %v752
        %v5037 = vunpack.c.h.b16 %v752
        %v5038 = vunpack.c.l.b16 %v753
        %v5039 = vunpack.c.h.b16 %v753
        %v5040 = vunpack.c.l.b16 %v754
        %v5041 = vunpack.c.h.b16 %v754
        %v5042 = vunpack.c.l.b16 %v755
        %v5043 = vunpack.c.h.b16 %v755
        %v5044 = vunpack.c.l.b16 %v756
        %v5045 = vunpack.c.h.b16 %v756
        %v5046 = vunpack.c.l.b16 %v757
        %v5047 = vunpack.c.h.b16 %v757
        %v5048 = vunpack.c.l.b16 %v758
        %v5049 = vunpack.c.h.b16 %v758
        %v5050 = vunpack.c.l.b16 %v759
        %v5051 = vunpack.c.h.b16 %v759
        %v5052 = vunpack.c.l.b16 %v760
        %v5053 = vunpack.c.h.b16 %v760
        %v5054 = vunpack.c.l.b16 %v761
        %v5055 = vunpack.c.h.b16 %v761
        %v5056 = vunpack.c.l.b16 %v762
        %v5057 = vunpack.c.h.b16 %v762
        %v5058 = vunpack.c.l.b16 %v763
        %v5059 = vunpack.c.h.b16 %v763
        %v5060 = vunpack.c.l.b16 %v764
        %v5061 = vunpack.c.h.b16 %v764
        %v5062 = vunpack.c.l.b16 %v765
        %v5063 = vunpack.c.h.b16 %v765
        %v5064 = vunpack.c.l.b16 %v766
        %v5065 = vunpack.c.h.b16 %v766
        %v5066 = vunpack.c.l.b16 %v767
        %v5067 = vunpack.c.h.b16 %v767
        %v5068 = vunpack.c.l.b16 %v768
        %v5069 = vunpack.c.h.b16 %v768
        %v5070 = vunpack.c.l.b16 %v769
        %v5071 = vunpack.c.h.b16 %v769
        %v5072 = vunpack.c.l.b16 %v770
        %v5073 = vunpack.c.h.b16 %v770
        %v5074 = vunpack.c.l.b16 %v771
        %v5075 = vunpack.c.h.b16 %v771
        %v5076 = vunpack.c.l.b16 %v772
        %v5077 = vunpack.c.h.b16 %v772
        %v5078 = vunpack.c.l.b16 %v773
        %v5079 = vunpack.c.h.b16 %v773
        %v5080 = vunpack.c.l.b16 %v774
        %v5081 = vunpack.c.h.b16 %v774
        %v5082 = vunpack.c.l.b16 %v775
        %v5083 = vunpack.c.h.b16 %v775
        %v5084 = vunpack.c.l.b16 %v776
        %v5085 = vunpack.c.h.b16 %v776
        %v5086 = vunpack.c.l.b16 %v777
        %v5087 = vunpack.c.h.b16 %v777
        %v5088 = vunpack.c.l.b16 %v778
        %v5089 = vunpack.c.h.b16 %v778
        %v5090 = vunpack.c.l.b16 %v779
        %v5091 = vunpack.c.h.b16 %v779
        %v5092 = vunpack.c.l.b16 %v780
        %v5093 = vunpack.c.h.b16 %v780
        %v5094 = vunpack.c.l.b16 %v781
        %v5095 = vunpack.c.h.b16 %v781
        %v5096 = vunpack.c.l.b16 %v782
        %v5097 = vunpack.c.h.b16 %v782
        %v5098 = vunpack.c.l.b16 %v783
        %v5099 = vunpack.c.h.b16 %v783
        %v5100 = vunpack.c.l.b16 %v784
        %v5101 = vunpack.c.h.b16 %v784
        %v5102 = vunpack.c.l.b16 %v785
        %v5103 = vunpack.c.h.b16 %v785
        %v5104 = vunpack.c.l.b16 %v786
        %v5105 = vunpack.c.h.b16 %v786
        %v5106 = vunpack.c.l.b16 %v787
        %v5107 = vunpack.c.h.b16 %v787
        %v5108 = vunpack.c.l.b16 %v788
        %v5109 = vunpack.c.h.b16 %v788
        %v5110 = vunpack.c.l.b16 %v789
        %v5111 = vunpack.c.h.b16 %v789
        %v5112 = vunpack.c.l.b16 %v790
        %v5113 = vunpack.c.h.b16 %v790
        %v5114 = vunpack.c.l.b16 %v791
        %v5115 = vunpack.c.h.b16 %v791
        %v5116 = vunpack.c.l.b16 %v792
        %v5117 = vunpack.c.h.b16 %v792
        %v5118 = vunpack.c.l.b16 %v793
        %v5119 = vunpack.c.h.b16 %v793
        %v5120 = vunpack.c.l.b16 %v794
        %v5121 = vunpack.c.h.b16 %v794
        %v5122 = vunpack.c.l.b16 %v795
        %v5123 = vunpack.c.h.b16 %v795
        %v5124 = vunpack.c.l.b16 %v796
        %v5125 = vunpack.c.h.b16 %v796
        %v5126 = vunpack.c.l.b16 %v797
        %v5127 = vunpack.c.h.b16 %v797
        %v5128 = vunpack.c.l.b16 %v798
        %v5129 = vunpack.c.h.b16 %v798
        %v5130 = vunpack.c.l.b16 %v799
        %v5131 = vunpack.c.h.b16 %v799
        %v5132 = vunpack.c.l.b16 %v800
        %v5133 = vunpack.c.h.b16 %v800
        %v5134 = vunpack.c.l.b16 %v801
        %v5135 = vunpack.c.h.b16 %v801
        %v5136 = vunpack.c.l.b16 %v802
        %v5137 = vunpack.c.h.b16 %v802
        %v5138 = vunpack.c.l.b16 %v803
        %v5139 = vunpack.c.h.b16 %v803
        %v5140 = vunpack.c.l.b16 %v804
        %v5141 = vunpack.c.h.b16 %v804
        %v5142 = vunpack.c.l.b16 %v805
        %v5143 = vunpack.c.h.b16 %v805
        %v5144 = vunpack.c.l.b16 %v806
        %v5145 = vunpack.c.h.b16 %v806
        %v5146 = vunpack.c.l.b16 %v807
        %v5147 = vunpack.c.h.b16 %v807
        %v5148 = vunpack.c.l.b16 %v808
        %v5149 = vunpack.c.h.b16 %v808
        %v5150 = vunpack.c.l.b16 %v809
        %v5151 = vunpack.c.h.b16 %v809
        %v5152 = vunpack.c.l.b16 %v810
        %v5153 = vunpack.c.h.b16 %v810
        %v5154 = vunpack.c.l.b16 %v811
        %v5155 = vunpack.c.h.b16 %v811
        %v5156 = vunpack.c.l.b16 %v812
        %v5157 = vunpack.c.h.b16 %v812
        %v5158 = vunpack.c.l.b16 %v813
        %v5159 = vunpack.c.h.b16 %v813
        %v5160 = vunpack.c.l.b16 %v814
        %v5161 = vunpack.c.h.b16 %v814
        %v5162 = vunpack.c.l.b16 %v815
        %v5163 = vunpack.c.h.b16 %v815
        %v5164 = vunpack.c.l.b16 %v816
        %v5165 = vunpack.c.h.b16 %v816
        %v5166 = vunpack.c.l.b16 %v817
        %v5167 = vunpack.c.h.b16 %v817
        %v5168 = vunpack.c.l.b16 %v818
        %v5169 = vunpack.c.h.b16 %v818
        %v5170 = vunpack.c.l.b16 %v819
        %v5171 = vunpack.c.h.b16 %v819
        %v5172 = vunpack.c.l.b16 %v820
        %v5173 = vunpack.c.h.b16 %v820
        %v5174 = vunpack.c.l.b16 %v821
        %v5175 = vunpack.c.h.b16 %v821
        %v5176 = vunpack.c.l.b16 %v822
        %v5177 = vunpack.c.h.b16 %v822
        %v5178 = vunpack.c.l.b16 %v823
        %v5179 = vunpack.c.h.b16 %v823
        %v5180 = vunpack.c.l.b16 %v824
        %v5181 = vunpack.c.h.b16 %v824
        %v5182 = vunpack.c.l.b16 %v825
        %v5183 = vunpack.c.h.b16 %v825
        %v5184 = vunpack.c.l.b16 %v826
        %v5185 = vunpack.c.h.b16 %v826
        %v5186 = vunpack.c.l.b16 %v827
        %v5187 = vunpack.c.h.b16 %v827
        %v5188 = vunpack.c.l.b16 %v828
        %v5189 = vunpack.c.h.b16 %v828
        %v5190 = vunpack.c.l.b16 %v829
        %v5191 = vunpack.c.h.b16 %v829
        %v5192 = vunpack.c.l.b16 %v830
        %v5193 = vunpack.c.h.b16 %v830
        %v5194 = vunpack.c.l.b16 %v831
        %v5195 = vunpack.c.h.b16 %v831
        %v5196 = vunpack.c.l.b16 %v832
        %v5197 = vunpack.c.h.b16 %v832
        %v5198 = vunpack.c.l.b16 %v833
        %v5199 = vunpack.c.h.b16 %v833
        %v5200 = vunpack.c.l.b16 %v834
        %v5201 = vunpack.c.h.b16 %v834
        %v5202 = vunpack.c.l.b16 %v835
        %v5203 = vunpack.c.h.b16 %v835
        %v5204 = vunpack.c.l.b16 %v836
        %v5205 = vunpack.c.h.b16 %v836
        %v5206 = vunpack.c.l.b16 %v837
        %v5207 = vunpack.c.h.b16 %v837
        %v5208 = vunpack.c.l.b16 %v838
        %v5209 = vunpack.c.h.b16 %v838
        %v5210 = vunpack.c.l.b16 %v839
        %v5211 = vunpack.c.h.b16 %v839
        %v5212 = vunpack.c.l.b16 %v840
        %v5213 = vunpack.c.h.b16 %v840
        %v5214 = vunpack.c.l.b16 %v841
        %v5215 = vunpack.c.h.b16 %v841
        %v5216 = vunpack.c.l.b16 %v842
        %v5217 = vunpack.c.h.b16 %v842
        %v5218 = vunpack.c.l.b16 %v843
        %v5219 = vunpack.c.h.b16 %v843
        %v5220 = vunpack.c.l.b16 %v844
        %v5221 = vunpack.c.h.b16 %v844
        %v5222 = vunpack.c.l.b16 %v845
        %v5223 = vunpack.c.h.b16 %v845
        %v5224 = vunpack.c.l.b16 %v846
        %v5225 = vunpack.c.h.b16 %v846
        %v5226 = vunpack.c.l.b16 %v847
        %v5227 = vunpack.c.h.b16 %v847
        %v5228 = vunpack.c.l.b16 %v848
        %v5229 = vunpack.c.h.b16 %v848
        %v5230 = vunpack.c.l.b16 %v849
        %v5231 = vunpack.c.h.b16 %v849
        %v5232 = vunpack.c.l.b16 %v850
        %v5233 = vunpack.c.h.b16 %v850
        %v5234 = vunpack.c.l.b16 %v851
        %v5235 = vunpack.c.h.b16 %v851
        %v5236 = vunpack.c.l.b16 %v852
        %v5237 = vunpack.c.h.b16 %v852
        %v5238 = vunpack.c.l.b16 %v853
        %v5239 = vunpack.c.h.b16 %v853
        %v5240 = vunpack.c.l.b16 %v854
        %v5241 = vunpack.c.h.b16 %v854
        %v5242 = vunpack.c.l.b16 %v855
        %v5243 = vunpack.c.h.b16 %v855
        %v5244 = vunpack.c.l.b16 %v856
        %v5245 = vunpack.c.h.b16 %v856
        %v5246 = vunpack.c.l.b16 %v857
        %v5247 = vunpack.c.h.b16 %v857
        %v5248 = vunpack.c.l.b16 %v858
        %v5249 = vunpack.c.h.b16 %v858
        %v5250 = vunpack.c.l.b16 %v859
        %v5251 = vunpack.c.h.b16 %v859
        %v5252 = vunpack.c.l.b16 %v860
        %v5253 = vunpack.c.h.b16 %v860
        %v5254 = vunpack.c.l.b16 %v861
        %v5255 = vunpack.c.h.b16 %v861
        %v5256 = vunpack.c.l.b16 %v862
        %v5257 = vunpack.c.h.b16 %v862
        %v5258 = vunpack.c.l.b16 %v863
        %v5259 = vunpack.c.h.b16 %v863
        %v5260 = vunpack.c.l.b16 %v864
        %v5261 = vunpack.c.h.b16 %v864
        %v5262 = vunpack.c.l.b16 %v865
        %v5263 = vunpack.c.h.b16 %v865
        %v5264 = vunpack.c.l.b16 %v866
        %v5265 = vunpack.c.h.b16 %v866
        %v5266 = vunpack.c.l.b16 %v867
        %v5267 = vunpack.c.h.b16 %v867
        %v5268 = vunpack.c.l.b16 %v868
        %v5269 = vunpack.c.h.b16 %v868
        %v5270 = vunpack.c.l.b16 %v869
        %v5271 = vunpack.c.h.b16 %v869
        %v5272 = vunpack.c.l.b16 %v870
        %v5273 = vunpack.c.h.b16 %v870
        %v5274 = vunpack.c.l.b16 %v871
        %v5275 = vunpack.c.h.b16 %v871
        %v5276 = vunpack.c.l.b16 %v872
        %v5277 = vunpack.c.h.b16 %v872
        %v5278 = vunpack.c.l.b16 %v873
        %v5279 = vunpack.c.h.b16 %v873
        %v5280 = vunpack.c.l.b16 %v874
        %v5281 = vunpack.c.h.b16 %v874
        %v5282 = vunpack.c.l.b16 %v875
        %v5283 = vunpack.c.h.b16 %v875
        %v5284 = vunpack.c.l.b16 %v876
        %v5285 = vunpack.c.h.b16 %v876
        %v5286 = vunpack.c.l.b16 %v877
        %v5287 = vunpack.c.h.b16 %v877
        %v5288 = vunpack.c.l.b16 %v878
        %v5289 = vunpack.c.h.b16 %v878
        %v5290 = vunpack.c.l.b16 %v879
        %v5291 = vunpack.c.h.b16 %v879
        %v5292 = vunpack.c.l.b16 %v880
        %v5293 = vunpack.c.h.b16 %v880
        %v5294 = vunpack.c.l.b16 %v881
        %v5295 = vunpack.c.h.b16 %v881
        %v5296 = vunpack.c.l.b16 %v882
        %v5297 = vunpack.c.h.b16 %v882
        %v5298 = vunpack.c.l.b16 %v883
        %v5299 = vunpack.c.h.b16 %v883
        %v5300 = vunpack.c.l.b16 %v884
        %v5301 = vunpack.c.h.b16 %v884
        %v5302 = vunpack.c.l.b16 %v885
        %v5303 = vunpack.c.h.b16 %v885
        %v5304 = vunpack.c.l.b16 %v886
        %v5305 = vunpack.c.h.b16 %v886
        %v5306 = vunpack.c.l.b16 %v887
        %v5307 = vunpack.c.h.b16 %v887
        %v5308 = vunpack.c.l.b16 %v888
        %v5309 = vunpack.c.h.b16 %v888
        %v5310 = vunpack.c.l.b16 %v889
        %v5311 = vunpack.c.h.b16 %v889
        %v5312 = vunpack.c.l.b16 %v890
        %v5313 = vunpack.c.h.b16 %v890
        %v5314 = vunpack.c.l.b16 %v891
        %v5315 = vunpack.c.h.b16 %v891
        %v5316 = vunpack.c.l.b16 %v892
        %v5317 = vunpack.c.h.b16 %v892
        %v5318 = vunpack.c.l.b16 %v893
        %v5319 = vunpack.c.h.b16 %v893
        %v5320 = vunpack.c.l.b16 %v894
        %v5321 = vunpack.c.h.b16 %v894
        %v5322 = vunpack.c.l.b16 %v895
        %v5323 = vunpack.c.h.b16 %v895
        %v5324 = vunpack.c.l.b16 %v896
        %v5325 = vunpack.c.h.b16 %v896
        %v5326 = vunpack.c.l.b16 %v897
        %v5327 = vunpack.c.h.b16 %v897
        %v5328 = vunpack.c.l.b16 %v898
        %v5329 = vunpack.c.h.b16 %v898
        %v5330 = vunpack.c.l.b16 %v899
        %v5331 = vunpack.c.h.b16 %v899
        %v5332 = vunpack.c.l.b16 %v900
        %v5333 = vunpack.c.h.b16 %v900
        %v5334 = vunpack.c.l.b16 %v901
        %v5335 = vunpack.c.h.b16 %v901
        %v5336 = vunpack.c.l.b16 %v902
        %v5337 = vunpack.c.h.b16 %v902
        %v5338 = vunpack.c.l.b16 %v903
        %v5339 = vunpack.c.h.b16 %v903
        %v5340 = vunpack.c.l.b16 %v904
        %v5341 = vunpack.c.h.b16 %v904
        %v5342 = vunpack.c.l.b16 %v905
        %v5343 = vunpack.c.h.b16 %v905
        %v5344 = vunpack.c.l.b16 %v906
        %v5345 = vunpack.c.h.b16 %v906
        %v5346 = vunpack.c.l.b16 %v907
        %v5347 = vunpack.c.h.b16 %v907
        %v5348 = vunpack.c.l.b16 %v908
        %v5349 = vunpack.c.h.b16 %v908
        %v5350 = vunpack.c.l.b16 %v909
        %v5351 = vunpack.c.h.b16 %v909
        %v5352 = vunpack.c.l.b16 %v910
        %v5353 = vunpack.c.h.b16 %v910
        %v5354 = vunpack.c.l.b16 %v911
        %v5355 = vunpack.c.h.b16 %v911
        %v5356 = vunpack.c.l.b16 %v912
        %v5357 = vunpack.c.h.b16 %v912
        %v5358 = vunpack.c.l.b16 %v913
        %v5359 = vunpack.c.h.b16 %v913
        %v5360 = vunpack.c.l.b16 %v914
        %v5361 = vunpack.c.h.b16 %v914
        %v5362 = vunpack.c.l.b16 %v915
        %v5363 = vunpack.c.h.b16 %v915
        %v5364 = vunpack.c.l.b16 %v916
        %v5365 = vunpack.c.h.b16 %v916
        %v5366 = vunpack.c.l.b16 %v917
        %v5367 = vunpack.c.h.b16 %v917
        %v5368 = vunpack.c.l.b16 %v918
        %v5369 = vunpack.c.h.b16 %v918
        %v5370 = vunpack.c.l.b16 %v919
        %v5371 = vunpack.c.h.b16 %v919
        %v5372 = vunpack.c.l.b16 %v920
        %v5373 = vunpack.c.h.b16 %v920
        %v5374 = vunpack.c.l.b16 %v921
        %v5375 = vunpack.c.h.b16 %v921
        %v5376 = vunpack.c.l.b16 %v922
        %v5377 = vunpack.c.h.b16 %v922
        %v5378 = vunpack.c.l.b16 %v923
        %v5379 = vunpack.c.h.b16 %v923
        %v5380 = vunpack.c.l.b16 %v924
        %v5381 = vunpack.c.h.b16 %v924
        %v5382 = vunpack.c.l.b16 %v925
        %v5383 = vunpack.c.h.b16 %v925
        %v5384 = vunpack.c.l.b16 %v926
        %v5385 = vunpack.c.h.b16 %v926
        %v5386 = vunpack.c.l.b16 %v927
        %v5387 = vunpack.c.h.b16 %v927
        %v5388 = vunpack.c.l.b16 %v928
        %v5389 = vunpack.c.h.b16 %v928
        %v5390 = vunpack.c.l.b16 %v929
        %v5391 = vunpack.c.h.b16 %v929
        %v5392 = vunpack.c.l.b16 %v930
        %v5393 = vunpack.c.h.b16 %v930
        %v5394 = vunpack.c.l.b16 %v931
        %v5395 = vunpack.c.h.b16 %v931
        %v5396 = vunpack.c.l.b16 %v932
        %v5397 = vunpack.c.h.b16 %v932
        %v5398 = vunpack.c.l.b16 %v933
        %v5399 = vunpack.c.h.b16 %v933
        %v5400 = vunpack.c.l.b16 %v934
        %v5401 = vunpack.c.h.b16 %v934
        %v5402 = vunpack.c.l.b16 %v935
        %v5403 = vunpack.c.h.b16 %v935
        %v5404 = vunpack.c.l.b16 %v936
        %v5405 = vunpack.c.h.b16 %v936
        %v5406 = vunpack.c.l.b16 %v937
        %v5407 = vunpack.c.h.b16 %v937
        %v5408 = vunpack.c.l.b16 %v938
        %v5409 = vunpack.c.h.b16 %v938
        %v5410 = vunpack.c.l.b16 %v939
        %v5411 = vunpack.c.h.b16 %v939
        %v5412 = vunpack.c.l.b16 %v940
        %v5413 = vunpack.c.h.b16 %v940
        %v5414 = vunpack.c.l.b16 %v941
        %v5415 = vunpack.c.h.b16 %v941
        %v5416 = vunpack.c.l.b16 %v942
        %v5417 = vunpack.c.h.b16 %v942
        %v5418 = vunpack.c.l.b16 %v943
        %v5419 = vunpack.c.h.b16 %v943
        %v5420 = vunpack.c.l.b16 %v944
        %v5421 = vunpack.c.h.b16 %v944
        %v5422 = vunpack.c.l.b16 %v945
        %v5423 = vunpack.c.h.b16 %v945
        %v5424 = vunpack.c.l.b16 %v946
        %v5425 = vunpack.c.h.b16 %v946
        %v5426 = vunpack.c.l.b16 %v947
        %v5427 = vunpack.c.h.b16 %v947
        %v5428 = vunpack.c.l.b16 %v948
        %v5429 = vunpack.c.h.b16 %v948
        %v5430 = vunpack.c.l.b16 %v949
        %v5431 = vunpack.c.h.b16 %v949
        %v5432 = vunpack.c.l.b16 %v950
        %v5433 = vunpack.c.h.b16 %v950
        %v5434 = vunpack.c.l.b16 %v951
        %v5435 = vunpack.c.h.b16 %v951
        %v5436 = vunpack.c.l.b16 %v952
        %v5437 = vunpack.c.h.b16 %v952
        %v5438 = vunpack.c.l.b16 %v953
        %v5439 = vunpack.c.h.b16 %v953
        %v5440 = vunpack.c.l.b16 %v954
        %v5441 = vunpack.c.h.b16 %v954
        %v5442 = vunpack.c.l.b16 %v955
        %v5443 = vunpack.c.h.b16 %v955
        %v5444 = vunpack.c.l.b16 %v956
        %v5445 = vunpack.c.h.b16 %v956
        %v5446 = vunpack.c.l.b16 %v957
        %v5447 = vunpack.c.h.b16 %v957
        %v5448 = vunpack.c.l.b16 %v958
        %v5449 = vunpack.c.h.b16 %v958
        %v5450 = vunpack.c.l.b16 %v959
        %v5451 = vunpack.c.h.b16 %v959
        %v5452 = vunpack.c.l.b16 %v960
        %v5453 = vunpack.c.h.b16 %v960
        %v5454 = vunpack.c.l.b16 %v961
        %v5455 = vunpack.c.h.b16 %v961
        %v5456 = vunpack.c.l.b16 %v962
        %v5457 = vunpack.c.h.b16 %v962
        %v5458 = vunpack.c.l.b16 %v963
        %v5459 = vunpack.c.h.b16 %v963
        %v5460 = vunpack.c.l.b16 %v964
        %v5461 = vunpack.c.h.b16 %v964
        %v5462 = vunpack.c.l.b16 %v965
        %v5463 = vunpack.c.h.b16 %v965
        %v5464 = vunpack.c.l.b16 %v966
        %v5465 = vunpack.c.h.b16 %v966
        %v5466 = vunpack.c.l.b16 %v967
        %v5467 = vunpack.c.h.b16 %v967
        %v5468 = vunpack.c.l.b16 %v968
        %v5469 = vunpack.c.h.b16 %v968
        %v5470 = vunpack.c.l.b16 %v969
        %v5471 = vunpack.c.h.b16 %v969
        %v5472 = vunpack.c.l.b16 %v970
        %v5473 = vunpack.c.h.b16 %v970
        %v5474 = vunpack.c.l.b16 %v971
        %v5475 = vunpack.c.h.b16 %v971
        %v5476 = vunpack.c.l.b16 %v972
        %v5477 = vunpack.c.h.b16 %v972
        %v5478 = vunpack.c.l.b16 %v973
        %v5479 = vunpack.c.h.b16 %v973
        %v5480 = vunpack.c.l.b16 %v974
        %v5481 = vunpack.c.h.b16 %v974
        %v5482 = vunpack.c.l.b16 %v975
        %v5483 = vunpack.c.h.b16 %v975
        %v5484 = vunpack.c.l.b16 %v976
        %v5485 = vunpack.c.h.b16 %v976
        %v5486 = vunpack.c.l.b16 %v977
        %v5487 = vunpack.c.h.b16 %v977
        %v5488 = vunpack.c.l.b16 %v978
        %v5489 = vunpack.c.h.b16 %v978
        %v5490 = vunpack.c.l.b16 %v979
        %v5491 = vunpack.c.h.b16 %v979
        %v5492 = vunpack.c.l.b16 %v980
        %v5493 = vunpack.c.h.b16 %v980
        %v5494 = vunpack.c.l.b16 %v981
        %v5495 = vunpack.c.h.b16 %v981
        %v5496 = vunpack.c.l.b16 %v982
        %v5497 = vunpack.c.h.b16 %v982
        %v5498 = vunpack.c.l.b16 %v983
        %v5499 = vunpack.c.h.b16 %v983
        %v5500 = vunpack.c.l.b16 %v984
        %v5501 = vunpack.c.h.b16 %v984
        %v5502 = vunpack.c.l.b16 %v985
        %v5503 = vunpack.c.h.b16 %v985
        %v5504 = vunpack.c.l.b16 %v986
        %v5505 = vunpack.c.h.b16 %v986
        %v5506 = vunpack.c.l.b16 %v987
        %v5507 = vunpack.c.h.b16 %v987
        %v5508 = vunpack.c.l.b16 %v988
        %v5509 = vunpack.c.h.b16 %v988
        %v5510 = vunpack.c.l.b16 %v989
        %v5511 = vunpack.c.h.b16 %v989
        %v5512 = vunpack.c.l.b16 %v990
        %v5513 = vunpack.c.h.b16 %v990
        %v5514 = vunpack.c.l.b16 %v991
        %v5515 = vunpack.c.h.b16 %v991
        %v5516 = vunpack.c.l.b16 %v992
        %v5517 = vunpack.c.h.b16 %v992
        %v5518 = vunpack.c.l.b16 %v993
        %v5519 = vunpack.c.h.b16 %v993
        %v5520 = vunpack.c.l.b16 %v994
        %v5521 = vunpack.c.h.b16 %v994
        %v5522 = vunpack.c.l.b16 %v995
        %v5523 = vunpack.c.h.b16 %v995
        %v5524 = vunpack.c.l.b16 %v996
        %v5525 = vunpack.c.h.b16 %v996
        %v5526 = vunpack.c.l.b16 %v997
        %v5527 = vunpack.c.h.b16 %v997
        %v5528 = vunpack.c.l.b16 %v998
        %v5529 = vunpack.c.h.b16 %v998
        %v5530 = vunpack.c.l.b16 %v999
        %v5531 = vunpack.c.h.b16 %v999
        %v5532 = vunpack.c.l.b16 %v1000
        %v5533 = vunpack.c.h.b16 %v1000
        %v5534 = vunpack.c.l.b16 %v1001
        %v5535 = vunpack.c.h.b16 %v1001
        %v5536 = vunpack.c.l.b16 %v1002
        %v5537 = vunpack.c.h.b16 %v1002
        %v5538 = vunpack.c.l.b16 %v1003
        %v5539 = vunpack.c.h.b16 %v1003
        %v5540 = vunpack.c.l.b16 %v1004
        %v5541 = vunpack.c.h.b16 %v1004
        %v5542 = vunpack.c.l.b16 %v1005
        %v5543 = vunpack.c.h.b16 %v1005
        %v5544 = vunpack.c.l.b16 %v1006
        %v5545 = vunpack.c.h.b16 %v1006
        %v5546 = vunpack.c.l.b16 %v1007
        %v5547 = vunpack.c.h.b16 %v1007
        %v5548 = vunpack.c.l.b16 %v1008
        %v5549 = vunpack.c.h.b16 %v1008
        %v5550 = vunpack.c.l.b16 %v1009
        %v5551 = vunpack.c.h.b16 %v1009
        %v5552 = vunpack.c.l.b16 %v1010
        %v5553 = vunpack.c.h.b16 %v1010
        %v5554 = vunpack.c.l.b16 %v1011
        %v5555 = vunpack.c.h.b16 %v1011
        %v5556 = vunpack.c.l.b16 %v1012
        %v5557 = vunpack.c.h.b16 %v1012
        %v5558 = vunpack.c.l.b16 %v1013
        %v5559 = vunpack.c.h.b16 %v1013
        %v5560 = vunpack.c.l.b16 %v1014
        %v5561 = vunpack.c.h.b16 %v1014
        %v5562 = vunpack.c.l.b16 %v1015
        %v5563 = vunpack.c.h.b16 %v1015
        %v5564 = vunpack.c.l.b16 %v1016
        %v5565 = vunpack.c.h.b16 %v1016
        %v5566 = vunpack.c.l.b16 %v1017
        %v5567 = vunpack.c.h.b16 %v1017
        %v5568 = vunpack.c.l.b16 %v1018
        %v5569 = vunpack.c.h.b16 %v1018
        %v5570 = vunpack.c.l.b16 %v1019
        %v5571 = vunpack.c.h.b16 %v1019
        %v5572 = vunpack.c.l.b16 %v1020
        %v5573 = vunpack.c.h.b16 %v1020
        %v5574 = vunpack.c.l.b16 %v1021
        %v5575 = vunpack.c.h.b16 %v1021
        %v5576 = vunpack.c.l.b16 %v1022
        %v5577 = vunpack.c.h.b16 %v1022
        %v5578 = vunpack.c.l.b16 %v1023
        %v5579 = vunpack.c.h.b16 %v1023
        %v5580 = vunpack.c.l.b16 %v1024
        %v5581 = vunpack.c.h.b16 %v1024
        %v5582 = vunpack.c.l.b16 %v1025
        %v5583 = vunpack.c.h.b16 %v1025
        %v5584 = vunpack.c.l.b16 %v1026
        %v5585 = vunpack.c.h.b16 %v1026
        %v5586 = vunpack.c.l.b16 %v1027
        %v5587 = vunpack.c.h.b16 %v1027
        %v5588 = vunpack.c.l.b16 %v1028
        %v5589 = vunpack.c.h.b16 %v1028
        %v5590 = vunpack.c.l.b16 %v1029
        %v5591 = vunpack.c.h.b16 %v1029
        %v5592 = vunpack.c.l.b16 %v1030
        %v5593 = vunpack.c.h.b16 %v1030
        %v5594 = vunpack.c.l.b16 %v1031
        %v5595 = vunpack.c.h.b16 %v1031
        %v5596 = vunpack.c.l.b16 %v1032
        %v5597 = vunpack.c.h.b16 %v1032
        %v5598 = vunpack.c.l.b16 %v1033
        %v5599 = vunpack.c.h.b16 %v1033
        %v5600 = vunpack.c.l.b16 %v1034
        %v5601 = vunpack.c.h.b16 %v1034
        %v5602 = vunpack.c.l.b16 %v1035
        %v5603 = vunpack.c.h.b16 %v1035
        %v5604 = vunpack.c.l.b16 %v1036
        %v5605 = vunpack.c.h.b16 %v1036
        %v5606 = vunpack.c.l.b16 %v1037
        %v5607 = vunpack.c.h.b16 %v1037
        %v5608 = vunpack.c.l.b16 %v1038
        %v5609 = vunpack.c.h.b16 %v1038
        %v5610 = vunpack.c.l.b16 %v1039
        %v5611 = vunpack.c.h.b16 %v1039
        %v5612 = vunpack.c.l.b16 %v1040
        %v5613 = vunpack.c.h.b16 %v1040
        %v5614 = vunpack.c.l.b16 %v1041
        %v5615 = vunpack.c.h.b16 %v1041
        %v5616 = vunpack.c.l.b16 %v1042
        %v5617 = vunpack.c.h.b16 %v1042
        %v5618 = vunpack.c.l.b16 %v1043
        %v5619 = vunpack.c.h.b16 %v1043
        %v5620 = vunpack.c.l.b16 %v1044
        %v5621 = vunpack.c.h.b16 %v1044
        %v5622 = vunpack.c.l.b16 %v1045
        %v5623 = vunpack.c.h.b16 %v1045
        %v5624 = vunpack.c.l.b16 %v1046
        %v5625 = vunpack.c.h.b16 %v1046
        %v5626 = vunpack.c.l.b16 %v1047
        %v5627 = vunpack.c.h.b16 %v1047
        %v5628 = vunpack.c.l.b16 %v1048
        %v5629 = vunpack.c.h.b16 %v1048
        %v5630 = vunpack.c.l.b16 %v1049
        %v5631 = vunpack.c.h.b16 %v1049
        %v5632 = vunpack.c.l.b16 %v1050
        %v5633 = vunpack.c.h.b16 %v1050
        %v5634 = vunpack.c.l.b16 %v1051
        %v5635 = vunpack.c.h.b16 %v1051
        %v5636 = vunpack.c.l.b16 %v1052
        %v5637 = vunpack.c.h.b16 %v1052
        %v5638 = vunpack.c.l.b16 %v1053
        %v5639 = vunpack.c.h.b16 %v1053
        %v5640 = vunpack.c.l.b16 %v1054
        %v5641 = vunpack.c.h.b16 %v1054
        %v5642 = vunpack.c.l.b16 %v1055
        %v5643 = vunpack.c.h.b16 %v1055
        %v5644 = vunpack.c.l.b16 %v1056
        %v5645 = vunpack.c.h.b16 %v1056
        %v5646 = vunpack.c.l.b16 %v1057
        %v5647 = vunpack.c.h.b16 %v1057
        %v5648 = vunpack.c.l.b16 %v1058
        %v5649 = vunpack.c.h.b16 %v1058
        %v5650 = vunpack.c.l.b16 %v1059
        %v5651 = vunpack.c.h.b16 %v1059
        %v5652 = vunpack.c.l.b16 %v1060
        %v5653 = vunpack.c.h.b16 %v1060
        %v5654 = vunpack.c.l.b16 %v1061
        %v5655 = vunpack.c.h.b16 %v1061
        %v5656 = vunpack.c.l.b16 %v1062
        %v5657 = vunpack.c.h.b16 %v1062
        %v5658 = vunpack.c.l.b16 %v1063
        %v5659 = vunpack.c.h.b16 %v1063
        %v5660 = vunpack.c.l.b16 %v1064
        %v5661 = vunpack.c.h.b16 %v1064
        %v5662 = vunpack.c.l.b16 %v1065
        %v5663 = vunpack.c.h.b16 %v1065
        %v5664 = vunpack.c.l.b16 %v1066
        %v5665 = vunpack.c.h.b16 %v1066
        %v5666 = vunpack.c.l.b16 %v1067
        %v5667 = vunpack.c.h.b16 %v1067
        %v5668 = vunpack.c.l.b16 %v1068
        %v5669 = vunpack.c.h.b16 %v1068
        %v5670 = vunpack.c.l.b16 %v1069
        %v5671 = vunpack.c.h.b16 %v1069
        %v5672 = vunpack.c.l.b16 %v1070
        %v5673 = vunpack.c.h.b16 %v1070
        %v5674 = vunpack.c.l.b16 %v1071
        %v5675 = vunpack.c.h.b16 %v1071
        %v5676 = vunpack.c.l.b16 %v1072
        %v5677 = vunpack.c.h.b16 %v1072
        %v5678 = vunpack.c.l.b16 %v1073
        %v5679 = vunpack.c.h.b16 %v1073
        %v5680 = vunpack.c.l.b16 %v1074
        %v5681 = vunpack.c.h.b16 %v1074
        %v5682 = vunpack.c.l.b16 %v1075
        %v5683 = vunpack.c.h.b16 %v1075
        %v5684 = vunpack.c.l.b16 %v1076
        %v5685 = vunpack.c.h.b16 %v1076
        %v5686 = vunpack.c.l.b16 %v1077
        %v5687 = vunpack.c.h.b16 %v1077
        %v5688 = vunpack.c.l.b16 %v1078
        %v5689 = vunpack.c.h.b16 %v1078
        %v5690 = vunpack.c.l.b16 %v1079
        %v5691 = vunpack.c.h.b16 %v1079
        %v5692 = vunpack.c.l.b16 %v1080
        %v5693 = vunpack.c.h.b16 %v1080
        %v5694 = vunpack.c.l.b16 %v1081
        %v5695 = vunpack.c.h.b16 %v1081
        %v5696 = vunpack.c.l.b16 %v1082
        %v5697 = vunpack.c.h.b16 %v1082
        %v5698 = vunpack.c.l.b16 %v1083
        %v5699 = vunpack.c.h.b16 %v1083
        %v5700 = vunpack.c.l.b16 %v1084
        %v5701 = vunpack.c.h.b16 %v1084
        %v5702 = vunpack.c.l.b16 %v1085
        %v5703 = vunpack.c.h.b16 %v1085
        %v5704 = vunpack.c.l.b16 %v1086
        %v5705 = vunpack.c.h.b16 %v1086
        %v5706 = vunpack.c.l.b16 %v1087
        %v5707 = vunpack.c.h.b16 %v1087
        %v5708 = vunpack.c.l.b16 %v1088
        %v5709 = vunpack.c.h.b16 %v1088
        %v5710 = vunpack.c.l.b16 %v1089
        %v5711 = vunpack.c.h.b16 %v1089
        %v5712 = vunpack.c.l.b16 %v1090
        %v5713 = vunpack.c.h.b16 %v1090
        %v5714 = vunpack.c.l.b16 %v1091
        %v5715 = vunpack.c.h.b16 %v1091
        %v5716 = vunpack.c.l.b16 %v1092
        %v5717 = vunpack.c.h.b16 %v1092
        %v5718 = vunpack.c.l.b16 %v1093
        %v5719 = vunpack.c.h.b16 %v1093
        %v5720 = vunpack.c.l.b16 %v1094
        %v5721 = vunpack.c.h.b16 %v1094
        %v5722 = vunpack.c.l.b16 %v1095
        %v5723 = vunpack.c.h.b16 %v1095
        %v5724 = vunpack.c.l.b16 %v1096
        %v5725 = vunpack.c.h.b16 %v1096
        %v5726 = vunpack.c.l.b16 %v1097
        %v5727 = vunpack.c.h.b16 %v1097
        %v5728 = vunpack.c.l.b16 %v1098
        %v5729 = vunpack.c.h.b16 %v1098
        %v5730 = vunpack.c.l.b16 %v1099
        %v5731 = vunpack.c.h.b16 %v1099
        %v5732 = vunpack.c.l.b16 %v1100
        %v5733 = vunpack.c.h.b16 %v1100
        %v5734 = vunpack.c.l.b16 %v1101
        %v5735 = vunpack.c.h.b16 %v1101
        %v5736 = vunpack.c.l.b16 %v1102
        %v5737 = vunpack.c.h.b16 %v1102
        %v5738 = vunpack.c.l.b16 %v1103
        %v5739 = vunpack.c.h.b16 %v1103
        %v5740 = vunpack.c.l.b16 %v1104
        %v5741 = vunpack.c.h.b16 %v1104
        %v5742 = vunpack.c.l.b16 %v1105
        %v5743 = vunpack.c.h.b16 %v1105
        %v5744 = vunpack.c.l.b16 %v1106
        %v5745 = vunpack.c.h.b16 %v1106
        %v5746 = vunpack.c.l.b16 %v1107
        %v5747 = vunpack.c.h.b16 %v1107
        %v5748 = vunpack.c.l.b16 %v1108
        %v5749 = vunpack.c.h.b16 %v1108
        %v5750 = vunpack.c.l.b16 %v1109
        %v5751 = vunpack.c.h.b16 %v1109
        %v5752 = vunpack.c.l.b16 %v1110
        %v5753 = vunpack.c.h.b16 %v1110
        %v5754 = vunpack.c.l.b16 %v1111
        %v5755 = vunpack.c.h.b16 %v1111
        %v5756 = vunpack.c.l.b16 %v1112
        %v5757 = vunpack.c.h.b16 %v1112
        %v5758 = vunpack.c.l.b16 %v1113
        %v5759 = vunpack.c.h.b16 %v1113
        %v5760 = vunpack.c.l.b16 %v1114
        %v5761 = vunpack.c.h.b16 %v1114
        %v5762 = vunpack.c.l.b16 %v1115
        %v5763 = vunpack.c.h.b16 %v1115
        %v5764 = vunpack.c.l.b16 %v1116
        %v5765 = vunpack.c.h.b16 %v1116
        %v5766 = vunpack.c.l.b16 %v1117
        %v5767 = vunpack.c.h.b16 %v1117
        %v5768 = vunpack.c.l.b16 %v1118
        %v5769 = vunpack.c.h.b16 %v1118
        %v5770 = vunpack.c.l.b16 %v1119
        %v5771 = vunpack.c.h.b16 %v1119
        %v5772 = vunpack.c.l.b16 %v1120
        %v5773 = vunpack.c.h.b16 %v1120
        %v5774 = vunpack.c.l.b16 %v1121
        %v5775 = vunpack.c.h.b16 %v1121
        %v5776 = vunpack.c.l.b16 %v1122
        %v5777 = vunpack.c.h.b16 %v1122
        %v5778 = vunpack.c.l.b16 %v1123
        %v5779 = vunpack.c.h.b16 %v1123
        %v5780 = vunpack.c.l.b16 %v1124
        %v5781 = vunpack.c.h.b16 %v1124
        %v5782 = vunpack.c.l.b16 %v1125
        %v5783 = vunpack.c.h.b16 %v1125
        %v5784 = vunpack.c.l.b16 %v1126
        %v5785 = vunpack.c.h.b16 %v1126
        %v5786 = vunpack.c.l.b16 %v1127
        %v5787 = vunpack.c.h.b16 %v1127
        %v5788 = vunpack.c.l.b16 %v1128
        %v5789 = vunpack.c.h.b16 %v1128
        %v5790 = vunpack.c.l.b16 %v1129
        %v5791 = vunpack.c.h.b16 %v1129
        %v5792 = vunpack.c.l.b16 %v1130
        %v5793 = vunpack.c.h.b16 %v1130
        %v5794 = vunpack.c.l.b16 %v1131
        %v5795 = vunpack.c.h.b16 %v1131
        %v5796 = vunpack.c.l.b16 %v1132
        %v5797 = vunpack.c.h.b16 %v1132
        %v5798 = vunpack.c.l.b16 %v1133
        %v5799 = vunpack.c.h.b16 %v1133
        %v5800 = vunpack.c.l.b16 %v1134
        %v5801 = vunpack.c.h.b16 %v1134
        %v5802 = vunpack.c.l.b16 %v1135
        %v5803 = vunpack.c.h.b16 %v1135
        %v5804 = vunpack.c.l.b16 %v1136
        %v5805 = vunpack.c.h.b16 %v1136
        %v5806 = vunpack.c.l.b16 %v1137
        %v5807 = vunpack.c.h.b16 %v1137
        %v5808 = vunpack.c.l.b16 %v1138
        %v5809 = vunpack.c.h.b16 %v1138
        %v5810 = vunpack.c.l.b16 %v1139
        %v5811 = vunpack.c.h.b16 %v1139
        %v5812 = vunpack.c.l.b16 %v1140
        %v5813 = vunpack.c.h.b16 %v1140
        %v5814 = vunpack.c.l.b16 %v1141
        %v5815 = vunpack.c.h.b16 %v1141
        %v5816 = vunpack.c.l.b16 %v1142
        %v5817 = vunpack.c.h.b16 %v1142
        %v5818 = vunpack.c.l.b16 %v1143
        %v5819 = vunpack.c.h.b16 %v1143
        %v5820 = vunpack.c.l.b16 %v1144
        %v5821 = vunpack.c.h.b16 %v1144
        %v5822 = vunpack.c.l.b16 %v1145
        %v5823 = vunpack.c.h.b16 %v1145
        %v5824 = vunpack.c.l.b16 %v1146
        %v5825 = vunpack.c.h.b16 %v1146
        %v5826 = vunpack.c.l.b16 %v1147
        %v5827 = vunpack.c.h.b16 %v1147
        %v5828 = vunpack.c.l.b16 %v1148
        %v5829 = vunpack.c.h.b16 %v1148
        %v5830 = vunpack.c.l.b16 %v1149
        %v5831 = vunpack.c.h.b16 %v1149
        %v5832 = vunpack.c.l.b16 %v1150
        %v5833 = vunpack.c.h.b16 %v1150
        %v5834 = vunpack.c.l.b16 %v1151
        %v5835 = vunpack.c.h.b16 %v1151
        %v5836 = vunpack.c.l.b16 %v1152
        %v5837 = vunpack.c.h.b16 %v1152
        %v5838 = vunpack.c.l.b16 %v1153
        %v5839 = vunpack.c.h.b16 %v1153
        %v5840 = vunpack.c.l.b16 %v1154
        %v5841 = vunpack.c.h.b16 %v1154
        %v5842 = vunpack.c.l.b16 %v1155
        %v5843 = vunpack.c.h.b16 %v1155
        %v5844 = vunpack.c.l.b16 %v1156
        %v5845 = vunpack.c.h.b16 %v1156
        %v5846 = vunpack.c.l.b16 %v1157
        %v5847 = vunpack.c.h.b16 %v1157
        %v5848 = vunpack.c.l.b16 %v1158
        %v5849 = vunpack.c.h.b16 %v1158
        %v5850 = vunpack.c.l.b16 %v1159
        %v5851 = vunpack.c.h.b16 %v1159
        %v5852 = vunpack.c.l.b16 %v1160
        %v5853 = vunpack.c.h.b16 %v1160
        %v5854 = vunpack.c.l.b16 %v1161
        %v5855 = vunpack.c.h.b16 %v1161
        %v5856 = vunpack.c.l.b16 %v1162
        %v5857 = vunpack.c.h.b16 %v1162
        %v5858 = vunpack.c.l.b16 %v1163
        %v5859 = vunpack.c.h.b16 %v1163
        %v5860 = vunpack.c.l.b16 %v1164
        %v5861 = vunpack.c.h.b16 %v1164
        %v5862 = vunpack.c.l.b16 %v1165
        %v5863 = vunpack.c.h.b16 %v1165
        %v5864 = vunpack.c.l.b16 %v1166
        %v5865 = vunpack.c.h.b16 %v1166
        %v5866 = vunpack.c.l.b16 %v1167
        %v5867 = vunpack.c.h.b16 %v1167
        %v5868 = vunpack.c.l.b16 %v1168
        %v5869 = vunpack.c.h.b16 %v1168
        %v5870 = vunpack.c.l.b16 %v1169
        %v5871 = vunpack.c.h.b16 %v1169
        %v5872 = vunpack.c.l.b16 %v1170
        %v5873 = vunpack.c.h.b16 %v1170
        %v5874 = vunpack.c.l.b16 %v1171
        %v5875 = vunpack.c.h.b16 %v1171
        %v5876 = vunpack.c.l.b16 %v1172
        %v5877 = vunpack.c.h.b16 %v1172
        %v5878 = vunpack.c.l.b16 %v1173
        %v5879 = vunpack.c.h.b16 %v1173
        %v5880 = vunpack.c.l.b16 %v1174
        %v5881 = vunpack.c.h.b16 %v1174
        %v5882 = vunpack.c.l.b16 %v1175
        %v5883 = vunpack.c.h.b16 %v1175
        %v5884 = vunpack.c.l.b16 %v1176
        %v5885 = vunpack.c.h.b16 %v1176
        %v5886 = vunpack.c.l.b16 %v1177
        %v5887 = vunpack.c.h.b16 %v1177
        %v5888 = vunpack.c.l.b16 %v1178
        %v5889 = vunpack.c.h.b16 %v1178
        %v5890 = vunpack.c.l.b16 %v1179
        %v5891 = vunpack.c.h.b16 %v1179
        %v5892 = vunpack.c.l.b16 %v1180
        %v5893 = vunpack.c.h.b16 %v1180
        %v5894 = vunpack.c.l.b16 %v1181
        %v5895 = vunpack.c.h.b16 %v1181
        %v5896 = vunpack.c.l.b16 %v1182
        %v5897 = vunpack.c.h.b16 %v1182
        %v5898 = vunpack.c.l.b16 %v1183
        %v5899 = vunpack.c.h.b16 %v1183
        %v5900 = vunpack.c.l.b16 %v1184
        %v5901 = vunpack.c.h.b16 %v1184
        %v5902 = vunpack.c.l.b16 %v1185
        %v5903 = vunpack.c.h.b16 %v1185
        %v5904 = vunpack.c.l.b16 %v1186
        %v5905 = vunpack.c.h.b16 %v1186
        %v5906 = vunpack.c.l.b16 %v1187
        %v5907 = vunpack.c.h.b16 %v1187
        %v5908 = vunpack.c.l.b16 %v1188
        %v5909 = vunpack.c.h.b16 %v1188
        %v5910 = vunpack.c.l.b16 %v1189
        %v5911 = vunpack.c.h.b16 %v1189
        %v5912 = vunpack.c.l.b16 %v1190
        %v5913 = vunpack.c.h.b16 %v1190
        %v5914 = vunpack.c.l.b16 %v1191
        %v5915 = vunpack.c.h.b16 %v1191
        %v5916 = vunpack.c.l.b16 %v1192
        %v5917 = vunpack.c.h.b16 %v1192
        %v5918 = vunpack.c.l.b16 %v1193
        %v5919 = vunpack.c.h.b16 %v1193
        %v5920 = vunpack.c.l.b16 %v1194
        %v5921 = vunpack.c.h.b16 %v1194
        %v5922 = vunpack.c.l.b16 %v1195
        %v5923 = vunpack.c.h.b16 %v1195
        %v5924 = vunpack.c.l.b16 %v1196
        %v5925 = vunpack.c.h.b16 %v1196
        %v5926 = vunpack.c.l.b16 %v1197
        %v5927 = vunpack.c.h.b16 %v1197
        %v5928 = vunpack.c.l.b16 %v1198
        %v5929 = vunpack.c.h.b16 %v1198
        %v5930 = vunpack.c.l.b16 %v1199
        %v5931 = vunpack.c.h.b16 %v1199
        %v5932 = vunpack.c.l.b16 %v1200
        %v5933 = vunpack.c.h.b16 %v1200
        %v5934 = vunpack.c.l.b16 %v1201
        %v5935 = vunpack.c.h.b16 %v1201
        %v5936 = vunpack.c.l.b16 %v1202
        %v5937 = vunpack.c.h.b16 %v1202
        %v5938 = vunpack.c.l.b16 %v1203
        %v5939 = vunpack.c.h.b16 %v1203
        %v5940 = vunpack.c.l.b16 %v1204
        %v5941 = vunpack.c.h.b16 %v1204
        %v5942 = vunpack.c.l.b16 %v1205
        %v5943 = vunpack.c.h.b16 %v1205
        %v5944 = vunpack.c.l.b16 %v1206
        %v5945 = vunpack.c.h.b16 %v1206
        %v5946 = vunpack.c.l.b16 %v1207
        %v5947 = vunpack.c.h.b16 %v1207
        %v5948 = vunpack.c.l.b16 %v1208
        %v5949 = vunpack.c.h.b16 %v1208
        %v5950 = vunpack.c.l.b16 %v1209
        %v5951 = vunpack.c.h.b16 %v1209
        %v5952 = vunpack.c.l.b16 %v1210
        %v5953 = vunpack.c.h.b16 %v1210
        %v5954 = vunpack.c.l.b16 %v1211
        %v5955 = vunpack.c.h.b16 %v1211
        %v5956 = vunpack.c.l.b16 %v1212
        %v5957 = vunpack.c.h.b16 %v1212
        %v5958 = vunpack.c.l.b16 %v1213
        %v5959 = vunpack.c.h.b16 %v1213
        %v5960 = vunpack.c.l.b16 %v1214
        %v5961 = vunpack.c.h.b16 %v1214
        %v5962 = vunpack.c.l.b16 %v1215
        %v5963 = vunpack.c.h.b16 %v1215
        %v5964 = vunpack.c.l.b16 %v1216
        %v5965 = vunpack.c.h.b16 %v1216
        %v5966 = vunpack.c.l.b16 %v1217
        %v5967 = vunpack.c.h.b16 %v1217
        %v5968 = vunpack.c.l.b16 %v1218
        %v5969 = vunpack.c.h.b16 %v1218
        %v5970 = vunpack.c.l.b16 %v1219
        %v5971 = vunpack.c.h.b16 %v1219
        %v5972 = vunpack.c.l.b16 %v1220
        %v5973 = vunpack.c.h.b16 %v1220
        %v5974 = vunpack.c.l.b16 %v1221
        %v5975 = vunpack.c.h.b16 %v1221
        %v5976 = vunpack.c.l.b16 %v1222
        %v5977 = vunpack.c.h.b16 %v1222
        %v5978 = vunpack.c.l.b16 %v1223
        %v5979 = vunpack.c.h.b16 %v1223
        %v5980 = vunpack.c.l.b16 %v1224
        %v5981 = vunpack.c.h.b16 %v1224
        %v5982 = vunpack.c.l.b16 %v1225
        %v5983 = vunpack.c.h.b16 %v1225
        %v5984 = vunpack.c.l.b16 %v1226
        %v5985 = vunpack.c.h.b16 %v1226
        %v5986 = vunpack.c.l.b16 %v1227
        %v5987 = vunpack.c.h.b16 %v1227
        %v5988 = vunpack.c.l.b16 %v1228
        %v5989 = vunpack.c.h.b16 %v1228
        %v5990 = vunpack.c.l.b16 %v1229
        %v5991 = vunpack.c.h.b16 %v1229
        %v5992 = vunpack.c.l.b16 %v1230
        %v5993 = vunpack.c.h.b16 %v1230
        %v5994 = vunpack.c.l.b16 %v1231
        %v5995 = vunpack.c.h.b16 %v1231
        %v5996 = vunpack.c.l.b16 %v1232
        %v5997 = vunpack.c.h.b16 %v1232
        %v5998 = vunpack.c.l.b16 %v1233
        %v5999 = vunpack.c.h.b16 %v1233
        %v6000 = vunpack.c.l.b16 %v1234
        %v6001 = vunpack.c.h.b16 %v1234
        %v6002 = vunpack.c.l.b16 %v1235
        %v6003 = vunpack.c.h.b16 %v1235
        %v6004 = vunpack.c.l.b16 %v1236
        %v6005 = vunpack.c.h.b16 %v1236
        %v6006 = vunpack.c.l.b16 %v1237
        %v6007 = vunpack.c.h.b16 %v1237
        %v6008 = vunpack.c.l.b16 %v1238
        %v6009 = vunpack.c.h.b16 %v1238
        %v6010 = vunpack.c.l.b16 %v1239
        %v6011 = vunpack.c.h.b16 %v1239
        %v6012 = vunpack.c.l.b16 %v1240
        %v6013 = vunpack.c.h.b16 %v1240
        %v6014 = vunpack.c.l.b16 %v1241
        %v6015 = vunpack.c.h.b16 %v1241
        %v6016 = vunpack.c.l.b16 %v1242
        %v6017 = vunpack.c.h.b16 %v1242
        %v6018 = vunpack.c.l.b16 %v1243
        %v6019 = vunpack.c.h.b16 %v1243
        %v6020 = vunpack.c.l.b16 %v1244
        %v6021 = vunpack.c.h.b16 %v1244
        %v6022 = vunpack.c.l.b16 %v1245
        %v6023 = vunpack.c.h.b16 %v1245
        %v6024 = vunpack.c.l.b16 %v1246
        %v6025 = vunpack.c.h.b16 %v1246
        %v6026 = vunpack.c.l.b16 %v1247
        %v6027 = vunpack.c.h.b16 %v1247
        %v6028 = vunpack.c.l.b16 %v1248
        %v6029 = vunpack.c.h.b16 %v1248
        %v6030 = vunpack.c.l.b16 %v1249
        %v6031 = vunpack.c.h.b16 %v1249
        %v6032 = vunpack.c.l.b16 %v1250
        %v6033 = vunpack.c.h.b16 %v1250
        %v6034 = vunpack.c.l.b16 %v1251
        %v6035 = vunpack.c.h.b16 %v1251
        %v6036 = vunpack.c.l.b16 %v1252
        %v6037 = vunpack.c.h.b16 %v1252
        %v6038 = vunpack.c.l.b16 %v1253
        %v6039 = vunpack.c.h.b16 %v1253
        %v6040 = vunpack.c.l.b16 %v1254
        %v6041 = vunpack.c.h.b16 %v1254
        %v6042 = vunpack.c.l.b16 %v1255
        %v6043 = vunpack.c.h.b16 %v1255
        %v6044 = vunpack.c.l.b16 %v1256
        %v6045 = vunpack.c.h.b16 %v1256
        %v6046 = vunpack.c.l.b16 %v1257
        %v6047 = vunpack.c.h.b16 %v1257
        %v6048 = vunpack.c.l.b16 %v1258
        %v6049 = vunpack.c.h.b16 %v1258
        %v6050 = vunpack.c.l.b16 %v1259
        %v6051 = vunpack.c.h.b16 %v1259
        %v6052 = vunpack.c.l.b16 %v1260
        %v6053 = vunpack.c.h.b16 %v1260
        %v6054 = vunpack.c.l.b16 %v1261
        %v6055 = vunpack.c.h.b16 %v1261
        %v6056 = vunpack.c.l.b16 %v1262
        %v6057 = vunpack.c.h.b16 %v1262
        %v6058 = vunpack.c.l.b16 %v1263
        %v6059 = vunpack.c.h.b16 %v1263
        %v6060 = vunpack.c.l.b16 %v1264
        %v6061 = vunpack.c.h.b16 %v1264
        %v6062 = vunpack.c.l.b16 %v1265
        %v6063 = vunpack.c.h.b16 %v1265
        %v6064 = vunpack.c.l.b16 %v1266
        %v6065 = vunpack.c.h.b16 %v1266
        %v6066 = vunpack.c.l.b16 %v1267
        %v6067 = vunpack.c.h.b16 %v1267
        %v6068 = vunpack.c.l.b16 %v1268
        %v6069 = vunpack.c.h.b16 %v1268
        %v6070 = vunpack.c.l.b16 %v1269
        %v6071 = vunpack.c.h.b16 %v1269
        %v6072 = vunpack.c.l.b16 %v1270
        %v6073 = vunpack.c.h.b16 %v1270
        %v6074 = vunpack.c.l.b16 %v1271
        %v6075 = vunpack.c.h.b16 %v1271
        %v6076 = vunpack.c.l.b16 %v1272
        %v6077 = vunpack.c.h.b16 %v1272
        %v6078 = vunpack.c.l.b16 %v1273
        %v6079 = vunpack.c.h.b16 %v1273
        %v6080 = vunpack.c.l.b16 %v1274
        %v6081 = vunpack.c.h.b16 %v1274
        %v6082 = vunpack.c.l.b16 %v1275
        %v6083 = vunpack.c.h.b16 %v1275
        %v6084 = vunpack.c.l.b16 %v1276
        %v6085 = vunpack.c.h.b16 %v1276
        %v6086 = vunpack.c.l.b16 %v1277
        %v6087 = vunpack.c.h.b16 %v1277
        %v6088 = vunpack.c.l.b16 %v1278
        %v6089 = vunpack.c.h.b16 %v1278
        %v6090 = vunpack.c.l.b16 %v1279
        %v6091 = vunpack.c.h.b16 %v1279
        %v6092 = vunpack.c.l.b16 %v1280
        %v6093 = vunpack.c.h.b16 %v1280
        %v6094 = vunpack.c.l.b16 %v1281
        %v6095 = vunpack.c.h.b16 %v1281
        %v6096 = vunpack.c.l.b16 %v1282
        %v6097 = vunpack.c.h.b16 %v1282
        %v6098 = vunpack.c.l.b16 %v1283
        %v6099 = vunpack.c.h.b16 %v1283
        %v6100 = vunpack.c.l.b16 %v1284
        %v6101 = vunpack.c.h.b16 %v1284
        %v6102 = vunpack.c.l.b16 %v1285
        %v6103 = vunpack.c.h.b16 %v1285
        %v6104 = vunpack.c.l.b16 %v1286
        %v6105 = vunpack.c.h.b16 %v1286
        %v6106 = vunpack.c.l.b16 %v1287
        %v6107 = vunpack.c.h.b16 %v1287
        %v6108 = vunpack.c.l.b16 %v1288
        %v6109 = vunpack.c.h.b16 %v1288
        %v6110 = vunpack.c.l.b16 %v1289
        %v6111 = vunpack.c.h.b16 %v1289
        %v6112 = vunpack.c.l.b16 %v1290
        %v6113 = vunpack.c.h.b16 %v1290
        %v6114 = vunpack.c.l.b16 %v1291
        %v6115 = vunpack.c.h.b16 %v1291
        %v6116 = vunpack.c.l.b16 %v1292
        %v6117 = vunpack.c.h.b16 %v1292
        %v6118 = vunpack.c.l.b16 %v1293
        %v6119 = vunpack.c.h.b16 %v1293
        %v6120 = vunpack.c.l.b16 %v1294
        %v6121 = vunpack.c.h.b16 %v1294
        %v6122 = vunpack.c.l.b16 %v1295
        %v6123 = vunpack.c.h.b16 %v1295
        %v6124 = vunpack.c.l.b16 %v1296
        %v6125 = vunpack.c.h.b16 %v1296
        %v6126 = vunpack.c.l.b16 %v1297
        %v6127 = vunpack.c.h.b16 %v1297
        %v6128 = vunpack.c.l.b16 %v1298
        %v6129 = vunpack.c.h.b16 %v1298
        %v6130 = vunpack.c.l.b16 %v1299
        %v6131 = vunpack.c.h.b16 %v1299
        %v6132 = vunpack.c.l.b16 %v1300
        %v6133 = vunpack.c.h.b16 %v1300
        %v6134 = vunpack.c.l.b16 %v1301
        %v6135 = vunpack.c.h.b16 %v1301
        %v6136 = vunpack.c.l.b16 %v1302
        %v6137 = vunpack.c.h.b16 %v1302
        %v6138 = vunpack.c.l.b16 %v1303
        %v6139 = vunpack.c.h.b16 %v1303
        %v6140 = vunpack.c.l.b16 %v1304
        %v6141 = vunpack.c.h.b16 %v1304
        %v6142 = vunpack.c.l.b16 %v1305
        %v6143 = vunpack.c.h.b16 %v1305
        %v6144 = vunpack.c.l.b16 %v1306
        %v6145 = vunpack.c.h.b16 %v1306
        %v6146 = vunpack.c.l.b16 %v1307
        %v6147 = vunpack.c.h.b16 %v1307
        %v6148 = vunpack.c.l.b16 %v1308
        %v6149 = vunpack.c.h.b16 %v1308
        %v6150 = vunpack.c.l.b16 %v1309
        %v6151 = vunpack.c.h.b16 %v1309
        %v6152 = vunpack.c.l.b16 %v1310
        %v6153 = vunpack.c.h.b16 %v1310
        %v6154 = vunpack.c.l.b16 %v1311
        %v6155 = vunpack.c.h.b16 %v1311
        %v6156 = vunpack.c.l.b16 %v1312
        %v6157 = vunpack.c.h.b16 %v1312
        %v6158 = vunpack.c.l.b16 %v1313
        %v6159 = vunpack.c.h.b16 %v1313
        %v6160 = vunpack.c.l.b16 %v1314
        %v6161 = vunpack.c.h.b16 %v1314
        %v6162 = vunpack.c.l.b16 %v1315
        %v6163 = vunpack.c.h.b16 %v1315
        %v6164 = vunpack.c.l.b16 %v1316
        %v6165 = vunpack.c.h.b16 %v1316
        %v6166 = vunpack.c.l.b16 %v1317
        %v6167 = vunpack.c.h.b16 %v1317
        %v6168 = vunpack.c.l.b16 %v1318
        %v6169 = vunpack.c.h.b16 %v1318
        %v6170 = vunpack.c.l.b16 %v1319
        %v6171 = vunpack.c.h.b16 %v1319
        %v6172 = vunpack.c.l.b16 %v1320
        %v6173 = vunpack.c.h.b16 %v1320
        %v6174 = vunpack.c.l.b16 %v1321
        %v6175 = vunpack.c.h.b16 %v1321
        %v6176 = vunpack.c.l.b16 %v1322
        %v6177 = vunpack.c.h.b16 %v1322
        %v6178 = vunpack.c.l.b16 %v1323
        %v6179 = vunpack.c.h.b16 %v1323
        %v6180 = vunpack.c.l.b16 %v1324
        %v6181 = vunpack.c.h.b16 %v1324
        %v6182 = vunpack.c.l.b16 %v1325
        %v6183 = vunpack.c.h.b16 %v1325
        %v6184 = vunpack.c.l.b16 %v1326
        %v6185 = vunpack.c.h.b16 %v1326
        %v6186 = vunpack.c.l.b16 %v1327
        %v6187 = vunpack.c.h.b16 %v1327
        %v6188 = vunpack.c.l.b16 %v1328
        %v6189 = vunpack.c.h.b16 %v1328
        %v6190 = vunpack.c.l.b16 %v1329
        %v6191 = vunpack.c.h.b16 %v1329
        %v6192 = vunpack.c.l.b16 %v1330
        %v6193 = vunpack.c.h.b16 %v1330
        %v6194 = vunpack.c.l.b16 %v1331
        %v6195 = vunpack.c.h.b16 %v1331
        %v6196 = vunpack.c.l.b16 %v1332
        %v6197 = vunpack.c.h.b16 %v1332
        %v6198 = vunpack.c.l.b16 %v1333
        %v6199 = vunpack.c.h.b16 %v1333
        %v6200 = vunpack.c.l.b16 %v1334
        %v6201 = vunpack.c.h.b16 %v1334
        %v6202 = vunpack.c.l.b16 %v1335
        %v6203 = vunpack.c.h.b16 %v1335
        %v6204 = vunpack.c.l.b16 %v1336
        %v6205 = vunpack.c.h.b16 %v1336
        %v6206 = vunpack.c.l.b16 %v1337
        %v6207 = vunpack.c.h.b16 %v1337
        %v6208 = vunpack.c.l.b16 %v1338
        %v6209 = vunpack.c.h.b16 %v1338
        %v6210 = vunpack.c.l.b16 %v1339
        %v6211 = vunpack.c.h.b16 %v1339
        %v6212 = vunpack.c.l.b16 %v1340
        %v6213 = vunpack.c.h.b16 %v1340
        %v6214 = vunpack.c.l.b16 %v1341
        %v6215 = vunpack.c.h.b16 %v1341
        %v6216 = vunpack.c.l.b16 %v1342
        %v6217 = vunpack.c.h.b16 %v1342
        %v6218 = vunpack.c.l.b16 %v1343
        %v6219 = vunpack.c.h.b16 %v1343
        %v6220 = vunpack.c.l.b16 %v1344
        %v6221 = vunpack.c.h.b16 %v1344
        %v6222 = vunpack.c.l.b16 %v1345
        %v6223 = vunpack.c.h.b16 %v1345
        %v6224 = vunpack.c.l.b16 %v1346
        %v6225 = vunpack.c.h.b16 %v1346
        %v6226 = vunpack.c.l.b16 %v1347
        %v6227 = vunpack.c.h.b16 %v1347
        %v6228 = vunpack.c.l.b16 %v1348
        %v6229 = vunpack.c.h.b16 %v1348
        %v6230 = vunpack.c.l.b16 %v1349
        %v6231 = vunpack.c.h.b16 %v1349
        %v6232 = vunpack.c.l.b16 %v1350
        %v6233 = vunpack.c.h.b16 %v1350
        %v6234 = vunpack.c.l.b16 %v1351
        %v6235 = vunpack.c.h.b16 %v1351
        %v6236 = vunpack.c.l.b16 %v1352
        %v6237 = vunpack.c.h.b16 %v1352
        %v6238 = vunpack.c.l.b16 %v1353
        %v6239 = vunpack.c.h.b16 %v1353
        %v6240 = vunpack.c.l.b16 %v1354
        %v6241 = vunpack.c.h.b16 %v1354
        %v6242 = vunpack.c.l.b16 %v1355
        %v6243 = vunpack.c.h.b16 %v1355
        %v6244 = vunpack.c.l.b16 %v1356
        %v6245 = vunpack.c.h.b16 %v1356
        %v6246 = vunpack.c.l.b16 %v1357
        %v6247 = vunpack.c.h.b16 %v1357
        %v6248 = vunpack.c.l.b16 %v1358
        %v6249 = vunpack.c.h.b16 %v1358
        %v6250 = vunpack.c.l.b16 %v1359
        %v6251 = vunpack.c.h.b16 %v1359
        %v6252 = vunpack.c.l.b16 %v1360
        %v6253 = vunpack.c.h.b16 %v1360
        %v6254 = vunpack.c.l.b16 %v1361
        %v6255 = vunpack.c.h.b16 %v1361
        %v6256 = vunpack.c.l.b16 %v1362
        %v6257 = vunpack.c.h.b16 %v1362
        %v6258 = vunpack.c.l.b16 %v1363
        %v6259 = vunpack.c.h.b16 %v1363
        %v6260 = vunpack.c.l.b16 %v1364
        %v6261 = vunpack.c.h.b16 %v1364
        %v6262 = vunpack.c.l.b16 %v1365
        %v6263 = vunpack.c.h.b16 %v1365
        %v6264 = vunpack.c.l.b16 %v1366
        %v6265 = vunpack.c.h.b16 %v1366
        %v6266 = vunpack.c.l.b16 %v1367
        %v6267 = vunpack.c.h.b16 %v1367
        %v6268 = vunpack.c.l.b16 %v1368
        %v6269 = vunpack.c.h.b16 %v1368
        %v6270 = vunpack.c.l.b16 %v1369
        %v6271 = vunpack.c.h.b16 %v1369
        %v6272 = vunpack.c.l.b16 %v1370
        %v6273 = vunpack.c.h.b16 %v1370
        %v6274 = vunpack.c.l.b16 %v1371
        %v6275 = vunpack.c.h.b16 %v1371
        %v6276 = vunpack.c.l.b16 %v1372
        %v6277 = vunpack.c.h.b16 %v1372
        %v6278 = vunpack.c.l.b16 %v1373
        %v6279 = vunpack.c.h.b16 %v1373
        %v6280 = vunpack.c.l.b16 %v1374
        %v6281 = vunpack.c.h.b16 %v1374
        %v6282 = vunpack.c.l.b16 %v1375
        %v6283 = vunpack.c.h.b16 %v1375
        %v6284 = vunpack.c.l.b16 %v1376
        %v6285 = vunpack.c.h.b16 %v1376
        %v6286 = vunpack.c.l.b16 %v1377
        %v6287 = vunpack.c.h.b16 %v1377
        %v6288 = vunpack.c.l.b16 %v1378
        %v6289 = vunpack.c.h.b16 %v1378
        %v6290 = vunpack.c.l.b16 %v1379
        %v6291 = vunpack.c.h.b16 %v1379
        %v6292 = vunpack.c.l.b16 %v1380
        %v6293 = vunpack.c.h.b16 %v1380
        %v6294 = vunpack.c.l.b16 %v1381
        %v6295 = vunpack.c.h.b16 %v1381
        %v6296 = vunpack.c.l.b16 %v1382
        %v6297 = vunpack.c.h.b16 %v1382
        %v6298 = vunpack.c.l.b16 %v1383
        %v6299 = vunpack.c.h.b16 %v1383
        %v6300 = vunpack.c.l.b16 %v1384
        %v6301 = vunpack.c.h.b16 %v1384
        %v6302 = vunpack.c.l.b16 %v1385
        %v6303 = vunpack.c.h.b16 %v1385
        %v6304 = vunpack.c.l.b16 %v1386
        %v6305 = vunpack.c.h.b16 %v1386
        %v6306 = vunpack.c.l.b16 %v1387
        %v6307 = vunpack.c.h.b16 %v1387
        %v6308 = vunpack.c.l.b16 %v1388
        %v6309 = vunpack.c.h.b16 %v1388
        %v6310 = vunpack.c.l.b16 %v1389
        %v6311 = vunpack.c.h.b16 %v1389
        %v6312 = vunpack.c.l.b16 %v1390
        %v6313 = vunpack.c.h.b16 %v1390
        %v6314 = vunpack.c.l.b16 %v1391
        %v6315 = vunpack.c.h.b16 %v1391
        %v6316 = vunpack.c.l.b16 %v1392
        %v6317 = vunpack.c.h.b16 %v1392
        %v6318 = vunpack.c.l.b16 %v1393
        %v6319 = vunpack.c.h.b16 %v1393
        %v6320 = vunpack.c.l.b16 %v1394
        %v6321 = vunpack.c.h.b16 %v1394
        %v6322 = vunpack.c.l.b16 %v1395
        %v6323 = vunpack.c.h.b16 %v1395
        %v6324 = vunpack.c.l.b16 %v1396
        %v6325 = vunpack.c.h.b16 %v1396
        %v6326 = vunpack.c.l.b16 %v1397
        %v6327 = vunpack.c.h.b16 %v1397
        %v6328 = vunpack.c.l.b16 %v1398
        %v6329 = vunpack.c.h.b16 %v1398
        %v6330 = vunpack.c.l.b16 %v1399
        %v6331 = vunpack.c.h.b16 %v1399
        %v6332 = vunpack.c.l.b16 %v1400
        %v6333 = vunpack.c.h.b16 %v1400
        %v6334 = vunpack.c.l.b16 %v1401
        %v6335 = vunpack.c.h.b16 %v1401
        %v6336 = vunpack.c.l.b16 %v1402
        %v6337 = vunpack.c.h.b16 %v1402
        %v6338 = vunpack.c.l.b16 %v1403
        %v6339 = vunpack.c.h.b16 %v1403
        %v6340 = vunpack.c.l.b16 %v1404
        %v6341 = vunpack.c.h.b16 %v1404
        %v6342 = vunpack.c.l.b16 %v1405
        %v6343 = vunpack.c.h.b16 %v1405
        %v6344 = vunpack.c.l.b16 %v1406
        %v6345 = vunpack.c.h.b16 %v1406
        %v6346 = vunpack.c.l.b16 %v1407
        %v6347 = vunpack.c.h.b16 %v1407
        %v6348 = vunpack.c.l.b16 %v1408
        %v6349 = vunpack.c.h.b16 %v1408
        %v6350 = vunpack.c.l.b16 %v1409
        %v6351 = vunpack.c.h.b16 %v1409
        %v6352 = vunpack.c.l.b16 %v1410
        %v6353 = vunpack.c.h.b16 %v1410
        %v6354 = vunpack.c.l.b16 %v1411
        %v6355 = vunpack.c.h.b16 %v1411
        %v6356 = vunpack.c.l.b16 %v1412
        %v6357 = vunpack.c.h.b16 %v1412
        %v6358 = vunpack.c.l.b16 %v1413
        %v6359 = vunpack.c.h.b16 %v1413
        %v6360 = vunpack.c.l.b16 %v1414
        %v6361 = vunpack.c.h.b16 %v1414
        %v6362 = vunpack.c.l.b16 %v1415
        %v6363 = vunpack.c.h.b16 %v1415
        %v6364 = vunpack.c.l.b16 %v1416
        %v6365 = vunpack.c.h.b16 %v1416
        %v6366 = vunpack.c.l.b16 %v1417
        %v6367 = vunpack.c.h.b16 %v1417
        %v6368 = vunpack.c.l.b16 %v1418
        %v6369 = vunpack.c.h.b16 %v1418
        %v6370 = vunpack.c.l.b16 %v1419
        %v6371 = vunpack.c.h.b16 %v1419
        %v6372 = vunpack.c.l.b16 %v1420
        %v6373 = vunpack.c.h.b16 %v1420
        %v6374 = vunpack.c.l.b16 %v1421
        %v6375 = vunpack.c.h.b16 %v1421
        %v6376 = vunpack.c.l.b16 %v1422
        %v6377 = vunpack.c.h.b16 %v1422
        %v6378 = vunpack.c.l.b16 %v1423
        %v6379 = vunpack.c.h.b16 %v1423
        %v6380 = vunpack.c.l.b16 %v1424
        %v6381 = vunpack.c.h.b16 %v1424
        %v6382 = vunpack.c.l.b16 %v1425
        %v6383 = vunpack.c.h.b16 %v1425
        %v6384 = vunpack.c.l.b16 %v1426
        %v6385 = vunpack.c.h.b16 %v1426
        %v6386 = vunpack.c.l.b16 %v1427
        %v6387 = vunpack.c.h.b16 %v1427
        %v6388 = vunpack.c.l.b16 %v1428
        %v6389 = vunpack.c.h.b16 %v1428
        %v6390 = vunpack.c.l.b16 %v1429
        %v6391 = vunpack.c.h.b16 %v1429
        %v6392 = vunpack.c.l.b16 %v1430
        %v6393 = vunpack.c.h.b16 %v1430
        %v6394 = vunpack.c.l.b16 %v1431
        %v6395 = vunpack.c.h.b16 %v1431
        %v6396 = vunpack.c.l.b16 %v1432
        %v6397 = vunpack.c.h.b16 %v1432
        %v6398 = vunpack.c.l.b16 %v1433
        %v6399 = vunpack.c.h.b16 %v1433
        %v6400 = vunpack.c.l.b16 %v1434
        %v6401 = vunpack.c.h.b16 %v1434
        %v6402 = vunpack.c.l.b16 %v1435
        %v6403 = vunpack.c.h.b16 %v1435
        %v6404 = vunpack.c.l.b16 %v1436
        %v6405 = vunpack.c.h.b16 %v1436
        %v6406 = vunpack.c.l.b16 %v1437
        %v6407 = vunpack.c.h.b16 %v1437
        %v6408 = vunpack.c.l.b16 %v1438
        %v6409 = vunpack.c.h.b16 %v1438
        %v6410 = vunpack.c.l.b16 %v1439
        %v6411 = vunpack.c.h.b16 %v1439
        %v6412 = vunpack.c.l.b16 %v1440
        %v6413 = vunpack.c.h.b16 %v1440
        %v6414 = vunpack.c.l.b16 %v1441
        %v6415 = vunpack.c.h.b16 %v1441
        %v6416 = vunpack.c.l.b16 %v1442
        %v6417 = vunpack.c.h.b16 %v1442
        %v6418 = vunpack.c.l.b16 %v1443
        %v6419 = vunpack.c.h.b16 %v1443
        %v6420 = vunpack.c.l.b16 %v1444
        %v6421 = vunpack.c.h.b16 %v1444
        %v6422 = vunpack.c.l.b16 %v1445
        %v6423 = vunpack.c.h.b16 %v1445
        %v6424 = vunpack.c.l.b16 %v1446
        %v6425 = vunpack.c.h.b16 %v1446
        %v6426 = vunpack.c.l.b16 %v1447
        %v6427 = vunpack.c.h.b16 %v1447
        %v6428 = vunpack.c.l.b16 %v1448
        %v6429 = vunpack.c.h.b16 %v1448
        %v6430 = vunpack.c.l.b16 %v1449
        %v6431 = vunpack.c.h.b16 %v1449
        %v6432 = vunpack.c.l.b16 %v1450
        %v6433 = vunpack.c.h.b16 %v1450
        %v6434 = vunpack.c.l.b16 %v1451
        %v6435 = vunpack.c.h.b16 %v1451
        %v6436 = vunpack.c.l.b16 %v1452
        %v6437 = vunpack.c.h.b16 %v1452
        %v6438 = vunpack.c.l.b16 %v1453
        %v6439 = vunpack.c.h.b16 %v1453
        %v6440 = vunpack.c.l.b16 %v1454
        %v6441 = vunpack.c.h.b16 %v1454
        %v6442 = vunpack.c.l.b16 %v1455
        %v6443 = vunpack.c.h.b16 %v1455
        %v6444 = vunpack.c.l.b16 %v1456
        %v6445 = vunpack.c.h.b16 %v1456
        %v6446 = vunpack.c.l.b16 %v1457
        %v6447 = vunpack.c.h.b16 %v1457
        %v6448 = vunpack.c.l.b16 %v1458
        %v6449 = vunpack.c.h.b16 %v1458
        %v6450 = vunpack.c.l.b16 %v1459
        %v6451 = vunpack.c.h.b16 %v1459
        %v6452 = vunpack.c.l.b16 %v1460
        %v6453 = vunpack.c.h.b16 %v1460
        %v6454 = vunpack.c.l.b16 %v1461
        %v6455 = vunpack.c.h.b16 %v1461
        %v6456 = vunpack.c.l.b16 %v1462
        %v6457 = vunpack.c.h.b16 %v1462
        %v6458 = vunpack.c.l.b16 %v1463
        %v6459 = vunpack.c.h.b16 %v1463
        %v6460 = vunpack.c.l.b16 %v1464
        %v6461 = vunpack.c.h.b16 %v1464
        %v6462 = vunpack.c.l.b16 %v1465
        %v6463 = vunpack.c.h.b16 %v1465
        %v6464 = vunpack.c.l.b16 %v1466
        %v6465 = vunpack.c.h.b16 %v1466
        %v6466 = vunpack.c.l.b16 %v1467
        %v6467 = vunpack.c.h.b16 %v1467
        %v6468 = vunpack.c.l.b16 %v1468
        %v6469 = vunpack.c.h.b16 %v1468
        %v6470 = vunpack.c.l.b16 %v1469
        %v6471 = vunpack.c.h.b16 %v1469
        %v6472 = vunpack.c.l.b16 %v1470
        %v6473 = vunpack.c.h.b16 %v1470
        %v6474 = vunpack.c.l.b16 %v1471
        %v6475 = vunpack.c.h.b16 %v1471
        %v6476 = vunpack.c.l.b16 %v1472
        %v6477 = vunpack.c.h.b16 %v1472
        %v6478 = vunpack.c.l.b16 %v1473
        %v6479 = vunpack.c.h.b16 %v1473
        %v6480 = vunpack.c.l.b16 %v1474
        %v6481 = vunpack.c.h.b16 %v1474
        %v6482 = vunpack.c.l.b16 %v1475
        %v6483 = vunpack.c.h.b16 %v1475
        %v6484 = vunpack.c.l.b16 %v1476
        %v6485 = vunpack.c.h.b16 %v1476
        %v6486 = vunpack.c.l.b16 %v1477
        %v6487 = vunpack.c.h.b16 %v1477
        %v6488 = vunpack.c.l.b16 %v1478
        %v6489 = vunpack.c.h.b16 %v1478
        %v6490 = vunpack.c.l.b16 %v1479
        %v6491 = vunpack.c.h.b16 %v1479
        %v6492 = vunpack.c.l.b16 %v1480
        %v6493 = vunpack.c.h.b16 %v1480
        %v6494 = vunpack.c.l.b16 %v1481
        %v6495 = vunpack.c.h.b16 %v1481
        %v6496 = vunpack.c.l.b16 %v1482
        %v6497 = vunpack.c.h.b16 %v1482
        %v6498 = vunpack.c.l.b16 %v1483
        %v6499 = vunpack.c.h.b16 %v1483
        %v6500 = vunpack.c.l.b16 %v1484
        %v6501 = vunpack.c.h.b16 %v1484
        %v6502 = vunpack.c.l.b16 %v1485
        %v6503 = vunpack.c.h.b16 %v1485
        %v6504 = vunpack.c.l.b16 %v1486
        %v6505 = vunpack.c.h.b16 %v1486
        %v6506 = vunpack.c.l.b16 %v1487
        %v6507 = vunpack.c.h.b16 %v1487
        %v6508 = vunpack.c.l.b16 %v1488
        %v6509 = vunpack.c.h.b16 %v1488
        %v6510 = vunpack.c.l.b16 %v1489
        %v6511 = vunpack.c.h.b16 %v1489
        %v6512 = vunpack.c.l.b16 %v1490
        %v6513 = vunpack.c.h.b16 %v1490
        %v6514 = vunpack.c.l.b16 %v1491
        %v6515 = vunpack.c.h.b16 %v1491
        %v6516 = vunpack.c.l.b16 %v1492
        %v6517 = vunpack.c.h.b16 %v1492
        %v6518 = vunpack.c.l.b16 %v1493
        %v6519 = vunpack.c.h.b16 %v1493
        %v6520 = vunpack.c.l.b16 %v1494
        %v6521 = vunpack.c.h.b16 %v1494
        %v6522 = vunpack.c.l.b16 %v1495
        %v6523 = vunpack.c.h.b16 %v1495
        %v6524 = vunpack.c.l.b16 %v1496
        %v6525 = vunpack.c.h.b16 %v1496
        %v6526 = vunpack.c.l.b16 %v1497
        %v6527 = vunpack.c.h.b16 %v1497
        %v6528 = vunpack.c.l.b16 %v1498
        %v6529 = vunpack.c.h.b16 %v1498
        %v6530 = vunpack.c.l.b16 %v1499
        %v6531 = vunpack.c.h.b16 %v1499
        %v6532 = vunpack.c.l.b16 %v1500
        %v6533 = vunpack.c.h.b16 %v1500
        %v6534 = vunpack.c.l.b16 %v1501
        %v6535 = vunpack.c.h.b16 %v1501
        %v6536 = vunpack.c.l.b16 %v1502
        %v6537 = vunpack.c.h.b16 %v1502
        %v6538 = vunpack.c.l.b16 %v1503
        %v6539 = vunpack.c.h.b16 %v1503
        %v6540 = vunpack.c.l.b16 %v1504
        %v6541 = vunpack.c.h.b16 %v1504
        %v6542 = vunpack.c.l.b16 %v1505
        %v6543 = vunpack.c.h.b16 %v1505
        %v6544 = vunpack.c.l.b16 %v1506
        %v6545 = vunpack.c.h.b16 %v1506
        %v6546 = vunpack.c.l.b16 %v1507
        %v6547 = vunpack.c.h.b16 %v1507
        %v6548 = vunpack.c.l.b16 %v1508
        %v6549 = vunpack.c.h.b16 %v1508
        %v6550 = vunpack.c.l.b16 %v1509
        %v6551 = vunpack.c.h.b16 %v1509
        %v6552 = vunpack.c.l.b16 %v1510
        %v6553 = vunpack.c.h.b16 %v1510
        %v6554 = vunpack.c.l.b16 %v1511
        %v6555 = vunpack.c.h.b16 %v1511
        %v6556 = vunpack.c.l.b16 %v1512
        %v6557 = vunpack.c.h.b16 %v1512
        %v6558 = vunpack.c.l.b16 %v1513
        %v6559 = vunpack.c.h.b16 %v1513
        %v6560 = vunpack.c.l.b16 %v1514
        %v6561 = vunpack.c.h.b16 %v1514
        %v6562 = vunpack.c.l.b16 %v1515
        %v6563 = vunpack.c.h.b16 %v1515
        %v6564 = vunpack.c.l.b16 %v1516
        %v6565 = vunpack.c.h.b16 %v1516
        %v6566 = vunpack.c.l.b16 %v1517
        %v6567 = vunpack.c.h.b16 %v1517
        %v6568 = vunpack.c.l.b16 %v1518
        %v6569 = vunpack.c.h.b16 %v1518
        %v6570 = vunpack.c.l.b16 %v1519
        %v6571 = vunpack.c.h.b16 %v1519
        %v6572 = vunpack.c.l.b16 %v1520
        %v6573 = vunpack.c.h.b16 %v1520
        %v6574 = vunpack.c.l.b16 %v1521
        %v6575 = vunpack.c.h.b16 %v1521
        %v6576 = vunpack.c.l.b16 %v1522
        %v6577 = vunpack.c.h.b16 %v1522
        %v6578 = vunpack.c.l.b16 %v1523
        %v6579 = vunpack.c.h.b16 %v1523
        %v6580 = vunpack.c.l.b16 %v1524
        %v6581 = vunpack.c.h.b16 %v1524
        %v6582 = vunpack.c.l.b16 %v1525
        %v6583 = vunpack.c.h.b16 %v1525
        %v6584 = vunpack.c.l.b16 %v1526
        %v6585 = vunpack.c.h.b16 %v1526
        %v6586 = vunpack.c.l.b16 %v1527
        %v6587 = vunpack.c.h.b16 %v1527
        %v6588 = vunpack.c.l.b16 %v1528
        %v6589 = vunpack.c.h.b16 %v1528
        %v6590 = vunpack.c.l.b16 %v1529
        %v6591 = vunpack.c.h.b16 %v1529
        %v6592 = vunpack.c.l.b16 %v1530
        %v6593 = vunpack.c.h.b16 %v1530
        %v6594 = vunpack.c.l.b16 %v1531
        %v6595 = vunpack.c.h.b16 %v1531
        %v6596 = vunpack.c.l.b16 %v1532
        %v6597 = vunpack.c.h.b16 %v1532
        %v6598 = vunpack.c.l.b16 %v1533
        %v6599 = vunpack.c.h.b16 %v1533
        %v6600 = vunpack.c.l.b16 %v1534
        %v6601 = vunpack.c.h.b16 %v1534
        %v6602 = vunpack.c.l.b16 %v1535
        %v6603 = vunpack.c.h.b16 %v1535
        %v6604 = vunpack.c.l.b16 %v1536
        %v6605 = vunpack.c.h.b16 %v1536
        %v6606 = vunpack.c.l.b16 %v1537
        %v6607 = vunpack.c.h.b16 %v1537
        %v6608 = vunpack.c.l.b16 %v1538
        %v6609 = vunpack.c.h.b16 %v1538
        %v6610 = vunpack.c.l.b16 %v1539
        %v6611 = vunpack.c.h.b16 %v1539
        %v6612 = vunpack.c.l.b16 %v1540
        %v6613 = vunpack.c.h.b16 %v1540
        %v6614 = vunpack.c.l.b16 %v1541
        %v6615 = vunpack.c.h.b16 %v1541
        %v6616 = vunpack.c.l.b16 %v1542
        %v6617 = vunpack.c.h.b16 %v1542
        %v6618 = vunpack.c.l.b16 %v1543
        %v6619 = vunpack.c.h.b16 %v1543
        %v6620 = vunpack.c.l.b16 %v1544
        %v6621 = vunpack.c.h.b16 %v1544
        %v6622 = vunpack.c.l.b16 %v1545
        %v6623 = vunpack.c.h.b16 %v1545
        %v6624 = vunpack.c.l.b16 %v1546
        %v6625 = vunpack.c.h.b16 %v1546
        %v6626 = vunpack.c.l.b16 %v1547
        %v6627 = vunpack.c.h.b16 %v1547
        %v6628 = vunpack.c.l.b16 %v1548
        %v6629 = vunpack.c.h.b16 %v1548
        %v6630 = vunpack.c.l.b16 %v1549
        %v6631 = vunpack.c.h.b16 %v1549
        %v6632 = vunpack.c.l.b16 %v1550
        %v6633 = vunpack.c.h.b16 %v1550
        %v6634 = vunpack.c.l.b16 %v1551
        %v6635 = vunpack.c.h.b16 %v1551
        %v6636 = vunpack.c.l.b16 %v1552
        %v6637 = vunpack.c.h.b16 %v1552
        %v6638 = vunpack.c.l.b16 %v1553
        %v6639 = vunpack.c.h.b16 %v1553
        %v6640 = vunpack.c.l.b16 %v1554
        %v6641 = vunpack.c.h.b16 %v1554
        %v6642 = vunpack.c.l.b16 %v1555
        %v6643 = vunpack.c.h.b16 %v1555
        %v6644 = vunpack.c.l.b16 %v1556
        %v6645 = vunpack.c.h.b16 %v1556
        %v6646 = vunpack.c.l.b16 %v1557
        %v6647 = vunpack.c.h.b16 %v1557
        %v6648 = vunpack.c.l.b16 %v1558
        %v6649 = vunpack.c.h.b16 %v1558
        %v6650 = vunpack.c.l.b16 %v1559
        %v6651 = vunpack.c.h.b16 %v1559
        %v6652 = vunpack.c.l.b16 %v1560
        %v6653 = vunpack.c.h.b16 %v1560
        %v6654 = vunpack.c.l.b16 %v1561
        %v6655 = vunpack.c.h.b16 %v1561
        %v6656 = vunpack.c.l.b16 %v1562
        %v6657 = vunpack.c.h.b16 %v1562
        %v6658 = vunpack.c.l.b16 %v1563
        %v6659 = vunpack.c.h.b16 %v1563
        %v6660 = vunpack.c.l.b16 %v1564
        %v6661 = vunpack.c.h.b16 %v1564
        %v6662 = vunpack.c.l.b16 %v1565
        %v6663 = vunpack.c.h.b16 %v1565
        %v6664 = vunpack.c.l.b16 %v1566
        %v6665 = vunpack.c.h.b16 %v1566
        %v6666 = vunpack.c.l.b16 %v1567
        %v6667 = vunpack.c.h.b16 %v1567
        %v6668 = vunpack.c.l.b16 %v1568
        %v6669 = vunpack.c.h.b16 %v1568
        %v6670 = vunpack.c.l.b16 %v1569
        %v6671 = vunpack.c.h.b16 %v1569
        %v6672 = vunpack.c.l.b16 %v1570
        %v6673 = vunpack.c.h.b16 %v1570
        %v6674 = vunpack.c.l.b16 %v1571
        %v6675 = vunpack.c.h.b16 %v1571
        %v6676 = vunpack.c.l.b16 %v1572
        %v6677 = vunpack.c.h.b16 %v1572
        %v6678 = vunpack.c.l.b16 %v1573
        %v6679 = vunpack.c.h.b16 %v1573
        %v6680 = vunpack.c.l.b16 %v1574
        %v6681 = vunpack.c.h.b16 %v1574
        %v6682 = vunpack.c.l.b16 %v1575
        %v6683 = vunpack.c.h.b16 %v1575
        %v6684 = vunpack.c.l.b16 %v1576
        %v6685 = vunpack.c.h.b16 %v1576
        %v6686 = vunpack.c.l.b16 %v1577
        %v6687 = vunpack.c.h.b16 %v1577
        %v6688 = vunpack.c.l.b16 %v1578
        %v6689 = vunpack.c.h.b16 %v1578
        %v6690 = vunpack.c.l.b16 %v1579
        %v6691 = vunpack.c.h.b16 %v1579
        %v6692 = vunpack.c.l.b16 %v1580
        %v6693 = vunpack.c.h.b16 %v1580
        %v6694 = vunpack.c.l.b16 %v1581
        %v6695 = vunpack.c.h.b16 %v1581
        %v6696 = vunpack.c.l.b16 %v1582
        %v6697 = vunpack.c.h.b16 %v1582
        %v6698 = vunpack.c.l.b16 %v1583
        %v6699 = vunpack.c.h.b16 %v1583
        %v6700 = vunpack.c.l.b16 %v1584
        %v6701 = vunpack.c.h.b16 %v1584
        %v6702 = vunpack.c.l.b16 %v1585
        %v6703 = vunpack.c.h.b16 %v1585
        %v6704 = vunpack.c.l.b16 %v1586
        %v6705 = vunpack.c.h.b16 %v1586
        %v6706 = vunpack.c.l.b16 %v1587
        %v6707 = vunpack.c.h.b16 %v1587
        %v6708 = vunpack.c.l.b16 %v1588
        %v6709 = vunpack.c.h.b16 %v1588
        %v6710 = vunpack.c.l.b16 %v1589
        %v6711 = vunpack.c.h.b16 %v1589
        %v6712 = vunpack.c.l.b16 %v1590
        %v6713 = vunpack.c.h.b16 %v1590
        %v6714 = vunpack.c.l.b16 %v1591
        %v6715 = vunpack.c.h.b16 %v1591
        %v6716 = vunpack.c.l.b16 %v1592
        %v6717 = vunpack.c.h.b16 %v1592
        %v6718 = vunpack.c.l.b16 %v1593
        %v6719 = vunpack.c.h.b16 %v1593
        %v6720 = vunpack.c.l.b16 %v1594
        %v6721 = vunpack.c.h.b16 %v1594
        %v6722 = vunpack.c.l.b16 %v1595
        %v6723 = vunpack.c.h.b16 %v1595
        %v6724 = vunpack.c.l.b16 %v1596
        %v6725 = vunpack.c.h.b16 %v1596
        %v6726 = vunpack.c.l.b16 %v1597
        %v6727 = vunpack.c.h.b16 %v1597
        %v6728 = vunpack.c.l.b16 %v1598
        %v6729 = vunpack.c.h.b16 %v1598
        %v6730 = vunpack.c.l.b16 %v1599
        %v6731 = vunpack.c.h.b16 %v1599
        %v6732 = vunpack.c.l.b16 %v1600
        %v6733 = vunpack.c.h.b16 %v1600
        %v6734 = vunpack.c.l.b16 %v1601
        %v6735 = vunpack.c.h.b16 %v1601
        %v6736 = vunpack.c.l.b16 %v1602
        %v6737 = vunpack.c.h.b16 %v1602
        %v6738 = vunpack.c.l.b16 %v1603
        %v6739 = vunpack.c.h.b16 %v1603
        %v6740 = vunpack.c.l.b16 %v1604
        %v6741 = vunpack.c.h.b16 %v1604
        %v6742 = vunpack.c.l.b16 %v1605
        %v6743 = vunpack.c.h.b16 %v1605
        %v6744 = vunpack.c.l.b16 %v1606
        %v6745 = vunpack.c.h.b16 %v1606
        %v6746 = vunpack.c.l.b16 %v1607
        %v6747 = vunpack.c.h.b16 %v1607
        %v6748 = vunpack.c.l.b16 %v1608
        %v6749 = vunpack.c.h.b16 %v1608
        %v6750 = vunpack.c.l.b16 %v1609
        %v6751 = vunpack.c.h.b16 %v1609
        %v6752 = vunpack.c.l.b16 %v1610
        %v6753 = vunpack.c.h.b16 %v1610
        %v6754 = vunpack.c.l.b16 %v1611
        %v6755 = vunpack.c.h.b16 %v1611
        %v6756 = vunpack.c.l.b16 %v1612
        %v6757 = vunpack.c.h.b16 %v1612
        %v6758 = vunpack.c.l.b16 %v1613
        %v6759 = vunpack.c.h.b16 %v1613
        %v6760 = vunpack.c.l.b16 %v1614
        %v6761 = vunpack.c.h.b16 %v1614
        %v6762 = vunpack.c.l.b16 %v1615
        %v6763 = vunpack.c.h.b16 %v1615
        %v6764 = vunpack.c.l.b16 %v1616
        %v6765 = vunpack.c.h.b16 %v1616
        %v6766 = vunpack.c.l.b16 %v1617
        %v6767 = vunpack.c.h.b16 %v1617
        %v6768 = vunpack.c.l.b16 %v1618
        %v6769 = vunpack.c.h.b16 %v1618
        %v6770 = vunpack.c.l.b16 %v1619
        %v6771 = vunpack.c.h.b16 %v1619
        %v6772 = vunpack.c.l.b16 %v1620
        %v6773 = vunpack.c.h.b16 %v1620
        %v6774 = vunpack.c.l.b16 %v1621
        %v6775 = vunpack.c.h.b16 %v1621
        %v6776 = vunpack.c.l.b16 %v1622
        %v6777 = vunpack.c.h.b16 %v1622
        %v6778 = vunpack.c.l.b16 %v1623
        %v6779 = vunpack.c.h.b16 %v1623
        %v6780 = vunpack.c.l.b16 %v1624
        %v6781 = vunpack.c.h.b16 %v1624
        %v6782 = vunpack.c.l.b16 %v1625
        %v6783 = vunpack.c.h.b16 %v1625
        %v6784 = vunpack.c.l.b16 %v1626
        %v6785 = vunpack.c.h.b16 %v1626
        %v6786 = vunpack.c.l.b16 %v1627
        %v6787 = vunpack.c.h.b16 %v1627
        %v6788 = vunpack.c.l.b16 %v1628
        %v6789 = vunpack.c.h.b16 %v1628
        %v6790 = vunpack.c.l.b16 %v1629
        %v6791 = vunpack.c.h.b16 %v1629
        %v6792 = vunpack.c.l.b16 %v1630
        %v6793 = vunpack.c.h.b16 %v1630
        %v6794 = vunpack.c.l.b16 %v1631
        %v6795 = vunpack.c.h.b16 %v1631
        %v6796 = vunpack.c.l.b16 %v1632
        %v6797 = vunpack.c.h.b16 %v1632
        %v6798 = vunpack.c.l.b16 %v1633
        %v6799 = vunpack.c.h.b16 %v1633
        %v6800 = vunpack.c.l.b16 %v1634
        %v6801 = vunpack.c.h.b16 %v1634
        %v6802 = vunpack.c.l.b16 %v1635
        %v6803 = vunpack.c.h.b16 %v1635
        %v6804 = vunpack.c.l.b16 %v1636
        %v6805 = vunpack.c.h.b16 %v1636
        %v6806 = vunpack.c.l.b16 %v1637
        %v6807 = vunpack.c.h.b16 %v1637
        %v6808 = vunpack.c.l.b16 %v1638
        %v6809 = vunpack.c.h.b16 %v1638
        %v6810 = vunpack.c.l.b16 %v1639
        %v6811 = vunpack.c.h.b16 %v1639
        %v6812 = vunpack.c.l.b16 %v1640
        %v6813 = vunpack.c.h.b16 %v1640
        %v6814 = vunpack.c.l.b16 %v1641
        %v6815 = vunpack.c.h.b16 %v1641
        %v6816 = vunpack.c.l.b16 %v1642
        %v6817 = vunpack.c.h.b16 %v1642
        %v6818 = vunpack.c.l.b16 %v1643
        %v6819 = vunpack.c.h.b16 %v1643
        %v6820 = vunpack.c.l.b16 %v1644
        %v6821 = vunpack.c.h.b16 %v1644
        %v6822 = vunpack.c.l.b16 %v1645
        %v6823 = vunpack.c.h.b16 %v1645
        %v6824 = vunpack.c.l.b16 %v1646
        %v6825 = vunpack.c.h.b16 %v1646
        %v6826 = vunpack.c.l.b16 %v1647
        %v6827 = vunpack.c.h.b16 %v1647
        %v6828 = vunpack.c.l.b16 %v1648
        %v6829 = vunpack.c.h.b16 %v1648
        %v6830 = vunpack.c.l.b16 %v1649
        %v6831 = vunpack.c.h.b16 %v1649
        %v6832 = vunpack.c.l.b16 %v1650
        %v6833 = vunpack.c.h.b16 %v1650
        %v6834 = vunpack.c.l.b16 %v1651
        %v6835 = vunpack.c.h.b16 %v1651
        %v6836 = vunpack.c.l.b16 %v1652
        %v6837 = vunpack.c.h.b16 %v1652
        %v6838 = vunpack.c.l.b16 %v1653
        %v6839 = vunpack.c.h.b16 %v1653
        %v6840 = vunpack.c.l.b16 %v1654
        %v6841 = vunpack.c.h.b16 %v1654
        %v6842 = vunpack.c.l.b16 %v1655
        %v6843 = vunpack.c.h.b16 %v1655
        %v6844 = vunpack.c.l.b16 %v1656
        %v6845 = vunpack.c.h.b16 %v1656
        %v6846 = vunpack.c.l.b16 %v1657
        %v6847 = vunpack.c.h.b16 %v1657
        %v6848 = vunpack.c.l.b16 %v1658
        %v6849 = vunpack.c.h.b16 %v1658
        %v6850 = vunpack.c.l.b16 %v1659
        %v6851 = vunpack.c.h.b16 %v1659
        %v6852 = vunpack.c.l.b16 %v1660
        %v6853 = vunpack.c.h.b16 %v1660
        %v6854 = vunpack.c.l.b16 %v1661
        %v6855 = vunpack.c.h.b16 %v1661
        %v6856 = vunpack.c.l.b16 %v1662
        %v6857 = vunpack.c.h.b16 %v1662
        %v6858 = vunpack.c.l.b16 %v1663
        %v6859 = vunpack.c.h.b16 %v1663
        %v6860 = vunpack.c.l.b16 %v1664
        %v6861 = vunpack.c.h.b16 %v1664
        %v6862 = vunpack.c.l.b16 %v1665
        %v6863 = vunpack.c.h.b16 %v1665
        %v6864 = vunpack.c.l.b16 %v1666
        %v6865 = vunpack.c.h.b16 %v1666
        %v6866 = vunpack.c.l.b16 %v1667
        %v6867 = vunpack.c.h.b16 %v1667
        %v6868 = vunpack.c.l.b16 %v1668
        %v6869 = vunpack.c.h.b16 %v1668
        %v6870 = vunpack.c.l.b16 %v1669
        %v6871 = vunpack.c.h.b16 %v1669
        %v6872 = vunpack.c.l.b16 %v1670
        %v6873 = vunpack.c.h.b16 %v1670
        %v6874 = vunpack.c.l.b16 %v1671
        %v6875 = vunpack.c.h.b16 %v1671
        %v6876 = vunpack.c.l.b16 %v1672
        %v6877 = vunpack.c.h.b16 %v1672
        %v6878 = vunpack.c.l.b16 %v1673
        %v6879 = vunpack.c.h.b16 %v1673
        %v6880 = vunpack.c.l.b16 %v1674
        %v6881 = vunpack.c.h.b16 %v1674
        %v6882 = vunpack.c.l.b16 %v1675
        %v6883 = vunpack.c.h.b16 %v1675
        %v6884 = vunpack.c.l.b16 %v1676
        %v6885 = vunpack.c.h.b16 %v1676
        %v6886 = vunpack.c.l.b16 %v1677
        %v6887 = vunpack.c.h.b16 %v1677
        %v6888 = vunpack.c.l.b16 %v1678
        %v6889 = vunpack.c.h.b16 %v1678
        %v6890 = vunpack.c.l.b16 %v1679
        %v6891 = vunpack.c.h.b16 %v1679
        %v6892 = vunpack.c.l.b16 %v1680
        %v6893 = vunpack.c.h.b16 %v1680
        %v6894 = vunpack.c.l.b16 %v1681
        %v6895 = vunpack.c.h.b16 %v1681
        %v6896 = vunpack.c.l.b16 %v1682
        %v6897 = vunpack.c.h.b16 %v1682
        %v6898 = vunpack.c.l.b16 %v1683
        %v6899 = vunpack.c.h.b16 %v1683
        %v6900 = vunpack.c.l.b16 %v1684
        %v6901 = vunpack.c.h.b16 %v1684
        %v6902 = vunpack.c.l.b16 %v1685
        %v6903 = vunpack.c.h.b16 %v1685
        %v6904 = vunpack.c.l.b16 %v1686
        %v6905 = vunpack.c.h.b16 %v1686
        %v6906 = vunpack.c.l.b16 %v1687
        %v6907 = vunpack.c.h.b16 %v1687
        %v6908 = vunpack.c.l.b16 %v1688
        %v6909 = vunpack.c.h.b16 %v1688
        %v6910 = vunpack.c.l.b16 %v1689
        %v6911 = vunpack.c.h.b16 %v1689
        %v6912 = vunpack.c.l.b16 %v1690
        %v6913 = vunpack.c.h.b16 %v1690
        %v6914 = vunpack.c.l.b16 %v1691
        %v6915 = vunpack.c.h.b16 %v1691
        %v6916 = vunpack.c.l.b16 %v1692
        %v6917 = vunpack.c.h.b16 %v1692
        %v6918 = vunpack.c.l.b16 %v1693
        %v6919 = vunpack.c.h.b16 %v1693
        %v6920 = vunpack.c.l.b16 %v1694
        %v6921 = vunpack.c.h.b16 %v1694
        %v6922 = vunpack.c.l.b16 %v1695
        %v6923 = vunpack.c.h.b16 %v1695
        %v6924 = vunpack.c.l.b16 %v1696
        %v6925 = vunpack.c.h.b16 %v1696
        %v6926 = vunpack.c.l.b16 %v1697
        %v6927 = vunpack.c.h.b16 %v1697
        %v6928 = vunpack.c.l.b16 %v1698
        %v6929 = vunpack.c.h.b16 %v1698
        %v6930 = vunpack.c.l.b16 %v1699
        %v6931 = vunpack.c.h.b16 %v1699
        %v6932 = vunpack.c.l.b16 %v1700
        %v6933 = vunpack.c.h.b16 %v1700
        %v6934 = vunpack.c.l.b16 %v1701
        %v6935 = vunpack.c.h.b16 %v1701
        %v6936 = vunpack.c.l.b16 %v1702
        %v6937 = vunpack.c.h.b16 %v1702
        %v6938 = vunpack.c.l.b16 %v1703
        %v6939 = vunpack.c.h.b16 %v1703
        %v6940 = vunpack.c.l.b16 %v1704
        %v6941 = vunpack.c.h.b16 %v1704
        %v6942 = vunpack.c.l.b16 %v1705
        %v6943 = vunpack.c.h.b16 %v1705
        %v6944 = vunpack.c.l.b16 %v1706
        %v6945 = vunpack.c.h.b16 %v1706
        %v6946 = vunpack.c.l.b16 %v1707
        %v6947 = vunpack.c.h.b16 %v1707
        %v6948 = vunpack.c.l.b16 %v1708
        %v6949 = vunpack.c.h.b16 %v1708
        %v6950 = vunpack.c.l.b16 %v1709
        %v6951 = vunpack.c.h.b16 %v1709
        %v6952 = vunpack.c.l.b16 %v1710
        %v6953 = vunpack.c.h.b16 %v1710
        %v6954 = vunpack.c.l.b16 %v1711
        %v6955 = vunpack.c.h.b16 %v1711
        %v6956 = vunpack.c.l.b16 %v1712
        %v6957 = vunpack.c.h.b16 %v1712
        %v6958 = vunpack.c.l.b16 %v1713
        %v6959 = vunpack.c.h.b16 %v1713
        %v6960 = vunpack.c.l.b16 %v1714
        %v6961 = vunpack.c.h.b16 %v1714
        %v6962 = vunpack.c.l.b16 %v1715
        %v6963 = vunpack.c.h.b16 %v1715
        %v6964 = vunpack.c.l.b16 %v1716
        %v6965 = vunpack.c.h.b16 %v1716
        %v6966 = vunpack.c.l.b16 %v1717
        %v6967 = vunpack.c.h.b16 %v1717
        %v6968 = vunpack.c.l.b16 %v1718
        %v6969 = vunpack.c.h.b16 %v1718
        %v6970 = vunpack.c.l.b16 %v1719
        %v6971 = vunpack.c.h.b16 %v1719
        %v6972 = vunpack.c.l.b16 %v1720
        %v6973 = vunpack.c.h.b16 %v1720
        %v6974 = vunpack.c.l.b16 %v1721
        %v6975 = vunpack.c.h.b16 %v1721
        %v6976 = vunpack.c.l.b16 %v1722
        %v6977 = vunpack.c.h.b16 %v1722
        %v6978 = vunpack.c.l.b16 %v1723
        %v6979 = vunpack.c.h.b16 %v1723
        %v6980 = vunpack.c.l.b16 %v1724
        %v6981 = vunpack.c.h.b16 %v1724
        %v6982 = vunpack.c.l.b16 %v1725
        %v6983 = vunpack.c.h.b16 %v1725
        %v6984 = vunpack.c.l.b16 %v1726
        %v6985 = vunpack.c.h.b16 %v1726
        %v6986 = vunpack.c.l.b16 %v1727
        %v6987 = vunpack.c.h.b16 %v1727
        %v6988 = vunpack.c.l.b16 %v1728
        %v6989 = vunpack.c.h.b16 %v1728
        %v6990 = vunpack.c.l.b16 %v1729
        %v6991 = vunpack.c.h.b16 %v1729
        %v6992 = vunpack.c.l.b16 %v1730
        %v6993 = vunpack.c.h.b16 %v1730
        %v6994 = vunpack.c.l.b16 %v1731
        %v6995 = vunpack.c.h.b16 %v1731
        %v6996 = vunpack.c.l.b16 %v1732
        %v6997 = vunpack.c.h.b16 %v1732
        %v6998 = vunpack.c.l.b16 %v1733
        %v6999 = vunpack.c.h.b16 %v1733
        %v7000 = vunpack.c.l.b16 %v1734
        %v7001 = vunpack.c.h.b16 %v1734
        %v7002 = vunpack.c.l.b16 %v1735
        %v7003 = vunpack.c.h.b16 %v1735
        %v7004 = vunpack.c.l.b16 %v1736
        %v7005 = vunpack.c.h.b16 %v1736
        %v7006 = vunpack.c.l.b16 %v1737
        %v7007 = vunpack.c.h.b16 %v1737
        %v7008 = vunpack.c.l.b16 %v1738
        %v7009 = vunpack.c.h.b16 %v1738
        %v7010 = vunpack.c.l.b16 %v1739
        %v7011 = vunpack.c.h.b16 %v1739
        %v7012 = vunpack.c.l.b16 %v1740
        %v7013 = vunpack.c.h.b16 %v1740
        %v7014 = vunpack.c.l.b16 %v1741
        %v7015 = vunpack.c.h.b16 %v1741
        %v7016 = vunpack.c.l.b16 %v1742
        %v7017 = vunpack.c.h.b16 %v1742
        %v7018 = vunpack.c.l.b16 %v1743
        %v7019 = vunpack.c.h.b16 %v1743
        %v7020 = vunpack.c.l.b16 %v1744
        %v7021 = vunpack.c.h.b16 %v1744
        %v7022 = vunpack.c.l.b16 %v1745
        %v7023 = vunpack.c.h.b16 %v1745
        %v7024 = vunpack.c.l.b16 %v1746
        %v7025 = vunpack.c.h.b16 %v1746
        %v7026 = vunpack.c.l.b16 %v1747
        %v7027 = vunpack.c.h.b16 %v1747
        %v7028 = vunpack.c.l.b16 %v1748
        %v7029 = vunpack.c.h.b16 %v1748
        %v7030 = vunpack.c.l.b16 %v1749
        %v7031 = vunpack.c.h.b16 %v1749
        %v7032 = vunpack.c.l.b16 %v1750
        %v7033 = vunpack.c.h.b16 %v1750
        %v7034 = vunpack.c.l.b16 %v1751
        %v7035 = vunpack.c.h.b16 %v1751
        %v7036 = vunpack.c.l.b16 %v1752
        %v7037 = vunpack.c.h.b16 %v1752
        %v7038 = vunpack.c.l.b16 %v1753
        %v7039 = vunpack.c.h.b16 %v1753
        %v7040 = vunpack.c.l.b16 %v1754
        %v7041 = vunpack.c.h.b16 %v1754
        %v7042 = vunpack.c.l.b16 %v1755
        %v7043 = vunpack.c.h.b16 %v1755
        %v7044 = vunpack.c.l.b16 %v1756
        %v7045 = vunpack.c.h.b16 %v1756
        %v7046 = vunpack.c.l.b16 %v1757
        %v7047 = vunpack.c.h.b16 %v1757
        %v7048 = vunpack.c.l.b16 %v1758
        %v7049 = vunpack.c.h.b16 %v1758
        %v7050 = vunpack.c.l.b16 %v1759
        %v7051 = vunpack.c.h.b16 %v1759
        %v7052 = vunpack.c.l.b16 %v1760
        %v7053 = vunpack.c.h.b16 %v1760
        %v7054 = vunpack.c.l.b16 %v1761
        %v7055 = vunpack.c.h.b16 %v1761
        %v7056 = vunpack.c.l.b16 %v1762
        %v7057 = vunpack.c.h.b16 %v1762
        %v7058 = vunpack.c.l.b16 %v1763
        %v7059 = vunpack.c.h.b16 %v1763
        %v7060 = vunpack.c.l.b16 %v1764
        %v7061 = vunpack.c.h.b16 %v1764
        %v7062 = vunpack.c.l.b16 %v1765
        %v7063 = vunpack.c.h.b16 %v1765
        %v7064 = vunpack.c.l.b16 %v1766
        %v7065 = vunpack.c.h.b16 %v1766
        %v7066 = vunpack.c.l.b16 %v1767
        %v7067 = vunpack.c.h.b16 %v1767
        %v7068 = vunpack.c.l.b16 %v1768
        %v7069 = vunpack.c.h.b16 %v1768
        %v7070 = vunpack.c.l.b16 %v1769
        %v7071 = vunpack.c.h.b16 %v1769
        %v7072 = vunpack.c.l.b16 %v1770
        %v7073 = vunpack.c.h.b16 %v1770
        %v7074 = vunpack.c.l.b16 %v1771
        %v7075 = vunpack.c.h.b16 %v1771
        %v7076 = vunpack.c.l.b16 %v1772
        %v7077 = vunpack.c.h.b16 %v1772
        %v7078 = vunpack.c.l.b16 %v1773
        %v7079 = vunpack.c.h.b16 %v1773
        %v7080 = vunpack.c.l.b16 %v1774
        %v7081 = vunpack.c.h.b16 %v1774
        %v7082 = vunpack.c.l.b16 %v1775
        %v7083 = vunpack.c.h.b16 %v1775
        %v7084 = vunpack.c.l.b16 %v1776
        %v7085 = vunpack.c.h.b16 %v1776
        %v7086 = vunpack.c.l.b16 %v1777
        %v7087 = vunpack.c.h.b16 %v1777
        %v7088 = vunpack.c.l.b16 %v1778
        %v7089 = vunpack.c.h.b16 %v1778
        %v7090 = vunpack.c.l.b16 %v1779
        %v7091 = vunpack.c.h.b16 %v1779
        %v7092 = vunpack.c.l.b16 %v1780
        %v7093 = vunpack.c.h.b16 %v1780
        %v7094 = vunpack.c.l.b16 %v1781
        %v7095 = vunpack.c.h.b16 %v1781
        %v7096 = vunpack.c.l.b16 %v1782
        %v7097 = vunpack.c.h.b16 %v1782
        %v7098 = vunpack.c.l.b16 %v1783
        %v7099 = vunpack.c.h.b16 %v1783
        %v7100 = vunpack.c.l.b16 %v1784
        %v7101 = vunpack.c.h.b16 %v1784
        %v7102 = vunpack.c.l.b16 %v1785
        %v7103 = vunpack.c.h.b16 %v1785
        %v7104 = vunpack.c.l.b16 %v1786
        %v7105 = vunpack.c.h.b16 %v1786
        %v7106 = vunpack.c.l.b16 %v1787
        %v7107 = vunpack.c.h.b16 %v1787
        %v7108 = vunpack.c.l.b16 %v1788
        %v7109 = vunpack.c.h.b16 %v1788
        %v7110 = vunpack.c.l.b16 %v1789
        %v7111 = vunpack.c.h.b16 %v1789
        %v7112 = vunpack.c.l.b16 %v1790
        %v7113 = vunpack.c.h.b16 %v1790
        %v7114 = vunpack.c.l.b16 %v1791
        %v7115 = vunpack.c.h.b16 %v1791
        %v7116 = vunpack.c.l.b16 %v1792
        %v7117 = vunpack.c.h.b16 %v1792
        %v7118 = vunpack.c.l.b16 %v1793
        %v7119 = vunpack.c.h.b16 %v1793
        %v7120 = vunpack.c.l.b16 %v1794
        %v7121 = vunpack.c.h.b16 %v1794
        %v7122 = vunpack.c.l.b16 %v1795
        %v7123 = vunpack.c.h.b16 %v1795
        %v7124 = vunpack.c.l.b16 %v1796
        %v7125 = vunpack.c.h.b16 %v1796
        %v7126 = vunpack.c.l.b16 %v1797
        %v7127 = vunpack.c.h.b16 %v1797
        %v7128 = vunpack.c.l.b16 %v1798
        %v7129 = vunpack.c.h.b16 %v1798
        %v7130 = vunpack.c.l.b16 %v1799
        %v7131 = vunpack.c.h.b16 %v1799
        %v7132 = vunpack.c.l.b16 %v1800
        %v7133 = vunpack.c.h.b16 %v1800
        %v7134 = vunpack.c.l.b16 %v1801
        %v7135 = vunpack.c.h.b16 %v1801
        %v7136 = vunpack.c.l.b16 %v1802
        %v7137 = vunpack.c.h.b16 %v1802
        %v7138 = vunpack.c.l.b16 %v1803
        %v7139 = vunpack.c.h.b16 %v1803
        %v7140 = vunpack.c.l.b16 %v1804
        %v7141 = vunpack.c.h.b16 %v1804
        %v7142 = vunpack.c.l.b16 %v1805
        %v7143 = vunpack.c.h.b16 %v1805
        %v7144 = vunpack.c.l.b16 %v1806
        %v7145 = vunpack.c.h.b16 %v1806
        %v7146 = vunpack.c.l.b16 %v1807
        %v7147 = vunpack.c.h.b16 %v1807
        %v7148 = vunpack.c.l.b16 %v1808
        %v7149 = vunpack.c.h.b16 %v1808
        %v7150 = vunpack.c.l.b16 %v1809
        %v7151 = vunpack.c.h.b16 %v1809
        %v7152 = vunpack.c.l.b16 %v1810
        %v7153 = vunpack.c.h.b16 %v1810
        %v7154 = vunpack.c.l.b16 %v1811
        %v7155 = vunpack.c.h.b16 %v1811
        %v7156 = vunpack.c.l.b16 %v1812
        %v7157 = vunpack.c.h.b16 %v1812
        %v7158 = vunpack.c.l.b16 %v1813
        %v7159 = vunpack.c.h.b16 %v1813
        %v7160 = vunpack.c.l.b16 %v1814
        %v7161 = vunpack.c.h.b16 %v1814
        %v7162 = vunpack.c.l.b16 %v1815
        %v7163 = vunpack.c.h.b16 %v1815
        %v7164 = vunpack.c.l.b16 %v1816
        %v7165 = vunpack.c.h.b16 %v1816
        %v7166 = vunpack.c.l.b16 %v1817
        %v7167 = vunpack.c.h.b16 %v1817
        %v7168 = vunpack.c.l.b16 %v1818
        %v7169 = vunpack.c.h.b16 %v1818
        %v7170 = vunpack.c.l.b16 %v1819
        %v7171 = vunpack.c.h.b16 %v1819
        %v7172 = vunpack.c.l.b16 %v1820
        %v7173 = vunpack.c.h.b16 %v1820
        %v7174 = vunpack.c.l.b16 %v1821
        %v7175 = vunpack.c.h.b16 %v1821
        %v7176 = vunpack.c.l.b16 %v1822
        %v7177 = vunpack.c.h.b16 %v1822
        %v7178 = vunpack.c.l.b16 %v1823
        %v7179 = vunpack.c.h.b16 %v1823
        %v7180 = vunpack.c.l.b16 %v1824
        %v7181 = vunpack.c.h.b16 %v1824
        %v7182 = vunpack.c.l.b16 %v1825
        %v7183 = vunpack.c.h.b16 %v1825
        %v7184 = vunpack.c.l.b16 %v1826
        %v7185 = vunpack.c.h.b16 %v1826
        %v7186 = vunpack.c.l.b16 %v1827
        %v7187 = vunpack.c.h.b16 %v1827
        %v7188 = vunpack.c.l.b16 %v1828
        %v7189 = vunpack.c.h.b16 %v1828
        %v7190 = vunpack.c.l.b16 %v1829
        %v7191 = vunpack.c.h.b16 %v1829
        %v7192 = vunpack.c.l.b16 %v1830
        %v7193 = vunpack.c.h.b16 %v1830
        %v7194 = vunpack.c.l.b16 %v1831
        %v7195 = vunpack.c.h.b16 %v1831
        %v7196 = vunpack.c.l.b16 %v1832
        %v7197 = vunpack.c.h.b16 %v1832
        %v7198 = vunpack.c.l.b16 %v1833
        %v7199 = vunpack.c.h.b16 %v1833
        %v7200 = vunpack.c.l.b16 %v1834
        %v7201 = vunpack.c.h.b16 %v1834
        %v7202 = vunpack.c.l.b16 %v1835
        %v7203 = vunpack.c.h.b16 %v1835
        %v7204 = vunpack.c.l.b16 %v1836
        %v7205 = vunpack.c.h.b16 %v1836
        %v7206 = vunpack.c.l.b16 %v1837
        %v7207 = vunpack.c.h.b16 %v1837
        %v7208 = vunpack.c.l.b16 %v1838
        %v7209 = vunpack.c.h.b16 %v1838
        %v7210 = vunpack.c.l.b16 %v1839
        %v7211 = vunpack.c.h.b16 %v1839
        %v7212 = vunpack.c.l.b16 %v1840
        %v7213 = vunpack.c.h.b16 %v1840
        %v7214 = vunpack.c.l.b16 %v1841
        %v7215 = vunpack.c.h.b16 %v1841
        %v7216 = vunpack.c.l.b16 %v1842
        %v7217 = vunpack.c.h.b16 %v1842
        %v7218 = vunpack.c.l.b16 %v1843
        %v7219 = vunpack.c.h.b16 %v1843
        %v7220 = vunpack.c.l.b16 %v1844
        %v7221 = vunpack.c.h.b16 %v1844
        %v7222 = vunpack.c.l.b16 %v1845
        %v7223 = vunpack.c.h.b16 %v1845
        %v7224 = vunpack.c.l.b16 %v1846
        %v7225 = vunpack.c.h.b16 %v1846
        %v7226 = vunpack.c.l.b16 %v1847
        %v7227 = vunpack.c.h.b16 %v1847
        %v7228 = vunpack.c.l.b16 %v1848
        %v7229 = vunpack.c.h.b16 %v1848
        %v7230 = vunpack.c.l.b16 %v1849
        %v7231 = vunpack.c.h.b16 %v1849
        %v7232 = vunpack.c.l.b16 %v1850
        %v7233 = vunpack.c.h.b16 %v1850
        %v7234 = vunpack.c.l.b16 %v1851
        %v7235 = vunpack.c.h.b16 %v1851
        %v7236 = vunpack.c.l.b16 %v1852
        %v7237 = vunpack.c.h.b16 %v1852
        %v7238 = vunpack.c.l.b16 %v1853
        %v7239 = vunpack.c.h.b16 %v1853
        %v7240 = vunpack.c.l.b16 %v1854
        %v7241 = vunpack.c.h.b16 %v1854
        %v7242 = vunpack.c.l.b16 %v1855
        %v7243 = vunpack.c.h.b16 %v1855
        %v7244 = vunpack.c.l.b16 %v1856
        %v7245 = vunpack.c.h.b16 %v1856
        %v7246 = vunpack.c.l.b16 %v1857
        %v7247 = vunpack.c.h.b16 %v1857
        %v7248 = vunpack.c.l.b16 %v1858
        %v7249 = vunpack.c.h.b16 %v1858
        %v7250 = vunpack.c.l.b16 %v1859
        %v7251 = vunpack.c.h.b16 %v1859
        %v7252 = vunpack.c.l.b16 %v1860
        %v7253 = vunpack.c.h.b16 %v1860
        %v7254 = vunpack.c.l.b16 %v1861
        %v7255 = vunpack.c.h.b16 %v1861
        %v7256 = vunpack.c.l.b16 %v1862
        %v7257 = vunpack.c.h.b16 %v1862
        %v7258 = vunpack.c.l.b16 %v1863
        %v7259 = vunpack.c.h.b16 %v1863
        %v7260 = vunpack.c.l.b16 %v1864
        %v7261 = vunpack.c.h.b16 %v1864
        %v7262 = vunpack.c.l.b16 %v1865
        %v7263 = vunpack.c.h.b16 %v1865
        %v7264 = vunpack.c.l.b16 %v1866
        %v7265 = vunpack.c.h.b16 %v1866
        %v7266 = vunpack.c.l.b16 %v1867
        %v7267 = vunpack.c.h.b16 %v1867
        %v7268 = vunpack.c.l.b16 %v1868
        %v7269 = vunpack.c.h.b16 %v1868
        %v7270 = vunpack.c.l.b16 %v1869
        %v7271 = vunpack.c.h.b16 %v1869
        %v7272 = vunpack.c.l.b16 %v1870
        %v7273 = vunpack.c.h.b16 %v1870
        %v7274 = vunpack.c.l.b16 %v1871
        %v7275 = vunpack.c.h.b16 %v1871
        %v7276 = vunpack.c.l.b16 %v1872
        %v7277 = vunpack.c.h.b16 %v1872
        %v7278 = vunpack.c.l.b16 %v1873
        %v7279 = vunpack.c.h.b16 %v1873
        %v7280 = vunpack.c.l.b16 %v1874
        %v7281 = vunpack.c.h.b16 %v1874
        %v7282 = vunpack.c.l.b16 %v1875
        %v7283 = vunpack.c.h.b16 %v1875
        %v7284 = vunpack.c.l.b16 %v1876
        %v7285 = vunpack.c.h.b16 %v1876
        %v7286 = vunpack.c.l.b16 %v1877
        %v7287 = vunpack.c.h.b16 %v1877
        %v7288 = vunpack.c.l.b16 %v1878
        %v7289 = vunpack.c.h.b16 %v1878
        %v7290 = vunpack.c.l.b16 %v1879
        %v7291 = vunpack.c.h.b16 %v1879
        %v7292 = vunpack.c.l.b16 %v1880
        %v7293 = vunpack.c.h.b16 %v1880
        %v7294 = vunpack.c.l.b16 %v1881
        %v7295 = vunpack.c.h.b16 %v1881
        %v7296 = vunpack.c.l.b16 %v1882
        %v7297 = vunpack.c.h.b16 %v1882
        %v7298 = vunpack.c.l.b16 %v1883
        %v7299 = vunpack.c.h.b16 %v1883
        %v7300 = vunpack.c.l.b16 %v1884
        %v7301 = vunpack.c.h.b16 %v1884
        %v7302 = vunpack.c.l.b16 %v1885
        %v7303 = vunpack.c.h.b16 %v1885
        %v7304 = vunpack.c.l.b16 %v1886
        %v7305 = vunpack.c.h.b16 %v1886
        %v7306 = vunpack.c.l.b16 %v1887
        %v7307 = vunpack.c.h.b16 %v1887
        %v7308 = vunpack.c.l.b16 %v1888
        %v7309 = vunpack.c.h.b16 %v1888
        %v7310 = vunpack.c.l.b16 %v1889
        %v7311 = vunpack.c.h.b16 %v1889
        %v7312 = vunpack.c.l.b16 %v1890
        %v7313 = vunpack.c.h.b16 %v1890
        %v7314 = vunpack.c.l.b16 %v1891
        %v7315 = vunpack.c.h.b16 %v1891
        %v7316 = vunpack.c.l.b16 %v1892
        %v7317 = vunpack.c.h.b16 %v1892
        %v7318 = vunpack.c.l.b16 %v1893
        %v7319 = vunpack.c.h.b16 %v1893
        %v7320 = vunpack.c.l.b16 %v1894
        %v7321 = vunpack.c.h.b16 %v1894
        %v7322 = vunpack.c.l.b16 %v1895
        %v7323 = vunpack.c.h.b16 %v1895
        %v7324 = vunpack.c.l.b16 %v1896
        %v7325 = vunpack.c.h.b16 %v1896
        %v7326 = vunpack.c.l.b16 %v1897
        %v7327 = vunpack.c.h.b16 %v1897
        %v7328 = vunpack.c.l.b16 %v1898
        %v7329 = vunpack.c.h.b16 %v1898
        %v7330 = vunpack.c.l.b16 %v1899
        %v7331 = vunpack.c.h.b16 %v1899
        %v7332 = vunpack.c.l.b16 %v1900
        %v7333 = vunpack.c.h.b16 %v1900
        %v7334 = vunpack.c.l.b16 %v1901
        %v7335 = vunpack.c.h.b16 %v1901
        %v7336 = vunpack.c.l.b16 %v1902
        %v7337 = vunpack.c.h.b16 %v1902
        %v7338 = vunpack.c.l.b16 %v1903
        %v7339 = vunpack.c.h.b16 %v1903
        %v7340 = vunpack.c.l.b16 %v1904
        %v7341 = vunpack.c.h.b16 %v1904
        %v7342 = vunpack.c.l.b16 %v1905
        %v7343 = vunpack.c.h.b16 %v1905
        %v7344 = vunpack.c.l.b16 %v1906
        %v7345 = vunpack.c.h.b16 %v1906
        %v7346 = vunpack.c.l.b16 %v1907
        %v7347 = vunpack.c.h.b16 %v1907
        %v7348 = vunpack.c.l.b16 %v1908
        %v7349 = vunpack.c.h.b16 %v1908
        %v7350 = vunpack.c.l.b16 %v1909
        %v7351 = vunpack.c.h.b16 %v1909
        %v7352 = vunpack.c.l.b16 %v1910
        %v7353 = vunpack.c.h.b16 %v1910
        %v7354 = vunpack.c.l.b16 %v1911
        %v7355 = vunpack.c.h.b16 %v1911
        %v7356 = vunpack.c.l.b16 %v1912
        %v7357 = vunpack.c.h.b16 %v1912
        %v7358 = vunpack.c.l.b16 %v1913
        %v7359 = vunpack.c.h.b16 %v1913
        %v7360 = vunpack.c.l.b16 %v1914
        %v7361 = vunpack.c.h.b16 %v1914
        %v7362 = vunpack.c.l.b16 %v1915
        %v7363 = vunpack.c.h.b16 %v1915
        %v7364 = vunpack.c.l.b16 %v1916
        %v7365 = vunpack.c.h.b16 %v1916
        %v7366 = vunpack.c.l.b16 %v1917
        %v7367 = vunpack.c.h.b16 %v1917
        %v7368 = vunpack.c.l.b16 %v1918
        %v7369 = vunpack.c.h.b16 %v1918
        %v7370 = vunpack.c.l.b16 %v1919
        %v7371 = vunpack.c.h.b16 %v1919
        %v7372 = vunpack.c.l.b16 %v1920
        %v7373 = vunpack.c.h.b16 %v1920
        %v7374 = vunpack.c.l.b16 %v1921
        %v7375 = vunpack.c.h.b16 %v1921
        %v7376 = vunpack.c.l.b16 %v1922
        %v7377 = vunpack.c.h.b16 %v1922
        %v7378 = vunpack.c.l.b16 %v1923
        %v7379 = vunpack.c.h.b16 %v1923
        %v7380 = vunpack.c.l.b16 %v1924
        %v7381 = vunpack.c.h.b16 %v1924
        %v7382 = vunpack.c.l.b16 %v1925
        %v7383 = vunpack.c.h.b16 %v1925
        %v7384 = vunpack.c.l.b16 %v1926
        %v7385 = vunpack.c.h.b16 %v1926
        %v7386 = vunpack.c.l.b16 %v1927
        %v7387 = vunpack.c.h.b16 %v1927
        %v7388 = vunpack.c.l.b16 %v1928
        %v7389 = vunpack.c.h.b16 %v1928
        %v7390 = vunpack.c.l.b16 %v1929
        %v7391 = vunpack.c.h.b16 %v1929
        %v7392 = vunpack.c.l.b16 %v1930
        %v7393 = vunpack.c.h.b16 %v1930
        %v7394 = vunpack.c.l.b16 %v1931
        %v7395 = vunpack.c.h.b16 %v1931
        %v7396 = vunpack.c.l.b16 %v1932
        %v7397 = vunpack.c.h.b16 %v1932
        %v7398 = vunpack.c.l.b16 %v1933
        %v7399 = vunpack.c.h.b16 %v1933
        %v7400 = vunpack.c.l.b16 %v1934
        %v7401 = vunpack.c.h.b16 %v1934
        %v7402 = vunpack.c.l.b16 %v1935
        %v7403 = vunpack.c.h.b16 %v1935
        %v7404 = vunpack.c.l.b16 %v1936
        %v7405 = vunpack.c.h.b16 %v1936
        %v7406 = vunpack.c.l.b16 %v1937
        %v7407 = vunpack.c.h.b16 %v1937
        %v7408 = vunpack.c.l.b16 %v1938
        %v7409 = vunpack.c.h.b16 %v1938
        %v7410 = vunpack.c.l.b16 %v1939
        %v7411 = vunpack.c.h.b16 %v1939
        %v7412 = vunpack.c.l.b16 %v1940
        %v7413 = vunpack.c.h.b16 %v1940
        %v7414 = vunpack.c.l.b16 %v1941
        %v7415 = vunpack.c.h.b16 %v1941
        %v7416 = vunpack.c.l.b16 %v1942
        %v7417 = vunpack.c.h.b16 %v1942
        %v7418 = vunpack.c.l.b16 %v1943
        %v7419 = vunpack.c.h.b16 %v1943
        %v7420 = vunpack.c.l.b16 %v1944
        %v7421 = vunpack.c.h.b16 %v1944
        %v7422 = vunpack.c.l.b16 %v1945
        %v7423 = vunpack.c.h.b16 %v1945
        %v7424 = vunpack.c.l.b16 %v1946
        %v7425 = vunpack.c.h.b16 %v1946
        %v7426 = vunpack.c.l.b16 %v1947
        %v7427 = vunpack.c.h.b16 %v1947
        %v7428 = vunpack.c.l.b16 %v1948
        %v7429 = vunpack.c.h.b16 %v1948
        %v7430 = vunpack.c.l.b16 %v1949
        %v7431 = vunpack.c.h.b16 %v1949
        %v7432 = vunpack.c.l.b16 %v1950
        %v7433 = vunpack.c.h.b16 %v1950
        %v7434 = vunpack.c.l.b16 %v1951
        %v7435 = vunpack.c.h.b16 %v1951
        %v7436 = vunpack.c.l.b16 %v1952
        %v7437 = vunpack.c.h.b16 %v1952
        %v7438 = vunpack.c.l.b16 %v1953
        %v7439 = vunpack.c.h.b16 %v1953
        %v7440 = vunpack.c.l.b16 %v1954
        %v7441 = vunpack.c.h.b16 %v1954
        %v7442 = vunpack.c.l.b16 %v1955
        %v7443 = vunpack.c.h.b16 %v1955
        %v7444 = vunpack.c.l.b16 %v1956
        %v7445 = vunpack.c.h.b16 %v1956
        %v7446 = vunpack.c.l.b16 %v1957
        %v7447 = vunpack.c.h.b16 %v1957
        %v7448 = vunpack.c.l.b16 %v1958
        %v7449 = vunpack.c.h.b16 %v1958
        %v7450 = vunpack.c.l.b16 %v1959
        %v7451 = vunpack.c.h.b16 %v1959
        %v7452 = vunpack.c.l.b16 %v1960
        %v7453 = vunpack.c.h.b16 %v1960
        %v7454 = vunpack.c.l.b16 %v1961
        %v7455 = vunpack.c.h.b16 %v1961
        %v7456 = vunpack.c.l.b16 %v1962
        %v7457 = vunpack.c.h.b16 %v1962
        %v7458 = vunpack.c.l.b16 %v1963
        %v7459 = vunpack.c.h.b16 %v1963
        %v7460 = vunpack.c.l.b16 %v1964
        %v7461 = vunpack.c.h.b16 %v1964
        %v7462 = vunpack.c.l.b16 %v1965
        %v7463 = vunpack.c.h.b16 %v1965
        %v7464 = vunpack.c.l.b16 %v1966
        %v7465 = vunpack.c.h.b16 %v1966
        %v7466 = vunpack.c.l.b16 %v1967
        %v7467 = vunpack.c.h.b16 %v1967
        %v7468 = vunpack.c.l.b16 %v1968
        %v7469 = vunpack.c.h.b16 %v1968
        %v7470 = vunpack.c.l.b16 %v1969
        %v7471 = vunpack.c.h.b16 %v1969
        %v7472 = vunpack.c.l.b16 %v1970
        %v7473 = vunpack.c.h.b16 %v1970
        %v7474 = vunpack.c.l.b16 %v1971
        %v7475 = vunpack.c.h.b16 %v1971
        %v7476 = vunpack.c.l.b16 %v1972
        %v7477 = vunpack.c.h.b16 %v1972
        %v7478 = vunpack.c.l.b16 %v1973
        %v7479 = vunpack.c.h.b16 %v1973
        %v7480 = vunpack.c.l.b16 %v1974
        %v7481 = vunpack.c.h.b16 %v1974
        %v7482 = vunpack.c.l.b16 %v1975
        %v7483 = vunpack.c.h.b16 %v1975
        %v7484 = vunpack.c.l.b16 %v1976
        %v7485 = vunpack.c.h.b16 %v1976
        %v7486 = vunpack.c.l.b16 %v1977
        %v7487 = vunpack.c.h.b16 %v1977
        %v7488 = vunpack.c.l.b16 %v1978
        %v7489 = vunpack.c.h.b16 %v1978
        %v7490 = vunpack.c.l.b16 %v1979
        %v7491 = vunpack.c.h.b16 %v1979
        %v7492 = vunpack.c.l.b16 %v1980
        %v7493 = vunpack.c.h.b16 %v1980
        %v7494 = vunpack.c.l.b16 %v1981
        %v7495 = vunpack.c.h.b16 %v1981
        %v7496 = vunpack.c.l.b16 %v1982
        %v7497 = vunpack.c.h.b16 %v1982
        %v7498 = vunpack.c.l.b16 %v1983
        %v7499 = vunpack.c.h.b16 %v1983
        %v7500 = vunpack.c.l.b16 %v1984
        %v7501 = vunpack.c.h.b16 %v1984
        %v7502 = vunpack.c.l.b16 %v1985
        %v7503 = vunpack.c.h.b16 %v1985
        %v7504 = vunpack.c.l.b16 %v1986
        %v7505 = vunpack.c.h.b16 %v1986
        %v7506 = vunpack.c.l.b16 %v1987
        %v7507 = vunpack.c.h.b16 %v1987
        %v7508 = vunpack.c.l.b16 %v1988
        %v7509 = vunpack.c.h.b16 %v1988
        %v7510 = vunpack.c.l.b16 %v1989
        %v7511 = vunpack.c.h.b16 %v1989
        %v7512 = vunpack.c.l.b16 %v1990
        %v7513 = vunpack.c.h.b16 %v1990
        %v7514 = vunpack.c.l.b16 %v1991
        %v7515 = vunpack.c.h.b16 %v1991
        %v7516 = vunpack.c.l.b16 %v1992
        %v7517 = vunpack.c.h.b16 %v1992
        %v7518 = vunpack.c.l.b16 %v1993
        %v7519 = vunpack.c.h.b16 %v1993
        %v7520 = vunpack.c.l.b16 %v1994
        %v7521 = vunpack.c.h.b16 %v1994
        %v7522 = vunpack.c.l.b16 %v1995
        %v7523 = vunpack.c.h.b16 %v1995
        %v7524 = vunpack.c.l.b16 %v1996
        %v7525 = vunpack.c.h.b16 %v1996
        %v7526 = vunpack.c.l.b16 %v1997
        %v7527 = vunpack.c.h.b16 %v1997
        %v7528 = vunpack.c.l.b16 %v1998
        %v7529 = vunpack.c.h.b16 %v1998
        %v7530 = vunpack.c.l.b16 %v1999
        %v7531 = vunpack.c.h.b16 %v1999
        %v7532 = vunpack.c.l.b16 %v2000
        %v7533 = vunpack.c.h.b16 %v2000
        %v7534 = vunpack.c.l.b16 %v2001
        %v7535 = vunpack.c.h.b16 %v2001
        %v7536 = vunpack.c.l.b16 %v2002
        %v7537 = vunpack.c.h.b16 %v2002
        %v7538 = vunpack.c.l.b16 %v2003
        %v7539 = vunpack.c.h.b16 %v2003
        %v7540 = vunpack.c.l.b16 %v2004
        %v7541 = vunpack.c.h.b16 %v2004
        %v7542 = vunpack.c.l.b16 %v2005
        %v7543 = vunpack.c.h.b16 %v2005
        %v7544 = vunpack.c.l.b16 %v2006
        %v7545 = vunpack.c.h.b16 %v2006
        %v7546 = vunpack.c.l.b16 %v2007
        %v7547 = vunpack.c.h.b16 %v2007
        %v7548 = vunpack.c.l.b16 %v2008
        %v7549 = vunpack.c.h.b16 %v2008
        %v7550 = vunpack.c.l.b16 %v2009
        %v7551 = vunpack.c.h.b16 %v2009
        %v7552 = vunpack.c.l.b16 %v2010
        %v7553 = vunpack.c.h.b16 %v2010
        %v7554 = vunpack.c.l.b16 %v2011
        %v7555 = vunpack.c.h.b16 %v2011
        %v7556 = vunpack.c.l.b16 %v2012
        %v7557 = vunpack.c.h.b16 %v2012
        %v7558 = vunpack.c.l.b16 %v2013
        %v7559 = vunpack.c.h.b16 %v2013
        %v7560 = vunpack.c.l.b16 %v2014
        %v7561 = vunpack.c.h.b16 %v2014
        %v7562 = vunpack.c.l.b16 %v2015
        %v7563 = vunpack.c.h.b16 %v2015
        %v7564 = vunpack.c.l.b16 %v2016
        %v7565 = vunpack.c.h.b16 %v2016
        %v7566 = vunpack.c.l.b16 %v2017
        %v7567 = vunpack.c.h.b16 %v2017
        %v7568 = vunpack.c.l.b16 %v2018
        %v7569 = vunpack.c.h.b16 %v2018
        %v7570 = vunpack.c.l.b16 %v2019
        %v7571 = vunpack.c.h.b16 %v2019
        %v7572 = vunpack.c.l.b16 %v2020
        %v7573 = vunpack.c.h.b16 %v2020
        %v7574 = vunpack.c.l.b16 %v2021
        %v7575 = vunpack.c.h.b16 %v2021
        %v7576 = vunpack.c.l.b16 %v2022
        %v7577 = vunpack.c.h.b16 %v2022
        %v7578 = vunpack.c.l.b16 %v2023
        %v7579 = vunpack.c.h.b16 %v2023
        %v7580 = vunpack.c.l.b16 %v2024
        %v7581 = vunpack.c.h.b16 %v2024
        %v7582 = vunpack.c.l.b16 %v2025
        %v7583 = vunpack.c.h.b16 %v2025
        %v7584 = vunpack.c.l.b16 %v2026
        %v7585 = vunpack.c.h.b16 %v2026
        %v7586 = vunpack.c.l.b16 %v2027
        %v7587 = vunpack.c.h.b16 %v2027
        %v7588 = vunpack.c.l.b16 %v2028
        %v7589 = vunpack.c.h.b16 %v2028
        %v7590 = vunpack.c.l.b16 %v2029
        %v7591 = vunpack.c.h.b16 %v2029
        %v7592 = vunpack.c.l.b16 %v2030
        %v7593 = vunpack.c.h.b16 %v2030
        %v7594 = vunpack.c.l.b16 %v2031
        %v7595 = vunpack.c.h.b16 %v2031
        %v7596 = vunpack.c.l.b16 %v2032
        %v7597 = vunpack.c.h.b16 %v2032
        %v7598 = vunpack.c.l.b16 %v2033
        %v7599 = vunpack.c.h.b16 %v2033
        %v7600 = vunpack.c.l.b16 %v2034
        %v7601 = vunpack.c.h.b16 %v2034
        %v7602 = vunpack.c.l.b16 %v2035
        %v7603 = vunpack.c.h.b16 %v2035
        %v7604 = vunpack.c.l.b16 %v2036
        %v7605 = vunpack.c.h.b16 %v2036
        %v7606 = vpack.c.b16 %v4054, %v4022
        %v7607 = vpack.c.b16 %v4055, %v4023
        %v7608 = vpack.c.b16 %v4056, %v4024
        %v7609 = vpack.c.b16 %v4057, %v4025
        %v7610 = vpack.c.b16 %v4058, %v4026
        %v7611 = vpack.c.b16 %v4059, %v4027
        %v7612 = vpack.c.b16 %v4060, %v4028
        %v7613 = vpack.c.b16 %v4061, %v4029
        %v7614 = vpack.c.b16 %v4062, %v4030
        %v7615 = vpack.c.b16 %v4063, %v4031
        %v7616 = vpack.c.b16 %v4064, %v4032
        %v7617 = vpack.c.b16 %v4065, %v4033
        %v7618 = vpack.c.b16 %v4066, %v4034
        %v7619 = vpack.c.b16 %v4067, %v4035
        %v7620 = vpack.c.b16 %v4068, %v4036
        %v7621 = vpack.c.b16 %v4069, %v4037
        %v7622 = vpack.c.b16 %v4070, %v4038
        %v7623 = vpack.c.b16 %v4071, %v4039
        %v7624 = vpack.c.b16 %v4072, %v4040
        %v7625 = vpack.c.b16 %v4073, %v4041
        %v7626 = vpack.c.b16 %v4074, %v4042
        %v7627 = vpack.c.b16 %v4075, %v4043
        %v7628 = vpack.c.b16 %v4076, %v4044
        %v7629 = vpack.c.b16 %v4077, %v4045
        %v7630 = vpack.c.b16 %v4078, %v4046
        %v7631 = vpack.c.b16 %v4079, %v4047
        %v7632 = vpack.c.b16 %v4080, %v4048
        %v7633 = vpack.c.b16 %v4081, %v4049
        %v7634 = vpack.c.b16 %v4082, %v4050
        %v7635 = vpack.c.b16 %v4083, %v4051
        %v7636 = vpack.c.b16 %v4084, %v4052
        %v7637 = vpack.c.b16 %v4085, %v4053
        %v7638 = vpack.c.b16 %v4118, %v4086
        %v7639 = vpack.c.b16 %v4119, %v4087
        %v7640 = vpack.c.b16 %v4120, %v4088
        %v7641 = vpack.c.b16 %v4121, %v4089
        %v7642 = vpack.c.b16 %v4122, %v4090
        %v7643 = vpack.c.b16 %v4123, %v4091
        %v7644 = vpack.c.b16 %v4124, %v4092
        %v7645 = vpack.c.b16 %v4125, %v4093
        %v7646 = vpack.c.b16 %v4126, %v4094
        %v7647 = vpack.c.b16 %v4127, %v4095
        %v7648 = vpack.c.b16 %v4128, %v4096
        %v7649 = vpack.c.b16 %v4129, %v4097
        %v7650 = vpack.c.b16 %v4130, %v4098
        %v7651 = vpack.c.b16 %v4131, %v4099
        %v7652 = vpack.c.b16 %v4132, %v4100
        %v7653 = vpack.c.b16 %v4133, %v4101
        %v7654 = vpack.c.b16 %v4134, %v4102
        %v7655 = vpack.c.b16 %v4135, %v4103
        %v7656 = vpack.c.b16 %v4136, %v4104
        %v7657 = vpack.c.b16 %v4137, %v4105
        %v7658 = vpack.c.b16 %v4138, %v4106
        %v7659 = vpack.c.b16 %v4139, %v4107
        %v7660 = vpack.c.b16 %v4140, %v4108
        %v7661 = vpack.c.b16 %v4141, %v4109
        %v7662 = vpack.c.b16 %v4142, %v4110
        %v7663 = vpack.c.b16 %v4143, %v4111
        %v7664 = vpack.c.b16 %v4144, %v4112
        %v7665 = vpack.c.b16 %v4145, %v4113
        %v7666 = vpack.c.b16 %v4146, %v4114
        %v7667 = vpack.c.b16 %v4147, %v4115
        %v7668 = vpack.c.b16 %v4148, %v4116
        %v7669 = vpack.c.b16 %v4149, %v4117
        %v7670 = vpack.c.b16 %v4182, %v4150
        %v7671 = vpack.c.b16 %v4183, %v4151
        %v7672 = vpack.c.b16 %v4184, %v4152
        %v7673 = vpack.c.b16 %v4185, %v4153
        %v7674 = vpack.c.b16 %v4186, %v4154
        %v7675 = vpack.c.b16 %v4187, %v4155
        %v7676 = vpack.c.b16 %v4188, %v4156
        %v7677 = vpack.c.b16 %v4189, %v4157
        %v7678 = vpack.c.b16 %v4190, %v4158
        %v7679 = vpack.c.b16 %v4191, %v4159
        %v7680 = vpack.c.b16 %v4192, %v4160
        %v7681 = vpack.c.b16 %v4193, %v4161
        %v7682 = vpack.c.b16 %v4194, %v4162
        %v7683 = vpack.c.b16 %v4195, %v4163
        %v7684 = vpack.c.b16 %v4196, %v4164
        %v7685 = vpack.c.b16 %v4197, %v4165
        %v7686 = vpack.c.b16 %v4198, %v4166
        %v7687 = vpack.c.b16 %v4199, %v4167
        %v7688 = vpack.c.b16 %v4200, %v4168
        %v7689 = vpack.c.b16 %v4201, %v4169
        %v7690 = vpack.c.b16 %v4202, %v4170
        %v7691 = vpack.c.b16 %v4203, %v4171
        %v7692 = vpack.c.b16 %v4204, %v4172
        %v7693 = vpack.c.b16 %v4205, %v4173
        %v7694 = vpack.c.b16 %v4206, %v4174
        %v7695 = vpack.c.b16 %v4207, %v4175
        %v7696 = vpack.c.b16 %v4208, %v4176
        %v7697 = vpack.c.b16 %v4209, %v4177
        %v7698 = vpack.c.b16 %v4210, %v4178
        %v7699 = vpack.c.b16 %v4211, %v4179
        %v7700 = vpack.c.b16 %v4212, %v4180
        %v7701 = vpack.c.b16 %v4213, %v4181
        %v7702 = vpack.c.b16 %v4246, %v4214
        %v7703 = vpack.c.b16 %v4247, %v4215
        %v7704 = vpack.c.b16 %v4248, %v4216
        %v7705 = vpack.c.b16 %v4249, %v4217
        %v7706 = vpack.c.b16 %v4250, %v4218
        %v7707 = vpack.c.b16 %v4251, %v4219
        %v7708 = vpack.c.b16 %v4252, %v4220
        %v7709 = vpack.c.b16 %v4253, %v4221
        %v7710 = vpack.c.b16 %v4254, %v4222
        %v7711 = vpack.c.b16 %v4255, %v4223
        %v7712 = vpack.c.b16 %v4256, %v4224
        %v7713 = vpack.c.b16 %v4257, %v4225
        %v7714 = vpack.c.b16 %v4258, %v4226
        %v7715 = vpack.c.b16 %v4259, %v4227
        %v7716 = vpack.c.b16 %v4260, %v4228
        %v7717 = vpack.c.b16 %v4261, %v4229
        %v7718 = vpack.c.b16 %v4262, %v4230
        %v7719 = vpack.c.b16 %v4263, %v4231
        %v7720 = vpack.c.b16 %v4264, %v4232
        %v7721 = vpack.c.b16 %v4265, %v4233
        %v7722 = vpack.c.b16 %v4266, %v4234
        %v7723 = vpack.c.b16 %v4267, %v4235
        %v7724 = vpack.c.b16 %v4268, %v4236
        %v7725 = vpack.c.b16 %v4269, %v4237
        %v7726 = vpack.c.b16 %v4270, %v4238
        %v7727 = vpack.c.b16 %v4271, %v4239
        %v7728 = vpack.c.b16 %v4272, %v4240
        %v7729 = vpack.c.b16 %v4273, %v4241
        %v7730 = vpack.c.b16 %v4274, %v4242
        %v7731 = vpack.c.b16 %v4275, %v4243
        %v7732 = vpack.c.b16 %v4276, %v4244
        %v7733 = vpack.c.b16 %v4277, %v4245
        %v7734 = vpack.c.b16 %v4310, %v4278
        %v7735 = vpack.c.b16 %v4311, %v4279
        %v7736 = vpack.c.b16 %v4312, %v4280
        %v7737 = vpack.c.b16 %v4313, %v4281
        %v7738 = vpack.c.b16 %v4314, %v4282
        %v7739 = vpack.c.b16 %v4315, %v4283
        %v7740 = vpack.c.b16 %v4316, %v4284
        %v7741 = vpack.c.b16 %v4317, %v4285
        %v7742 = vpack.c.b16 %v4318, %v4286
        %v7743 = vpack.c.b16 %v4319, %v4287
        %v7744 = vpack.c.b16 %v4320, %v4288
        %v7745 = vpack.c.b16 %v4321, %v4289
        %v7746 = vpack.c.b16 %v4322, %v4290
        %v7747 = vpack.c.b16 %v4323, %v4291
        %v7748 = vpack.c.b16 %v4324, %v4292
        %v7749 = vpack.c.b16 %v4325, %v4293
        %v7750 = vpack.c.b16 %v4326, %v4294
        %v7751 = vpack.c.b16 %v4327, %v4295
        %v7752 = vpack.c.b16 %v4328, %v4296
        %v7753 = vpack.c.b16 %v4329, %v4297
        %v7754 = vpack.c.b16 %v4330, %v4298
        %v7755 = vpack.c.b16 %v4331, %v4299
        %v7756 = vpack.c.b16 %v4332, %v4300
        %v7757 = vpack.c.b16 %v4333, %v4301
        %v7758 = vpack.c.b16 %v4334, %v4302
        %v7759 = vpack.c.b16 %v4335, %v4303
        %v7760 = vpack.c.b16 %v4336, %v4304
        %v7761 = vpack.c.b16 %v4337, %v4305
        %v7762 = vpack.c.b16 %v4338, %v4306
        %v7763 = vpack.c.b16 %v4339, %v4307
        %v7764 = vpack.c.b16 %v4340, %v4308
        %v7765 = vpack.c.b16 %v4341, %v4309
        %v7766 = vpack.c.b16 %v4374, %v4342
        %v7767 = vpack.c.b16 %v4375, %v4343
        %v7768 = vpack.c.b16 %v4376, %v4344
        %v7769 = vpack.c.b16 %v4377, %v4345
        %v7770 = vpack.c.b16 %v4378, %v4346
        %v7771 = vpack.c.b16 %v4379, %v4347
        %v7772 = vpack.c.b16 %v4380, %v4348
        %v7773 = vpack.c.b16 %v4381, %v4349
        %v7774 = vpack.c.b16 %v4382, %v4350
        %v7775 = vpack.c.b16 %v4383, %v4351
        %v7776 = vpack.c.b16 %v4384, %v4352
        %v7777 = vpack.c.b16 %v4385, %v4353
        %v7778 = vpack.c.b16 %v4386, %v4354
        %v7779 = vpack.c.b16 %v4387, %v4355
        %v7780 = vpack.c.b16 %v4388, %v4356
        %v7781 = vpack.c.b16 %v4389, %v4357
        %v7782 = vpack.c.b16 %v4390, %v4358
        %v7783 = vpack.c.b16 %v4391, %v4359
        %v7784 = vpack.c.b16 %v4392, %v4360
        %v7785 = vpack.c.b16 %v4393, %v4361
        %v7786 = vpack.c.b16 %v4394, %v4362
        %v7787 = vpack.c.b16 %v4395, %v4363
        %v7788 = vpack.c.b16 %v4396, %v4364
        %v7789 = vpack.c.b16 %v4397, %v4365
        %v7790 = vpack.c.b16 %v4398, %v4366
        %v7791 = vpack.c.b16 %v4399, %v4367
        %v7792 = vpack.c.b16 %v4400, %v4368
        %v7793 = vpack.c.b16 %v4401, %v4369
        %v7794 = vpack.c.b16 %v4402, %v4370
        %v7795 = vpack.c.b16 %v4403, %v4371
        %v7796 = vpack.c.b16 %v4404, %v4372
        %v7797 = vpack.c.b16 %v4405, %v4373
        %v7798 = vpack.c.b16 %v4438, %v4406
        %v7799 = vpack.c.b16 %v4439, %v4407
        %v7800 = vpack.c.b16 %v4440, %v4408
        %v7801 = vpack.c.b16 %v4441, %v4409
        %v7802 = vpack.c.b16 %v4442, %v4410
        %v7803 = vpack.c.b16 %v4443, %v4411
        %v7804 = vpack.c.b16 %v4444, %v4412
        %v7805 = vpack.c.b16 %v4445, %v4413
        %v7806 = vpack.c.b16 %v4446, %v4414
        %v7807 = vpack.c.b16 %v4447, %v4415
        %v7808 = vpack.c.b16 %v4448, %v4416
        %v7809 = vpack.c.b16 %v4449, %v4417
        %v7810 = vpack.c.b16 %v4450, %v4418
        %v7811 = vpack.c.b16 %v4451, %v4419
        %v7812 = vpack.c.b16 %v4452, %v4420
        %v7813 = vpack.c.b16 %v4453, %v4421
        %v7814 = vpack.c.b16 %v4454, %v4422
        %v7815 = vpack.c.b16 %v4455, %v4423
        %v7816 = vpack.c.b16 %v4456, %v4424
        %v7817 = vpack.c.b16 %v4457, %v4425
        %v7818 = vpack.c.b16 %v4458, %v4426
        %v7819 = vpack.c.b16 %v4459, %v4427
        %v7820 = vpack.c.b16 %v4460, %v4428
        %v7821 = vpack.c.b16 %v4461, %v4429
        %v7822 = vpack.c.b16 %v4462, %v4430
        %v7823 = vpack.c.b16 %v4463, %v4431
        %v7824 = vpack.c.b16 %v4464, %v4432
        %v7825 = vpack.c.b16 %v4465, %v4433
        %v7826 = vpack.c.b16 %v4466, %v4434
        %v7827 = vpack.c.b16 %v4467, %v4435
        %v7828 = vpack.c.b16 %v4468, %v4436
        %v7829 = vpack.c.b16 %v4469, %v4437
        %v7830 = vpack.c.b16 %v4502, %v4470
        %v7831 = vpack.c.b16 %v4503, %v4471
        %v7832 = vpack.c.b16 %v4504, %v4472
        %v7833 = vpack.c.b16 %v4505, %v4473
        %v7834 = vpack.c.b16 %v4506, %v4474
        %v7835 = vpack.c.b16 %v4507, %v4475
        %v7836 = vpack.c.b16 %v4508, %v4476
        %v7837 = vpack.c.b16 %v4509, %v4477
        %v7838 = vpack.c.b16 %v4510, %v4478
        %v7839 = vpack.c.b16 %v4511, %v4479
        %v7840 = vpack.c.b16 %v4512, %v4480
        %v7841 = vpack.c.b16 %v4513, %v4481
        %v7842 = vpack.c.b16 %v4514, %v4482
        %v7843 = vpack.c.b16 %v4515, %v4483
        %v7844 = vpack.c.b16 %v4516, %v4484
        %v7845 = vpack.c.b16 %v4517, %v4485
        %v7846 = vpack.c.b16 %v4518, %v4486
        %v7847 = vpack.c.b16 %v4519, %v4487
        %v7848 = vpack.c.b16 %v4520, %v4488
        %v7849 = vpack.c.b16 %v4521, %v4489
        %v7850 = vpack.c.b16 %v4522, %v4490
        %v7851 = vpack.c.b16 %v4523, %v4491
        %v7852 = vpack.c.b16 %v4524, %v4492
        %v7853 = vpack.c.b16 %v4525, %v4493
        %v7854 = vpack.c.b16 %v4526, %v4494
        %v7855 = vpack.c.b16 %v4527, %v4495
        %v7856 = vpack.c.b16 %v4528, %v4496
        %v7857 = vpack.c.b16 %v4529, %v4497
        %v7858 = vpack.c.b16 %v4530, %v4498
        %v7859 = vpack.c.b16 %v4531, %v4499
        %v7860 = vpack.c.b16 %v4532, %v4500
        %v7861 = vpack.c.b16 %v4533, %v4501
        %v7862 = vpack.c.b16 %v4566, %v4534
        %v7863 = vpack.c.b16 %v4567, %v4535
        %v7864 = vpack.c.b16 %v4568, %v4536
        %v7865 = vpack.c.b16 %v4569, %v4537
        %v7866 = vpack.c.b16 %v4570, %v4538
        %v7867 = vpack.c.b16 %v4571, %v4539
        %v7868 = vpack.c.b16 %v4572, %v4540
        %v7869 = vpack.c.b16 %v4573, %v4541
        %v7870 = vpack.c.b16 %v4574, %v4542
        %v7871 = vpack.c.b16 %v4575, %v4543
        %v7872 = vpack.c.b16 %v4576, %v4544
        %v7873 = vpack.c.b16 %v4577, %v4545
        %v7874 = vpack.c.b16 %v4578, %v4546
        %v7875 = vpack.c.b16 %v4579, %v4547
        %v7876 = vpack.c.b16 %v4580, %v4548
        %v7877 = vpack.c.b16 %v4581, %v4549
        %v7878 = vpack.c.b16 %v4582, %v4550
        %v7879 = vpack.c.b16 %v4583, %v4551
        %v7880 = vpack.c.b16 %v4584, %v4552
        %v7881 = vpack.c.b16 %v4585, %v4553
        %v7882 = vpack.c.b16 %v4586, %v4554
        %v7883 = vpack.c.b16 %v4587, %v4555
        %v7884 = vpack.c.b16 %v4588, %v4556
        %v7885 = vpack.c.b16 %v4589, %v4557
        %v7886 = vpack.c.b16 %v4590, %v4558
        %v7887 = vpack.c.b16 %v4591, %v4559
        %v7888 = vpack.c.b16 %v4592, %v4560
        %v7889 = vpack.c.b16 %v4593, %v4561
        %v7890 = vpack.c.b16 %v4594, %v4562
        %v7891 = vpack.c.b16 %v4595, %v4563
        %v7892 = vpack.c.b16 %v4596, %v4564
        %v7893 = vpack.c.b16 %v4597, %v4565
        %v7894 = vpack.c.b16 %v4630, %v4598
        %v7895 = vpack.c.b16 %v4631, %v4599
        %v7896 = vpack.c.b16 %v4632, %v4600
        %v7897 = vpack.c.b16 %v4633, %v4601
        %v7898 = vpack.c.b16 %v4634, %v4602
        %v7899 = vpack.c.b16 %v4635, %v4603
        %v7900 = vpack.c.b16 %v4636, %v4604
        %v7901 = vpack.c.b16 %v4637, %v4605
        %v7902 = vpack.c.b16 %v4638, %v4606
        %v7903 = vpack.c.b16 %v4639, %v4607
        %v7904 = vpack.c.b16 %v4640, %v4608
        %v7905 = vpack.c.b16 %v4641, %v4609
        %v7906 = vpack.c.b16 %v4642, %v4610
        %v7907 = vpack.c.b16 %v4643, %v4611
        %v7908 = vpack.c.b16 %v4644, %v4612
        %v7909 = vpack.c.b16 %v4645, %v4613
        %v7910 = vpack.c.b16 %v4646, %v4614
        %v7911 = vpack.c.b16 %v4647, %v4615
        %v7912 = vpack.c.b16 %v4648, %v4616
        %v7913 = vpack.c.b16 %v4649, %v4617
        %v7914 = vpack.c.b16 %v4650, %v4618
        %v7915 = vpack.c.b16 %v4651, %v4619
        %v7916 = vpack.c.b16 %v4652, %v4620
        %v7917 = vpack.c.b16 %v4653, %v4621
        %v7918 = vpack.c.b16 %v4654, %v4622
        %v7919 = vpack.c.b16 %v4655, %v4623
        %v7920 = vpack.c.b16 %v4656, %v4624
        %v7921 = vpack.c.b16 %v4657, %v4625
        %v7922 = vpack.c.b16 %v4658, %v4626
        %v7923 = vpack.c.b16 %v4659, %v4627
        %v7924 = vpack.c.b16 %v4660, %v4628
        %v7925 = vpack.c.b16 %v4661, %v4629
        %v7926 = vpack.c.b16 %v4694, %v4662
        %v7927 = vpack.c.b16 %v4695, %v4663
        %v7928 = vpack.c.b16 %v4696, %v4664
        %v7929 = vpack.c.b16 %v4697, %v4665
        %v7930 = vpack.c.b16 %v4698, %v4666
        %v7931 = vpack.c.b16 %v4699, %v4667
        %v7932 = vpack.c.b16 %v4700, %v4668
        %v7933 = vpack.c.b16 %v4701, %v4669
        %v7934 = vpack.c.b16 %v4702, %v4670
        %v7935 = vpack.c.b16 %v4703, %v4671
        %v7936 = vpack.c.b16 %v4704, %v4672
        %v7937 = vpack.c.b16 %v4705, %v4673
        %v7938 = vpack.c.b16 %v4706, %v4674
        %v7939 = vpack.c.b16 %v4707, %v4675
        %v7940 = vpack.c.b16 %v4708, %v4676
        %v7941 = vpack.c.b16 %v4709, %v4677
        %v7942 = vpack.c.b16 %v4710, %v4678
        %v7943 = vpack.c.b16 %v4711, %v4679
        %v7944 = vpack.c.b16 %v4712, %v4680
        %v7945 = vpack.c.b16 %v4713, %v4681
        %v7946 = vpack.c.b16 %v4714, %v4682
        %v7947 = vpack.c.b16 %v4715, %v4683
        %v7948 = vpack.c.b16 %v4716, %v4684
        %v7949 = vpack.c.b16 %v4717, %v4685
        %v7950 = vpack.c.b16 %v4718, %v4686
        %v7951 = vpack.c.b16 %v4719, %v4687
        %v7952 = vpack.c.b16 %v4720, %v4688
        %v7953 = vpack.c.b16 %v4721, %v4689
        %v7954 = vpack.c.b16 %v4722, %v4690
        %v7955 = vpack.c.b16 %v4723, %v4691
        %v7956 = vpack.c.b16 %v4724, %v4692
        %v7957 = vpack.c.b16 %v4725, %v4693
        %v7958 = vpack.c.b16 %v4758, %v4726
        %v7959 = vpack.c.b16 %v4759, %v4727
        %v7960 = vpack.c.b16 %v4760, %v4728
        %v7961 = vpack.c.b16 %v4761, %v4729
        %v7962 = vpack.c.b16 %v4762, %v4730
        %v7963 = vpack.c.b16 %v4763, %v4731
        %v7964 = vpack.c.b16 %v4764, %v4732
        %v7965 = vpack.c.b16 %v4765, %v4733
        %v7966 = vpack.c.b16 %v4766, %v4734
        %v7967 = vpack.c.b16 %v4767, %v4735
        %v7968 = vpack.c.b16 %v4768, %v4736
        %v7969 = vpack.c.b16 %v4769, %v4737
        %v7970 = vpack.c.b16 %v4770, %v4738
        %v7971 = vpack.c.b16 %v4771, %v4739
        %v7972 = vpack.c.b16 %v4772, %v4740
        %v7973 = vpack.c.b16 %v4773, %v4741
        %v7974 = vpack.c.b16 %v4774, %v4742
        %v7975 = vpack.c.b16 %v4775, %v4743
        %v7976 = vpack.c.b16 %v4776, %v4744
        %v7977 = vpack.c.b16 %v4777, %v4745
        %v7978 = vpack.c.b16 %v4778, %v4746
        %v7979 = vpack.c.b16 %v4779, %v4747
        %v7980 = vpack.c.b16 %v4780, %v4748
        %v7981 = vpack.c.b16 %v4781, %v4749
        %v7982 = vpack.c.b16 %v4782, %v4750
        %v7983 = vpack.c.b16 %v4783, %v4751
        %v7984 = vpack.c.b16 %v4784, %v4752
        %v7985 = vpack.c.b16 %v4785, %v4753
        %v7986 = vpack.c.b16 %v4786, %v4754
        %v7987 = vpack.c.b16 %v4787, %v4755
        %v7988 = vpack.c.b16 %v4788, %v4756
        %v7989 = vpack.c.b16 %v4789, %v4757
        %v7990 = vpack.c.b16 %v4822, %v4790
        %v7991 = vpack.c.b16 %v4823, %v4791
        %v7992 = vpack.c.b16 %v4824, %v4792
        %v7993 = vpack.c.b16 %v4825, %v4793
        %v7994 = vpack.c.b16 %v4826, %v4794
        %v7995 = vpack.c.b16 %v4827, %v4795
        %v7996 = vpack.c.b16 %v4828, %v4796
        %v7997 = vpack.c.b16 %v4829, %v4797
        %v7998 = vpack.c.b16 %v4830, %v4798
        %v7999 = vpack.c.b16 %v4831, %v4799
        %v8000 = vpack.c.b16 %v4832, %v4800
        %v8001 = vpack.c.b16 %v4833, %v4801
        %v8002 = vpack.c.b16 %v4834, %v4802
        %v8003 = vpack.c.b16 %v4835, %v4803
        %v8004 = vpack.c.b16 %v4836, %v4804
        %v8005 = vpack.c.b16 %v4837, %v4805
        %v8006 = vpack.c.b16 %v4838, %v4806
        %v8007 = vpack.c.b16 %v4839, %v4807
        %v8008 = vpack.c.b16 %v4840, %v4808
        %v8009 = vpack.c.b16 %v4841, %v4809
        %v8010 = vpack.c.b16 %v4842, %v4810
        %v8011 = vpack.c.b16 %v4843, %v4811
        %v8012 = vpack.c.b16 %v4844, %v4812
        %v8013 = vpack.c.b16 %v4845, %v4813
        %v8014 = vpack.c.b16 %v4846, %v4814
        %v8015 = vpack.c.b16 %v4847, %v4815
        %v8016 = vpack.c.b16 %v4848, %v4816
        %v8017 = vpack.c.b16 %v4849, %v4817
        %v8018 = vpack.c.b16 %v4850, %v4818
        %v8019 = vpack.c.b16 %v4851, %v4819
        %v8020 = vpack.c.b16 %v4852, %v4820
        %v8021 = vpack.c.b16 %v4853, %v4821
        %v8022 = vpack.c.b16 %v4886, %v4854
        %v8023 = vpack.c.b16 %v4887, %v4855
        %v8024 = vpack.c.b16 %v4888, %v4856
        %v8025 = vpack.c.b16 %v4889, %v4857
        %v8026 = vpack.c.b16 %v4890, %v4858
        %v8027 = vpack.c.b16 %v4891, %v4859
        %v8028 = vpack.c.b16 %v4892, %v4860
        %v8029 = vpack.c.b16 %v4893, %v4861
        %v8030 = vpack.c.b16 %v4894, %v4862
        %v8031 = vpack.c.b16 %v4895, %v4863
        %v8032 = vpack.c.b16 %v4896, %v4864
        %v8033 = vpack.c.b16 %v4897, %v4865
        %v8034 = vpack.c.b16 %v4898, %v4866
        %v8035 = vpack.c.b16 %v4899, %v4867
        %v8036 = vpack.c.b16 %v4900, %v4868
        %v8037 = vpack.c.b16 %v4901, %v4869
        %v8038 = vpack.c.b16 %v4902, %v4870
        %v8039 = vpack.c.b16 %v4903, %v4871
        %v8040 = vpack.c.b16 %v4904, %v4872
        %v8041 = vpack.c.b16 %v4905, %v4873
        %v8042 = vpack.c.b16 %v4906, %v4874
        %v8043 = vpack.c.b16 %v4907, %v4875
        %v8044 = vpack.c.b16 %v4908, %v4876
        %v8045 = vpack.c.b16 %v4909, %v4877
        %v8046 = vpack.c.b16 %v4910, %v4878
        %v8047 = vpack.c.b16 %v4911, %v4879
        %v8048 = vpack.c.b16 %v4912, %v4880
        %v8049 = vpack.c.b16 %v4913, %v4881
        %v8050 = vpack.c.b16 %v4914, %v4882
        %v8051 = vpack.c.b16 %v4915, %v4883
        %v8052 = vpack.c.b16 %v4916, %v4884
        %v8053 = vpack.c.b16 %v4917, %v4885
        %v8054 = vpack.c.b16 %v4950, %v4918
        %v8055 = vpack.c.b16 %v4951, %v4919
        %v8056 = vpack.c.b16 %v4952, %v4920
        %v8057 = vpack.c.b16 %v4953, %v4921
        %v8058 = vpack.c.b16 %v4954, %v4922
        %v8059 = vpack.c.b16 %v4955, %v4923
        %v8060 = vpack.c.b16 %v4956, %v4924
        %v8061 = vpack.c.b16 %v4957, %v4925
        %v8062 = vpack.c.b16 %v4958, %v4926
        %v8063 = vpack.c.b16 %v4959, %v4927
        %v8064 = vpack.c.b16 %v4960, %v4928
        %v8065 = vpack.c.b16 %v4961, %v4929
        %v8066 = vpack.c.b16 %v4962, %v4930
        %v8067 = vpack.c.b16 %v4963, %v4931
        %v8068 = vpack.c.b16 %v4964, %v4932
        %v8069 = vpack.c.b16 %v4965, %v4933
        %v8070 = vpack.c.b16 %v4966, %v4934
        %v8071 = vpack.c.b16 %v4967, %v4935
        %v8072 = vpack.c.b16 %v4968, %v4936
        %v8073 = vpack.c.b16 %v4969, %v4937
        %v8074 = vpack.c.b16 %v4970, %v4938
        %v8075 = vpack.c.b16 %v4971, %v4939
        %v8076 = vpack.c.b16 %v4972, %v4940
        %v8077 = vpack.c.b16 %v4973, %v4941
        %v8078 = vpack.c.b16 %v4974, %v4942
        %v8079 = vpack.c.b16 %v4975, %v4943
        %v8080 = vpack.c.b16 %v4976, %v4944
        %v8081 = vpack.c.b16 %v4977, %v4945
        %v8082 = vpack.c.b16 %v4978, %v4946
        %v8083 = vpack.c.b16 %v4979, %v4947
        %v8084 = vpack.c.b16 %v4980, %v4948
        %v8085 = vpack.c.b16 %v4981, %v4949
        %v8086 = vpack.c.b16 %v5014, %v4982
        %v8087 = vpack.c.b16 %v5015, %v4983
        %v8088 = vpack.c.b16 %v5016, %v4984
        %v8089 = vpack.c.b16 %v5017, %v4985
        %v8090 = vpack.c.b16 %v5018, %v4986
        %v8091 = vpack.c.b16 %v5019, %v4987
        %v8092 = vpack.c.b16 %v5020, %v4988
        %v8093 = vpack.c.b16 %v5021, %v4989
        %v8094 = vpack.c.b16 %v5022, %v4990
        %v8095 = vpack.c.b16 %v5023, %v4991
        %v8096 = vpack.c.b16 %v5024, %v4992
        %v8097 = vpack.c.b16 %v5025, %v4993
        %v8098 = vpack.c.b16 %v5026, %v4994
        %v8099 = vpack.c.b16 %v5027, %v4995
        %v8100 = vpack.c.b16 %v5028, %v4996
        %v8101 = vpack.c.b16 %v5029, %v4997
        %v8102 = vpack.c.b16 %v5030, %v4998
        %v8103 = vpack.c.b16 %v5031, %v4999
        %v8104 = vpack.c.b16 %v5032, %v5000
        %v8105 = vpack.c.b16 %v5033, %v5001
        %v8106 = vpack.c.b16 %v5034, %v5002
        %v8107 = vpack.c.b16 %v5035, %v5003
        %v8108 = vpack.c.b16 %v5036, %v5004
        %v8109 = vpack.c.b16 %v5037, %v5005
        %v8110 = vpack.c.b16 %v5038, %v5006
        %v8111 = vpack.c.b16 %v5039, %v5007
        %v8112 = vpack.c.b16 %v5040, %v5008
        %v8113 = vpack.c.b16 %v5041, %v5009
        %v8114 = vpack.c.b16 %v5042, %v5010
        %v8115 = vpack.c.b16 %v5043, %v5011
        %v8116 = vpack.c.b16 %v5044, %v5012
        %v8117 = vpack.c.b16 %v5045, %v5013
        %v8118 = vpack.c.b16 %v5078, %v5046
        %v8119 = vpack.c.b16 %v5079, %v5047
        %v8120 = vpack.c.b16 %v5080, %v5048
        %v8121 = vpack.c.b16 %v5081, %v5049
        %v8122 = vpack.c.b16 %v5082, %v5050
        %v8123 = vpack.c.b16 %v5083, %v5051
        %v8124 = vpack.c.b16 %v5084, %v5052
        %v8125 = vpack.c.b16 %v5085, %v5053
        %v8126 = vpack.c.b16 %v5086, %v5054
        %v8127 = vpack.c.b16 %v5087, %v5055
        %v8128 = vpack.c.b16 %v5088, %v5056
        %v8129 = vpack.c.b16 %v5089, %v5057
        %v8130 = vpack.c.b16 %v5090, %v5058
        %v8131 = vpack.c.b16 %v5091, %v5059
        %v8132 = vpack.c.b16 %v5092, %v5060
        %v8133 = vpack.c.b16 %v5093, %v5061
        %v8134 = vpack.c.b16 %v5094, %v5062
        %v8135 = vpack.c.b16 %v5095, %v5063
        %v8136 = vpack.c.b16 %v5096, %v5064
        %v8137 = vpack.c.b16 %v5097, %v5065
        %v8138 = vpack.c.b16 %v5098, %v5066
        %v8139 = vpack.c.b16 %v5099, %v5067
        %v8140 = vpack.c.b16 %v5100, %v5068
        %v8141 = vpack.c.b16 %v5101, %v5069
        %v8142 = vpack.c.b16 %v5102, %v5070
        %v8143 = vpack.c.b16 %v5103, %v5071
        %v8144 = vpack.c.b16 %v5104, %v5072
        %v8145 = vpack.c.b16 %v5105, %v5073
        %v8146 = vpack.c.b16 %v5106, %v5074
        %v8147 = vpack.c.b16 %v5107, %v5075
        %v8148 = vpack.c.b16 %v5108, %v5076
        %v8149 = vpack.c.b16 %v5109, %v5077
        %v8150 = vpack.c.b16 %v5142, %v5110
        %v8151 = vpack.c.b16 %v5143, %v5111
        %v8152 = vpack.c.b16 %v5144, %v5112
        %v8153 = vpack.c.b16 %v5145, %v5113
        %v8154 = vpack.c.b16 %v5146, %v5114
        %v8155 = vpack.c.b16 %v5147, %v5115
        %v8156 = vpack.c.b16 %v5148, %v5116
        %v8157 = vpack.c.b16 %v5149, %v5117
        %v8158 = vpack.c.b16 %v5150, %v5118
        %v8159 = vpack.c.b16 %v5151, %v5119
        %v8160 = vpack.c.b16 %v5152, %v5120
        %v8161 = vpack.c.b16 %v5153, %v5121
        %v8162 = vpack.c.b16 %v5154, %v5122
        %v8163 = vpack.c.b16 %v5155, %v5123
        %v8164 = vpack.c.b16 %v5156, %v5124
        %v8165 = vpack.c.b16 %v5157, %v5125
        %v8166 = vpack.c.b16 %v5158, %v5126
        %v8167 = vpack.c.b16 %v5159, %v5127
        %v8168 = vpack.c.b16 %v5160, %v5128
        %v8169 = vpack.c.b16 %v5161, %v5129
        %v8170 = vpack.c.b16 %v5162, %v5130
        %v8171 = vpack.c.b16 %v5163, %v5131
        %v8172 = vpack.c.b16 %v5164, %v5132
        %v8173 = vpack.c.b16 %v5165, %v5133
        %v8174 = vpack.c.b16 %v5166, %v5134
        %v8175 = vpack.c.b16 %v5167, %v5135
        %v8176 = vpack.c.b16 %v5168, %v5136
        %v8177 = vpack.c.b16 %v5169, %v5137
        %v8178 = vpack.c.b16 %v5170, %v5138
        %v8179 = vpack.c.b16 %v5171, %v5139
        %v8180 = vpack.c.b16 %v5172, %v5140
        %v8181 = vpack.c.b16 %v5173, %v5141
        %v8182 = vpack.c.b16 %v5206, %v5174
        %v8183 = vpack.c.b16 %v5207, %v5175
        %v8184 = vpack.c.b16 %v5208, %v5176
        %v8185 = vpack.c.b16 %v5209, %v5177
        %v8186 = vpack.c.b16 %v5210, %v5178
        %v8187 = vpack.c.b16 %v5211, %v5179
        %v8188 = vpack.c.b16 %v5212, %v5180
        %v8189 = vpack.c.b16 %v5213, %v5181
        %v8190 = vpack.c.b16 %v5214, %v5182
        %v8191 = vpack.c.b16 %v5215, %v5183
        %v8192 = vpack.c.b16 %v5216, %v5184
        %v8193 = vpack.c.b16 %v5217, %v5185
        %v8194 = vpack.c.b16 %v5218, %v5186
        %v8195 = vpack.c.b16 %v5219, %v5187
        %v8196 = vpack.c.b16 %v5220, %v5188
        %v8197 = vpack.c.b16 %v5221, %v5189
        %v8198 = vpack.c.b16 %v5222, %v5190
        %v8199 = vpack.c.b16 %v5223, %v5191
        %v8200 = vpack.c.b16 %v5224, %v5192
        %v8201 = vpack.c.b16 %v5225, %v5193
        %v8202 = vpack.c.b16 %v5226, %v5194
        %v8203 = vpack.c.b16 %v5227, %v5195
        %v8204 = vpack.c.b16 %v5228, %v5196
        %v8205 = vpack.c.b16 %v5229, %v5197
        %v8206 = vpack.c.b16 %v5230, %v5198
        %v8207 = vpack.c.b16 %v5231, %v5199
        %v8208 = vpack.c.b16 %v5232, %v5200
        %v8209 = vpack.c.b16 %v5233, %v5201
        %v8210 = vpack.c.b16 %v5234, %v5202
        %v8211 = vpack.c.b16 %v5235, %v5203
        %v8212 = vpack.c.b16 %v5236, %v5204
        %v8213 = vpack.c.b16 %v5237, %v5205
        %v8214 = vpack.c.b16 %v5270, %v5238
        %v8215 = vpack.c.b16 %v5271, %v5239
        %v8216 = vpack.c.b16 %v5272, %v5240
        %v8217 = vpack.c.b16 %v5273, %v5241
        %v8218 = vpack.c.b16 %v5274, %v5242
        %v8219 = vpack.c.b16 %v5275, %v5243
        %v8220 = vpack.c.b16 %v5276, %v5244
        %v8221 = vpack.c.b16 %v5277, %v5245
        %v8222 = vpack.c.b16 %v5278, %v5246
        %v8223 = vpack.c.b16 %v5279, %v5247
        %v8224 = vpack.c.b16 %v5280, %v5248
        %v8225 = vpack.c.b16 %v5281, %v5249
        %v8226 = vpack.c.b16 %v5282, %v5250
        %v8227 = vpack.c.b16 %v5283, %v5251
        %v8228 = vpack.c.b16 %v5284, %v5252
        %v8229 = vpack.c.b16 %v5285, %v5253
        %v8230 = vpack.c.b16 %v5286, %v5254
        %v8231 = vpack.c.b16 %v5287, %v5255
        %v8232 = vpack.c.b16 %v5288, %v5256
        %v8233 = vpack.c.b16 %v5289, %v5257
        %v8234 = vpack.c.b16 %v5290, %v5258
        %v8235 = vpack.c.b16 %v5291, %v5259
        %v8236 = vpack.c.b16 %v5292, %v5260
        %v8237 = vpack.c.b16 %v5293, %v5261
        %v8238 = vpack.c.b16 %v5294, %v5262
        %v8239 = vpack.c.b16 %v5295, %v5263
        %v8240 = vpack.c.b16 %v5296, %v5264
        %v8241 = vpack.c.b16 %v5297, %v5265
        %v8242 = vpack.c.b16 %v5298, %v5266
        %v8243 = vpack.c.b16 %v5299, %v5267
        %v8244 = vpack.c.b16 %v5300, %v5268
        %v8245 = vpack.c.b16 %v5301, %v5269
        %v8246 = vpack.c.b16 %v5334, %v5302
        %v8247 = vpack.c.b16 %v5335, %v5303
        %v8248 = vpack.c.b16 %v5336, %v5304
        %v8249 = vpack.c.b16 %v5337, %v5305
        %v8250 = vpack.c.b16 %v5338, %v5306
        %v8251 = vpack.c.b16 %v5339, %v5307
        %v8252 = vpack.c.b16 %v5340, %v5308
        %v8253 = vpack.c.b16 %v5341, %v5309
        %v8254 = vpack.c.b16 %v5342, %v5310
        %v8255 = vpack.c.b16 %v5343, %v5311
        %v8256 = vpack.c.b16 %v5344, %v5312
        %v8257 = vpack.c.b16 %v5345, %v5313
        %v8258 = vpack.c.b16 %v5346, %v5314
        %v8259 = vpack.c.b16 %v5347, %v5315
        %v8260 = vpack.c.b16 %v5348, %v5316
        %v8261 = vpack.c.b16 %v5349, %v5317
        %v8262 = vpack.c.b16 %v5350, %v5318
        %v8263 = vpack.c.b16 %v5351, %v5319
        %v8264 = vpack.c.b16 %v5352, %v5320
        %v8265 = vpack.c.b16 %v5353, %v5321
        %v8266 = vpack.c.b16 %v5354, %v5322
        %v8267 = vpack.c.b16 %v5355, %v5323
        %v8268 = vpack.c.b16 %v5356, %v5324
        %v8269 = vpack.c.b16 %v5357, %v5325
        %v8270 = vpack.c.b16 %v5358, %v5326
        %v8271 = vpack.c.b16 %v5359, %v5327
        %v8272 = vpack.c.b16 %v5360, %v5328
        %v8273 = vpack.c.b16 %v5361, %v5329
        %v8274 = vpack.c.b16 %v5362, %v5330
        %v8275 = vpack.c.b16 %v5363, %v5331
        %v8276 = vpack.c.b16 %v5364, %v5332
        %v8277 = vpack.c.b16 %v5365, %v5333
        %v8278 = vpack.c.b16 %v5398, %v5366
        %v8279 = vpack.c.b16 %v5399, %v5367
        %v8280 = vpack.c.b16 %v5400, %v5368
        %v8281 = vpack.c.b16 %v5401, %v5369
        %v8282 = vpack.c.b16 %v5402, %v5370
        %v8283 = vpack.c.b16 %v5403, %v5371
        %v8284 = vpack.c.b16 %v5404, %v5372
        %v8285 = vpack.c.b16 %v5405, %v5373
        %v8286 = vpack.c.b16 %v5406, %v5374
        %v8287 = vpack.c.b16 %v5407, %v5375
        %v8288 = vpack.c.b16 %v5408, %v5376
        %v8289 = vpack.c.b16 %v5409, %v5377
        %v8290 = vpack.c.b16 %v5410, %v5378
        %v8291 = vpack.c.b16 %v5411, %v5379
        %v8292 = vpack.c.b16 %v5412, %v5380
        %v8293 = vpack.c.b16 %v5413, %v5381
        %v8294 = vpack.c.b16 %v5414, %v5382
        %v8295 = vpack.c.b16 %v5415, %v5383
        %v8296 = vpack.c.b16 %v5416, %v5384
        %v8297 = vpack.c.b16 %v5417, %v5385
        %v8298 = vpack.c.b16 %v5418, %v5386
        %v8299 = vpack.c.b16 %v5419, %v5387
        %v8300 = vpack.c.b16 %v5420, %v5388
        %v8301 = vpack.c.b16 %v5421, %v5389
        %v8302 = vpack.c.b16 %v5422, %v5390
        %v8303 = vpack.c.b16 %v5423, %v5391
        %v8304 = vpack.c.b16 %v5424, %v5392
        %v8305 = vpack.c.b16 %v5425, %v5393
        %v8306 = vpack.c.b16 %v5426, %v5394
        %v8307 = vpack.c.b16 %v5427, %v5395
        %v8308 = vpack.c.b16 %v5428, %v5396
        %v8309 = vpack.c.b16 %v5429, %v5397
        %v8310 = vpack.c.b16 %v5462, %v5430
        %v8311 = vpack.c.b16 %v5463, %v5431
        %v8312 = vpack.c.b16 %v5464, %v5432
        %v8313 = vpack.c.b16 %v5465, %v5433
        %v8314 = vpack.c.b16 %v5466, %v5434
        %v8315 = vpack.c.b16 %v5467, %v5435
        %v8316 = vpack.c.b16 %v5468, %v5436
        %v8317 = vpack.c.b16 %v5469, %v5437
        %v8318 = vpack.c.b16 %v5470, %v5438
        %v8319 = vpack.c.b16 %v5471, %v5439
        %v8320 = vpack.c.b16 %v5472, %v5440
        %v8321 = vpack.c.b16 %v5473, %v5441
        %v8322 = vpack.c.b16 %v5474, %v5442
        %v8323 = vpack.c.b16 %v5475, %v5443
        %v8324 = vpack.c.b16 %v5476, %v5444
        %v8325 = vpack.c.b16 %v5477, %v5445
        %v8326 = vpack.c.b16 %v5478, %v5446
        %v8327 = vpack.c.b16 %v5479, %v5447
        %v8328 = vpack.c.b16 %v5480, %v5448
        %v8329 = vpack.c.b16 %v5481, %v5449
        %v8330 = vpack.c.b16 %v5482, %v5450
        %v8331 = vpack.c.b16 %v5483, %v5451
        %v8332 = vpack.c.b16 %v5484, %v5452
        %v8333 = vpack.c.b16 %v5485, %v5453
        %v8334 = vpack.c.b16 %v5486, %v5454
        %v8335 = vpack.c.b16 %v5487, %v5455
        %v8336 = vpack.c.b16 %v5488, %v5456
        %v8337 = vpack.c.b16 %v5489, %v5457
        %v8338 = vpack.c.b16 %v5490, %v5458
        %v8339 = vpack.c.b16 %v5491, %v5459
        %v8340 = vpack.c.b16 %v5492, %v5460
        %v8341 = vpack.c.b16 %v5493, %v5461
        %v8342 = vpack.c.b16 %v5526, %v5494
        %v8343 = vpack.c.b16 %v5527, %v5495
        %v8344 = vpack.c.b16 %v5528, %v5496
        %v8345 = vpack.c.b16 %v5529, %v5497
        %v8346 = vpack.c.b16 %v5530, %v5498
        %v8347 = vpack.c.b16 %v5531, %v5499
        %v8348 = vpack.c.b16 %v5532, %v5500
        %v8349 = vpack.c.b16 %v5533, %v5501
        %v8350 = vpack.c.b16 %v5534, %v5502
        %v8351 = vpack.c.b16 %v5535, %v5503
        %v8352 = vpack.c.b16 %v5536, %v5504
        %v8353 = vpack.c.b16 %v5537, %v5505
        %v8354 = vpack.c.b16 %v5538, %v5506
        %v8355 = vpack.c.b16 %v5539, %v5507
        %v8356 = vpack.c.b16 %v5540, %v5508
        %v8357 = vpack.c.b16 %v5541, %v5509
        %v8358 = vpack.c.b16 %v5542, %v5510
        %v8359 = vpack.c.b16 %v5543, %v5511
        %v8360 = vpack.c.b16 %v5544, %v5512
        %v8361 = vpack.c.b16 %v5545, %v5513
        %v8362 = vpack.c.b16 %v5546, %v5514
        %v8363 = vpack.c.b16 %v5547, %v5515
        %v8364 = vpack.c.b16 %v5548, %v5516
        %v8365 = vpack.c.b16 %v5549, %v5517
        %v8366 = vpack.c.b16 %v5550, %v5518
        %v8367 = vpack.c.b16 %v5551, %v5519
        %v8368 = vpack.c.b16 %v5552, %v5520
        %v8369 = vpack.c.b16 %v5553, %v5521
        %v8370 = vpack.c.b16 %v5554, %v5522
        %v8371 = vpack.c.b16 %v5555, %v5523
        %v8372 = vpack.c.b16 %v5556, %v5524
        %v8373 = vpack.c.b16 %v5557, %v5525
        %v8374 = vpack.c.b16 %v5590, %v5558
        %v8375 = vpack.c.b16 %v5591, %v5559
        %v8376 = vpack.c.b16 %v5592, %v5560
        %v8377 = vpack.c.b16 %v5593, %v5561
        %v8378 = vpack.c.b16 %v5594, %v5562
        %v8379 = vpack.c.b16 %v5595, %v5563
        %v8380 = vpack.c.b16 %v5596, %v5564
        %v8381 = vpack.c.b16 %v5597, %v5565
        %v8382 = vpack.c.b16 %v5598, %v5566
        %v8383 = vpack.c.b16 %v5599, %v5567
        %v8384 = vpack.c.b16 %v5600, %v5568
        %v8385 = vpack.c.b16 %v5601, %v5569
        %v8386 = vpack.c.b16 %v5602, %v5570
        %v8387 = vpack.c.b16 %v5603, %v5571
        %v8388 = vpack.c.b16 %v5604, %v5572
        %v8389 = vpack.c.b16 %v5605, %v5573
        %v8390 = vpack.c.b16 %v5606, %v5574
        %v8391 = vpack.c.b16 %v5607, %v5575
        %v8392 = vpack.c.b16 %v5608, %v5576
        %v8393 = vpack.c.b16 %v5609, %v5577
        %v8394 = vpack.c.b16 %v5610, %v5578
        %v8395 = vpack.c.b16 %v5611, %v5579
        %v8396 = vpack.c.b16 %v5612, %v5580
        %v8397 = vpack.c.b16 %v5613, %v5581
        %v8398 = vpack.c.b16 %v5614, %v5582
        %v8399 = vpack.c.b16 %v5615, %v5583
        %v8400 = vpack.c.b16 %v5616, %v5584
        %v8401 = vpack.c.b16 %v5617, %v5585
        %v8402 = vpack.c.b16 %v5618, %v5586
        %v8403 = vpack.c.b16 %v5619, %v5587
        %v8404 = vpack.c.b16 %v5620, %v5588
        %v8405 = vpack.c.b16 %v5621, %v5589
        %v8406 = vpack.c.b16 %v5654, %v5622
        %v8407 = vpack.c.b16 %v5655, %v5623
        %v8408 = vpack.c.b16 %v5656, %v5624
        %v8409 = vpack.c.b16 %v5657, %v5625
        %v8410 = vpack.c.b16 %v5658, %v5626
        %v8411 = vpack.c.b16 %v5659, %v5627
        %v8412 = vpack.c.b16 %v5660, %v5628
        %v8413 = vpack.c.b16 %v5661, %v5629
        %v8414 = vpack.c.b16 %v5662, %v5630
        %v8415 = vpack.c.b16 %v5663, %v5631
        %v8416 = vpack.c.b16 %v5664, %v5632
        %v8417 = vpack.c.b16 %v5665, %v5633
        %v8418 = vpack.c.b16 %v5666, %v5634
        %v8419 = vpack.c.b16 %v5667, %v5635
        %v8420 = vpack.c.b16 %v5668, %v5636
        %v8421 = vpack.c.b16 %v5669, %v5637
        %v8422 = vpack.c.b16 %v5670, %v5638
        %v8423 = vpack.c.b16 %v5671, %v5639
        %v8424 = vpack.c.b16 %v5672, %v5640
        %v8425 = vpack.c.b16 %v5673, %v5641
        %v8426 = vpack.c.b16 %v5674, %v5642
        %v8427 = vpack.c.b16 %v5675, %v5643
        %v8428 = vpack.c.b16 %v5676, %v5644
        %v8429 = vpack.c.b16 %v5677, %v5645
        %v8430 = vpack.c.b16 %v5678, %v5646
        %v8431 = vpack.c.b16 %v5679, %v5647
        %v8432 = vpack.c.b16 %v5680, %v5648
        %v8433 = vpack.c.b16 %v5681, %v5649
        %v8434 = vpack.c.b16 %v5682, %v5650
        %v8435 = vpack.c.b16 %v5683, %v5651
        %v8436 = vpack.c.b16 %v5684, %v5652
        %v8437 = vpack.c.b16 %v5685, %v5653
        %v8438 = vpack.c.b16 %v5718, %v5686
        %v8439 = vpack.c.b16 %v5719, %v5687
        %v8440 = vpack.c.b16 %v5720, %v5688
        %v8441 = vpack.c.b16 %v5721, %v5689
        %v8442 = vpack.c.b16 %v5722, %v5690
        %v8443 = vpack.c.b16 %v5723, %v5691
        %v8444 = vpack.c.b16 %v5724, %v5692
        %v8445 = vpack.c.b16 %v5725, %v5693
        %v8446 = vpack.c.b16 %v5726, %v5694
        %v8447 = vpack.c.b16 %v5727, %v5695
        %v8448 = vpack.c.b16 %v5728, %v5696
        %v8449 = vpack.c.b16 %v5729, %v5697
        %v8450 = vpack.c.b16 %v5730, %v5698
        %v8451 = vpack.c.b16 %v5731, %v5699
        %v8452 = vpack.c.b16 %v5732, %v5700
        %v8453 = vpack.c.b16 %v5733, %v5701
        %v8454 = vpack.c.b16 %v5734, %v5702
        %v8455 = vpack.c.b16 %v5735, %v5703
        %v8456 = vpack.c.b16 %v5736, %v5704
        %v8457 = vpack.c.b16 %v5737, %v5705
        %v8458 = vpack.c.b16 %v5738, %v5706
        %v8459 = vpack.c.b16 %v5739, %v5707
        %v8460 = vpack.c.b16 %v5740, %v5708
        %v8461 = vpack.c.b16 %v5741, %v5709
        %v8462 = vpack.c.b16 %v5742, %v5710
        %v8463 = vpack.c.b16 %v5743, %v5711
        %v8464 = vpack.c.b16 %v5744, %v5712
        %v8465 = vpack.c.b16 %v5745, %v5713
        %v8466 = vpack.c.b16 %v5746, %v5714
        %v8467 = vpack.c.b16 %v5747, %v5715
        %v8468 = vpack.c.b16 %v5748, %v5716
        %v8469 = vpack.c.b16 %v5749, %v5717
        %v8470 = vpack.c.b16 %v5782, %v5750
        %v8471 = vpack.c.b16 %v5783, %v5751
        %v8472 = vpack.c.b16 %v5784, %v5752
        %v8473 = vpack.c.b16 %v5785, %v5753
        %v8474 = vpack.c.b16 %v5786, %v5754
        %v8475 = vpack.c.b16 %v5787, %v5755
        %v8476 = vpack.c.b16 %v5788, %v5756
        %v8477 = vpack.c.b16 %v5789, %v5757
        %v8478 = vpack.c.b16 %v5790, %v5758
        %v8479 = vpack.c.b16 %v5791, %v5759
        %v8480 = vpack.c.b16 %v5792, %v5760
        %v8481 = vpack.c.b16 %v5793, %v5761
        %v8482 = vpack.c.b16 %v5794, %v5762
        %v8483 = vpack.c.b16 %v5795, %v5763
        %v8484 = vpack.c.b16 %v5796, %v5764
        %v8485 = vpack.c.b16 %v5797, %v5765
        %v8486 = vpack.c.b16 %v5798, %v5766
        %v8487 = vpack.c.b16 %v5799, %v5767
        %v8488 = vpack.c.b16 %v5800, %v5768
        %v8489 = vpack.c.b16 %v5801, %v5769
        %v8490 = vpack.c.b16 %v5802, %v5770
        %v8491 = vpack.c.b16 %v5803, %v5771
        %v8492 = vpack.c.b16 %v5804, %v5772
        %v8493 = vpack.c.b16 %v5805, %v5773
        %v8494 = vpack.c.b16 %v5806, %v5774
        %v8495 = vpack.c.b16 %v5807, %v5775
        %v8496 = vpack.c.b16 %v5808, %v5776
        %v8497 = vpack.c.b16 %v5809, %v5777
        %v8498 = vpack.c.b16 %v5810, %v5778
        %v8499 = vpack.c.b16 %v5811, %v5779
        %v8500 = vpack.c.b16 %v5812, %v5780
        %v8501 = vpack.c.b16 %v5813, %v5781
        %v8502 = vpack.c.b16 %v5846, %v5814
        %v8503 = vpack.c.b16 %v5847, %v5815
        %v8504 = vpack.c.b16 %v5848, %v5816
        %v8505 = vpack.c.b16 %v5849, %v5817
        %v8506 = vpack.c.b16 %v5850, %v5818
        %v8507 = vpack.c.b16 %v5851, %v5819
        %v8508 = vpack.c.b16 %v5852, %v5820
        %v8509 = vpack.c.b16 %v5853, %v5821
        %v8510 = vpack.c.b16 %v5854, %v5822
        %v8511 = vpack.c.b16 %v5855, %v5823
        %v8512 = vpack.c.b16 %v5856, %v5824
        %v8513 = vpack.c.b16 %v5857, %v5825
        %v8514 = vpack.c.b16 %v5858, %v5826
        %v8515 = vpack.c.b16 %v5859, %v5827
        %v8516 = vpack.c.b16 %v5860, %v5828
        %v8517 = vpack.c.b16 %v5861, %v5829
        %v8518 = vpack.c.b16 %v5862, %v5830
        %v8519 = vpack.c.b16 %v5863, %v5831
        %v8520 = vpack.c.b16 %v5864, %v5832
        %v8521 = vpack.c.b16 %v5865, %v5833
        %v8522 = vpack.c.b16 %v5866, %v5834
        %v8523 = vpack.c.b16 %v5867, %v5835
        %v8524 = vpack.c.b16 %v5868, %v5836
        %v8525 = vpack.c.b16 %v5869, %v5837
        %v8526 = vpack.c.b16 %v5870, %v5838
        %v8527 = vpack.c.b16 %v5871, %v5839
        %v8528 = vpack.c.b16 %v5872, %v5840
        %v8529 = vpack.c.b16 %v5873, %v5841
        %v8530 = vpack.c.b16 %v5874, %v5842
        %v8531 = vpack.c.b16 %v5875, %v5843
        %v8532 = vpack.c.b16 %v5876, %v5844
        %v8533 = vpack.c.b16 %v5877, %v5845
        %v8534 = vpack.c.b16 %v5910, %v5878
        %v8535 = vpack.c.b16 %v5911, %v5879
        %v8536 = vpack.c.b16 %v5912, %v5880
        %v8537 = vpack.c.b16 %v5913, %v5881
        %v8538 = vpack.c.b16 %v5914, %v5882
        %v8539 = vpack.c.b16 %v5915, %v5883
        %v8540 = vpack.c.b16 %v5916, %v5884
        %v8541 = vpack.c.b16 %v5917, %v5885
        %v8542 = vpack.c.b16 %v5918, %v5886
        %v8543 = vpack.c.b16 %v5919, %v5887
        %v8544 = vpack.c.b16 %v5920, %v5888
        %v8545 = vpack.c.b16 %v5921, %v5889
        %v8546 = vpack.c.b16 %v5922, %v5890
        %v8547 = vpack.c.b16 %v5923, %v5891
        %v8548 = vpack.c.b16 %v5924, %v5892
        %v8549 = vpack.c.b16 %v5925, %v5893
        %v8550 = vpack.c.b16 %v5926, %v5894
        %v8551 = vpack.c.b16 %v5927, %v5895
        %v8552 = vpack.c.b16 %v5928, %v5896
        %v8553 = vpack.c.b16 %v5929, %v5897
        %v8554 = vpack.c.b16 %v5930, %v5898
        %v8555 = vpack.c.b16 %v5931, %v5899
        %v8556 = vpack.c.b16 %v5932, %v5900
        %v8557 = vpack.c.b16 %v5933, %v5901
        %v8558 = vpack.c.b16 %v5934, %v5902
        %v8559 = vpack.c.b16 %v5935, %v5903
        %v8560 = vpack.c.b16 %v5936, %v5904
        %v8561 = vpack.c.b16 %v5937, %v5905
        %v8562 = vpack.c.b16 %v5938, %v5906
        %v8563 = vpack.c.b16 %v5939, %v5907
        %v8564 = vpack.c.b16 %v5940, %v5908
        %v8565 = vpack.c.b16 %v5941, %v5909
        %v8566 = vpack.c.b16 %v5974, %v5942
        %v8567 = vpack.c.b16 %v5975, %v5943
        %v8568 = vpack.c.b16 %v5976, %v5944
        %v8569 = vpack.c.b16 %v5977, %v5945
        %v8570 = vpack.c.b16 %v5978, %v5946
        %v8571 = vpack.c.b16 %v5979, %v5947
        %v8572 = vpack.c.b16 %v5980, %v5948
        %v8573 = vpack.c.b16 %v5981, %v5949
        %v8574 = vpack.c.b16 %v5982, %v5950
        %v8575 = vpack.c.b16 %v5983, %v5951
        %v8576 = vpack.c.b16 %v5984, %v5952
        %v8577 = vpack.c.b16 %v5985, %v5953
        %v8578 = vpack.c.b16 %v5986, %v5954
        %v8579 = vpack.c.b16 %v5987, %v5955
        %v8580 = vpack.c.b16 %v5988, %v5956
        %v8581 = vpack.c.b16 %v5989, %v5957
        %v8582 = vpack.c.b16 %v5990, %v5958
        %v8583 = vpack.c.b16 %v5991, %v5959
        %v8584 = vpack.c.b16 %v5992, %v5960
        %v8585 = vpack.c.b16 %v5993, %v5961
        %v8586 = vpack.c.b16 %v5994, %v5962
        %v8587 = vpack.c.b16 %v5995, %v5963
        %v8588 = vpack.c.b16 %v5996, %v5964
        %v8589 = vpack.c.b16 %v5997, %v5965
        %v8590 = vpack.c.b16 %v5998, %v5966
        %v8591 = vpack.c.b16 %v5999, %v5967
        %v8592 = vpack.c.b16 %v6000, %v5968
        %v8593 = vpack.c.b16 %v6001, %v5969
        %v8594 = vpack.c.b16 %v6002, %v5970
        %v8595 = vpack.c.b16 %v6003, %v5971
        %v8596 = vpack.c.b16 %v6004, %v5972
        %v8597 = vpack.c.b16 %v6005, %v5973
        %v8598 = vpack.c.b16 %v6038, %v6006
        %v8599 = vpack.c.b16 %v6039, %v6007
        %v8600 = vpack.c.b16 %v6040, %v6008
        %v8601 = vpack.c.b16 %v6041, %v6009
        %v8602 = vpack.c.b16 %v6042, %v6010
        %v8603 = vpack.c.b16 %v6043, %v6011
        %v8604 = vpack.c.b16 %v6044, %v6012
        %v8605 = vpack.c.b16 %v6045, %v6013
        %v8606 = vpack.c.b16 %v6046, %v6014
        %v8607 = vpack.c.b16 %v6047, %v6015
        %v8608 = vpack.c.b16 %v6048, %v6016
        %v8609 = vpack.c.b16 %v6049, %v6017
        %v8610 = vpack.c.b16 %v6050, %v6018
        %v8611 = vpack.c.b16 %v6051, %v6019
        %v8612 = vpack.c.b16 %v6052, %v6020
        %v8613 = vpack.c.b16 %v6053, %v6021
        %v8614 = vpack.c.b16 %v6054, %v6022
        %v8615 = vpack.c.b16 %v6055, %v6023
        %v8616 = vpack.c.b16 %v6056, %v6024
        %v8617 = vpack.c.b16 %v6057, %v6025
        %v8618 = vpack.c.b16 %v6058, %v6026
        %v8619 = vpack.c.b16 %v6059, %v6027
        %v8620 = vpack.c.b16 %v6060, %v6028
        %v8621 = vpack.c.b16 %v6061, %v6029
        %v8622 = vpack.c.b16 %v6062, %v6030
        %v8623 = vpack.c.b16 %v6063, %v6031
        %v8624 = vpack.c.b16 %v6064, %v6032
        %v8625 = vpack.c.b16 %v6065, %v6033
        %v8626 = vpack.c.b16 %v6066, %v6034
        %v8627 = vpack.c.b16 %v6067, %v6035
        %v8628 = vpack.c.b16 %v6068, %v6036
        %v8629 = vpack.c.b16 %v6069, %v6037
        %v8630 = vpack.c.b16 %v6102, %v6070
        %v8631 = vpack.c.b16 %v6103, %v6071
        %v8632 = vpack.c.b16 %v6104, %v6072
        %v8633 = vpack.c.b16 %v6105, %v6073
        %v8634 = vpack.c.b16 %v6106, %v6074
        %v8635 = vpack.c.b16 %v6107, %v6075
        %v8636 = vpack.c.b16 %v6108, %v6076
        %v8637 = vpack.c.b16 %v6109, %v6077
        %v8638 = vpack.c.b16 %v6110, %v6078
        %v8639 = vpack.c.b16 %v6111, %v6079
        %v8640 = vpack.c.b16 %v6112, %v6080
        %v8641 = vpack.c.b16 %v6113, %v6081
        %v8642 = vpack.c.b16 %v6114, %v6082
        %v8643 = vpack.c.b16 %v6115, %v6083
        %v8644 = vpack.c.b16 %v6116, %v6084
        %v8645 = vpack.c.b16 %v6117, %v6085
        %v8646 = vpack.c.b16 %v6118, %v6086
        %v8647 = vpack.c.b16 %v6119, %v6087
        %v8648 = vpack.c.b16 %v6120, %v6088
        %v8649 = vpack.c.b16 %v6121, %v6089
        %v8650 = vpack.c.b16 %v6122, %v6090
        %v8651 = vpack.c.b16 %v6123, %v6091
        %v8652 = vpack.c.b16 %v6124, %v6092
        %v8653 = vpack.c.b16 %v6125, %v6093
        %v8654 = vpack.c.b16 %v6126, %v6094
        %v8655 = vpack.c.b16 %v6127, %v6095
        %v8656 = vpack.c.b16 %v6128, %v6096
        %v8657 = vpack.c.b16 %v6129, %v6097
        %v8658 = vpack.c.b16 %v6130, %v6098
        %v8659 = vpack.c.b16 %v6131, %v6099
        %v8660 = vpack.c.b16 %v6132, %v6100
        %v8661 = vpack.c.b16 %v6133, %v6101
        %v8662 = vpack.c.b16 %v6166, %v6134
        %v8663 = vpack.c.b16 %v6167, %v6135
        %v8664 = vpack.c.b16 %v6168, %v6136
        %v8665 = vpack.c.b16 %v6169, %v6137
        %v8666 = vpack.c.b16 %v6170, %v6138
        %v8667 = vpack.c.b16 %v6171, %v6139
        %v8668 = vpack.c.b16 %v6172, %v6140
        %v8669 = vpack.c.b16 %v6173, %v6141
        %v8670 = vpack.c.b16 %v6174, %v6142
        %v8671 = vpack.c.b16 %v6175, %v6143
        %v8672 = vpack.c.b16 %v6176, %v6144
        %v8673 = vpack.c.b16 %v6177, %v6145
        %v8674 = vpack.c.b16 %v6178, %v6146
        %v8675 = vpack.c.b16 %v6179, %v6147
        %v8676 = vpack.c.b16 %v6180, %v6148
        %v8677 = vpack.c.b16 %v6181, %v6149
        %v8678 = vpack.c.b16 %v6182, %v6150
        %v8679 = vpack.c.b16 %v6183, %v6151
        %v8680 = vpack.c.b16 %v6184, %v6152
        %v8681 = vpack.c.b16 %v6185, %v6153
        %v8682 = vpack.c.b16 %v6186, %v6154
        %v8683 = vpack.c.b16 %v6187, %v6155
        %v8684 = vpack.c.b16 %v6188, %v6156
        %v8685 = vpack.c.b16 %v6189, %v6157
        %v8686 = vpack.c.b16 %v6190, %v6158
        %v8687 = vpack.c.b16 %v6191, %v6159
        %v8688 = vpack.c.b16 %v6192, %v6160
        %v8689 = vpack.c.b16 %v6193, %v6161
        %v8690 = vpack.c.b16 %v6194, %v6162
        %v8691 = vpack.c.b16 %v6195, %v6163
        %v8692 = vpack.c.b16 %v6196, %v6164
        %v8693 = vpack.c.b16 %v6197, %v6165
        %v8694 = vpack.c.b16 %v6230, %v6198
        %v8695 = vpack.c.b16 %v6231, %v6199
        %v8696 = vpack.c.b16 %v6232, %v6200
        %v8697 = vpack.c.b16 %v6233, %v6201
        %v8698 = vpack.c.b16 %v6234, %v6202
        %v8699 = vpack.c.b16 %v6235, %v6203
        %v8700 = vpack.c.b16 %v6236, %v6204
        %v8701 = vpack.c.b16 %v6237, %v6205
        %v8702 = vpack.c.b16 %v6238, %v6206
        %v8703 = vpack.c.b16 %v6239, %v6207
        %v8704 = vpack.c.b16 %v6240, %v6208
        %v8705 = vpack.c.b16 %v6241, %v6209
        %v8706 = vpack.c.b16 %v6242, %v6210
        %v8707 = vpack.c.b16 %v6243, %v6211
        %v8708 = vpack.c.b16 %v6244, %v6212
        %v8709 = vpack.c.b16 %v6245, %v6213
        %v8710 = vpack.c.b16 %v6246, %v6214
        %v8711 = vpack.c.b16 %v6247, %v6215
        %v8712 = vpack.c.b16 %v6248, %v6216
        %v8713 = vpack.c.b16 %v6249, %v6217
        %v8714 = vpack.c.b16 %v6250, %v6218
        %v8715 = vpack.c.b16 %v6251, %v6219
        %v8716 = vpack.c.b16 %v6252, %v6220
        %v8717 = vpack.c.b16 %v6253, %v6221
        %v8718 = vpack.c.b16 %v6254, %v6222
        %v8719 = vpack.c.b16 %v6255, %v6223
        %v8720 = vpack.c.b16 %v6256, %v6224
        %v8721 = vpack.c.b16 %v6257, %v6225
        %v8722 = vpack.c.b16 %v6258, %v6226
        %v8723 = vpack.c.b16 %v6259, %v6227
        %v8724 = vpack.c.b16 %v6260, %v6228
        %v8725 = vpack.c.b16 %v6261, %v6229
        %v8726 = vpack.c.b16 %v6294, %v6262
        %v8727 = vpack.c.b16 %v6295, %v6263
        %v8728 = vpack.c.b16 %v6296, %v6264
        %v8729 = vpack.c.b16 %v6297, %v6265
        %v8730 = vpack.c.b16 %v6298, %v6266
        %v8731 = vpack.c.b16 %v6299, %v6267
        %v8732 = vpack.c.b16 %v6300, %v6268
        %v8733 = vpack.c.b16 %v6301, %v6269
        %v8734 = vpack.c.b16 %v6302, %v6270
        %v8735 = vpack.c.b16 %v6303, %v6271
        %v8736 = vpack.c.b16 %v6304, %v6272
        %v8737 = vpack.c.b16 %v6305, %v6273
        %v8738 = vpack.c.b16 %v6306, %v6274
        %v8739 = vpack.c.b16 %v6307, %v6275
        %v8740 = vpack.c.b16 %v6308, %v6276
        %v8741 = vpack.c.b16 %v6309, %v6277
        %v8742 = vpack.c.b16 %v6310, %v6278
        %v8743 = vpack.c.b16 %v6311, %v6279
        %v8744 = vpack.c.b16 %v6312, %v6280
        %v8745 = vpack.c.b16 %v6313, %v6281
        %v8746 = vpack.c.b16 %v6314, %v6282
        %v8747 = vpack.c.b16 %v6315, %v6283
        %v8748 = vpack.c.b16 %v6316, %v6284
        %v8749 = vpack.c.b16 %v6317, %v6285
        %v8750 = vpack.c.b16 %v6318, %v6286
        %v8751 = vpack.c.b16 %v6319, %v6287
        %v8752 = vpack.c.b16 %v6320, %v6288
        %v8753 = vpack.c.b16 %v6321, %v6289
        %v8754 = vpack.c.b16 %v6322, %v6290
        %v8755 = vpack.c.b16 %v6323, %v6291
        %v8756 = vpack.c.b16 %v6324, %v6292
        %v8757 = vpack.c.b16 %v6325, %v6293
        %v8758 = vpack.c.b16 %v6358, %v6326
        %v8759 = vpack.c.b16 %v6359, %v6327
        %v8760 = vpack.c.b16 %v6360, %v6328
        %v8761 = vpack.c.b16 %v6361, %v6329
        %v8762 = vpack.c.b16 %v6362, %v6330
        %v8763 = vpack.c.b16 %v6363, %v6331
        %v8764 = vpack.c.b16 %v6364, %v6332
        %v8765 = vpack.c.b16 %v6365, %v6333
        %v8766 = vpack.c.b16 %v6366, %v6334
        %v8767 = vpack.c.b16 %v6367, %v6335
        %v8768 = vpack.c.b16 %v6368, %v6336
        %v8769 = vpack.c.b16 %v6369, %v6337
        %v8770 = vpack.c.b16 %v6370, %v6338
        %v8771 = vpack.c.b16 %v6371, %v6339
        %v8772 = vpack.c.b16 %v6372, %v6340
        %v8773 = vpack.c.b16 %v6373, %v6341
        %v8774 = vpack.c.b16 %v6374, %v6342
        %v8775 = vpack.c.b16 %v6375, %v6343
        %v8776 = vpack.c.b16 %v6376, %v6344
        %v8777 = vpack.c.b16 %v6377, %v6345
        %v8778 = vpack.c.b16 %v6378, %v6346
        %v8779 = vpack.c.b16 %v6379, %v6347
        %v8780 = vpack.c.b16 %v6380, %v6348
        %v8781 = vpack.c.b16 %v6381, %v6349
        %v8782 = vpack.c.b16 %v6382, %v6350
        %v8783 = vpack.c.b16 %v6383, %v6351
        %v8784 = vpack.c.b16 %v6384, %v6352
        %v8785 = vpack.c.b16 %v6385, %v6353
        %v8786 = vpack.c.b16 %v6386, %v6354
        %v8787 = vpack.c.b16 %v6387, %v6355
        %v8788 = vpack.c.b16 %v6388, %v6356
        %v8789 = vpack.c.b16 %v6389, %v6357
        %v8790 = vpack.c.b16 %v6422, %v6390
        %v8791 = vpack.c.b16 %v6423, %v6391
        %v8792 = vpack.c.b16 %v6424, %v6392
        %v8793 = vpack.c.b16 %v6425, %v6393
        %v8794 = vpack.c.b16 %v6426, %v6394
        %v8795 = vpack.c.b16 %v6427, %v6395
        %v8796 = vpack.c.b16 %v6428, %v6396
        %v8797 = vpack.c.b16 %v6429, %v6397
        %v8798 = vpack.c.b16 %v6430, %v6398
        %v8799 = vpack.c.b16 %v6431, %v6399
        %v8800 = vpack.c.b16 %v6432, %v6400
        %v8801 = vpack.c.b16 %v6433, %v6401
        %v8802 = vpack.c.b16 %v6434, %v6402
        %v8803 = vpack.c.b16 %v6435, %v6403
        %v8804 = vpack.c.b16 %v6436, %v6404
        %v8805 = vpack.c.b16 %v6437, %v6405
        %v8806 = vpack.c.b16 %v6438, %v6406
        %v8807 = vpack.c.b16 %v6439, %v6407
        %v8808 = vpack.c.b16 %v6440, %v6408
        %v8809 = vpack.c.b16 %v6441, %v6409
        %v8810 = vpack.c.b16 %v6442, %v6410
        %v8811 = vpack.c.b16 %v6443, %v6411
        %v8812 = vpack.c.b16 %v6444, %v6412
        %v8813 = vpack.c.b16 %v6445, %v6413
        %v8814 = vpack.c.b16 %v6446, %v6414
        %v8815 = vpack.c.b16 %v6447, %v6415
        %v8816 = vpack.c.b16 %v6448, %v6416
        %v8817 = vpack.c.b16 %v6449, %v6417
        %v8818 = vpack.c.b16 %v6450, %v6418
        %v8819 = vpack.c.b16 %v6451, %v6419
        %v8820 = vpack.c.b16 %v6452, %v6420
        %v8821 = vpack.c.b16 %v6453, %v6421
        %v8822 = vpack.c.b16 %v6486, %v6454
        %v8823 = vpack.c.b16 %v6487, %v6455
        %v8824 = vpack.c.b16 %v6488, %v6456
        %v8825 = vpack.c.b16 %v6489, %v6457
        %v8826 = vpack.c.b16 %v6490, %v6458
        %v8827 = vpack.c.b16 %v6491, %v6459
        %v8828 = vpack.c.b16 %v6492, %v6460
        %v8829 = vpack.c.b16 %v6493, %v6461
        %v8830 = vpack.c.b16 %v6494, %v6462
        %v8831 = vpack.c.b16 %v6495, %v6463
        %v8832 = vpack.c.b16 %v6496, %v6464
        %v8833 = vpack.c.b16 %v6497, %v6465
        %v8834 = vpack.c.b16 %v6498, %v6466
        %v8835 = vpack.c.b16 %v6499, %v6467
        %v8836 = vpack.c.b16 %v6500, %v6468
        %v8837 = vpack.c.b16 %v6501, %v6469
        %v8838 = vpack.c.b16 %v6502, %v6470
        %v8839 = vpack.c.b16 %v6503, %v6471
        %v8840 = vpack.c.b16 %v6504, %v6472
        %v8841 = vpack.c.b16 %v6505, %v6473
        %v8842 = vpack.c.b16 %v6506, %v6474
        %v8843 = vpack.c.b16 %v6507, %v6475
        %v8844 = vpack.c.b16 %v6508, %v6476
        %v8845 = vpack.c.b16 %v6509, %v6477
        %v8846 = vpack.c.b16 %v6510, %v6478
        %v8847 = vpack.c.b16 %v6511, %v6479
        %v8848 = vpack.c.b16 %v6512, %v6480
        %v8849 = vpack.c.b16 %v6513, %v6481
        %v8850 = vpack.c.b16 %v6514, %v6482
        %v8851 = vpack.c.b16 %v6515, %v6483
        %v8852 = vpack.c.b16 %v6516, %v6484
        %v8853 = vpack.c.b16 %v6517, %v6485
        %v8854 = vpack.c.b16 %v6550, %v6518
        %v8855 = vpack.c.b16 %v6551, %v6519
        %v8856 = vpack.c.b16 %v6552, %v6520
        %v8857 = vpack.c.b16 %v6553, %v6521
        %v8858 = vpack.c.b16 %v6554, %v6522
        %v8859 = vpack.c.b16 %v6555, %v6523
        %v8860 = vpack.c.b16 %v6556, %v6524
        %v8861 = vpack.c.b16 %v6557, %v6525
        %v8862 = vpack.c.b16 %v6558, %v6526
        %v8863 = vpack.c.b16 %v6559, %v6527
        %v8864 = vpack.c.b16 %v6560, %v6528
        %v8865 = vpack.c.b16 %v6561, %v6529
        %v8866 = vpack.c.b16 %v6562, %v6530
        %v8867 = vpack.c.b16 %v6563, %v6531
        %v8868 = vpack.c.b16 %v6564, %v6532
        %v8869 = vpack.c.b16 %v6565, %v6533
        %v8870 = vpack.c.b16 %v6566, %v6534
        %v8871 = vpack.c.b16 %v6567, %v6535
        %v8872 = vpack.c.b16 %v6568, %v6536
        %v8873 = vpack.c.b16 %v6569, %v6537
        %v8874 = vpack.c.b16 %v6570, %v6538
        %v8875 = vpack.c.b16 %v6571, %v6539
        %v8876 = vpack.c.b16 %v6572, %v6540
        %v8877 = vpack.c.b16 %v6573, %v6541
        %v8878 = vpack.c.b16 %v6574, %v6542
        %v8879 = vpack.c.b16 %v6575, %v6543
        %v8880 = vpack.c.b16 %v6576, %v6544
        %v8881 = vpack.c.b16 %v6577, %v6545
        %v8882 = vpack.c.b16 %v6578, %v6546
        %v8883 = vpack.c.b16 %v6579, %v6547
        %v8884 = vpack.c.b16 %v6580, %v6548
        %v8885 = vpack.c.b16 %v6581, %v6549
        %v8886 = vpack.c.b16 %v6614, %v6582
        %v8887 = vpack.c.b16 %v6615, %v6583
        %v8888 = vpack.c.b16 %v6616, %v6584
        %v8889 = vpack.c.b16 %v6617, %v6585
        %v8890 = vpack.c.b16 %v6618, %v6586
        %v8891 = vpack.c.b16 %v6619, %v6587
        %v8892 = vpack.c.b16 %v6620, %v6588
        %v8893 = vpack.c.b16 %v6621, %v6589
        %v8894 = vpack.c.b16 %v6622, %v6590
        %v8895 = vpack.c.b16 %v6623, %v6591
        %v8896 = vpack.c.b16 %v6624, %v6592
        %v8897 = vpack.c.b16 %v6625, %v6593
        %v8898 = vpack.c.b16 %v6626, %v6594
        %v8899 = vpack.c.b16 %v6627, %v6595
        %v8900 = vpack.c.b16 %v6628, %v6596
        %v8901 = vpack.c.b16 %v6629, %v6597
        %v8902 = vpack.c.b16 %v6630, %v6598
        %v8903 = vpack.c.b16 %v6631, %v6599
        %v8904 = vpack.c.b16 %v6632, %v6600
        %v8905 = vpack.c.b16 %v6633, %v6601
        %v8906 = vpack.c.b16 %v6634, %v6602
        %v8907 = vpack.c.b16 %v6635, %v6603
        %v8908 = vpack.c.b16 %v6636, %v6604
        %v8909 = vpack.c.b16 %v6637, %v6605
        %v8910 = vpack.c.b16 %v6638, %v6606
        %v8911 = vpack.c.b16 %v6639, %v6607
        %v8912 = vpack.c.b16 %v6640, %v6608
        %v8913 = vpack.c.b16 %v6641, %v6609
        %v8914 = vpack.c.b16 %v6642, %v6610
        %v8915 = vpack.c.b16 %v6643, %v6611
        %v8916 = vpack.c.b16 %v6644, %v6612
        %v8917 = vpack.c.b16 %v6645, %v6613
        %v8918 = vpack.c.b16 %v6678, %v6646
        %v8919 = vpack.c.b16 %v6679, %v6647
        %v8920 = vpack.c.b16 %v6680, %v6648
        %v8921 = vpack.c.b16 %v6681, %v6649
        %v8922 = vpack.c.b16 %v6682, %v6650
        %v8923 = vpack.c.b16 %v6683, %v6651
        %v8924 = vpack.c.b16 %v6684, %v6652
        %v8925 = vpack.c.b16 %v6685, %v6653
        %v8926 = vpack.c.b16 %v6686, %v6654
        %v8927 = vpack.c.b16 %v6687, %v6655
        %v8928 = vpack.c.b16 %v6688, %v6656
        %v8929 = vpack.c.b16 %v6689, %v6657
        %v8930 = vpack.c.b16 %v6690, %v6658
        %v8931 = vpack.c.b16 %v6691, %v6659
        %v8932 = vpack.c.b16 %v6692, %v6660
        %v8933 = vpack.c.b16 %v6693, %v6661
        %v8934 = vpack.c.b16 %v6694, %v6662
        %v8935 = vpack.c.b16 %v6695, %v6663
        %v8936 = vpack.c.b16 %v6696, %v6664
        %v8937 = vpack.c.b16 %v6697, %v6665
        %v8938 = vpack.c.b16 %v6698, %v6666
        %v8939 = vpack.c.b16 %v6699, %v6667
        %v8940 = vpack.c.b16 %v6700, %v6668
        %v8941 = vpack.c.b16 %v6701, %v6669
        %v8942 = vpack.c.b16 %v6702, %v6670
        %v8943 = vpack.c.b16 %v6703, %v6671
        %v8944 = vpack.c.b16 %v6704, %v6672
        %v8945 = vpack.c.b16 %v6705, %v6673
        %v8946 = vpack.c.b16 %v6706, %v6674
        %v8947 = vpack.c.b16 %v6707, %v6675
        %v8948 = vpack.c.b16 %v6708, %v6676
        %v8949 = vpack.c.b16 %v6709, %v6677
        %v8950 = vpack.c.b16 %v6742, %v6710
        %v8951 = vpack.c.b16 %v6743, %v6711
        %v8952 = vpack.c.b16 %v6744, %v6712
        %v8953 = vpack.c.b16 %v6745, %v6713
        %v8954 = vpack.c.b16 %v6746, %v6714
        %v8955 = vpack.c.b16 %v6747, %v6715
        %v8956 = vpack.c.b16 %v6748, %v6716
        %v8957 = vpack.c.b16 %v6749, %v6717
        %v8958 = vpack.c.b16 %v6750, %v6718
        %v8959 = vpack.c.b16 %v6751, %v6719
        %v8960 = vpack.c.b16 %v6752, %v6720
        %v8961 = vpack.c.b16 %v6753, %v6721
        %v8962 = vpack.c.b16 %v6754, %v6722
        %v8963 = vpack.c.b16 %v6755, %v6723
        %v8964 = vpack.c.b16 %v6756, %v6724
        %v8965 = vpack.c.b16 %v6757, %v6725
        %v8966 = vpack.c.b16 %v6758, %v6726
        %v8967 = vpack.c.b16 %v6759, %v6727
        %v8968 = vpack.c.b16 %v6760, %v6728
        %v8969 = vpack.c.b16 %v6761, %v6729
        %v8970 = vpack.c.b16 %v6762, %v6730
        %v8971 = vpack.c.b16 %v6763, %v6731
        %v8972 = vpack.c.b16 %v6764, %v6732
        %v8973 = vpack.c.b16 %v6765, %v6733
        %v8974 = vpack.c.b16 %v6766, %v6734
        %v8975 = vpack.c.b16 %v6767, %v6735
        %v8976 = vpack.c.b16 %v6768, %v6736
        %v8977 = vpack.c.b16 %v6769, %v6737
        %v8978 = vpack.c.b16 %v6770, %v6738
        %v8979 = vpack.c.b16 %v6771, %v6739
        %v8980 = vpack.c.b16 %v6772, %v6740
        %v8981 = vpack.c.b16 %v6773, %v6741
        %v8982 = vpack.c.b16 %v6806, %v6774
        %v8983 = vpack.c.b16 %v6807, %v6775
        %v8984 = vpack.c.b16 %v6808, %v6776
        %v8985 = vpack.c.b16 %v6809, %v6777
        %v8986 = vpack.c.b16 %v6810, %v6778
        %v8987 = vpack.c.b16 %v6811, %v6779
        %v8988 = vpack.c.b16 %v6812, %v6780
        %v8989 = vpack.c.b16 %v6813, %v6781
        %v8990 = vpack.c.b16 %v6814, %v6782
        %v8991 = vpack.c.b16 %v6815, %v6783
        %v8992 = vpack.c.b16 %v6816, %v6784
        %v8993 = vpack.c.b16 %v6817, %v6785
        %v8994 = vpack.c.b16 %v6818, %v6786
        %v8995 = vpack.c.b16 %v6819, %v6787
        %v8996 = vpack.c.b16 %v6820, %v6788
        %v8997 = vpack.c.b16 %v6821, %v6789
        %v8998 = vpack.c.b16 %v6822, %v6790
        %v8999 = vpack.c.b16 %v6823, %v6791
        %v9000 = vpack.c.b16 %v6824, %v6792
        %v9001 = vpack.c.b16 %v6825, %v6793
        %v9002 = vpack.c.b16 %v6826, %v6794
        %v9003 = vpack.c.b16 %v6827, %v6795
        %v9004 = vpack.c.b16 %v6828, %v6796
        %v9005 = vpack.c.b16 %v6829, %v6797
        %v9006 = vpack.c.b16 %v6830, %v6798
        %v9007 = vpack.c.b16 %v6831, %v6799
        %v9008 = vpack.c.b16 %v6832, %v6800
        %v9009 = vpack.c.b16 %v6833, %v6801
        %v9010 = vpack.c.b16 %v6834, %v6802
        %v9011 = vpack.c.b16 %v6835, %v6803
        %v9012 = vpack.c.b16 %v6836, %v6804
        %v9013 = vpack.c.b16 %v6837, %v6805
        %v9014 = vpack.c.b16 %v6870, %v6838
        %v9015 = vpack.c.b16 %v6871, %v6839
        %v9016 = vpack.c.b16 %v6872, %v6840
        %v9017 = vpack.c.b16 %v6873, %v6841
        %v9018 = vpack.c.b16 %v6874, %v6842
        %v9019 = vpack.c.b16 %v6875, %v6843
        %v9020 = vpack.c.b16 %v6876, %v6844
        %v9021 = vpack.c.b16 %v6877, %v6845
        %v9022 = vpack.c.b16 %v6878, %v6846
        %v9023 = vpack.c.b16 %v6879, %v6847
        %v9024 = vpack.c.b16 %v6880, %v6848
        %v9025 = vpack.c.b16 %v6881, %v6849
        %v9026 = vpack.c.b16 %v6882, %v6850
        %v9027 = vpack.c.b16 %v6883, %v6851
        %v9028 = vpack.c.b16 %v6884, %v6852
        %v9029 = vpack.c.b16 %v6885, %v6853
        %v9030 = vpack.c.b16 %v6886, %v6854
        %v9031 = vpack.c.b16 %v6887, %v6855
        %v9032 = vpack.c.b16 %v6888, %v6856
        %v9033 = vpack.c.b16 %v6889, %v6857
        %v9034 = vpack.c.b16 %v6890, %v6858
        %v9035 = vpack.c.b16 %v6891, %v6859
        %v9036 = vpack.c.b16 %v6892, %v6860
        %v9037 = vpack.c.b16 %v6893, %v6861
        %v9038 = vpack.c.b16 %v6894, %v6862
        %v9039 = vpack.c.b16 %v6895, %v6863
        %v9040 = vpack.c.b16 %v6896, %v6864
        %v9041 = vpack.c.b16 %v6897, %v6865
        %v9042 = vpack.c.b16 %v6898, %v6866
        %v9043 = vpack.c.b16 %v6899, %v6867
        %v9044 = vpack.c.b16 %v6900, %v6868
        %v9045 = vpack.c.b16 %v6901, %v6869
        %v9046 = vpack.c.b16 %v6934, %v6902
        %v9047 = vpack.c.b16 %v6935, %v6903
        %v9048 = vpack.c.b16 %v6936, %v6904
        %v9049 = vpack.c.b16 %v6937, %v6905
        %v9050 = vpack.c.b16 %v6938, %v6906
        %v9051 = vpack.c.b16 %v6939, %v6907
        %v9052 = vpack.c.b16 %v6940, %v6908
        %v9053 = vpack.c.b16 %v6941, %v6909
        %v9054 = vpack.c.b16 %v6942, %v6910
        %v9055 = vpack.c.b16 %v6943, %v6911
        %v9056 = vpack.c.b16 %v6944, %v6912
        %v9057 = vpack.c.b16 %v6945, %v6913
        %v9058 = vpack.c.b16 %v6946, %v6914
        %v9059 = vpack.c.b16 %v6947, %v6915
        %v9060 = vpack.c.b16 %v6948, %v6916
        %v9061 = vpack.c.b16 %v6949, %v6917
        %v9062 = vpack.c.b16 %v6950, %v6918
        %v9063 = vpack.c.b16 %v6951, %v6919
        %v9064 = vpack.c.b16 %v6952, %v6920
        %v9065 = vpack.c.b16 %v6953, %v6921
        %v9066 = vpack.c.b16 %v6954, %v6922
        %v9067 = vpack.c.b16 %v6955, %v6923
        %v9068 = vpack.c.b16 %v6956, %v6924
        %v9069 = vpack.c.b16 %v6957, %v6925
        %v9070 = vpack.c.b16 %v6958, %v6926
        %v9071 = vpack.c.b16 %v6959, %v6927
        %v9072 = vpack.c.b16 %v6960, %v6928
        %v9073 = vpack.c.b16 %v6961, %v6929
        %v9074 = vpack.c.b16 %v6962, %v6930
        %v9075 = vpack.c.b16 %v6963, %v6931
        %v9076 = vpack.c.b16 %v6964, %v6932
        %v9077 = vpack.c.b16 %v6965, %v6933
        %v9078 = vpack.c.b16 %v6998, %v6966
        %v9079 = vpack.c.b16 %v6999, %v6967
        %v9080 = vpack.c.b16 %v7000, %v6968
        %v9081 = vpack.c.b16 %v7001, %v6969
        %v9082 = vpack.c.b16 %v7002, %v6970
        %v9083 = vpack.c.b16 %v7003, %v6971
        %v9084 = vpack.c.b16 %v7004, %v6972
        %v9085 = vpack.c.b16 %v7005, %v6973
        %v9086 = vpack.c.b16 %v7006, %v6974
        %v9087 = vpack.c.b16 %v7007, %v6975
        %v9088 = vpack.c.b16 %v7008, %v6976
        %v9089 = vpack.c.b16 %v7009, %v6977
        %v9090 = vpack.c.b16 %v7010, %v6978
        %v9091 = vpack.c.b16 %v7011, %v6979
        %v9092 = vpack.c.b16 %v7012, %v6980
        %v9093 = vpack.c.b16 %v7013, %v6981
        %v9094 = vpack.c.b16 %v7014, %v6982
        %v9095 = vpack.c.b16 %v7015, %v6983
        %v9096 = vpack.c.b16 %v7016, %v6984
        %v9097 = vpack.c.b16 %v7017, %v6985
        %v9098 = vpack.c.b16 %v7018, %v6986
        %v9099 = vpack.c.b16 %v7019, %v6987
        %v9100 = vpack.c.b16 %v7020, %v6988
        %v9101 = vpack.c.b16 %v7021, %v6989
        %v9102 = vpack.c.b16 %v7022, %v6990
        %v9103 = vpack.c.b16 %v7023, %v6991
        %v9104 = vpack.c.b16 %v7024, %v6992
        %v9105 = vpack.c.b16 %v7025, %v6993
        %v9106 = vpack.c.b16 %v7026, %v6994
        %v9107 = vpack.c.b16 %v7027, %v6995
        %v9108 = vpack.c.b16 %v7028, %v6996
        %v9109 = vpack.c.b16 %v7029, %v6997
        %v9110 = vpack.c.b16 %v7062, %v7030
        %v9111 = vpack.c.b16 %v7063, %v7031
        %v9112 = vpack.c.b16 %v7064, %v7032
        %v9113 = vpack.c.b16 %v7065, %v7033
        %v9114 = vpack.c.b16 %v7066, %v7034
        %v9115 = vpack.c.b16 %v7067, %v7035
        %v9116 = vpack.c.b16 %v7068, %v7036
        %v9117 = vpack.c.b16 %v7069, %v7037
        %v9118 = vpack.c.b16 %v7070, %v7038
        %v9119 = vpack.c.b16 %v7071, %v7039
        %v9120 = vpack.c.b16 %v7072, %v7040
        %v9121 = vpack.c.b16 %v7073, %v7041
        %v9122 = vpack.c.b16 %v7074, %v7042
        %v9123 = vpack.c.b16 %v7075, %v7043
        %v9124 = vpack.c.b16 %v7076, %v7044
        %v9125 = vpack.c.b16 %v7077, %v7045
        %v9126 = vpack.c.b16 %v7078, %v7046
        %v9127 = vpack.c.b16 %v7079, %v7047
        %v9128 = vpack.c.b16 %v7080, %v7048
        %v9129 = vpack.c.b16 %v7081, %v7049
        %v9130 = vpack.c.b16 %v7082, %v7050
        %v9131 = vpack.c.b16 %v7083, %v7051
        %v9132 = vpack.c.b16 %v7084, %v7052
        %v9133 = vpack.c.b16 %v7085, %v7053
        %v9134 = vpack.c.b16 %v7086, %v7054
        %v9135 = vpack.c.b16 %v7087, %v7055
        %v9136 = vpack.c.b16 %v7088, %v7056
        %v9137 = vpack.c.b16 %v7089, %v7057
        %v9138 = vpack.c.b16 %v7090, %v7058
        %v9139 = vpack.c.b16 %v7091, %v7059
        %v9140 = vpack.c.b16 %v7092, %v7060
        %v9141 = vpack.c.b16 %v7093, %v7061
        %v9142 = vpack.c.b16 %v7126, %v7094
        %v9143 = vpack.c.b16 %v7127, %v7095
        %v9144 = vpack.c.b16 %v7128, %v7096
        %v9145 = vpack.c.b16 %v7129, %v7097
        %v9146 = vpack.c.b16 %v7130, %v7098
        %v9147 = vpack.c.b16 %v7131, %v7099
        %v9148 = vpack.c.b16 %v7132, %v7100
        %v9149 = vpack.c.b16 %v7133, %v7101
        %v9150 = vpack.c.b16 %v7134, %v7102
        %v9151 = vpack.c.b16 %v7135, %v7103
        %v9152 = vpack.c.b16 %v7136, %v7104
        %v9153 = vpack.c.b16 %v7137, %v7105
        %v9154 = vpack.c.b16 %v7138, %v7106
        %v9155 = vpack.c.b16 %v7139, %v7107
        %v9156 = vpack.c.b16 %v7140, %v7108
        %v9157 = vpack.c.b16 %v7141, %v7109
        %v9158 = vpack.c.b16 %v7142, %v7110
        %v9159 = vpack.c.b16 %v7143, %v7111
        %v9160 = vpack.c.b16 %v7144, %v7112
        %v9161 = vpack.c.b16 %v7145, %v7113
        %v9162 = vpack.c.b16 %v7146, %v7114
        %v9163 = vpack.c.b16 %v7147, %v7115
        %v9164 = vpack.c.b16 %v7148, %v7116
        %v9165 = vpack.c.b16 %v7149, %v7117
        %v9166 = vpack.c.b16 %v7150, %v7118
        %v9167 = vpack.c.b16 %v7151, %v7119
        %v9168 = vpack.c.b16 %v7152, %v7120
        %v9169 = vpack.c.b16 %v7153, %v7121
        %v9170 = vpack.c.b16 %v7154, %v7122
        %v9171 = vpack.c.b16 %v7155, %v7123
        %v9172 = vpack.c.b16 %v7156, %v7124
        %v9173 = vpack.c.b16 %v7157, %v7125
        %v9174 = vpack.c.b16 %v7190, %v7158
        %v9175 = vpack.c.b16 %v7191, %v7159
        %v9176 = vpack.c.b16 %v7192, %v7160
        %v9177 = vpack.c.b16 %v7193, %v7161
        %v9178 = vpack.c.b16 %v7194, %v7162
        %v9179 = vpack.c.b16 %v7195, %v7163
        %v9180 = vpack.c.b16 %v7196, %v7164
        %v9181 = vpack.c.b16 %v7197, %v7165
        %v9182 = vpack.c.b16 %v7198, %v7166
        %v9183 = vpack.c.b16 %v7199, %v7167
        %v9184 = vpack.c.b16 %v7200, %v7168
        %v9185 = vpack.c.b16 %v7201, %v7169
        %v9186 = vpack.c.b16 %v7202, %v7170
        %v9187 = vpack.c.b16 %v7203, %v7171
        %v9188 = vpack.c.b16 %v7204, %v7172
        %v9189 = vpack.c.b16 %v7205, %v7173
        %v9190 = vpack.c.b16 %v7206, %v7174
        %v9191 = vpack.c.b16 %v7207, %v7175
        %v9192 = vpack.c.b16 %v7208, %v7176
        %v9193 = vpack.c.b16 %v7209, %v7177
        %v9194 = vpack.c.b16 %v7210, %v7178
        %v9195 = vpack.c.b16 %v7211, %v7179
        %v9196 = vpack.c.b16 %v7212, %v7180
        %v9197 = vpack.c.b16 %v7213, %v7181
        %v9198 = vpack.c.b16 %v7214, %v7182
        %v9199 = vpack.c.b16 %v7215, %v7183
        %v9200 = vpack.c.b16 %v7216, %v7184
        %v9201 = vpack.c.b16 %v7217, %v7185
        %v9202 = vpack.c.b16 %v7218, %v7186
        %v9203 = vpack.c.b16 %v7219, %v7187
        %v9204 = vpack.c.b16 %v7220, %v7188
        %v9205 = vpack.c.b16 %v7221, %v7189
        %v9206 = vpack.c.b16 %v7254, %v7222
        %v9207 = vpack.c.b16 %v7255, %v7223
        %v9208 = vpack.c.b16 %v7256, %v7224
        %v9209 = vpack.c.b16 %v7257, %v7225
        %v9210 = vpack.c.b16 %v7258, %v7226
        %v9211 = vpack.c.b16 %v7259, %v7227
        %v9212 = vpack.c.b16 %v7260, %v7228
        %v9213 = vpack.c.b16 %v7261, %v7229
        %v9214 = vpack.c.b16 %v7262, %v7230
        %v9215 = vpack.c.b16 %v7263, %v7231
        %v9216 = vpack.c.b16 %v7264, %v7232
        %v9217 = vpack.c.b16 %v7265, %v7233
        %v9218 = vpack.c.b16 %v7266, %v7234
        %v9219 = vpack.c.b16 %v7267, %v7235
        %v9220 = vpack.c.b16 %v7268, %v7236
        %v9221 = vpack.c.b16 %v7269, %v7237
        %v9222 = vpack.c.b16 %v7270, %v7238
        %v9223 = vpack.c.b16 %v7271, %v7239
        %v9224 = vpack.c.b16 %v7272, %v7240
        %v9225 = vpack.c.b16 %v7273, %v7241
        %v9226 = vpack.c.b16 %v7274, %v7242
        %v9227 = vpack.c.b16 %v7275, %v7243
        %v9228 = vpack.c.b16 %v7276, %v7244
        %v9229 = vpack.c.b16 %v7277, %v7245
        %v9230 = vpack.c.b16 %v7278, %v7246
        %v9231 = vpack.c.b16 %v7279, %v7247
        %v9232 = vpack.c.b16 %v7280, %v7248
        %v9233 = vpack.c.b16 %v7281, %v7249
        %v9234 = vpack.c.b16 %v7282, %v7250
        %v9235 = vpack.c.b16 %v7283, %v7251
        %v9236 = vpack.c.b16 %v7284, %v7252
        %v9237 = vpack.c.b16 %v7285, %v7253
        %v9238 = vpack.c.b16 %v7318, %v7286
        %v9239 = vpack.c.b16 %v7319, %v7287
        %v9240 = vpack.c.b16 %v7320, %v7288
        %v9241 = vpack.c.b16 %v7321, %v7289
        %v9242 = vpack.c.b16 %v7322, %v7290
        %v9243 = vpack.c.b16 %v7323, %v7291
        %v9244 = vpack.c.b16 %v7324, %v7292
        %v9245 = vpack.c.b16 %v7325, %v7293
        %v9246 = vpack.c.b16 %v7326, %v7294
        %v9247 = vpack.c.b16 %v7327, %v7295
        %v9248 = vpack.c.b16 %v7328, %v7296
        %v9249 = vpack.c.b16 %v7329, %v7297
        %v9250 = vpack.c.b16 %v7330, %v7298
        %v9251 = vpack.c.b16 %v7331, %v7299
        %v9252 = vpack.c.b16 %v7332, %v7300
        %v9253 = vpack.c.b16 %v7333, %v7301
        %v9254 = vpack.c.b16 %v7334, %v7302
        %v9255 = vpack.c.b16 %v7335, %v7303
        %v9256 = vpack.c.b16 %v7336, %v7304
        %v9257 = vpack.c.b16 %v7337, %v7305
        %v9258 = vpack.c.b16 %v7338, %v7306
        %v9259 = vpack.c.b16 %v7339, %v7307
        %v9260 = vpack.c.b16 %v7340, %v7308
        %v9261 = vpack.c.b16 %v7341, %v7309
        %v9262 = vpack.c.b16 %v7342, %v7310
        %v9263 = vpack.c.b16 %v7343, %v7311
        %v9264 = vpack.c.b16 %v7344, %v7312
        %v9265 = vpack.c.b16 %v7345, %v7313
        %v9266 = vpack.c.b16 %v7346, %v7314
        %v9267 = vpack.c.b16 %v7347, %v7315
        %v9268 = vpack.c.b16 %v7348, %v7316
        %v9269 = vpack.c.b16 %v7349, %v7317
        %v9270 = vpack.c.b16 %v7382, %v7350
        %v9271 = vpack.c.b16 %v7383, %v7351
        %v9272 = vpack.c.b16 %v7384, %v7352
        %v9273 = vpack.c.b16 %v7385, %v7353
        %v9274 = vpack.c.b16 %v7386, %v7354
        %v9275 = vpack.c.b16 %v7387, %v7355
        %v9276 = vpack.c.b16 %v7388, %v7356
        %v9277 = vpack.c.b16 %v7389, %v7357
        %v9278 = vpack.c.b16 %v7390, %v7358
        %v9279 = vpack.c.b16 %v7391, %v7359
        %v9280 = vpack.c.b16 %v7392, %v7360
        %v9281 = vpack.c.b16 %v7393, %v7361
        %v9282 = vpack.c.b16 %v7394, %v7362
        %v9283 = vpack.c.b16 %v7395, %v7363
        %v9284 = vpack.c.b16 %v7396, %v7364
        %v9285 = vpack.c.b16 %v7397, %v7365
        %v9286 = vpack.c.b16 %v7398, %v7366
        %v9287 = vpack.c.b16 %v7399, %v7367
        %v9288 = vpack.c.b16 %v7400, %v7368
        %v9289 = vpack.c.b16 %v7401, %v7369
        %v9290 = vpack.c.b16 %v7402, %v7370
        %v9291 = vpack.c.b16 %v7403, %v7371
        %v9292 = vpack.c.b16 %v7404, %v7372
        %v9293 = vpack.c.b16 %v7405, %v7373
        %v9294 = vpack.c.b16 %v7406, %v7374
        %v9295 = vpack.c.b16 %v7407, %v7375
        %v9296 = vpack.c.b16 %v7408, %v7376
        %v9297 = vpack.c.b16 %v7409, %v7377
        %v9298 = vpack.c.b16 %v7410, %v7378
        %v9299 = vpack.c.b16 %v7411, %v7379
        %v9300 = vpack.c.b16 %v7412, %v7380
        %v9301 = vpack.c.b16 %v7413, %v7381
        %v9302 = vpack.c.b16 %v7446, %v7414
        %v9303 = vpack.c.b16 %v7447, %v7415
        %v9304 = vpack.c.b16 %v7448, %v7416
        %v9305 = vpack.c.b16 %v7449, %v7417
        %v9306 = vpack.c.b16 %v7450, %v7418
        %v9307 = vpack.c.b16 %v7451, %v7419
        %v9308 = vpack.c.b16 %v7452, %v7420
        %v9309 = vpack.c.b16 %v7453, %v7421
        %v9310 = vpack.c.b16 %v7454, %v7422
        %v9311 = vpack.c.b16 %v7455, %v7423
        %v9312 = vpack.c.b16 %v7456, %v7424
        %v9313 = vpack.c.b16 %v7457, %v7425
        %v9314 = vpack.c.b16 %v7458, %v7426
        %v9315 = vpack.c.b16 %v7459, %v7427
        %v9316 = vpack.c.b16 %v7460, %v7428
        %v9317 = vpack.c.b16 %v7461, %v7429
        %v9318 = vpack.c.b16 %v7462, %v7430
        %v9319 = vpack.c.b16 %v7463, %v7431
        %v9320 = vpack.c.b16 %v7464, %v7432
        %v9321 = vpack.c.b16 %v7465, %v7433
        %v9322 = vpack.c.b16 %v7466, %v7434
        %v9323 = vpack.c.b16 %v7467, %v7435
        %v9324 = vpack.c.b16 %v7468, %v7436
        %v9325 = vpack.c.b16 %v7469, %v7437
        %v9326 = vpack.c.b16 %v7470, %v7438
        %v9327 = vpack.c.b16 %v7471, %v7439
        %v9328 = vpack.c.b16 %v7472, %v7440
        %v9329 = vpack.c.b16 %v7473, %v7441
        %v9330 = vpack.c.b16 %v7474, %v7442
        %v9331 = vpack.c.b16 %v7475, %v7443
        %v9332 = vpack.c.b16 %v7476, %v7444
        %v9333 = vpack.c.b16 %v7477, %v7445
        %v9334 = vpack.c.b16 %v7510, %v7478
        %v9335 = vpack.c.b16 %v7511, %v7479
        %v9336 = vpack.c.b16 %v7512, %v7480
        %v9337 = vpack.c.b16 %v7513, %v7481
        %v9338 = vpack.c.b16 %v7514, %v7482
        %v9339 = vpack.c.b16 %v7515, %v7483
        %v9340 = vpack.c.b16 %v7516, %v7484
        %v9341 = vpack.c.b16 %v7517, %v7485
        %v9342 = vpack.c.b16 %v7518, %v7486
        %v9343 = vpack.c.b16 %v7519, %v7487
        %v9344 = vpack.c.b16 %v7520, %v7488
        %v9345 = vpack.c.b16 %v7521, %v7489
        %v9346 = vpack.c.b16 %v7522, %v7490
        %v9347 = vpack.c.b16 %v7523, %v7491
        %v9348 = vpack.c.b16 %v7524, %v7492
        %v9349 = vpack.c.b16 %v7525, %v7493
        %v9350 = vpack.c.b16 %v7526, %v7494
        %v9351 = vpack.c.b16 %v7527, %v7495
        %v9352 = vpack.c.b16 %v7528, %v7496
        %v9353 = vpack.c.b16 %v7529, %v7497
        %v9354 = vpack.c.b16 %v7530, %v7498
        %v9355 = vpack.c.b16 %v7531, %v7499
        %v9356 = vpack.c.b16 %v7532, %v7500
        %v9357 = vpack.c.b16 %v7533, %v7501
        %v9358 = vpack.c.b16 %v7534, %v7502
        %v9359 = vpack.c.b16 %v7535, %v7503
        %v9360 = vpack.c.b16 %v7536, %v7504
        %v9361 = vpack.c.b16 %v7537, %v7505
        %v9362 = vpack.c.b16 %v7538, %v7506
        %v9363 = vpack.c.b16 %v7539, %v7507
        %v9364 = vpack.c.b16 %v7540, %v7508
        %v9365 = vpack.c.b16 %v7541, %v7509
        %v9366 = vpack.c.b16 %v7574, %v7542
        %v9367 = vpack.c.b16 %v7575, %v7543
        %v9368 = vpack.c.b16 %v7576, %v7544
        %v9369 = vpack.c.b16 %v7577, %v7545
        %v9370 = vpack.c.b16 %v7578, %v7546
        %v9371 = vpack.c.b16 %v7579, %v7547
        %v9372 = vpack.c.b16 %v7580, %v7548
        %v9373 = vpack.c.b16 %v7581, %v7549
        %v9374 = vpack.c.b16 %v7582, %v7550
        %v9375 = vpack.c.b16 %v7583, %v7551
        %v9376 = vpack.c.b16 %v7584, %v7552
        %v9377 = vpack.c.b16 %v7585, %v7553
        %v9378 = vpack.c.b16 %v7586, %v7554
        %v9379 = vpack.c.b16 %v7587, %v7555
        %v9380 = vpack.c.b16 %v7588, %v7556
        %v9381 = vpack.c.b16 %v7589, %v7557
        %v9382 = vpack.c.b16 %v7590, %v7558
        %v9383 = vpack.c.b16 %v7591, %v7559
        %v9384 = vpack.c.b16 %v7592, %v7560
        %v9385 = vpack.c.b16 %v7593, %v7561
        %v9386 = vpack.c.b16 %v7594, %v7562
        %v9387 = vpack.c.b16 %v7595, %v7563
        %v9388 = vpack.c.b16 %v7596, %v7564
        %v9389 = vpack.c.b16 %v7597, %v7565
        %v9390 = vpack.c.b16 %v7598, %v7566
        %v9391 = vpack.c.b16 %v7599, %v7567
        %v9392 = vpack.c.b16 %v7600, %v7568
        %v9393 = vpack.c.b16 %v7601, %v7569
        %v9394 = vpack.c.b16 %v7602, %v7570
        %v9395 = vpack.c.b16 %v7603, %v7571
        %v9396 = vpack.c.b16 %v7604, %v7572
        %v9397 = vpack.c.b16 %v7605, %v7573
        %11190 = vmatprep.subr.bf16.mxu0 %v7607
        %11191 = vmatpush1.bf16.msra.mxu0 %v7606
        %11192 = vmatprep.subr.bf16.mxu0 %v7639
        %11193 = vmatpush1.bf16.msra.mxu0 %v7638
        %11194 = vmatprep.subr.bf16.mxu0 %v7671
        %11195 = vmatpush1.bf16.msra.mxu0 %v7670
        %11196 = vmatprep.subr.bf16.mxu0 %v7703
        %11197 = vmatpush1.bf16.msra.mxu0 %v7702
        %11198 = vmatprep.subr.bf16.mxu0 %v7735
        %11199 = vmatpush1.bf16.msra.mxu0 %v7734
        %11200 = vmatprep.subr.bf16.mxu0 %v7767
        %11201 = vmatpush1.bf16.msra.mxu0 %v7766
        %11202 = vmatprep.subr.bf16.mxu0 %v7799
        %11203 = vmatpush1.bf16.msra.mxu0 %v7798
        %11204 = vmatprep.subr.bf16.mxu0 %v7831
        %11205 = vmatpush1.bf16.msra.mxu0 %v7830
        %11206 = vmatprep.subr.bf16.mxu0 %v7863
        %11207 = vmatpush1.bf16.msra.mxu0 %v7862
        %11208 = vmatprep.subr.bf16.mxu0 %v7895
        %11209 = vmatpush1.bf16.msra.mxu0 %v7894
        %11210 = vmatprep.subr.bf16.mxu0 %v7927
        %11211 = vmatpush1.bf16.msra.mxu0 %v7926
        %11212 = vmatprep.subr.bf16.mxu0 %v7959
        %11213 = vmatpush1.bf16.msra.mxu0 %v7958
        %11214 = vmatprep.subr.bf16.mxu0 %v7991
        %11215 = vmatpush1.bf16.msra.mxu0 %v7990
        %11216 = vmatprep.subr.bf16.mxu0 %v8023
        %11217 = vmatpush1.bf16.msra.mxu0 %v8022
        %11218 = vmatprep.subr.bf16.mxu0 %v8055
        %11219 = vmatpush1.bf16.msra.mxu0 %v8054
        %11220 = vmatprep.subr.bf16.mxu0 %v8087
        %11221 = vmatpush1.bf16.msra.mxu0 %v8086
        %11222 = vmatprep.mubr.bf16.mxu0 %v2217
        %11223 = vmatmul.mubr.bf16.gmra.mrb[0].mxu0 %v2216
        %v11224 = vpop.f32.mrb[0].mxu0
        %v11225 = vadd.f32 %v2048, %v11224
        %v11226 = vpop.f32.mrb[0].mxu0
        %v11227 = vadd.f32 %v2052, %v11226
        %v11228 = vpop.f32.mrb[0].mxu0
        %v11229 = vpop.f32.mrb[0].mxu0
        %11230 = vdwg.mxu0
        %11231 = vmatprep.subr.bf16.mxu0 %v8119
        %11232 = vmatpush1.bf16.msra.mxu0 %v8118
        %11233 = vmatprep.subr.bf16.mxu0 %v8151
        %11234 = vmatpush1.bf16.msra.mxu0 %v8150
        %11235 = vmatprep.subr.bf16.mxu0 %v8183
        %11236 = vmatpush1.bf16.msra.mxu0 %v8182
        %11237 = vmatprep.subr.bf16.mxu0 %v8215
        %11238 = vmatpush1.bf16.msra.mxu0 %v8214
        %11239 = vmatprep.subr.bf16.mxu0 %v8247
        %11240 = vmatpush1.bf16.msra.mxu0 %v8246
        %11241 = vmatprep.subr.bf16.mxu0 %v8279
        %11242 = vmatpush1.bf16.msra.mxu0 %v8278
        %11243 = vmatprep.subr.bf16.mxu0 %v8311
        %11244 = vmatpush1.bf16.msra.mxu0 %v8310
        %11245 = vmatprep.subr.bf16.mxu0 %v8343
        %11246 = vmatpush1.bf16.msra.mxu0 %v8342
        %11247 = vmatprep.subr.bf16.mxu0 %v8375
        %11248 = vmatpush1.bf16.msra.mxu0 %v8374
        %11249 = vmatprep.subr.bf16.mxu0 %v8407
        %11250 = vmatpush1.bf16.msra.mxu0 %v8406
        %11251 = vmatprep.subr.bf16.mxu0 %v8439
        %11252 = vmatpush1.bf16.msra.mxu0 %v8438
        %11253 = vmatprep.subr.bf16.mxu0 %v8471
        %11254 = vmatpush1.bf16.msra.mxu0 %v8470
        %11255 = vmatprep.subr.bf16.mxu0 %v8503
        %11256 = vmatpush1.bf16.msra.mxu0 %v8502
        %11257 = vmatprep.subr.bf16.mxu0 %v8535
        %11258 = vmatpush1.bf16.msra.mxu0 %v8534
        %11259 = vmatprep.subr.bf16.mxu0 %v8567
        %11260 = vmatpush1.bf16.msra.mxu0 %v8566
        %11261 = vmatprep.subr.bf16.mxu0 %v8599
        %11262 = vmatpush1.bf16.msra.mxu0 %v8598
        %11263 = vmatprep.mubr.bf16.mxu0 %v2219
        %11264 = vmatmul.mubr.bf16.gmra.mrb[0].mxu0 %v2218
        %v11265 = vpop.f32.mrb[0].mxu0
        %v11266 = vadd.f32 %v11225, %v11265
        %v11267 = vpop.f32.mrb[0].mxu0
        %v11268 = vadd.f32 %v11227, %v11267
        %v11269 = vpop.f32.mrb[0].mxu0
        %v11270 = vpop.f32.mrb[0].mxu0
        %11271 = vdwg.mxu0
        %11272 = vmatprep.subr.bf16.mxu0 %v8631
        %11273 = vmatpush1.bf16.msra.mxu0 %v8630
        %11274 = vmatprep.subr.bf16.mxu0 %v8663
        %11275 = vmatpush1.bf16.msra.mxu0 %v8662
        %11276 = vmatprep.subr.bf16.mxu0 %v8695
        %11277 = vmatpush1.bf16.msra.mxu0 %v8694
        %11278 = vmatprep.subr.bf16.mxu0 %v8727
        %11279 = vmatpush1.bf16.msra.mxu0 %v8726
        %11280 = vmatprep.subr.bf16.mxu0 %v8759
        %11281 = vmatpush1.bf16.msra.mxu0 %v8758
        %11282 = vmatprep.subr.bf16.mxu0 %v8791
        %11283 = vmatpush1.bf16.msra.mxu0 %v8790
        %11284 = vmatprep.subr.bf16.mxu0 %v8823
        %11285 = vmatpush1.bf16.msra.mxu0 %v8822
        %11286 = vmatprep.subr.bf16.mxu0 %v8855
        %11287 = vmatpush1.bf16.msra.mxu0 %v8854
        %11288 = vmatprep.subr.bf16.mxu0 %v8887
        %11289 = vmatpush1.bf16.msra.mxu0 %v8886
        %11290 = vmatprep.subr.bf16.mxu0 %v8919
        %11291 = vmatpush1.bf16.msra.mxu0 %v8918
        %11292 = vmatprep.subr.bf16.mxu0 %v8951
        %11293 = vmatpush1.bf16.msra.mxu0 %v8950
        %11294 = vmatprep.subr.bf16.mxu0 %v8983
        %11295 = vmatpush1.bf16.msra.mxu0 %v8982
        %11296 = vmatprep.subr.bf16.mxu0 %v9015
        %11297 = vmatpush1.bf16.msra.mxu0 %v9014
        %11298 = vmatprep.subr.bf16.mxu0 %v9047
        %11299 = vmatpush1.bf16.msra.mxu0 %v9046
        %11300 = vmatprep.subr.bf16.mxu0 %v9079
        %11301 = vmatpush1.bf16.msra.mxu0 %v9078
        %11302 = vmatprep.subr.bf16.mxu0 %v9111
        %11303 = vmatpush1.bf16.msra.mxu0 %v9110
        %11304 = vmatprep.mubr.bf16.mxu0 %v2221
        %11305 = vmatmul.mubr.bf16.gmra.mrb[0].mxu0 %v2220
        %v11306 = vpop.f32.mrb[0].mxu0
        %v11307 = vadd.f32 %v11266, %v11306
        %v11308 = vpop.f32.mrb[0].mxu0
        %v11309 = vadd.f32 %v11268, %v11308
        %v11310 = vpop.f32.mrb[0].mxu0
        %v11311 = vpop.f32.mrb[0].mxu0
        %11312 = vdwg.mxu0
        %11313 = vmatprep.subr.bf16.mxu0 %v9143
        %11314 = vmatpush1.bf16.msra.mxu0 %v9142
        %11315 = vmatprep.subr.bf16.mxu0 %v9175
        %11316 = vmatpush1.bf16.msra.mxu0 %v9174
        %11317 = vmatprep.subr.bf16.mxu0 %v9207
        %11318 = vmatpush1.bf16.msra.mxu0 %v9206
        %11319 = vmatprep.subr.bf16.mxu0 %v9239
        %11320 = vmatpush1.bf16.msra.mxu0 %v9238
        %11321 = vmatprep.subr.bf16.mxu0 %v9271
        %11322 = vmatpush1.bf16.msra.mxu0 %v9270
        %11323 = vmatprep.subr.bf16.mxu0 %v9303
        %11324 = vmatpush1.bf16.msra.mxu0 %v9302
        %11325 = vmatprep.subr.bf16.mxu0 %v9335
        %11326 = vmatpush1.bf16.msra.mxu0 %v9334
        %11327 = vmatprep.subr.bf16.mxu0 %v9367
        %11328 = vmatpush1.bf16.msra.mxu0 %v9366
        %11329 = vmatprep.subr.bf16.mxu0 0
        %11330 = vmatpush1.bf16.msra.mxu0 0
        %11331 = vmatprep.subr.bf16.mxu0 0
        %11332 = vmatpush1.bf16.msra.mxu0 0
        %11333 = vmatprep.subr.bf16.mxu0 0
        %11334 = vmatpush1.bf16.msra.mxu0 0
        %11335 = vmatprep.subr.bf16.mxu0 0
        %11336 = vmatpush1.bf16.msra.mxu0 0
        %11337 = vmatprep.subr.bf16.mxu0 0
        %11338 = vmatpush1.bf16.msra.mxu0 0
        %11339 = vmatprep.subr.bf16.mxu0 0
        %11340 = vmatpush1.bf16.msra.mxu0 0
        %11341 = vmatprep.subr.bf16.mxu0 0
        %11342 = vmatpush1.bf16.msra.mxu0 0
        %11343 = vmatprep.subr.bf16.mxu0 0
        %11344 = vmatpush1.bf16.msra.mxu0 0
        %11345 = vmatprep.mubr.bf16.mxu0 0
        %11346 = vmatmul.mubr.bf16.gmra.mrb[0].mxu0 %v2222
        %v11347 = vpop.f32.mrb[0].mxu0
        %v11348 = vadd.f32 %v11307, %v11347
        %v11349 = vpop.f32.mrb[0].mxu0
        %v11350 = vadd.f32 %v11309, %v11349
        %v11351 = vpop.f32.mrb[0].mxu0
        %v11352 = vpop.f32.mrb[0].mxu0
        %11353 = vdwg.mxu0
        %11354 = vmatprep.subr.bf16.mxu0 %v7609
        %11355 = vmatpush1.bf16.msra.mxu0 %v7608
        %11356 = vmatprep.subr.bf16.mxu0 %v7641
        %11357 = vmatpush1.bf16.msra.mxu0 %v7640
        %11358 = vmatprep.subr.bf16.mxu0 %v7673
        %11359 = vmatpush1.bf16.msra.mxu0 %v7672
        %11360 = vmatprep.subr.bf16.mxu0 %v7705
        %11361 = vmatpush1.bf16.msra.mxu0 %v7704
        %11362 = vmatprep.subr.bf16.mxu0 %v7737
        %11363 = vmatpush1.bf16.msra.mxu0 %v7736
        %11364 = vmatprep.subr.bf16.mxu0 %v7769
        %11365 = vmatpush1.bf16.msra.mxu0 %v7768
        %11366 = vmatprep.subr.bf16.mxu0 %v7801
        %11367 = vmatpush1.bf16.msra.mxu0 %v7800
        %11368 = vmatprep.subr.bf16.mxu0 %v7833
        %11369 = vmatpush1.bf16.msra.mxu0 %v7832
        %11370 = vmatprep.subr.bf16.mxu0 %v7865
        %11371 = vmatpush1.bf16.msra.mxu0 %v7864
        %11372 = vmatprep.subr.bf16.mxu0 %v7897
        %11373 = vmatpush1.bf16.msra.mxu0 %v7896
        %11374 = vmatprep.subr.bf16.mxu0 %v7929
        %11375 = vmatpush1.bf16.msra.mxu0 %v7928
        %11376 = vmatprep.subr.bf16.mxu0 %v7961
        %11377 = vmatpush1.bf16.msra.mxu0 %v7960
        %11378 = vmatprep.subr.bf16.mxu0 %v7993
        %11379 = vmatpush1.bf16.msra.mxu0 %v7992
        %11380 = vmatprep.subr.bf16.mxu0 %v8025
        %11381 = vmatpush1.bf16.msra.mxu0 %v8024
        %11382 = vmatprep.subr.bf16.mxu0 %v8057
        %11383 = vmatpush1.bf16.msra.mxu0 %v8056
        %11384 = vmatprep.subr.bf16.mxu0 %v8089
        %11385 = vmatpush1.bf16.msra.mxu0 %v8088
        %11386 = vmatprep.mubr.bf16.mxu0 %v2217
        %11387 = vmatmul.mubr.bf16.gmra.mrb[0].mxu0 %v2216
        %v11388 = vpop.f32.mrb[0].mxu0
        %v11389 = vadd.f32 %v2056, %v11388
        %v11390 = vpop.f32.mrb[0].mxu0
        %v11391 = vadd.f32 %v2060, %v11390
        %v11392 = vpop.f32.mrb[0].mxu0
        %v11393 = vpop.f32.mrb[0].mxu0
        %11394 = vdwg.mxu0
        %11395 = vmatprep.subr.bf16.mxu0 %v8121
        %11396 = vmatpush1.bf16.msra.mxu0 %v8120
        %11397 = vmatprep.subr.bf16.mxu0 %v8153
        %11398 = vmatpush1.bf16.msra.mxu0 %v8152
        %11399 = vmatprep.subr.bf16.mxu0 %v8185
        %11400 = vmatpush1.bf16.msra.mxu0 %v8184
        %11401 = vmatprep.subr.bf16.mxu0 %v8217
        %11402 = vmatpush1.bf16.msra.mxu0 %v8216
        %11403 = vmatprep.subr.bf16.mxu0 %v8249
        %11404 = vmatpush1.bf16.msra.mxu0 %v8248
        %11405 = vmatprep.subr.bf16.mxu0 %v8281
        %11406 = vmatpush1.bf16.msra.mxu0 %v8280
        %11407 = vmatprep.subr.bf16.mxu0 %v8313
        %11408 = vmatpush1.bf16.msra.mxu0 %v8312
        %11409 = vmatprep.subr.bf16.mxu0 %v8345
        %11410 = vmatpush1.bf16.msra.mxu0 %v8344
        %11411 = vmatprep.subr.bf16.mxu0 %v8377
        %11412 = vmatpush1.bf16.msra.mxu0 %v8376
        %11413 = vmatprep.subr.bf16.mxu0 %v8409
        %11414 = vmatpush1.bf16.msra.mxu0 %v8408
        %11415 = vmatprep.subr.bf16.mxu0 %v8441
        %11416 = vmatpush1.bf16.msra.mxu0 %v8440
        %11417 = vmatprep.subr.bf16.mxu0 %v8473
        %11418 = vmatpush1.bf16.msra.mxu0 %v8472
        %11419 = vmatprep.subr.bf16.mxu0 %v8505
        %11420 = vmatpush1.bf16.msra.mxu0 %v8504
        %11421 = vmatprep.subr.bf16.mxu0 %v8537
        %11422 = vmatpush1.bf16.msra.mxu0 %v8536
        %11423 = vmatprep.subr.bf16.mxu0 %v8569
        %11424 = vmatpush1.bf16.msra.mxu0 %v8568
        %11425 = vmatprep.subr.bf16.mxu0 %v8601
        %11426 = vmatpush1.bf16.msra.mxu0 %v8600
        %11427 = vmatprep.mubr.bf16.mxu0 %v2219
        %11428 = vmatmul.mubr.bf16.gmra.mrb[0].mxu0 %v2218
        %v11429 = vpop.f32.mrb[0].mxu0
        %v11430 = vadd.f32 %v11389, %v11429
        %v11431 = vpop.f32.mrb[0].mxu0
        %v11432 = vadd.f32 %v11391, %v11431
        %v11433 = vpop.f32.mrb[0].mxu0
        %v11434 = vpop.f32.mrb[0].mxu0
        %11435 = vdwg.mxu0
        %11436 = vmatprep.subr.bf16.mxu0 %v8633
        %11437 = vmatpush1.bf16.msra.mxu0 %v8632
        %11438 = vmatprep.subr.bf16.mxu0 %v8665
        %11439 = vmatpush1.bf16.msra.mxu0 %v8664
        %11440 = vmatprep.subr.bf16.mxu0 %v8697
        %11441 = vmatpush1.bf16.msra.mxu0 %v8696
        %11442 = vmatprep.subr.bf16.mxu0 %v8729
        %11443 = vmatpush1.bf16.msra.mxu0 %v8728
        %11444 = vmatprep.subr.bf16.mxu0 %v8761
        %11445 = vmatpush1.bf16.msra.mxu0 %v8760
        %11446 = vmatprep.subr.bf16.mxu0 %v8793
        %11447 = vmatpush1.bf16.msra.mxu0 %v8792
        %11448 = vmatprep.subr.bf16.mxu0 %v8825
        %11449 = vmatpush1.bf16.msra.mxu0 %v8824
        %11450 = vmatprep.subr.bf16.mxu0 %v8857
        %11451 = vmatpush1.bf16.msra.mxu0 %v8856
        %11452 = vmatprep.subr.bf16.mxu0 %v8889
        %11453 = vmatpush1.bf16.msra.mxu0 %v8888
        %11454 = vmatprep.subr.bf16.mxu0 %v8921
        %11455 = vmatpush1.bf16.msra.mxu0 %v8920
        %11456 = vmatprep.subr.bf16.mxu0 %v8953
        %11457 = vmatpush1.bf16.msra.mxu0 %v8952
        %11458 = vmatprep.subr.bf16.mxu0 %v8985
        %11459 = vmatpush1.bf16.msra.mxu0 %v8984
        %11460 = vmatprep.subr.bf16.mxu0 %v9017
        %11461 = vmatpush1.bf16.msra.mxu0 %v9016
        %11462 = vmatprep.subr.bf16.mxu0 %v9049
        %11463 = vmatpush1.bf16.msra.mxu0 %v9048
        %11464 = vmatprep.subr.bf16.mxu0 %v9081
        %11465 = vmatpush1.bf16.msra.mxu0 %v9080
        %11466 = vmatprep.subr.bf16.mxu0 %v9113
        %11467 = vmatpush1.bf16.msra.mxu0 %v9112
        %11468 = vmatprep.mubr.bf16.mxu0 %v2221
        %11469 = vmatmul.mubr.bf16.gmra.mrb[0].mxu0 %v2220
        %v11470 = vpop.f32.mrb[0].mxu0
        %v11471 = vadd.f32 %v11430, %v11470
        %v11472 = vpop.f32.mrb[0].mxu0
        %v11473 = vadd.f32 %v11432, %v11472
        %v11474 = vpop.f32.mrb[0].mxu0
        %v11475 = vpop.f32.mrb[0].mxu0
        %11476 = vdwg.mxu0
        %11477 = vmatprep.subr.bf16.mxu0 %v9145
        %11478 = vmatpush1.bf16.msra.mxu0 %v9144
        %11479 = vmatprep.subr.bf16.mxu0 %v9177
        %11480 = vmatpush1.bf16.msra.mxu0 %v9176
        %11481 = vmatprep.subr.bf16.mxu0 %v9209
        %11482 = vmatpush1.bf16.msra.mxu0 %v9208
        %11483 = vmatprep.subr.bf16.mxu0 %v9241
        %11484 = vmatpush1.bf16.msra.mxu0 %v9240
        %11485 = vmatprep.subr.bf16.mxu0 %v9273
        %11486 = vmatpush1.bf16.msra.mxu0 %v9272
        %11487 = vmatprep.subr.bf16.mxu0 %v9305
        %11488 = vmatpush1.bf16.msra.mxu0 %v9304
        %11489 = vmatprep.subr.bf16.mxu0 %v9337
        %11490 = vmatpush1.bf16.msra.mxu0 %v9336
        %11491 = vmatprep.subr.bf16.mxu0 %v9369
        %11492 = vmatpush1.bf16.msra.mxu0 %v9368
        %11493 = vmatprep.subr.bf16.mxu0 0
        %11494 = vmatpush1.bf16.msra.mxu0 0
        %11495 = vmatprep.subr.bf16.mxu0 0
        %11496 = vmatpush1.bf16.msra.mxu0 0
        %11497 = vmatprep.subr.bf16.mxu0 0
        %11498 = vmatpush1.bf16.msra.mxu0 0
        %11499 = vmatprep.subr.bf16.mxu0 0
        %11500 = vmatpush1.bf16.msra.mxu0 0
        %11501 = vmatprep.subr.bf16.mxu0 0
        %11502 = vmatpush1.bf16.msra.mxu0 0
        %11503 = vmatprep.subr.bf16.mxu0 0
        %11504 = vmatpush1.bf16.msra.mxu0 0
        %11505 = vmatprep.subr.bf16.mxu0 0
        %11506 = vmatpush1.bf16.msra.mxu0 0
        %11507 = vmatprep.subr.bf16.mxu0 0
        %11508 = vmatpush1.bf16.msra.mxu0 0
        %11509 = vmatprep.mubr.bf16.mxu0 0
        %11510 = vmatmul.mubr.bf16.gmra.mrb[0].mxu0 %v2222
        %v11511 = vpop.f32.mrb[0].mxu0
        %v11512 = vadd.f32 %v11471, %v11511
        %v11513 = vpop.f32.mrb[0].mxu0
        %v11514 = vadd.f32 %v11473, %v11513
        %v11515 = vpop.f32.mrb[0].mxu0
        %v11516 = vpop.f32.mrb[0].mxu0
        %11517 = vdwg.mxu0
        %11518 = vmatprep.subr.bf16.mxu0 %v7611
        %11519 = vmatpush1.bf16.msra.mxu0 %v7610
        %11520 = vmatprep.subr.bf16.mxu0 %v7643
        %11521 = vmatpush1.bf16.msra.mxu0 %v7642
        %11522 = vmatprep.subr.bf16.mxu0 %v7675
        %11523 = vmatpush1.bf16.msra.mxu0 %v7674
        %11524 = vmatprep.subr.bf16.mxu0 %v7707
        %11525 = vmatpush1.bf16.msra.mxu0 %v7706
        %11526 = vmatprep.subr.bf16.mxu0 %v7739
        %11527 = vmatpush1.bf16.msra.mxu0 %v7738
        %11528 = vmatprep.subr.bf16.mxu0 %v7771
        %11529 = vmatpush1.bf16.msra.mxu0 %v7770
        %11530 = vmatprep.subr.bf16.mxu0 %v7803
        %11531 = vmatpush1.bf16.msra.mxu0 %v7802
        %11532 = vmatprep.subr.bf16.mxu0 %v7835
        %11533 = vmatpush1.bf16.msra.mxu0 %v7834
        %11534 = vmatprep.subr.bf16.mxu0 %v7867
        %11535 = vmatpush1.bf16.msra.mxu0 %v7866
        %11536 = vmatprep.subr.bf16.mxu0 %v7899
        %11537 = vmatpush1.bf16.msra.mxu0 %v7898
        %11538 = vmatprep.subr.bf16.mxu0 %v7931
        %11539 = vmatpush1.bf16.msra.mxu0 %v7930
        %11540 = vmatprep.subr.bf16.mxu0 %v7963
        %11541 = vmatpush1.bf16.msra.mxu0 %v7962
        %11542 = vmatprep.subr.bf16.mxu0 %v7995
        %11543 = vmatpush1.bf16.msra.mxu0 %v7994
        %11544 = vmatprep.subr.bf16.mxu0 %v8027
        %11545 = vmatpush1.bf16.msra.mxu0 %v8026
        %11546 = vmatprep.subr.bf16.mxu0 %v8059
        %11547 = vmatpush1.bf16.msra.mxu0 %v8058
        %11548 = vmatprep.subr.bf16.mxu0 %v8091
        %11549 = vmatpush1.bf16.msra.mxu0 %v8090
        %11550 = vmatprep.mubr.bf16.mxu0 %v2217
        %11551 = vmatmul.mubr.bf16.gmra.mrb[0].mxu0 %v2216
        %v11552 = vpop.f32.mrb[0].mxu0
        %v11553 = vadd.f32 %v2064, %v11552
        %v11554 = vpop.f32.mrb[0].mxu0
        %v11555 = vadd.f32 %v2068, %v11554
        %v11556 = vpop.f32.mrb[0].mxu0
        %v11557 = vpop.f32.mrb[0].mxu0
        %11558 = vdwg.mxu0
        %11559 = vmatprep.subr.bf16.mxu0 %v8123
        %11560 = vmatpush1.bf16.msra.mxu0 %v8122
        %11561 = vmatprep.subr.bf16.mxu0 %v8155
        %11562 = vmatpush1.bf16.msra.mxu0 %v8154
        %11563 = vmatprep.subr.bf16.mxu0 %v8187
        %11564 = vmatpush1.bf16.msra.mxu0 %v8186
        %11565 = vmatprep.subr.bf16.mxu0 %v8219
        %11566 = vmatpush1.bf16.msra.mxu0 %v8218
        %11567 = vmatprep.subr.bf16.mxu0 %v8251
        %11568 = vmatpush1.bf16.msra.mxu0 %v8250
        %11569 = vmatprep.subr.bf16.mxu0 %v8283
        %11570 = vmatpush1.bf16.msra.mxu0 %v8282
        %11571 = vmatprep.subr.bf16.mxu0 %v8315
        %11572 = vmatpush1.bf16.msra.mxu0 %v8314
        %11573 = vmatprep.subr.bf16.mxu0 %v8347
        %11574 = vmatpush1.bf16.msra.mxu0 %v8346
        %11575 = vmatprep.subr.bf16.mxu0 %v8379
        %11576 = vmatpush1.bf16.msra.mxu0 %v8378
        %11577 = vmatprep.subr.bf16.mxu0 %v8411
        %11578 = vmatpush1.bf16.msra.mxu0 %v8410
        %11579 = vmatprep.subr.bf16.mxu0 %v8443
        %11580 = vmatpush1.bf16.msra.mxu0 %v8442
        %11581 = vmatprep.subr.bf16.mxu0 %v8475
        %11582 = vmatpush1.bf16.msra.mxu0 %v8474
        %11583 = vmatprep.subr.bf16.mxu0 %v8507
        %11584 = vmatpush1.bf16.msra.mxu0 %v8506
        %11585 = vmatprep.subr.bf16.mxu0 %v8539
        %11586 = vmatpush1.bf16.msra.mxu0 %v8538
        %11587 = vmatprep.subr.bf16.mxu0 %v8571
        %11588 = vmatpush1.bf16.msra.mxu0 %v8570
        %11589 = vmatprep.subr.bf16.mxu0 %v8603
        %11590 = vmatpush1.bf16.msra.mxu0 %v8602
        %11591 = vmatprep.mubr.bf16.mxu0 %v2219
        %11592 = vmatmul.mubr.bf16.gmra.mrb[0].mxu0 %v2218
        %v11593 = vpop.f32.mrb[0].mxu0
        %v11594 = vadd.f32 %v11553, %v11593
        %v11595 = vpop.f32.mrb[0].mxu0
        %v11596 = vadd.f32 %v11555, %v11595
        %v11597 = vpop.f32.mrb[0].mxu0
        %v11598 = vpop.f32.mrb[0].mxu0
        %11599 = vdwg.mxu0
        %11600 = vmatprep.subr.bf16.mxu0 %v8635
        %11601 = vmatpush1.bf16.msra.mxu0 %v8634
        %11602 = vmatprep.subr.bf16.mxu0 %v8667
        %11603 = vmatpush1.bf16.msra.mxu0 %v8666
        %11604 = vmatprep.subr.bf16.mxu0 %v8699
        %11605 = vmatpush1.bf16.msra.mxu0 %v8698
        %11606 = vmatprep.subr.bf16.mxu0 %v8731
        %11607 = vmatpush1.bf16.msra.mxu0 %v8730
        %11608 = vmatprep.subr.bf16.mxu0 %v8763
        %11609 = vmatpush1.bf16.msra.mxu0 %v8762
        %11610 = vmatprep.subr.bf16.mxu0 %v8795
        %11611 = vmatpush1.bf16.msra.mxu0 %v8794
        %11612 = vmatprep.subr.bf16.mxu0 %v8827
        %11613 = vmatpush1.bf16.msra.mxu0 %v8826
        %11614 = vmatprep.subr.bf16.mxu0 %v8859
        %11615 = vmatpush1.bf16.msra.mxu0 %v8858
        %11616 = vmatprep.subr.bf16.mxu0 %v8891
        %11617 = vmatpush1.bf16.msra.mxu0 %v8890
        %11618 = vmatprep.subr.bf16.mxu0 %v8923
        %11619 = vmatpush1.bf16.msra.mxu0 %v8922
        %11620 = vmatprep.subr.bf16.mxu0 %v8955
        %11621 = vmatpush1.bf16.msra.mxu0 %v8954
        %11622 = vmatprep.subr.bf16.mxu0 %v8987
        %11623 = vmatpush1.bf16.msra.mxu0 %v8986
        %11624 = vmatprep.subr.bf16.mxu0 %v9019
        %11625 = vmatpush1.bf16.msra.mxu0 %v9018
        %11626 = vmatprep.subr.bf16.mxu0 %v9051
        %11627 = vmatpush1.bf16.msra.mxu0 %v9050
        %11628 = vmatprep.subr.bf16.mxu0 %v9083
        %11629 = vmatpush1.bf16.msra.mxu0 %v9082
        %11630 = vmatprep.subr.bf16.mxu0 %v9115
        %11631 = vmatpush1.bf16.msra.mxu0 %v9114
        %11632 = vmatprep.mubr.bf16.mxu0 %v2221
        %11633 = vmatmul.mubr.bf16.gmra.mrb[0].mxu0 %v2220
        %v11634 = vpop.f32.mrb[0].mxu0
        %v11635 = vadd.f32 %v11594, %v11634
        %v11636 = vpop.f32.mrb[0].mxu0
        %v11637 = vadd.f32 %v11596, %v11636
        %v11638 = vpop.f32.mrb[0].mxu0
        %v11639 = vpop.f32.mrb[0].mxu0
        %11640 = vdwg.mxu0
        %11641 = vmatprep.subr.bf16.mxu0 %v9147
        %11642 = vmatpush1.bf16.msra.mxu0 %v9146
        %11643 = vmatprep.subr.bf16.mxu0 %v9179
        %11644 = vmatpush1.bf16.msra.mxu0 %v9178
        %11645 = vmatprep.subr.bf16.mxu0 %v9211
        %11646 = vmatpush1.bf16.msra.mxu0 %v9210
        %11647 = vmatprep.subr.bf16.mxu0 %v9243
        %11648 = vmatpush1.bf16.msra.mxu0 %v9242
        %11649 = vmatprep.subr.bf16.mxu0 %v9275
        %11650 = vmatpush1.bf16.msra.mxu0 %v9274
        %11651 = vmatprep.subr.bf16.mxu0 %v9307
        %11652 = vmatpush1.bf16.msra.mxu0 %v9306
        %11653 = vmatprep.subr.bf16.mxu0 %v9339
        %11654 = vmatpush1.bf16.msra.mxu0 %v9338
        %11655 = vmatprep.subr.bf16.mxu0 %v9371
        %11656 = vmatpush1.bf16.msra.mxu0 %v9370
        %11657 = vmatprep.subr.bf16.mxu0 0
        %11658 = vmatpush1.bf16.msra.mxu0 0
        %11659 = vmatprep.subr.bf16.mxu0 0
        %11660 = vmatpush1.bf16.msra.mxu0 0
        %11661 = vmatprep.subr.bf16.mxu0 0
        %11662 = vmatpush1.bf16.msra.mxu0 0
        %11663 = vmatprep.subr.bf16.mxu0 0
        %11664 = vmatpush1.bf16.msra.mxu0 0
        %11665 = vmatprep.subr.bf16.mxu0 0
        %11666 = vmatpush1.bf16.msra.mxu0 0
        %11667 = vmatprep.subr.bf16.mxu0 0
        %11668 = vmatpush1.bf16.msra.mxu0 0
        %11669 = vmatprep.subr.bf16.mxu0 0
        %11670 = vmatpush1.bf16.msra.mxu0 0
        %11671 = vmatprep.subr.bf16.mxu0 0
        %11672 = vmatpush1.bf16.msra.mxu0 0
        %11673 = vmatprep.mubr.bf16.mxu0 0
        %11674 = vmatmul.mubr.bf16.gmra.mrb[0].mxu0 %v2222
        %v11675 = vpop.f32.mrb[0].mxu0
        %v11676 = vadd.f32 %v11635, %v11675
        %v11677 = vpop.f32.mrb[0].mxu0
        %v11678 = vadd.f32 %v11637, %v11677
        %v11679 = vpop.f32.mrb[0].mxu0
        %v11680 = vpop.f32.mrb[0].mxu0
        %11681 = vdwg.mxu0
        %11682 = vmatprep.subr.bf16.mxu0 %v7613
        %11683 = vmatpush1.bf16.msra.mxu0 %v7612
        %11684 = vmatprep.subr.bf16.mxu0 %v7645
        %11685 = vmatpush1.bf16.msra.mxu0 %v7644
        %11686 = vmatprep.subr.bf16.mxu0 %v7677
        %11687 = vmatpush1.bf16.msra.mxu0 %v7676
        %11688 = vmatprep.subr.bf16.mxu0 %v7709
        %11689 = vmatpush1.bf16.msra.mxu0 %v7708
        %11690 = vmatprep.subr.bf16.mxu0 %v7741
        %11691 = vmatpush1.bf16.msra.mxu0 %v7740
        %11692 = vmatprep.subr.bf16.mxu0 %v7773
        %11693 = vmatpush1.bf16.msra.mxu0 %v7772
        %11694 = vmatprep.subr.bf16.mxu0 %v7805
        %11695 = vmatpush1.bf16.msra.mxu0 %v7804
        %11696 = vmatprep.subr.bf16.mxu0 %v7837
        %11697 = vmatpush1.bf16.msra.mxu0 %v7836
        %11698 = vmatprep.subr.bf16.mxu0 %v7869
        %11699 = vmatpush1.bf16.msra.mxu0 %v7868
        %11700 = vmatprep.subr.bf16.mxu0 %v7901
        %11701 = vmatpush1.bf16.msra.mxu0 %v7900
        %11702 = vmatprep.subr.bf16.mxu0 %v7933
        %11703 = vmatpush1.bf16.msra.mxu0 %v7932
        %11704 = vmatprep.subr.bf16.mxu0 %v7965
        %11705 = vmatpush1.bf16.msra.mxu0 %v7964
        %11706 = vmatprep.subr.bf16.mxu0 %v7997
        %11707 = vmatpush1.bf16.msra.mxu0 %v7996
        %11708 = vmatprep.subr.bf16.mxu0 %v8029
        %11709 = vmatpush1.bf16.msra.mxu0 %v8028
        %11710 = vmatprep.subr.bf16.mxu0 %v8061
        %11711 = vmatpush1.bf16.msra.mxu0 %v8060
        %11712 = vmatprep.subr.bf16.mxu0 %v8093
        %11713 = vmatpush1.bf16.msra.mxu0 %v8092
        %11714 = vmatprep.mubr.bf16.mxu0 %v2217
        %11715 = vmatmul.mubr.bf16.gmra.mrb[0].mxu0 %v2216
        %v11716 = vpop.f32.mrb[0].mxu0
        %v11717 = vadd.f32 %v2072, %v11716
        %v11718 = vpop.f32.mrb[0].mxu0
        %v11719 = vadd.f32 %v2076, %v11718
        %v11720 = vpop.f32.mrb[0].mxu0
        %v11721 = vpop.f32.mrb[0].mxu0
        %11722 = vdwg.mxu0
        %11723 = vmatprep.subr.bf16.mxu0 %v8125
        %11724 = vmatpush1.bf16.msra.mxu0 %v8124
        %11725 = vmatprep.subr.bf16.mxu0 %v8157
        %11726 = vmatpush1.bf16.msra.mxu0 %v8156
        %11727 = vmatprep.subr.bf16.mxu0 %v8189
        %11728 = vmatpush1.bf16.msra.mxu0 %v8188
        %11729 = vmatprep.subr.bf16.mxu0 %v8221
        %11730 = vmatpush1.bf16.msra.mxu0 %v8220
        %11731 = vmatprep.subr.bf16.mxu0 %v8253
        %11732 = vmatpush1.bf16.msra.mxu0 %v8252
        %11733 = vmatprep.subr.bf16.mxu0 %v8285
        %11734 = vmatpush1.bf16.msra.mxu0 %v8284
        %11735 = vmatprep.subr.bf16.mxu0 %v8317
        %11736 = vmatpush1.bf16.msra.mxu0 %v8316
        %11737 = vmatprep.subr.bf16.mxu0 %v8349
        %11738 = vmatpush1.bf16.msra.mxu0 %v8348
        %11739 = vmatprep.subr.bf16.mxu0 %v8381
        %11740 = vmatpush1.bf16.msra.mxu0 %v8380
        %11741 = vmatprep.subr.bf16.mxu0 %v8413
        %11742 = vmatpush1.bf16.msra.mxu0 %v8412
        %11743 = vmatprep.subr.bf16.mxu0 %v8445
        %11744 = vmatpush1.bf16.msra.mxu0 %v8444
        %11745 = vmatprep.subr.bf16.mxu0 %v8477
        %11746 = vmatpush1.bf16.msra.mxu0 %v8476
        %11747 = vmatprep.subr.bf16.mxu0 %v8509
        %11748 = vmatpush1.bf16.msra.mxu0 %v8508
        %11749 = vmatprep.subr.bf16.mxu0 %v8541
        %11750 = vmatpush1.bf16.msra.mxu0 %v8540
        %11751 = vmatprep.subr.bf16.mxu0 %v8573
        %11752 = vmatpush1.bf16.msra.mxu0 %v8572
        %11753 = vmatprep.subr.bf16.mxu0 %v8605
        %11754 = vmatpush1.bf16.msra.mxu0 %v8604
        %11755 = vmatprep.mubr.bf16.mxu0 %v2219
        %11756 = vmatmul.mubr.bf16.gmra.mrb[0].mxu0 %v2218
        %v11757 = vpop.f32.mrb[0].mxu0
        %v11758 = vadd.f32 %v11717, %v11757
        %v11759 = vpop.f32.mrb[0].mxu0
        %v11760 = vadd.f32 %v11719, %v11759
        %v11761 = vpop.f32.mrb[0].mxu0
        %v11762 = vpop.f32.mrb[0].mxu0
        %11763 = vdwg.mxu0
        %11764 = vmatprep.subr.bf16.mxu0 %v8637
        %11765 = vmatpush1.bf16.msra.mxu0 %v8636
        %11766 = vmatprep.subr.bf16.mxu0 %v8669
        %11767 = vmatpush1.bf16.msra.mxu0 %v8668
        %11768 = vmatprep.subr.bf16.mxu0 %v8701
        %11769 = vmatpush1.bf16.msra.mxu0 %v8700
        %11770 = vmatprep.subr.bf16.mxu0 %v8733
        %11771 = vmatpush1.bf16.msra.mxu0 %v8732
        %11772 = vmatprep.subr.bf16.mxu0 %v8765
        %11773 = vmatpush1.bf16.msra.mxu0 %v8764
        %11774 = vmatprep.subr.bf16.mxu0 %v8797
        %11775 = vmatpush1.bf16.msra.mxu0 %v8796
        %11776 = vmatprep.subr.bf16.mxu0 %v8829
        %11777 = vmatpush1.bf16.msra.mxu0 %v8828
        %11778 = vmatprep.subr.bf16.mxu0 %v8861
        %11779 = vmatpush1.bf16.msra.mxu0 %v8860
        %11780 = vmatprep.subr.bf16.mxu0 %v8893
        %11781 = vmatpush1.bf16.msra.mxu0 %v8892
        %11782 = vmatprep.subr.bf16.mxu0 %v8925
        %11783 = vmatpush1.bf16.msra.mxu0 %v8924
        %11784 = vmatprep.subr.bf16.mxu0 %v8957
        %11785 = vmatpush1.bf16.msra.mxu0 %v8956
        %11786 = vmatprep.subr.bf16.mxu0 %v8989
        %11787 = vmatpush1.bf16.msra.mxu0 %v8988
        %11788 = vmatprep.subr.bf16.mxu0 %v9021
        %11789 = vmatpush1.bf16.msra.mxu0 %v9020
        %11790 = vmatprep.subr.bf16.mxu0 %v9053
        %11791 = vmatpush1.bf16.msra.mxu0 %v9052
        %11792 = vmatprep.subr.bf16.mxu0 %v9085
        %11793 = vmatpush1.bf16.msra.mxu0 %v9084
        %11794 = vmatprep.subr.bf16.mxu0 %v9117
        %11795 = vmatpush1.bf16.msra.mxu0 %v9116
        %11796 = vmatprep.mubr.bf16.mxu0 %v2221
        %11797 = vmatmul.mubr.bf16.gmra.mrb[0].mxu0 %v2220
        %v11798 = vpop.f32.mrb[0].mxu0
        %v11799 = vadd.f32 %v11758, %v11798
        %v11800 = vpop.f32.mrb[0].mxu0
        %v11801 = vadd.f32 %v11760, %v11800
        %v11802 = vpop.f32.mrb[0].mxu0
        %v11803 = vpop.f32.mrb[0].mxu0
        %11804 = vdwg.mxu0
        %11805 = vmatprep.subr.bf16.mxu0 %v9149
        %11806 = vmatpush1.bf16.msra.mxu0 %v9148
        %11807 = vmatprep.subr.bf16.mxu0 %v9181
        %11808 = vmatpush1.bf16.msra.mxu0 %v9180
        %11809 = vmatprep.subr.bf16.mxu0 %v9213
        %11810 = vmatpush1.bf16.msra.mxu0 %v9212
        %11811 = vmatprep.subr.bf16.mxu0 %v9245
        %11812 = vmatpush1.bf16.msra.mxu0 %v9244
        %11813 = vmatprep.subr.bf16.mxu0 %v9277
        %11814 = vmatpush1.bf16.msra.mxu0 %v9276
        %11815 = vmatprep.subr.bf16.mxu0 %v9309
        %11816 = vmatpush1.bf16.msra.mxu0 %v9308
        %11817 = vmatprep.subr.bf16.mxu0 %v9341
        %11818 = vmatpush1.bf16.msra.mxu0 %v9340
        %11819 = vmatprep.subr.bf16.mxu0 %v9373
        %11820 = vmatpush1.bf16.msra.mxu0 %v9372
        %11821 = vmatprep.subr.bf16.mxu0 0
        %11822 = vmatpush1.bf16.msra.mxu0 0
        %11823 = vmatprep.subr.bf16.mxu0 0
        %11824 = vmatpush1.bf16.msra.mxu0 0
        %11825 = vmatprep.subr.bf16.mxu0 0
        %11826 = vmatpush1.bf16.msra.mxu0 0
        %11827 = vmatprep.subr.bf16.mxu0 0
        %11828 = vmatpush1.bf16.msra.mxu0 0
        %11829 = vmatprep.subr.bf16.mxu0 0
        %11830 = vmatpush1.bf16.msra.mxu0 0
        %11831 = vmatprep.subr.bf16.mxu0 0
        %11832 = vmatpush1.bf16.msra.mxu0 0
        %11833 = vmatprep.subr.bf16.mxu0 0
        %11834 = vmatpush1.bf16.msra.mxu0 0
        %11835 = vmatprep.subr.bf16.mxu0 0
        %11836 = vmatpush1.bf16.msra.mxu0 0
        %11837 = vmatprep.mubr.bf16.mxu0 0
        %11838 = vmatmul.mubr.bf16.gmra.mrb[0].mxu0 %v2222
        %v11839 = vpop.f32.mrb[0].mxu0
        %v11840 = vadd.f32 %v11799, %v11839
        %v11841 = vpop.f32.mrb[0].mxu0
        %v11842 = vadd.f32 %v11801, %v11841
        %v11843 = vpop.f32.mrb[0].mxu0
        %v11844 = vpop.f32.mrb[0].mxu0
        %11845 = vdwg.mxu0
        %11846 = vmatprep.subr.bf16.mxu0 %v7615
        %11847 = vmatpush1.bf16.msra.mxu0 %v7614
        %11848 = vmatprep.subr.bf16.mxu0 %v7647
        %11849 = vmatpush1.bf16.msra.mxu0 %v7646
        %11850 = vmatprep.subr.bf16.mxu0 %v7679
        %11851 = vmatpush1.bf16.msra.mxu0 %v7678
        %11852 = vmatprep.subr.bf16.mxu0 %v7711
        %11853 = vmatpush1.bf16.msra.mxu0 %v7710
        %11854 = vmatprep.subr.bf16.mxu0 %v7743
        %11855 = vmatpush1.bf16.msra.mxu0 %v7742
        %11856 = vmatprep.subr.bf16.mxu0 %v7775
        %11857 = vmatpush1.bf16.msra.mxu0 %v7774
        %11858 = vmatprep.subr.bf16.mxu0 %v7807
        %11859 = vmatpush1.bf16.msra.mxu0 %v7806
        %11860 = vmatprep.subr.bf16.mxu0 %v7839
        %11861 = vmatpush1.bf16.msra.mxu0 %v7838
        %11862 = vmatprep.subr.bf16.mxu0 %v7871
        %11863 = vmatpush1.bf16.msra.mxu0 %v7870
        %11864 = vmatprep.subr.bf16.mxu0 %v7903
        %11865 = vmatpush1.bf16.msra.mxu0 %v7902
        %11866 = vmatprep.subr.bf16.mxu0 %v7935
        %11867 = vmatpush1.bf16.msra.mxu0 %v7934
        %11868 = vmatprep.subr.bf16.mxu0 %v7967
        %11869 = vmatpush1.bf16.msra.mxu0 %v7966
        %11870 = vmatprep.subr.bf16.mxu0 %v7999
        %11871 = vmatpush1.bf16.msra.mxu0 %v7998
        %11872 = vmatprep.subr.bf16.mxu0 %v8031
        %11873 = vmatpush1.bf16.msra.mxu0 %v8030
        %11874 = vmatprep.subr.bf16.mxu0 %v8063
        %11875 = vmatpush1.bf16.msra.mxu0 %v8062
        %11876 = vmatprep.subr.bf16.mxu0 %v8095
        %11877 = vmatpush1.bf16.msra.mxu0 %v8094
        %11878 = vmatprep.mubr.bf16.mxu0 %v2217
        %11879 = vmatmul.mubr.bf16.gmra.mrb[0].mxu0 %v2216
        %v11880 = vpop.f32.mrb[0].mxu0
        %v11881 = vadd.f32 %v2080, %v11880
        %v11882 = vpop.f32.mrb[0].mxu0
        %v11883 = vadd.f32 %v2084, %v11882
        %v11884 = vpop.f32.mrb[0].mxu0
        %v11885 = vpop.f32.mrb[0].mxu0
        %11886 = vdwg.mxu0
        %11887 = vmatprep.subr.bf16.mxu0 %v8127
        %11888 = vmatpush1.bf16.msra.mxu0 %v8126
        %11889 = vmatprep.subr.bf16.mxu0 %v8159
        %11890 = vmatpush1.bf16.msra.mxu0 %v8158
        %11891 = vmatprep.subr.bf16.mxu0 %v8191
        %11892 = vmatpush1.bf16.msra.mxu0 %v8190
        %11893 = vmatprep.subr.bf16.mxu0 %v8223
        %11894 = vmatpush1.bf16.msra.mxu0 %v8222
        %11895 = vmatprep.subr.bf16.mxu0 %v8255
        %11896 = vmatpush1.bf16.msra.mxu0 %v8254
        %11897 = vmatprep.subr.bf16.mxu0 %v8287
        %11898 = vmatpush1.bf16.msra.mxu0 %v8286
        %11899 = vmatprep.subr.bf16.mxu0 %v8319
        %11900 = vmatpush1.bf16.msra.mxu0 %v8318
        %11901 = vmatprep.subr.bf16.mxu0 %v8351
        %11902 = vmatpush1.bf16.msra.mxu0 %v8350
        %11903 = vmatprep.subr.bf16.mxu0 %v8383
        %11904 = vmatpush1.bf16.msra.mxu0 %v8382
        %11905 = vmatprep.subr.bf16.mxu0 %v8415
        %11906 = vmatpush1.bf16.msra.mxu0 %v8414
        %11907 = vmatprep.subr.bf16.mxu0 %v8447
        %11908 = vmatpush1.bf16.msra.mxu0 %v8446
        %11909 = vmatprep.subr.bf16.mxu0 %v8479
        %11910 = vmatpush1.bf16.msra.mxu0 %v8478
        %11911 = vmatprep.subr.bf16.mxu0 %v8511
        %11912 = vmatpush1.bf16.msra.mxu0 %v8510
        %11913 = vmatprep.subr.bf16.mxu0 %v8543
        %11914 = vmatpush1.bf16.msra.mxu0 %v8542
        %11915 = vmatprep.subr.bf16.mxu0 %v8575
        %11916 = vmatpush1.bf16.msra.mxu0 %v8574
        %11917 = vmatprep.subr.bf16.mxu0 %v8607
        %11918 = vmatpush1.bf16.msra.mxu0 %v8606
        %11919 = vmatprep.mubr.bf16.mxu0 %v2219
        %11920 = vmatmul.mubr.bf16.gmra.mrb[0].mxu0 %v2218
        %v11921 = vpop.f32.mrb[0].mxu0
        %v11922 = vadd.f32 %v11881, %v11921
        %v11923 = vpop.f32.mrb[0].mxu0
        %v11924 = vadd.f32 %v11883, %v11923
        %v11925 = vpop.f32.mrb[0].mxu0
        %v11926 = vpop.f32.mrb[0].mxu0
        %11927 = vdwg.mxu0
        %11928 = vmatprep.subr.bf16.mxu0 %v8639
        %11929 = vmatpush1.bf16.msra.mxu0 %v8638
        %11930 = vmatprep.subr.bf16.mxu0 %v8671
        %11931 = vmatpush1.bf16.msra.mxu0 %v8670
        %11932 = vmatprep.subr.bf16.mxu0 %v8703
        %11933 = vmatpush1.bf16.msra.mxu0 %v8702
        %11934 = vmatprep.subr.bf16.mxu0 %v8735
        %11935 = vmatpush1.bf16.msra.mxu0 %v8734
        %11936 = vmatprep.subr.bf16.mxu0 %v8767
        %11937 = vmatpush1.bf16.msra.mxu0 %v8766
        %11938 = vmatprep.subr.bf16.mxu0 %v8799
        %11939 = vmatpush1.bf16.msra.mxu0 %v8798
        %11940 = vmatprep.subr.bf16.mxu0 %v8831
        %11941 = vmatpush1.bf16.msra.mxu0 %v8830
        %11942 = vmatprep.subr.bf16.mxu0 %v8863
        %11943 = vmatpush1.bf16.msra.mxu0 %v8862
        %11944 = vmatprep.subr.bf16.mxu0 %v8895
        %11945 = vmatpush1.bf16.msra.mxu0 %v8894
        %11946 = vmatprep.subr.bf16.mxu0 %v8927
        %11947 = vmatpush1.bf16.msra.mxu0 %v8926
        %11948 = vmatprep.subr.bf16.mxu0 %v8959
        %11949 = vmatpush1.bf16.msra.mxu0 %v8958
        %11950 = vmatprep.subr.bf16.mxu0 %v8991
        %11951 = vmatpush1.bf16.msra.mxu0 %v8990
        %11952 = vmatprep.subr.bf16.mxu0 %v9023
        %11953 = vmatpush1.bf16.msra.mxu0 %v9022
        %11954 = vmatprep.subr.bf16.mxu0 %v9055
        %11955 = vmatpush1.bf16.msra.mxu0 %v9054
        %11956 = vmatprep.subr.bf16.mxu0 %v9087
        %11957 = vmatpush1.bf16.msra.mxu0 %v9086
        %11958 = vmatprep.subr.bf16.mxu0 %v9119
        %11959 = vmatpush1.bf16.msra.mxu0 %v9118
        %11960 = vmatprep.mubr.bf16.mxu0 %v2221
        %11961 = vmatmul.mubr.bf16.gmra.mrb[0].mxu0 %v2220
        %v11962 = vpop.f32.mrb[0].mxu0
        %v11963 = vadd.f32 %v11922, %v11962
        %v11964 = vpop.f32.mrb[0].mxu0
        %v11965 = vadd.f32 %v11924, %v11964
        %v11966 = vpop.f32.mrb[0].mxu0
        %v11967 = vpop.f32.mrb[0].mxu0
        %11968 = vdwg.mxu0
        %11969 = vmatprep.subr.bf16.mxu0 %v9151
        %11970 = vmatpush1.bf16.msra.mxu0 %v9150
        %11971 = vmatprep.subr.bf16.mxu0 %v9183
        %11972 = vmatpush1.bf16.msra.mxu0 %v9182
        %11973 = vmatprep.subr.bf16.mxu0 %v9215
        %11974 = vmatpush1.bf16.msra.mxu0 %v9214
        %11975 = vmatprep.subr.bf16.mxu0 %v9247
        %11976 = vmatpush1.bf16.msra.mxu0 %v9246
        %11977 = vmatprep.subr.bf16.mxu0 %v9279
        %11978 = vmatpush1.bf16.msra.mxu0 %v9278
        %11979 = vmatprep.subr.bf16.mxu0 %v9311
        %11980 = vmatpush1.bf16.msra.mxu0 %v9310
        %11981 = vmatprep.subr.bf16.mxu0 %v9343
        %11982 = vmatpush1.bf16.msra.mxu0 %v9342
        %11983 = vmatprep.subr.bf16.mxu0 %v9375
        %11984 = vmatpush1.bf16.msra.mxu0 %v9374
        %11985 = vmatprep.subr.bf16.mxu0 0
        %11986 = vmatpush1.bf16.msra.mxu0 0
        %11987 = vmatprep.subr.bf16.mxu0 0
        %11988 = vmatpush1.bf16.msra.mxu0 0
        %11989 = vmatprep.subr.bf16.mxu0 0
        %11990 = vmatpush1.bf16.msra.mxu0 0
        %11991 = vmatprep.subr.bf16.mxu0 0
        %11992 = vmatpush1.bf16.msra.mxu0 0
        %11993 = vmatprep.subr.bf16.mxu0 0
        %11994 = vmatpush1.bf16.msra.mxu0 0
        %11995 = vmatprep.subr.bf16.mxu0 0
        %11996 = vmatpush1.bf16.msra.mxu0 0
        %11997 = vmatprep.subr.bf16.mxu0 0
        %11998 = vmatpush1.bf16.msra.mxu0 0
        %11999 = vmatprep.subr.bf16.mxu0 0
        %12000 = vmatpush1.bf16.msra.mxu0 0
        %12001 = vmatprep.mubr.bf16.mxu0 0
        %12002 = vmatmul.mubr.bf16.gmra.mrb[0].mxu0 %v2222
        %v12003 = vpop.f32.mrb[0].mxu0
        %v12004 = vadd.f32 %v11963, %v12003
        %v12005 = vpop.f32.mrb[0].mxu0
        %v12006 = vadd.f32 %v11965, %v12005
        %v12007 = vpop.f32.mrb[0].mxu0
        %v12008 = vpop.f32.mrb[0].mxu0
        %12009 = vdwg.mxu0
        %12010 = vmatprep.subr.bf16.mxu0 %v7617
        %12011 = vmatpush1.bf16.msra.mxu0 %v7616
        %12012 = vmatprep.subr.bf16.mxu0 %v7649
        %12013 = vmatpush1.bf16.msra.mxu0 %v7648
        %12014 = vmatprep.subr.bf16.mxu0 %v7681
        %12015 = vmatpush1.bf16.msra.mxu0 %v7680
        %12016 = vmatprep.subr.bf16.mxu0 %v7713
        %12017 = vmatpush1.bf16.msra.mxu0 %v7712
        %12018 = vmatprep.subr.bf16.mxu0 %v7745
        %12019 = vmatpush1.bf16.msra.mxu0 %v7744
        %12020 = vmatprep.subr.bf16.mxu0 %v7777
        %12021 = vmatpush1.bf16.msra.mxu0 %v7776
        %12022 = vmatprep.subr.bf16.mxu0 %v7809
        %12023 = vmatpush1.bf16.msra.mxu0 %v7808
        %12024 = vmatprep.subr.bf16.mxu0 %v7841
        %12025 = vmatpush1.bf16.msra.mxu0 %v7840
        %12026 = vmatprep.subr.bf16.mxu0 %v7873
        %12027 = vmatpush1.bf16.msra.mxu0 %v7872
        %12028 = vmatprep.subr.bf16.mxu0 %v7905
        %12029 = vmatpush1.bf16.msra.mxu0 %v7904
        %12030 = vmatprep.subr.bf16.mxu0 %v7937
        %12031 = vmatpush1.bf16.msra.mxu0 %v7936
        %12032 = vmatprep.subr.bf16.mxu0 %v7969
        %12033 = vmatpush1.bf16.msra.mxu0 %v7968
        %12034 = vmatprep.subr.bf16.mxu0 %v8001
        %12035 = vmatpush1.bf16.msra.mxu0 %v8000
        %12036 = vmatprep.subr.bf16.mxu0 %v8033
        %12037 = vmatpush1.bf16.msra.mxu0 %v8032
        %12038 = vmatprep.subr.bf16.mxu0 %v8065
        %12039 = vmatpush1.bf16.msra.mxu0 %v8064
        %12040 = vmatprep.subr.bf16.mxu0 %v8097
        %12041 = vmatpush1.bf16.msra.mxu0 %v8096
        %12042 = vmatprep.mubr.bf16.mxu0 %v2217
        %12043 = vmatmul.mubr.bf16.gmra.mrb[0].mxu0 %v2216
        %v12044 = vpop.f32.mrb[0].mxu0
        %v12045 = vadd.f32 %v2088, %v12044
        %v12046 = vpop.f32.mrb[0].mxu0
        %v12047 = vadd.f32 %v2092, %v12046
        %v12048 = vpop.f32.mrb[0].mxu0
        %v12049 = vpop.f32.mrb[0].mxu0
        %12050 = vdwg.mxu0
        %12051 = vmatprep.subr.bf16.mxu0 %v8129
        %12052 = vmatpush1.bf16.msra.mxu0 %v8128
        %12053 = vmatprep.subr.bf16.mxu0 %v8161
        %12054 = vmatpush1.bf16.msra.mxu0 %v8160
        %12055 = vmatprep.subr.bf16.mxu0 %v8193
        %12056 = vmatpush1.bf16.msra.mxu0 %v8192
        %12057 = vmatprep.subr.bf16.mxu0 %v8225
        %12058 = vmatpush1.bf16.msra.mxu0 %v8224
        %12059 = vmatprep.subr.bf16.mxu0 %v8257
        %12060 = vmatpush1.bf16.msra.mxu0 %v8256
        %12061 = vmatprep.subr.bf16.mxu0 %v8289
        %12062 = vmatpush1.bf16.msra.mxu0 %v8288
        %12063 = vmatprep.subr.bf16.mxu0 %v8321
        %12064 = vmatpush1.bf16.msra.mxu0 %v8320
        %12065 = vmatprep.subr.bf16.mxu0 %v8353
        %12066 = vmatpush1.bf16.msra.mxu0 %v8352
        %12067 = vmatprep.subr.bf16.mxu0 %v8385
        %12068 = vmatpush1.bf16.msra.mxu0 %v8384
        %12069 = vmatprep.subr.bf16.mxu0 %v8417
        %12070 = vmatpush1.bf16.msra.mxu0 %v8416
        %12071 = vmatprep.subr.bf16.mxu0 %v8449
        %12072 = vmatpush1.bf16.msra.mxu0 %v8448
        %12073 = vmatprep.subr.bf16.mxu0 %v8481
        %12074 = vmatpush1.bf16.msra.mxu0 %v8480
        %12075 = vmatprep.subr.bf16.mxu0 %v8513
        %12076 = vmatpush1.bf16.msra.mxu0 %v8512
        %12077 = vmatprep.subr.bf16.mxu0 %v8545
        %12078 = vmatpush1.bf16.msra.mxu0 %v8544
        %12079 = vmatprep.subr.bf16.mxu0 %v8577
        %12080 = vmatpush1.bf16.msra.mxu0 %v8576
        %12081 = vmatprep.subr.bf16.mxu0 %v8609
        %12082 = vmatpush1.bf16.msra.mxu0 %v8608
        %12083 = vmatprep.mubr.bf16.mxu0 %v2219
        %12084 = vmatmul.mubr.bf16.gmra.mrb[0].mxu0 %v2218
        %v12085 = vpop.f32.mrb[0].mxu0
        %v12086 = vadd.f32 %v12045, %v12085
        %v12087 = vpop.f32.mrb[0].mxu0
        %v12088 = vadd.f32 %v12047, %v12087
        %v12089 = vpop.f32.mrb[0].mxu0
        %v12090 = vpop.f32.mrb[0].mxu0
        %12091 = vdwg.mxu0
        %12092 = vmatprep.subr.bf16.mxu0 %v8641
        %12093 = vmatpush1.bf16.msra.mxu0 %v8640
        %12094 = vmatprep.subr.bf16.mxu0 %v8673
        %12095 = vmatpush1.bf16.msra.mxu0 %v8672
        %12096 = vmatprep.subr.bf16.mxu0 %v8705
        %12097 = vmatpush1.bf16.msra.mxu0 %v8704
        %12098 = vmatprep.subr.bf16.mxu0 %v8737
        %12099 = vmatpush1.bf16.msra.mxu0 %v8736
        %12100 = vmatprep.subr.bf16.mxu0 %v8769
        %12101 = vmatpush1.bf16.msra.mxu0 %v8768
        %12102 = vmatprep.subr.bf16.mxu0 %v8801
        %12103 = vmatpush1.bf16.msra.mxu0 %v8800
        %12104 = vmatprep.subr.bf16.mxu0 %v8833
        %12105 = vmatpush1.bf16.msra.mxu0 %v8832
        %12106 = vmatprep.subr.bf16.mxu0 %v8865
        %12107 = vmatpush1.bf16.msra.mxu0 %v8864
        %12108 = vmatprep.subr.bf16.mxu0 %v8897
        %12109 = vmatpush1.bf16.msra.mxu0 %v8896
        %12110 = vmatprep.subr.bf16.mxu0 %v8929
        %12111 = vmatpush1.bf16.msra.mxu0 %v8928
        %12112 = vmatprep.subr.bf16.mxu0 %v8961
        %12113 = vmatpush1.bf16.msra.mxu0 %v8960
        %12114 = vmatprep.subr.bf16.mxu0 %v8993
        %12115 = vmatpush1.bf16.msra.mxu0 %v8992
        %12116 = vmatprep.subr.bf16.mxu0 %v9025
        %12117 = vmatpush1.bf16.msra.mxu0 %v9024
        %12118 = vmatprep.subr.bf16.mxu0 %v9057
        %12119 = vmatpush1.bf16.msra.mxu0 %v9056
        %12120 = vmatprep.subr.bf16.mxu0 %v9089
        %12121 = vmatpush1.bf16.msra.mxu0 %v9088
        %12122 = vmatprep.subr.bf16.mxu0 %v9121
        %12123 = vmatpush1.bf16.msra.mxu0 %v9120
        %12124 = vmatprep.mubr.bf16.mxu0 %v2221
        %12125 = vmatmul.mubr.bf16.gmra.mrb[0].mxu0 %v2220
        %v12126 = vpop.f32.mrb[0].mxu0
        %v12127 = vadd.f32 %v12086, %v12126
        %v12128 = vpop.f32.mrb[0].mxu0
        %v12129 = vadd.f32 %v12088, %v12128
        %v12130 = vpop.f32.mrb[0].mxu0
        %v12131 = vpop.f32.mrb[0].mxu0
        %12132 = vdwg.mxu0
        %12133 = vmatprep.subr.bf16.mxu0 %v9153
        %12134 = vmatpush1.bf16.msra.mxu0 %v9152
        %12135 = vmatprep.subr.bf16.mxu0 %v9185
        %12136 = vmatpush1.bf16.msra.mxu0 %v9184
        %12137 = vmatprep.subr.bf16.mxu0 %v9217
        %12138 = vmatpush1.bf16.msra.mxu0 %v9216
        %12139 = vmatprep.subr.bf16.mxu0 %v9249
        %12140 = vmatpush1.bf16.msra.mxu0 %v9248
        %12141 = vmatprep.subr.bf16.mxu0 %v9281
        %12142 = vmatpush1.bf16.msra.mxu0 %v9280
        %12143 = vmatprep.subr.bf16.mxu0 %v9313
        %12144 = vmatpush1.bf16.msra.mxu0 %v9312
        %12145 = vmatprep.subr.bf16.mxu0 %v9345
        %12146 = vmatpush1.bf16.msra.mxu0 %v9344
        %12147 = vmatprep.subr.bf16.mxu0 %v9377
        %12148 = vmatpush1.bf16.msra.mxu0 %v9376
        %12149 = vmatprep.subr.bf16.mxu0 0
        %12150 = vmatpush1.bf16.msra.mxu0 0
        %12151 = vmatprep.subr.bf16.mxu0 0
        %12152 = vmatpush1.bf16.msra.mxu0 0
        %12153 = vmatprep.subr.bf16.mxu0 0
        %12154 = vmatpush1.bf16.msra.mxu0 0
        %12155 = vmatprep.subr.bf16.mxu0 0
        %12156 = vmatpush1.bf16.msra.mxu0 0
        %12157 = vmatprep.subr.bf16.mxu0 0
        %12158 = vmatpush1.bf16.msra.mxu0 0
        %12159 = vmatprep.subr.bf16.mxu0 0
        %12160 = vmatpush1.bf16.msra.mxu0 0
        %12161 = vmatprep.subr.bf16.mxu0 0
        %12162 = vmatpush1.bf16.msra.mxu0 0
        %12163 = vmatprep.subr.bf16.mxu0 0
        %12164 = vmatpush1.bf16.msra.mxu0 0
        %12165 = vmatprep.mubr.bf16.mxu0 0
        %12166 = vmatmul.mubr.bf16.gmra.mrb[0].mxu0 %v2222
        %v12167 = vpop.f32.mrb[0].mxu0
        %v12168 = vadd.f32 %v12127, %v12167
        %v12169 = vpop.f32.mrb[0].mxu0
        %v12170 = vadd.f32 %v12129, %v12169
        %v12171 = vpop.f32.mrb[0].mxu0
        %v12172 = vpop.f32.mrb[0].mxu0
        %12173 = vdwg.mxu0
        %12174 = vmatprep.subr.bf16.mxu0 %v7619
        %12175 = vmatpush1.bf16.msra.mxu0 %v7618
        %12176 = vmatprep.subr.bf16.mxu0 %v7651
        %12177 = vmatpush1.bf16.msra.mxu0 %v7650
        %12178 = vmatprep.subr.bf16.mxu0 %v7683
        %12179 = vmatpush1.bf16.msra.mxu0 %v7682
        %12180 = vmatprep.subr.bf16.mxu0 %v7715
        %12181 = vmatpush1.bf16.msra.mxu0 %v7714
        %12182 = vmatprep.subr.bf16.mxu0 %v7747
        %12183 = vmatpush1.bf16.msra.mxu0 %v7746
        %12184 = vmatprep.subr.bf16.mxu0 %v7779
        %12185 = vmatpush1.bf16.msra.mxu0 %v7778
        %12186 = vmatprep.subr.bf16.mxu0 %v7811
        %12187 = vmatpush1.bf16.msra.mxu0 %v7810
        %12188 = vmatprep.subr.bf16.mxu0 %v7843
        %12189 = vmatpush1.bf16.msra.mxu0 %v7842
        %12190 = vmatprep.subr.bf16.mxu0 %v7875
        %12191 = vmatpush1.bf16.msra.mxu0 %v7874
        %12192 = vmatprep.subr.bf16.mxu0 %v7907
        %12193 = vmatpush1.bf16.msra.mxu0 %v7906
        %12194 = vmatprep.subr.bf16.mxu0 %v7939
        %12195 = vmatpush1.bf16.msra.mxu0 %v7938
        %12196 = vmatprep.subr.bf16.mxu0 %v7971
        %12197 = vmatpush1.bf16.msra.mxu0 %v7970
        %12198 = vmatprep.subr.bf16.mxu0 %v8003
        %12199 = vmatpush1.bf16.msra.mxu0 %v8002
        %12200 = vmatprep.subr.bf16.mxu0 %v8035
        %12201 = vmatpush1.bf16.msra.mxu0 %v8034
        %12202 = vmatprep.subr.bf16.mxu0 %v8067
        %12203 = vmatpush1.bf16.msra.mxu0 %v8066
        %12204 = vmatprep.subr.bf16.mxu0 %v8099
        %12205 = vmatpush1.bf16.msra.mxu0 %v8098
        %12206 = vmatprep.mubr.bf16.mxu0 %v2217
        %12207 = vmatmul.mubr.bf16.gmra.mrb[0].mxu0 %v2216
        %v12208 = vpop.f32.mrb[0].mxu0
        %v12209 = vadd.f32 %v2096, %v12208
        %v12210 = vpop.f32.mrb[0].mxu0
        %v12211 = vadd.f32 %v2100, %v12210
        %v12212 = vpop.f32.mrb[0].mxu0
        %v12213 = vpop.f32.mrb[0].mxu0
        %12214 = vdwg.mxu0
        %12215 = vmatprep.subr.bf16.mxu0 %v8131
        %12216 = vmatpush1.bf16.msra.mxu0 %v8130
        %12217 = vmatprep.subr.bf16.mxu0 %v8163
        %12218 = vmatpush1.bf16.msra.mxu0 %v8162
        %12219 = vmatprep.subr.bf16.mxu0 %v8195
        %12220 = vmatpush1.bf16.msra.mxu0 %v8194
        %12221 = vmatprep.subr.bf16.mxu0 %v8227
        %12222 = vmatpush1.bf16.msra.mxu0 %v8226
        %12223 = vmatprep.subr.bf16.mxu0 %v8259
        %12224 = vmatpush1.bf16.msra.mxu0 %v8258
        %12225 = vmatprep.subr.bf16.mxu0 %v8291
        %12226 = vmatpush1.bf16.msra.mxu0 %v8290
        %12227 = vmatprep.subr.bf16.mxu0 %v8323
        %12228 = vmatpush1.bf16.msra.mxu0 %v8322
        %12229 = vmatprep.subr.bf16.mxu0 %v8355
        %12230 = vmatpush1.bf16.msra.mxu0 %v8354
        %12231 = vmatprep.subr.bf16.mxu0 %v8387
        %12232 = vmatpush1.bf16.msra.mxu0 %v8386
        %12233 = vmatprep.subr.bf16.mxu0 %v8419
        %12234 = vmatpush1.bf16.msra.mxu0 %v8418
        %12235 = vmatprep.subr.bf16.mxu0 %v8451
        %12236 = vmatpush1.bf16.msra.mxu0 %v8450
        %12237 = vmatprep.subr.bf16.mxu0 %v8483
        %12238 = vmatpush1.bf16.msra.mxu0 %v8482
        %12239 = vmatprep.subr.bf16.mxu0 %v8515
        %12240 = vmatpush1.bf16.msra.mxu0 %v8514
        %12241 = vmatprep.subr.bf16.mxu0 %v8547
        %12242 = vmatpush1.bf16.msra.mxu0 %v8546
        %12243 = vmatprep.subr.bf16.mxu0 %v8579
        %12244 = vmatpush1.bf16.msra.mxu0 %v8578
        %12245 = vmatprep.subr.bf16.mxu0 %v8611
        %12246 = vmatpush1.bf16.msra.mxu0 %v8610
        %12247 = vmatprep.mubr.bf16.mxu0 %v2219
        %12248 = vmatmul.mubr.bf16.gmra.mrb[0].mxu0 %v2218
        %v12249 = vpop.f32.mrb[0].mxu0
        %v12250 = vadd.f32 %v12209, %v12249
        %v12251 = vpop.f32.mrb[0].mxu0
        %v12252 = vadd.f32 %v12211, %v12251
        %v12253 = vpop.f32.mrb[0].mxu0
        %v12254 = vpop.f32.mrb[0].mxu0
        %12255 = vdwg.mxu0
        %12256 = vmatprep.subr.bf16.mxu0 %v8643
        %12257 = vmatpush1.bf16.msra.mxu0 %v8642
        %12258 = vmatprep.subr.bf16.mxu0 %v8675
        %12259 = vmatpush1.bf16.msra.mxu0 %v8674
        %12260 = vmatprep.subr.bf16.mxu0 %v8707
        %12261 = vmatpush1.bf16.msra.mxu0 %v8706
        %12262 = vmatprep.subr.bf16.mxu0 %v8739
        %12263 = vmatpush1.bf16.msra.mxu0 %v8738
        %12264 = vmatprep.subr.bf16.mxu0 %v8771
        %12265 = vmatpush1.bf16.msra.mxu0 %v8770
        %12266 = vmatprep.subr.bf16.mxu0 %v8803
        %12267 = vmatpush1.bf16.msra.mxu0 %v8802
        %12268 = vmatprep.subr.bf16.mxu0 %v8835
        %12269 = vmatpush1.bf16.msra.mxu0 %v8834
        %12270 = vmatprep.subr.bf16.mxu0 %v8867
        %12271 = vmatpush1.bf16.msra.mxu0 %v8866
        %12272 = vmatprep.subr.bf16.mxu0 %v8899
        %12273 = vmatpush1.bf16.msra.mxu0 %v8898
        %12274 = vmatprep.subr.bf16.mxu0 %v8931
        %12275 = vmatpush1.bf16.msra.mxu0 %v8930
        %12276 = vmatprep.subr.bf16.mxu0 %v8963
        %12277 = vmatpush1.bf16.msra.mxu0 %v8962
        %12278 = vmatprep.subr.bf16.mxu0 %v8995
        %12279 = vmatpush1.bf16.msra.mxu0 %v8994
        %12280 = vmatprep.subr.bf16.mxu0 %v9027
        %12281 = vmatpush1.bf16.msra.mxu0 %v9026
        %12282 = vmatprep.subr.bf16.mxu0 %v9059
        %12283 = vmatpush1.bf16.msra.mxu0 %v9058
        %12284 = vmatprep.subr.bf16.mxu0 %v9091
        %12285 = vmatpush1.bf16.msra.mxu0 %v9090
        %12286 = vmatprep.subr.bf16.mxu0 %v9123
        %12287 = vmatpush1.bf16.msra.mxu0 %v9122
        %12288 = vmatprep.mubr.bf16.mxu0 %v2221
        %12289 = vmatmul.mubr.bf16.gmra.mrb[0].mxu0 %v2220
        %v12290 = vpop.f32.mrb[0].mxu0
        %v12291 = vadd.f32 %v12250, %v12290
        %v12292 = vpop.f32.mrb[0].mxu0
        %v12293 = vadd.f32 %v12252, %v12292
        %v12294 = vpop.f32.mrb[0].mxu0
        %v12295 = vpop.f32.mrb[0].mxu0
        %12296 = vdwg.mxu0
        %12297 = vmatprep.subr.bf16.mxu0 %v9155
        %12298 = vmatpush1.bf16.msra.mxu0 %v9154
        %12299 = vmatprep.subr.bf16.mxu0 %v9187
        %12300 = vmatpush1.bf16.msra.mxu0 %v9186
        %12301 = vmatprep.subr.bf16.mxu0 %v9219
        %12302 = vmatpush1.bf16.msra.mxu0 %v9218
        %12303 = vmatprep.subr.bf16.mxu0 %v9251
        %12304 = vmatpush1.bf16.msra.mxu0 %v9250
        %12305 = vmatprep.subr.bf16.mxu0 %v9283
        %12306 = vmatpush1.bf16.msra.mxu0 %v9282
        %12307 = vmatprep.subr.bf16.mxu0 %v9315
        %12308 = vmatpush1.bf16.msra.mxu0 %v9314
        %12309 = vmatprep.subr.bf16.mxu0 %v9347
        %12310 = vmatpush1.bf16.msra.mxu0 %v9346
        %12311 = vmatprep.subr.bf16.mxu0 %v9379
        %12312 = vmatpush1.bf16.msra.mxu0 %v9378
        %12313 = vmatprep.subr.bf16.mxu0 0
        %12314 = vmatpush1.bf16.msra.mxu0 0
        %12315 = vmatprep.subr.bf16.mxu0 0
        %12316 = vmatpush1.bf16.msra.mxu0 0
        %12317 = vmatprep.subr.bf16.mxu0 0
        %12318 = vmatpush1.bf16.msra.mxu0 0
        %12319 = vmatprep.subr.bf16.mxu0 0
        %12320 = vmatpush1.bf16.msra.mxu0 0
        %12321 = vmatprep.subr.bf16.mxu0 0
        %12322 = vmatpush1.bf16.msra.mxu0 0
        %12323 = vmatprep.subr.bf16.mxu0 0
        %12324 = vmatpush1.bf16.msra.mxu0 0
        %12325 = vmatprep.subr.bf16.mxu0 0
        %12326 = vmatpush1.bf16.msra.mxu0 0
        %12327 = vmatprep.subr.bf16.mxu0 0
        %12328 = vmatpush1.bf16.msra.mxu0 0
        %12329 = vmatprep.mubr.bf16.mxu0 0
        %12330 = vmatmul.mubr.bf16.gmra.mrb[0].mxu0 %v2222
        %v12331 = vpop.f32.mrb[0].mxu0
        %v12332 = vadd.f32 %v12291, %v12331
        %v12333 = vpop.f32.mrb[0].mxu0
        %v12334 = vadd.f32 %v12293, %v12333
        %v12335 = vpop.f32.mrb[0].mxu0
        %v12336 = vpop.f32.mrb[0].mxu0
        %12337 = vdwg.mxu0
        %12338 = vmatprep.subr.bf16.mxu0 %v7621
        %12339 = vmatpush1.bf16.msra.mxu0 %v7620
        %12340 = vmatprep.subr.bf16.mxu0 %v7653
        %12341 = vmatpush1.bf16.msra.mxu0 %v7652
        %12342 = vmatprep.subr.bf16.mxu0 %v7685
        %12343 = vmatpush1.bf16.msra.mxu0 %v7684
        %12344 = vmatprep.subr.bf16.mxu0 %v7717
        %12345 = vmatpush1.bf16.msra.mxu0 %v7716
        %12346 = vmatprep.subr.bf16.mxu0 %v7749
        %12347 = vmatpush1.bf16.msra.mxu0 %v7748
        %12348 = vmatprep.subr.bf16.mxu0 %v7781
        %12349 = vmatpush1.bf16.msra.mxu0 %v7780
        %12350 = vmatprep.subr.bf16.mxu0 %v7813
        %12351 = vmatpush1.bf16.msra.mxu0 %v7812
        %12352 = vmatprep.subr.bf16.mxu0 %v7845
        %12353 = vmatpush1.bf16.msra.mxu0 %v7844
        %12354 = vmatprep.subr.bf16.mxu0 %v7877
        %12355 = vmatpush1.bf16.msra.mxu0 %v7876
        %12356 = vmatprep.subr.bf16.mxu0 %v7909
        %12357 = vmatpush1.bf16.msra.mxu0 %v7908
        %12358 = vmatprep.subr.bf16.mxu0 %v7941
        %12359 = vmatpush1.bf16.msra.mxu0 %v7940
        %12360 = vmatprep.subr.bf16.mxu0 %v7973
        %12361 = vmatpush1.bf16.msra.mxu0 %v7972
        %12362 = vmatprep.subr.bf16.mxu0 %v8005
        %12363 = vmatpush1.bf16.msra.mxu0 %v8004
        %12364 = vmatprep.subr.bf16.mxu0 %v8037
        %12365 = vmatpush1.bf16.msra.mxu0 %v8036
        %12366 = vmatprep.subr.bf16.mxu0 %v8069
        %12367 = vmatpush1.bf16.msra.mxu0 %v8068
        %12368 = vmatprep.subr.bf16.mxu0 %v8101
        %12369 = vmatpush1.bf16.msra.mxu0 %v8100
        %12370 = vmatprep.mubr.bf16.mxu0 %v2217
        %12371 = vmatmul.mubr.bf16.gmra.mrb[0].mxu0 %v2216
        %v12372 = vpop.f32.mrb[0].mxu0
        %v12373 = vadd.f32 %v2104, %v12372
        %v12374 = vpop.f32.mrb[0].mxu0
        %v12375 = vadd.f32 %v2108, %v12374
        %v12376 = vpop.f32.mrb[0].mxu0
        %v12377 = vpop.f32.mrb[0].mxu0
        %12378 = vdwg.mxu0
        %12379 = vmatprep.subr.bf16.mxu0 %v8133
        %12380 = vmatpush1.bf16.msra.mxu0 %v8132
        %12381 = vmatprep.subr.bf16.mxu0 %v8165
        %12382 = vmatpush1.bf16.msra.mxu0 %v8164
        %12383 = vmatprep.subr.bf16.mxu0 %v8197
        %12384 = vmatpush1.bf16.msra.mxu0 %v8196
        %12385 = vmatprep.subr.bf16.mxu0 %v8229
        %12386 = vmatpush1.bf16.msra.mxu0 %v8228
        %12387 = vmatprep.subr.bf16.mxu0 %v8261
        %12388 = vmatpush1.bf16.msra.mxu0 %v8260
        %12389 = vmatprep.subr.bf16.mxu0 %v8293
        %12390 = vmatpush1.bf16.msra.mxu0 %v8292
        %12391 = vmatprep.subr.bf16.mxu0 %v8325
        %12392 = vmatpush1.bf16.msra.mxu0 %v8324
        %12393 = vmatprep.subr.bf16.mxu0 %v8357
        %12394 = vmatpush1.bf16.msra.mxu0 %v8356
        %12395 = vmatprep.subr.bf16.mxu0 %v8389
        %12396 = vmatpush1.bf16.msra.mxu0 %v8388
        %12397 = vmatprep.subr.bf16.mxu0 %v8421
        %12398 = vmatpush1.bf16.msra.mxu0 %v8420
        %12399 = vmatprep.subr.bf16.mxu0 %v8453
        %12400 = vmatpush1.bf16.msra.mxu0 %v8452
        %12401 = vmatprep.subr.bf16.mxu0 %v8485
        %12402 = vmatpush1.bf16.msra.mxu0 %v8484
        %12403 = vmatprep.subr.bf16.mxu0 %v8517
        %12404 = vmatpush1.bf16.msra.mxu0 %v8516
        %12405 = vmatprep.subr.bf16.mxu0 %v8549
        %12406 = vmatpush1.bf16.msra.mxu0 %v8548
        %12407 = vmatprep.subr.bf16.mxu0 %v8581
        %12408 = vmatpush1.bf16.msra.mxu0 %v8580
        %12409 = vmatprep.subr.bf16.mxu0 %v8613
        %12410 = vmatpush1.bf16.msra.mxu0 %v8612
        %12411 = vmatprep.mubr.bf16.mxu0 %v2219
        %12412 = vmatmul.mubr.bf16.gmra.mrb[0].mxu0 %v2218
        %v12413 = vpop.f32.mrb[0].mxu0
        %v12414 = vadd.f32 %v12373, %v12413
        %v12415 = vpop.f32.mrb[0].mxu0
        %v12416 = vadd.f32 %v12375, %v12415
        %v12417 = vpop.f32.mrb[0].mxu0
        %v12418 = vpop.f32.mrb[0].mxu0
        %12419 = vdwg.mxu0
        %12420 = vmatprep.subr.bf16.mxu0 %v8645
        %12421 = vmatpush1.bf16.msra.mxu0 %v8644
        %12422 = vmatprep.subr.bf16.mxu0 %v8677
        %12423 = vmatpush1.bf16.msra.mxu0 %v8676
        %12424 = vmatprep.subr.bf16.mxu0 %v8709
        %12425 = vmatpush1.bf16.msra.mxu0 %v8708
        %12426 = vmatprep.subr.bf16.mxu0 %v8741
        %12427 = vmatpush1.bf16.msra.mxu0 %v8740
        %12428 = vmatprep.subr.bf16.mxu0 %v8773
        %12429 = vmatpush1.bf16.msra.mxu0 %v8772
        %12430 = vmatprep.subr.bf16.mxu0 %v8805
        %12431 = vmatpush1.bf16.msra.mxu0 %v8804
        %12432 = vmatprep.subr.bf16.mxu0 %v8837
        %12433 = vmatpush1.bf16.msra.mxu0 %v8836
        %12434 = vmatprep.subr.bf16.mxu0 %v8869
        %12435 = vmatpush1.bf16.msra.mxu0 %v8868
        %12436 = vmatprep.subr.bf16.mxu0 %v8901
        %12437 = vmatpush1.bf16.msra.mxu0 %v8900
        %12438 = vmatprep.subr.bf16.mxu0 %v8933
        %12439 = vmatpush1.bf16.msra.mxu0 %v8932
        %12440 = vmatprep.subr.bf16.mxu0 %v8965
        %12441 = vmatpush1.bf16.msra.mxu0 %v8964
        %12442 = vmatprep.subr.bf16.mxu0 %v8997
        %12443 = vmatpush1.bf16.msra.mxu0 %v8996
        %12444 = vmatprep.subr.bf16.mxu0 %v9029
        %12445 = vmatpush1.bf16.msra.mxu0 %v9028
        %12446 = vmatprep.subr.bf16.mxu0 %v9061
        %12447 = vmatpush1.bf16.msra.mxu0 %v9060
        %12448 = vmatprep.subr.bf16.mxu0 %v9093
        %12449 = vmatpush1.bf16.msra.mxu0 %v9092
        %12450 = vmatprep.subr.bf16.mxu0 %v9125
        %12451 = vmatpush1.bf16.msra.mxu0 %v9124
        %12452 = vmatprep.mubr.bf16.mxu0 %v2221
        %12453 = vmatmul.mubr.bf16.gmra.mrb[0].mxu0 %v2220
        %v12454 = vpop.f32.mrb[0].mxu0
        %v12455 = vadd.f32 %v12414, %v12454
        %v12456 = vpop.f32.mrb[0].mxu0
        %v12457 = vadd.f32 %v12416, %v12456
        %v12458 = vpop.f32.mrb[0].mxu0
        %v12459 = vpop.f32.mrb[0].mxu0
        %12460 = vdwg.mxu0
        %12461 = vmatprep.subr.bf16.mxu0 %v9157
        %12462 = vmatpush1.bf16.msra.mxu0 %v9156
        %12463 = vmatprep.subr.bf16.mxu0 %v9189
        %12464 = vmatpush1.bf16.msra.mxu0 %v9188
        %12465 = vmatprep.subr.bf16.mxu0 %v9221
        %12466 = vmatpush1.bf16.msra.mxu0 %v9220
        %12467 = vmatprep.subr.bf16.mxu0 %v9253
        %12468 = vmatpush1.bf16.msra.mxu0 %v9252
        %12469 = vmatprep.subr.bf16.mxu0 %v9285
        %12470 = vmatpush1.bf16.msra.mxu0 %v9284
        %12471 = vmatprep.subr.bf16.mxu0 %v9317
        %12472 = vmatpush1.bf16.msra.mxu0 %v9316
        %12473 = vmatprep.subr.bf16.mxu0 %v9349
        %12474 = vmatpush1.bf16.msra.mxu0 %v9348
        %12475 = vmatprep.subr.bf16.mxu0 %v9381
        %12476 = vmatpush1.bf16.msra.mxu0 %v9380
        %12477 = vmatprep.subr.bf16.mxu0 0
        %12478 = vmatpush1.bf16.msra.mxu0 0
        %12479 = vmatprep.subr.bf16.mxu0 0
        %12480 = vmatpush1.bf16.msra.mxu0 0
        %12481 = vmatprep.subr.bf16.mxu0 0
        %12482 = vmatpush1.bf16.msra.mxu0 0
        %12483 = vmatprep.subr.bf16.mxu0 0
        %12484 = vmatpush1.bf16.msra.mxu0 0
        %12485 = vmatprep.subr.bf16.mxu0 0
        %12486 = vmatpush1.bf16.msra.mxu0 0
        %12487 = vmatprep.subr.bf16.mxu0 0
        %12488 = vmatpush1.bf16.msra.mxu0 0
        %12489 = vmatprep.subr.bf16.mxu0 0
        %12490 = vmatpush1.bf16.msra.mxu0 0
        %12491 = vmatprep.subr.bf16.mxu0 0
        %12492 = vmatpush1.bf16.msra.mxu0 0
        %12493 = vmatprep.mubr.bf16.mxu0 0
        %12494 = vmatmul.mubr.bf16.gmra.mrb[0].mxu0 %v2222
        %v12495 = vpop.f32.mrb[0].mxu0
        %v12496 = vadd.f32 %v12455, %v12495
        %v12497 = vpop.f32.mrb[0].mxu0
        %v12498 = vadd.f32 %v12457, %v12497
        %v12499 = vpop.f32.mrb[0].mxu0
        %v12500 = vpop.f32.mrb[0].mxu0
        %12501 = vdwg.mxu0
        %12502 = vmatprep.subr.bf16.mxu0 %v7623
        %12503 = vmatpush1.bf16.msra.mxu0 %v7622
        %12504 = vmatprep.subr.bf16.mxu0 %v7655
        %12505 = vmatpush1.bf16.msra.mxu0 %v7654
        %12506 = vmatprep.subr.bf16.mxu0 %v7687
        %12507 = vmatpush1.bf16.msra.mxu0 %v7686
        %12508 = vmatprep.subr.bf16.mxu0 %v7719
        %12509 = vmatpush1.bf16.msra.mxu0 %v7718
        %12510 = vmatprep.subr.bf16.mxu0 %v7751
        %12511 = vmatpush1.bf16.msra.mxu0 %v7750
        %12512 = vmatprep.subr.bf16.mxu0 %v7783
        %12513 = vmatpush1.bf16.msra.mxu0 %v7782
        %12514 = vmatprep.subr.bf16.mxu0 %v7815
        %12515 = vmatpush1.bf16.msra.mxu0 %v7814
        %12516 = vmatprep.subr.bf16.mxu0 %v7847
        %12517 = vmatpush1.bf16.msra.mxu0 %v7846
        %12518 = vmatprep.subr.bf16.mxu0 %v7879
        %12519 = vmatpush1.bf16.msra.mxu0 %v7878
        %12520 = vmatprep.subr.bf16.mxu0 %v7911
        %12521 = vmatpush1.bf16.msra.mxu0 %v7910
        %12522 = vmatprep.subr.bf16.mxu0 %v7943
        %12523 = vmatpush1.bf16.msra.mxu0 %v7942
        %12524 = vmatprep.subr.bf16.mxu0 %v7975
        %12525 = vmatpush1.bf16.msra.mxu0 %v7974
        %12526 = vmatprep.subr.bf16.mxu0 %v8007
        %12527 = vmatpush1.bf16.msra.mxu0 %v8006
        %12528 = vmatprep.subr.bf16.mxu0 %v8039
        %12529 = vmatpush1.bf16.msra.mxu0 %v8038
        %12530 = vmatprep.subr.bf16.mxu0 %v8071
        %12531 = vmatpush1.bf16.msra.mxu0 %v8070
        %12532 = vmatprep.subr.bf16.mxu0 %v8103
        %12533 = vmatpush1.bf16.msra.mxu0 %v8102
        %12534 = vmatprep.mubr.bf16.mxu0 %v2217
        %12535 = vmatmul.mubr.bf16.gmra.mrb[0].mxu0 %v2216
        %v12536 = vpop.f32.mrb[0].mxu0
        %v12537 = vadd.f32 %v2112, %v12536
        %v12538 = vpop.f32.mrb[0].mxu0
        %v12539 = vadd.f32 %v2116, %v12538
        %v12540 = vpop.f32.mrb[0].mxu0
        %v12541 = vpop.f32.mrb[0].mxu0
        %12542 = vdwg.mxu0
        %12543 = vmatprep.subr.bf16.mxu0 %v8135
        %12544 = vmatpush1.bf16.msra.mxu0 %v8134
        %12545 = vmatprep.subr.bf16.mxu0 %v8167
        %12546 = vmatpush1.bf16.msra.mxu0 %v8166
        %12547 = vmatprep.subr.bf16.mxu0 %v8199
        %12548 = vmatpush1.bf16.msra.mxu0 %v8198
        %12549 = vmatprep.subr.bf16.mxu0 %v8231
        %12550 = vmatpush1.bf16.msra.mxu0 %v8230
        %12551 = vmatprep.subr.bf16.mxu0 %v8263
        %12552 = vmatpush1.bf16.msra.mxu0 %v8262
        %12553 = vmatprep.subr.bf16.mxu0 %v8295
        %12554 = vmatpush1.bf16.msra.mxu0 %v8294
        %12555 = vmatprep.subr.bf16.mxu0 %v8327
        %12556 = vmatpush1.bf16.msra.mxu0 %v8326
        %12557 = vmatprep.subr.bf16.mxu0 %v8359
        %12558 = vmatpush1.bf16.msra.mxu0 %v8358
        %12559 = vmatprep.subr.bf16.mxu0 %v8391
        %12560 = vmatpush1.bf16.msra.mxu0 %v8390
        %12561 = vmatprep.subr.bf16.mxu0 %v8423
        %12562 = vmatpush1.bf16.msra.mxu0 %v8422
        %12563 = vmatprep.subr.bf16.mxu0 %v8455
        %12564 = vmatpush1.bf16.msra.mxu0 %v8454
        %12565 = vmatprep.subr.bf16.mxu0 %v8487
        %12566 = vmatpush1.bf16.msra.mxu0 %v8486
        %12567 = vmatprep.subr.bf16.mxu0 %v8519
        %12568 = vmatpush1.bf16.msra.mxu0 %v8518
        %12569 = vmatprep.subr.bf16.mxu0 %v8551
        %12570 = vmatpush1.bf16.msra.mxu0 %v8550
        %12571 = vmatprep.subr.bf16.mxu0 %v8583
        %12572 = vmatpush1.bf16.msra.mxu0 %v8582
        %12573 = vmatprep.subr.bf16.mxu0 %v8615
        %12574 = vmatpush1.bf16.msra.mxu0 %v8614
        %12575 = vmatprep.mubr.bf16.mxu0 %v2219
        %12576 = vmatmul.mubr.bf16.gmra.mrb[0].mxu0 %v2218
        %v12577 = vpop.f32.mrb[0].mxu0
        %v12578 = vadd.f32 %v12537, %v12577
        %v12579 = vpop.f32.mrb[0].mxu0
        %v12580 = vadd.f32 %v12539, %v12579
        %v12581 = vpop.f32.mrb[0].mxu0
        %v12582 = vpop.f32.mrb[0].mxu0
        %12583 = vdwg.mxu0
        %12584 = vmatprep.subr.bf16.mxu0 %v8647
        %12585 = vmatpush1.bf16.msra.mxu0 %v8646
        %12586 = vmatprep.subr.bf16.mxu0 %v8679
        %12587 = vmatpush1.bf16.msra.mxu0 %v8678
        %12588 = vmatprep.subr.bf16.mxu0 %v8711
        %12589 = vmatpush1.bf16.msra.mxu0 %v8710
        %12590 = vmatprep.subr.bf16.mxu0 %v8743
        %12591 = vmatpush1.bf16.msra.mxu0 %v8742
        %12592 = vmatprep.subr.bf16.mxu0 %v8775
        %12593 = vmatpush1.bf16.msra.mxu0 %v8774
        %12594 = vmatprep.subr.bf16.mxu0 %v8807
        %12595 = vmatpush1.bf16.msra.mxu0 %v8806
        %12596 = vmatprep.subr.bf16.mxu0 %v8839
        %12597 = vmatpush1.bf16.msra.mxu0 %v8838
        %12598 = vmatprep.subr.bf16.mxu0 %v8871
        %12599 = vmatpush1.bf16.msra.mxu0 %v8870
        %12600 = vmatprep.subr.bf16.mxu0 %v8903
        %12601 = vmatpush1.bf16.msra.mxu0 %v8902
        %12602 = vmatprep.subr.bf16.mxu0 %v8935
        %12603 = vmatpush1.bf16.msra.mxu0 %v8934
        %12604 = vmatprep.subr.bf16.mxu0 %v8967
        %12605 = vmatpush1.bf16.msra.mxu0 %v8966
        %12606 = vmatprep.subr.bf16.mxu0 %v8999
        %12607 = vmatpush1.bf16.msra.mxu0 %v8998
        %12608 = vmatprep.subr.bf16.mxu0 %v9031
        %12609 = vmatpush1.bf16.msra.mxu0 %v9030
        %12610 = vmatprep.subr.bf16.mxu0 %v9063
        %12611 = vmatpush1.bf16.msra.mxu0 %v9062
        %12612 = vmatprep.subr.bf16.mxu0 %v9095
        %12613 = vmatpush1.bf16.msra.mxu0 %v9094
        %12614 = vmatprep.subr.bf16.mxu0 %v9127
        %12615 = vmatpush1.bf16.msra.mxu0 %v9126
        %12616 = vmatprep.mubr.bf16.mxu0 %v2221
        %12617 = vmatmul.mubr.bf16.gmra.mrb[0].mxu0 %v2220
        %v12618 = vpop.f32.mrb[0].mxu0
        %v12619 = vadd.f32 %v12578, %v12618
        %v12620 = vpop.f32.mrb[0].mxu0
        %v12621 = vadd.f32 %v12580, %v12620
        %v12622 = vpop.f32.mrb[0].mxu0
        %v12623 = vpop.f32.mrb[0].mxu0
        %12624 = vdwg.mxu0
        %12625 = vmatprep.subr.bf16.mxu0 %v9159
        %12626 = vmatpush1.bf16.msra.mxu0 %v9158
        %12627 = vmatprep.subr.bf16.mxu0 %v9191
        %12628 = vmatpush1.bf16.msra.mxu0 %v9190
        %12629 = vmatprep.subr.bf16.mxu0 %v9223
        %12630 = vmatpush1.bf16.msra.mxu0 %v9222
        %12631 = vmatprep.subr.bf16.mxu0 %v9255
        %12632 = vmatpush1.bf16.msra.mxu0 %v9254
        %12633 = vmatprep.subr.bf16.mxu0 %v9287
        %12634 = vmatpush1.bf16.msra.mxu0 %v9286
        %12635 = vmatprep.subr.bf16.mxu0 %v9319
        %12636 = vmatpush1.bf16.msra.mxu0 %v9318
        %12637 = vmatprep.subr.bf16.mxu0 %v9351
        %12638 = vmatpush1.bf16.msra.mxu0 %v9350
        %12639 = vmatprep.subr.bf16.mxu0 %v9383
        %12640 = vmatpush1.bf16.msra.mxu0 %v9382
        %12641 = vmatprep.subr.bf16.mxu0 0
        %12642 = vmatpush1.bf16.msra.mxu0 0
        %12643 = vmatprep.subr.bf16.mxu0 0
        %12644 = vmatpush1.bf16.msra.mxu0 0
        %12645 = vmatprep.subr.bf16.mxu0 0
        %12646 = vmatpush1.bf16.msra.mxu0 0
        %12647 = vmatprep.subr.bf16.mxu0 0
        %12648 = vmatpush1.bf16.msra.mxu0 0
        %12649 = vmatprep.subr.bf16.mxu0 0
        %12650 = vmatpush1.bf16.msra.mxu0 0
        %12651 = vmatprep.subr.bf16.mxu0 0
        %12652 = vmatpush1.bf16.msra.mxu0 0
        %12653 = vmatprep.subr.bf16.mxu0 0
        %12654 = vmatpush1.bf16.msra.mxu0 0
        %12655 = vmatprep.subr.bf16.mxu0 0
        %12656 = vmatpush1.bf16.msra.mxu0 0
        %12657 = vmatprep.mubr.bf16.mxu0 0
        %12658 = vmatmul.mubr.bf16.gmra.mrb[0].mxu0 %v2222
        %v12659 = vpop.f32.mrb[0].mxu0
        %v12660 = vadd.f32 %v12619, %v12659
        %v12661 = vpop.f32.mrb[0].mxu0
        %v12662 = vadd.f32 %v12621, %v12661
        %v12663 = vpop.f32.mrb[0].mxu0
        %v12664 = vpop.f32.mrb[0].mxu0
        %12665 = vdwg.mxu0
        %12666 = vmatprep.subr.bf16.mxu0 %v7625
        %12667 = vmatpush1.bf16.msra.mxu0 %v7624
        %12668 = vmatprep.subr.bf16.mxu0 %v7657
        %12669 = vmatpush1.bf16.msra.mxu0 %v7656
        %12670 = vmatprep.subr.bf16.mxu0 %v7689
        %12671 = vmatpush1.bf16.msra.mxu0 %v7688
        %12672 = vmatprep.subr.bf16.mxu0 %v7721
        %12673 = vmatpush1.bf16.msra.mxu0 %v7720
        %12674 = vmatprep.subr.bf16.mxu0 %v7753
        %12675 = vmatpush1.bf16.msra.mxu0 %v7752
        %12676 = vmatprep.subr.bf16.mxu0 %v7785
        %12677 = vmatpush1.bf16.msra.mxu0 %v7784
        %12678 = vmatprep.subr.bf16.mxu0 %v7817
        %12679 = vmatpush1.bf16.msra.mxu0 %v7816
        %12680 = vmatprep.subr.bf16.mxu0 %v7849
        %12681 = vmatpush1.bf16.msra.mxu0 %v7848
        %12682 = vmatprep.subr.bf16.mxu0 %v7881
        %12683 = vmatpush1.bf16.msra.mxu0 %v7880
        %12684 = vmatprep.subr.bf16.mxu0 %v7913
        %12685 = vmatpush1.bf16.msra.mxu0 %v7912
        %12686 = vmatprep.subr.bf16.mxu0 %v7945
        %12687 = vmatpush1.bf16.msra.mxu0 %v7944
        %12688 = vmatprep.subr.bf16.mxu0 %v7977
        %12689 = vmatpush1.bf16.msra.mxu0 %v7976
        %12690 = vmatprep.subr.bf16.mxu0 %v8009
        %12691 = vmatpush1.bf16.msra.mxu0 %v8008
        %12692 = vmatprep.subr.bf16.mxu0 %v8041
        %12693 = vmatpush1.bf16.msra.mxu0 %v8040
        %12694 = vmatprep.subr.bf16.mxu0 %v8073
        %12695 = vmatpush1.bf16.msra.mxu0 %v8072
        %12696 = vmatprep.subr.bf16.mxu0 %v8105
        %12697 = vmatpush1.bf16.msra.mxu0 %v8104
        %12698 = vmatprep.mubr.bf16.mxu0 %v2217
        %12699 = vmatmul.mubr.bf16.gmra.mrb[0].mxu0 %v2216
        %v12700 = vpop.f32.mrb[0].mxu0
        %v12701 = vadd.f32 %v2120, %v12700
        %v12702 = vpop.f32.mrb[0].mxu0
        %v12703 = vadd.f32 %v2124, %v12702
        %v12704 = vpop.f32.mrb[0].mxu0
        %v12705 = vpop.f32.mrb[0].mxu0
        %12706 = vdwg.mxu0
        %12707 = vmatprep.subr.bf16.mxu0 %v8137
        %12708 = vmatpush1.bf16.msra.mxu0 %v8136
        %12709 = vmatprep.subr.bf16.mxu0 %v8169
        %12710 = vmatpush1.bf16.msra.mxu0 %v8168
        %12711 = vmatprep.subr.bf16.mxu0 %v8201
        %12712 = vmatpush1.bf16.msra.mxu0 %v8200
        %12713 = vmatprep.subr.bf16.mxu0 %v8233
        %12714 = vmatpush1.bf16.msra.mxu0 %v8232
        %12715 = vmatprep.subr.bf16.mxu0 %v8265
        %12716 = vmatpush1.bf16.msra.mxu0 %v8264
        %12717 = vmatprep.subr.bf16.mxu0 %v8297
        %12718 = vmatpush1.bf16.msra.mxu0 %v8296
        %12719 = vmatprep.subr.bf16.mxu0 %v8329
        %12720 = vmatpush1.bf16.msra.mxu0 %v8328
        %12721 = vmatprep.subr.bf16.mxu0 %v8361
        %12722 = vmatpush1.bf16.msra.mxu0 %v8360
        %12723 = vmatprep.subr.bf16.mxu0 %v8393
        %12724 = vmatpush1.bf16.msra.mxu0 %v8392
        %12725 = vmatprep.subr.bf16.mxu0 %v8425
        %12726 = vmatpush1.bf16.msra.mxu0 %v8424
        %12727 = vmatprep.subr.bf16.mxu0 %v8457
        %12728 = vmatpush1.bf16.msra.mxu0 %v8456
        %12729 = vmatprep.subr.bf16.mxu0 %v8489
        %12730 = vmatpush1.bf16.msra.mxu0 %v8488
        %12731 = vmatprep.subr.bf16.mxu0 %v8521
        %12732 = vmatpush1.bf16.msra.mxu0 %v8520
        %12733 = vmatprep.subr.bf16.mxu0 %v8553
        %12734 = vmatpush1.bf16.msra.mxu0 %v8552
        %12735 = vmatprep.subr.bf16.mxu0 %v8585
        %12736 = vmatpush1.bf16.msra.mxu0 %v8584
        %12737 = vmatprep.subr.bf16.mxu0 %v8617
        %12738 = vmatpush1.bf16.msra.mxu0 %v8616
        %12739 = vmatprep.mubr.bf16.mxu0 %v2219
        %12740 = vmatmul.mubr.bf16.gmra.mrb[0].mxu0 %v2218
        %v12741 = vpop.f32.mrb[0].mxu0
        %v12742 = vadd.f32 %v12701, %v12741
        %v12743 = vpop.f32.mrb[0].mxu0
        %v12744 = vadd.f32 %v12703, %v12743
        %v12745 = vpop.f32.mrb[0].mxu0
        %v12746 = vpop.f32.mrb[0].mxu0
        %12747 = vdwg.mxu0
        %12748 = vmatprep.subr.bf16.mxu0 %v8649
        %12749 = vmatpush1.bf16.msra.mxu0 %v8648
        %12750 = vmatprep.subr.bf16.mxu0 %v8681
        %12751 = vmatpush1.bf16.msra.mxu0 %v8680
        %12752 = vmatprep.subr.bf16.mxu0 %v8713
        %12753 = vmatpush1.bf16.msra.mxu0 %v8712
        %12754 = vmatprep.subr.bf16.mxu0 %v8745
        %12755 = vmatpush1.bf16.msra.mxu0 %v8744
        %12756 = vmatprep.subr.bf16.mxu0 %v8777
        %12757 = vmatpush1.bf16.msra.mxu0 %v8776
        %12758 = vmatprep.subr.bf16.mxu0 %v8809
        %12759 = vmatpush1.bf16.msra.mxu0 %v8808
        %12760 = vmatprep.subr.bf16.mxu0 %v8841
        %12761 = vmatpush1.bf16.msra.mxu0 %v8840
        %12762 = vmatprep.subr.bf16.mxu0 %v8873
        %12763 = vmatpush1.bf16.msra.mxu0 %v8872
        %12764 = vmatprep.subr.bf16.mxu0 %v8905
        %12765 = vmatpush1.bf16.msra.mxu0 %v8904
        %12766 = vmatprep.subr.bf16.mxu0 %v8937
        %12767 = vmatpush1.bf16.msra.mxu0 %v8936
        %12768 = vmatprep.subr.bf16.mxu0 %v8969
        %12769 = vmatpush1.bf16.msra.mxu0 %v8968
        %12770 = vmatprep.subr.bf16.mxu0 %v9001
        %12771 = vmatpush1.bf16.msra.mxu0 %v9000
        %12772 = vmatprep.subr.bf16.mxu0 %v9033
        %12773 = vmatpush1.bf16.msra.mxu0 %v9032
        %12774 = vmatprep.subr.bf16.mxu0 %v9065
        %12775 = vmatpush1.bf16.msra.mxu0 %v9064
        %12776 = vmatprep.subr.bf16.mxu0 %v9097
        %12777 = vmatpush1.bf16.msra.mxu0 %v9096
        %12778 = vmatprep.subr.bf16.mxu0 %v9129
        %12779 = vmatpush1.bf16.msra.mxu0 %v9128
        %12780 = vmatprep.mubr.bf16.mxu0 %v2221
        %12781 = vmatmul.mubr.bf16.gmra.mrb[0].mxu0 %v2220
        %v12782 = vpop.f32.mrb[0].mxu0
        %v12783 = vadd.f32 %v12742, %v12782
        %v12784 = vpop.f32.mrb[0].mxu0
        %v12785 = vadd.f32 %v12744, %v12784
        %v12786 = vpop.f32.mrb[0].mxu0
        %v12787 = vpop.f32.mrb[0].mxu0
        %12788 = vdwg.mxu0
        %12789 = vmatprep.subr.bf16.mxu0 %v9161
        %12790 = vmatpush1.bf16.msra.mxu0 %v9160
        %12791 = vmatprep.subr.bf16.mxu0 %v9193
        %12792 = vmatpush1.bf16.msra.mxu0 %v9192
        %12793 = vmatprep.subr.bf16.mxu0 %v9225
        %12794 = vmatpush1.bf16.msra.mxu0 %v9224
        %12795 = vmatprep.subr.bf16.mxu0 %v9257
        %12796 = vmatpush1.bf16.msra.mxu0 %v9256
        %12797 = vmatprep.subr.bf16.mxu0 %v9289
        %12798 = vmatpush1.bf16.msra.mxu0 %v9288
        %12799 = vmatprep.subr.bf16.mxu0 %v9321
        %12800 = vmatpush1.bf16.msra.mxu0 %v9320
        %12801 = vmatprep.subr.bf16.mxu0 %v9353
        %12802 = vmatpush1.bf16.msra.mxu0 %v9352
        %12803 = vmatprep.subr.bf16.mxu0 %v9385
        %12804 = vmatpush1.bf16.msra.mxu0 %v9384
        %12805 = vmatprep.subr.bf16.mxu0 0
        %12806 = vmatpush1.bf16.msra.mxu0 0
        %12807 = vmatprep.subr.bf16.mxu0 0
        %12808 = vmatpush1.bf16.msra.mxu0 0
        %12809 = vmatprep.subr.bf16.mxu0 0
        %12810 = vmatpush1.bf16.msra.mxu0 0
        %12811 = vmatprep.subr.bf16.mxu0 0
        %12812 = vmatpush1.bf16.msra.mxu0 0
        %12813 = vmatprep.subr.bf16.mxu0 0
        %12814 = vmatpush1.bf16.msra.mxu0 0
        %12815 = vmatprep.subr.bf16.mxu0 0
        %12816 = vmatpush1.bf16.msra.mxu0 0
        %12817 = vmatprep.subr.bf16.mxu0 0
        %12818 = vmatpush1.bf16.msra.mxu0 0
        %12819 = vmatprep.subr.bf16.mxu0 0
        %12820 = vmatpush1.bf16.msra.mxu0 0
        %12821 = vmatprep.mubr.bf16.mxu0 0
        %12822 = vmatmul.mubr.bf16.gmra.mrb[0].mxu0 %v2222
        %v12823 = vpop.f32.mrb[0].mxu0
        %v12824 = vadd.f32 %v12783, %v12823
        %v12825 = vpop.f32.mrb[0].mxu0
        %v12826 = vadd.f32 %v12785, %v12825
        %v12827 = vpop.f32.mrb[0].mxu0
        %v12828 = vpop.f32.mrb[0].mxu0
        %12829 = vdwg.mxu0
        %12830 = vmatprep.subr.bf16.mxu0 %v7627
        %12831 = vmatpush1.bf16.msra.mxu0 %v7626
        %12832 = vmatprep.subr.bf16.mxu0 %v7659
        %12833 = vmatpush1.bf16.msra.mxu0 %v7658
        %12834 = vmatprep.subr.bf16.mxu0 %v7691
        %12835 = vmatpush1.bf16.msra.mxu0 %v7690
        %12836 = vmatprep.subr.bf16.mxu0 %v7723
        %12837 = vmatpush1.bf16.msra.mxu0 %v7722
        %12838 = vmatprep.subr.bf16.mxu0 %v7755
        %12839 = vmatpush1.bf16.msra.mxu0 %v7754
        %12840 = vmatprep.subr.bf16.mxu0 %v7787
        %12841 = vmatpush1.bf16.msra.mxu0 %v7786
        %12842 = vmatprep.subr.bf16.mxu0 %v7819
        %12843 = vmatpush1.bf16.msra.mxu0 %v7818
        %12844 = vmatprep.subr.bf16.mxu0 %v7851
        %12845 = vmatpush1.bf16.msra.mxu0 %v7850
        %12846 = vmatprep.subr.bf16.mxu0 %v7883
        %12847 = vmatpush1.bf16.msra.mxu0 %v7882
        %12848 = vmatprep.subr.bf16.mxu0 %v7915
        %12849 = vmatpush1.bf16.msra.mxu0 %v7914
        %12850 = vmatprep.subr.bf16.mxu0 %v7947
        %12851 = vmatpush1.bf16.msra.mxu0 %v7946
        %12852 = vmatprep.subr.bf16.mxu0 %v7979
        %12853 = vmatpush1.bf16.msra.mxu0 %v7978
        %12854 = vmatprep.subr.bf16.mxu0 %v8011
        %12855 = vmatpush1.bf16.msra.mxu0 %v8010
        %12856 = vmatprep.subr.bf16.mxu0 %v8043
        %12857 = vmatpush1.bf16.msra.mxu0 %v8042
        %12858 = vmatprep.subr.bf16.mxu0 %v8075
        %12859 = vmatpush1.bf16.msra.mxu0 %v8074
        %12860 = vmatprep.subr.bf16.mxu0 %v8107
        %12861 = vmatpush1.bf16.msra.mxu0 %v8106
        %12862 = vmatprep.mubr.bf16.mxu0 %v2217
        %12863 = vmatmul.mubr.bf16.gmra.mrb[0].mxu0 %v2216
        %v12864 = vpop.f32.mrb[0].mxu0
        %v12865 = vadd.f32 %v2128, %v12864
        %v12866 = vpop.f32.mrb[0].mxu0
        %v12867 = vadd.f32 %v2132, %v12866
        %v12868 = vpop.f32.mrb[0].mxu0
        %v12869 = vpop.f32.mrb[0].mxu0
        %12870 = vdwg.mxu0
        %12871 = vmatprep.subr.bf16.mxu0 %v8139
        %12872 = vmatpush1.bf16.msra.mxu0 %v8138
        %12873 = vmatprep.subr.bf16.mxu0 %v8171
        %12874 = vmatpush1.bf16.msra.mxu0 %v8170
        %12875 = vmatprep.subr.bf16.mxu0 %v8203
        %12876 = vmatpush1.bf16.msra.mxu0 %v8202
        %12877 = vmatprep.subr.bf16.mxu0 %v8235
        %12878 = vmatpush1.bf16.msra.mxu0 %v8234
        %12879 = vmatprep.subr.bf16.mxu0 %v8267
        %12880 = vmatpush1.bf16.msra.mxu0 %v8266
        %12881 = vmatprep.subr.bf16.mxu0 %v8299
        %12882 = vmatpush1.bf16.msra.mxu0 %v8298
        %12883 = vmatprep.subr.bf16.mxu0 %v8331
        %12884 = vmatpush1.bf16.msra.mxu0 %v8330
        %12885 = vmatprep.subr.bf16.mxu0 %v8363
        %12886 = vmatpush1.bf16.msra.mxu0 %v8362
        %12887 = vmatprep.subr.bf16.mxu0 %v8395
        %12888 = vmatpush1.bf16.msra.mxu0 %v8394
        %12889 = vmatprep.subr.bf16.mxu0 %v8427
        %12890 = vmatpush1.bf16.msra.mxu0 %v8426
        %12891 = vmatprep.subr.bf16.mxu0 %v8459
        %12892 = vmatpush1.bf16.msra.mxu0 %v8458
        %12893 = vmatprep.subr.bf16.mxu0 %v8491
        %12894 = vmatpush1.bf16.msra.mxu0 %v8490
        %12895 = vmatprep.subr.bf16.mxu0 %v8523
        %12896 = vmatpush1.bf16.msra.mxu0 %v8522
        %12897 = vmatprep.subr.bf16.mxu0 %v8555
        %12898 = vmatpush1.bf16.msra.mxu0 %v8554
        %12899 = vmatprep.subr.bf16.mxu0 %v8587
        %12900 = vmatpush1.bf16.msra.mxu0 %v8586
        %12901 = vmatprep.subr.bf16.mxu0 %v8619
        %12902 = vmatpush1.bf16.msra.mxu0 %v8618
        %12903 = vmatprep.mubr.bf16.mxu0 %v2219
        %12904 = vmatmul.mubr.bf16.gmra.mrb[0].mxu0 %v2218
        %v12905 = vpop.f32.mrb[0].mxu0
        %v12906 = vadd.f32 %v12865, %v12905
        %v12907 = vpop.f32.mrb[0].mxu0
        %v12908 = vadd.f32 %v12867, %v12907
        %v12909 = vpop.f32.mrb[0].mxu0
        %v12910 = vpop.f32.mrb[0].mxu0
        %12911 = vdwg.mxu0
        %12912 = vmatprep.subr.bf16.mxu0 %v8651
        %12913 = vmatpush1.bf16.msra.mxu0 %v8650
        %12914 = vmatprep.subr.bf16.mxu0 %v8683
        %12915 = vmatpush1.bf16.msra.mxu0 %v8682
        %12916 = vmatprep.subr.bf16.mxu0 %v8715
        %12917 = vmatpush1.bf16.msra.mxu0 %v8714
        %12918 = vmatprep.subr.bf16.mxu0 %v8747
        %12919 = vmatpush1.bf16.msra.mxu0 %v8746
        %12920 = vmatprep.subr.bf16.mxu0 %v8779
        %12921 = vmatpush1.bf16.msra.mxu0 %v8778
        %12922 = vmatprep.subr.bf16.mxu0 %v8811
        %12923 = vmatpush1.bf16.msra.mxu0 %v8810
        %12924 = vmatprep.subr.bf16.mxu0 %v8843
        %12925 = vmatpush1.bf16.msra.mxu0 %v8842
        %12926 = vmatprep.subr.bf16.mxu0 %v8875
        %12927 = vmatpush1.bf16.msra.mxu0 %v8874
        %12928 = vmatprep.subr.bf16.mxu0 %v8907
        %12929 = vmatpush1.bf16.msra.mxu0 %v8906
        %12930 = vmatprep.subr.bf16.mxu0 %v8939
        %12931 = vmatpush1.bf16.msra.mxu0 %v8938
        %12932 = vmatprep.subr.bf16.mxu0 %v8971
        %12933 = vmatpush1.bf16.msra.mxu0 %v8970
        %12934 = vmatprep.subr.bf16.mxu0 %v9003
        %12935 = vmatpush1.bf16.msra.mxu0 %v9002
        %12936 = vmatprep.subr.bf16.mxu0 %v9035
        %12937 = vmatpush1.bf16.msra.mxu0 %v9034
        %12938 = vmatprep.subr.bf16.mxu0 %v9067
        %12939 = vmatpush1.bf16.msra.mxu0 %v9066
        %12940 = vmatprep.subr.bf16.mxu0 %v9099
        %12941 = vmatpush1.bf16.msra.mxu0 %v9098
        %12942 = vmatprep.subr.bf16.mxu0 %v9131
        %12943 = vmatpush1.bf16.msra.mxu0 %v9130
        %12944 = vmatprep.mubr.bf16.mxu0 %v2221
        %12945 = vmatmul.mubr.bf16.gmra.mrb[0].mxu0 %v2220
        %v12946 = vpop.f32.mrb[0].mxu0
        %v12947 = vadd.f32 %v12906, %v12946
        %v12948 = vpop.f32.mrb[0].mxu0
        %v12949 = vadd.f32 %v12908, %v12948
        %v12950 = vpop.f32.mrb[0].mxu0
        %v12951 = vpop.f32.mrb[0].mxu0
        %12952 = vdwg.mxu0
        %12953 = vmatprep.subr.bf16.mxu0 %v9163
        %12954 = vmatpush1.bf16.msra.mxu0 %v9162
        %12955 = vmatprep.subr.bf16.mxu0 %v9195
        %12956 = vmatpush1.bf16.msra.mxu0 %v9194
        %12957 = vmatprep.subr.bf16.mxu0 %v9227
        %12958 = vmatpush1.bf16.msra.mxu0 %v9226
        %12959 = vmatprep.subr.bf16.mxu0 %v9259
        %12960 = vmatpush1.bf16.msra.mxu0 %v9258
        %12961 = vmatprep.subr.bf16.mxu0 %v9291
        %12962 = vmatpush1.bf16.msra.mxu0 %v9290
        %12963 = vmatprep.subr.bf16.mxu0 %v9323
        %12964 = vmatpush1.bf16.msra.mxu0 %v9322
        %12965 = vmatprep.subr.bf16.mxu0 %v9355
        %12966 = vmatpush1.bf16.msra.mxu0 %v9354
        %12967 = vmatprep.subr.bf16.mxu0 %v9387
        %12968 = vmatpush1.bf16.msra.mxu0 %v9386
        %12969 = vmatprep.subr.bf16.mxu0 0
        %12970 = vmatpush1.bf16.msra.mxu0 0
        %12971 = vmatprep.subr.bf16.mxu0 0
        %12972 = vmatpush1.bf16.msra.mxu0 0
        %12973 = vmatprep.subr.bf16.mxu0 0
        %12974 = vmatpush1.bf16.msra.mxu0 0
        %12975 = vmatprep.subr.bf16.mxu0 0
        %12976 = vmatpush1.bf16.msra.mxu0 0
        %12977 = vmatprep.subr.bf16.mxu0 0
        %12978 = vmatpush1.bf16.msra.mxu0 0
        %12979 = vmatprep.subr.bf16.mxu0 0
        %12980 = vmatpush1.bf16.msra.mxu0 0
        %12981 = vmatprep.subr.bf16.mxu0 0
        %12982 = vmatpush1.bf16.msra.mxu0 0
        %12983 = vmatprep.subr.bf16.mxu0 0
        %12984 = vmatpush1.bf16.msra.mxu0 0
        %12985 = vmatprep.mubr.bf16.mxu0 0
        %12986 = vmatmul.mubr.bf16.gmra.mrb[0].mxu0 %v2222
        %v12987 = vpop.f32.mrb[0].mxu0
        %v12988 = vadd.f32 %v12947, %v12987
        %v12989 = vpop.f32.mrb[0].mxu0
        %v12990 = vadd.f32 %v12949, %v12989
        %v12991 = vpop.f32.mrb[0].mxu0
        %v12992 = vpop.f32.mrb[0].mxu0
        %12993 = vdwg.mxu0
        %12994 = vmatprep.subr.bf16.mxu0 %v7629
        %12995 = vmatpush1.bf16.msra.mxu0 %v7628
        %12996 = vmatprep.subr.bf16.mxu0 %v7661
        %12997 = vmatpush1.bf16.msra.mxu0 %v7660
        %12998 = vmatprep.subr.bf16.mxu0 %v7693
        %12999 = vmatpush1.bf16.msra.mxu0 %v7692
        %13000 = vmatprep.subr.bf16.mxu0 %v7725
        %13001 = vmatpush1.bf16.msra.mxu0 %v7724
        %13002 = vmatprep.subr.bf16.mxu0 %v7757
        %13003 = vmatpush1.bf16.msra.mxu0 %v7756
        %13004 = vmatprep.subr.bf16.mxu0 %v7789
        %13005 = vmatpush1.bf16.msra.mxu0 %v7788
        %13006 = vmatprep.subr.bf16.mxu0 %v7821
        %13007 = vmatpush1.bf16.msra.mxu0 %v7820
        %13008 = vmatprep.subr.bf16.mxu0 %v7853
        %13009 = vmatpush1.bf16.msra.mxu0 %v7852
        %13010 = vmatprep.subr.bf16.mxu0 %v7885
        %13011 = vmatpush1.bf16.msra.mxu0 %v7884
        %13012 = vmatprep.subr.bf16.mxu0 %v7917
        %13013 = vmatpush1.bf16.msra.mxu0 %v7916
        %13014 = vmatprep.subr.bf16.mxu0 %v7949
        %13015 = vmatpush1.bf16.msra.mxu0 %v7948
        %13016 = vmatprep.subr.bf16.mxu0 %v7981
        %13017 = vmatpush1.bf16.msra.mxu0 %v7980
        %13018 = vmatprep.subr.bf16.mxu0 %v8013
        %13019 = vmatpush1.bf16.msra.mxu0 %v8012
        %13020 = vmatprep.subr.bf16.mxu0 %v8045
        %13021 = vmatpush1.bf16.msra.mxu0 %v8044
        %13022 = vmatprep.subr.bf16.mxu0 %v8077
        %13023 = vmatpush1.bf16.msra.mxu0 %v8076
        %13024 = vmatprep.subr.bf16.mxu0 %v8109
        %13025 = vmatpush1.bf16.msra.mxu0 %v8108
        %13026 = vmatprep.mubr.bf16.mxu0 %v2217
        %13027 = vmatmul.mubr.bf16.gmra.mrb[0].mxu0 %v2216
        %v13028 = vpop.f32.mrb[0].mxu0
        %v13029 = vadd.f32 %v2136, %v13028
        %v13030 = vpop.f32.mrb[0].mxu0
        %v13031 = vadd.f32 %v2140, %v13030
        %v13032 = vpop.f32.mrb[0].mxu0
        %v13033 = vpop.f32.mrb[0].mxu0
        %13034 = vdwg.mxu0
        %13035 = vmatprep.subr.bf16.mxu0 %v8141
        %13036 = vmatpush1.bf16.msra.mxu0 %v8140
        %13037 = vmatprep.subr.bf16.mxu0 %v8173
        %13038 = vmatpush1.bf16.msra.mxu0 %v8172
        %13039 = vmatprep.subr.bf16.mxu0 %v8205
        %13040 = vmatpush1.bf16.msra.mxu0 %v8204
        %13041 = vmatprep.subr.bf16.mxu0 %v8237
        %13042 = vmatpush1.bf16.msra.mxu0 %v8236
        %13043 = vmatprep.subr.bf16.mxu0 %v8269
        %13044 = vmatpush1.bf16.msra.mxu0 %v8268
        %13045 = vmatprep.subr.bf16.mxu0 %v8301
        %13046 = vmatpush1.bf16.msra.mxu0 %v8300
        %13047 = vmatprep.subr.bf16.mxu0 %v8333
        %13048 = vmatpush1.bf16.msra.mxu0 %v8332
        %13049 = vmatprep.subr.bf16.mxu0 %v8365
        %13050 = vmatpush1.bf16.msra.mxu0 %v8364
        %13051 = vmatprep.subr.bf16.mxu0 %v8397
        %13052 = vmatpush1.bf16.msra.mxu0 %v8396
        %13053 = vmatprep.subr.bf16.mxu0 %v8429
        %13054 = vmatpush1.bf16.msra.mxu0 %v8428
        %13055 = vmatprep.subr.bf16.mxu0 %v8461
        %13056 = vmatpush1.bf16.msra.mxu0 %v8460
        %13057 = vmatprep.subr.bf16.mxu0 %v8493
        %13058 = vmatpush1.bf16.msra.mxu0 %v8492
        %13059 = vmatprep.subr.bf16.mxu0 %v8525
        %13060 = vmatpush1.bf16.msra.mxu0 %v8524
        %13061 = vmatprep.subr.bf16.mxu0 %v8557
        %13062 = vmatpush1.bf16.msra.mxu0 %v8556
        %13063 = vmatprep.subr.bf16.mxu0 %v8589
        %13064 = vmatpush1.bf16.msra.mxu0 %v8588
        %13065 = vmatprep.subr.bf16.mxu0 %v8621
        %13066 = vmatpush1.bf16.msra.mxu0 %v8620
        %13067 = vmatprep.mubr.bf16.mxu0 %v2219
        %13068 = vmatmul.mubr.bf16.gmra.mrb[0].mxu0 %v2218
        %v13069 = vpop.f32.mrb[0].mxu0
        %v13070 = vadd.f32 %v13029, %v13069
        %v13071 = vpop.f32.mrb[0].mxu0
        %v13072 = vadd.f32 %v13031, %v13071
        %v13073 = vpop.f32.mrb[0].mxu0
        %v13074 = vpop.f32.mrb[0].mxu0
        %13075 = vdwg.mxu0
        %13076 = vmatprep.subr.bf16.mxu0 %v8653
        %13077 = vmatpush1.bf16.msra.mxu0 %v8652
        %13078 = vmatprep.subr.bf16.mxu0 %v8685
        %13079 = vmatpush1.bf16.msra.mxu0 %v8684
        %13080 = vmatprep.subr.bf16.mxu0 %v8717
        %13081 = vmatpush1.bf16.msra.mxu0 %v8716
        %13082 = vmatprep.subr.bf16.mxu0 %v8749
        %13083 = vmatpush1.bf16.msra.mxu0 %v8748
        %13084 = vmatprep.subr.bf16.mxu0 %v8781
        %13085 = vmatpush1.bf16.msra.mxu0 %v8780
        %13086 = vmatprep.subr.bf16.mxu0 %v8813
        %13087 = vmatpush1.bf16.msra.mxu0 %v8812
        %13088 = vmatprep.subr.bf16.mxu0 %v8845
        %13089 = vmatpush1.bf16.msra.mxu0 %v8844
        %13090 = vmatprep.subr.bf16.mxu0 %v8877
        %13091 = vmatpush1.bf16.msra.mxu0 %v8876
        %13092 = vmatprep.subr.bf16.mxu0 %v8909
        %13093 = vmatpush1.bf16.msra.mxu0 %v8908
        %13094 = vmatprep.subr.bf16.mxu0 %v8941
        %13095 = vmatpush1.bf16.msra.mxu0 %v8940
        %13096 = vmatprep.subr.bf16.mxu0 %v8973
        %13097 = vmatpush1.bf16.msra.mxu0 %v8972
        %13098 = vmatprep.subr.bf16.mxu0 %v9005
        %13099 = vmatpush1.bf16.msra.mxu0 %v9004
        %13100 = vmatprep.subr.bf16.mxu0 %v9037
        %13101 = vmatpush1.bf16.msra.mxu0 %v9036
        %13102 = vmatprep.subr.bf16.mxu0 %v9069
        %13103 = vmatpush1.bf16.msra.mxu0 %v9068
        %13104 = vmatprep.subr.bf16.mxu0 %v9101
        %13105 = vmatpush1.bf16.msra.mxu0 %v9100
        %13106 = vmatprep.subr.bf16.mxu0 %v9133
        %13107 = vmatpush1.bf16.msra.mxu0 %v9132
        %13108 = vmatprep.mubr.bf16.mxu0 %v2221
        %13109 = vmatmul.mubr.bf16.gmra.mrb[0].mxu0 %v2220
        %v13110 = vpop.f32.mrb[0].mxu0
        %v13111 = vadd.f32 %v13070, %v13110
        %v13112 = vpop.f32.mrb[0].mxu0
        %v13113 = vadd.f32 %v13072, %v13112
        %v13114 = vpop.f32.mrb[0].mxu0
        %v13115 = vpop.f32.mrb[0].mxu0
        %13116 = vdwg.mxu0
        %13117 = vmatprep.subr.bf16.mxu0 %v9165
        %13118 = vmatpush1.bf16.msra.mxu0 %v9164
        %13119 = vmatprep.subr.bf16.mxu0 %v9197
        %13120 = vmatpush1.bf16.msra.mxu0 %v9196
        %13121 = vmatprep.subr.bf16.mxu0 %v9229
        %13122 = vmatpush1.bf16.msra.mxu0 %v9228
        %13123 = vmatprep.subr.bf16.mxu0 %v9261
        %13124 = vmatpush1.bf16.msra.mxu0 %v9260
        %13125 = vmatprep.subr.bf16.mxu0 %v9293
        %13126 = vmatpush1.bf16.msra.mxu0 %v9292
        %13127 = vmatprep.subr.bf16.mxu0 %v9325
        %13128 = vmatpush1.bf16.msra.mxu0 %v9324
        %13129 = vmatprep.subr.bf16.mxu0 %v9357
        %13130 = vmatpush1.bf16.msra.mxu0 %v9356
        %13131 = vmatprep.subr.bf16.mxu0 %v9389
        %13132 = vmatpush1.bf16.msra.mxu0 %v9388
        %13133 = vmatprep.subr.bf16.mxu0 0
        %13134 = vmatpush1.bf16.msra.mxu0 0
        %13135 = vmatprep.subr.bf16.mxu0 0
        %13136 = vmatpush1.bf16.msra.mxu0 0
        %13137 = vmatprep.subr.bf16.mxu0 0
        %13138 = vmatpush1.bf16.msra.mxu0 0
        %13139 = vmatprep.subr.bf16.mxu0 0
        %13140 = vmatpush1.bf16.msra.mxu0 0
        %13141 = vmatprep.subr.bf16.mxu0 0
        %13142 = vmatpush1.bf16.msra.mxu0 0
        %13143 = vmatprep.subr.bf16.mxu0 0
        %13144 = vmatpush1.bf16.msra.mxu0 0
        %13145 = vmatprep.subr.bf16.mxu0 0
        %13146 = vmatpush1.bf16.msra.mxu0 0
        %13147 = vmatprep.subr.bf16.mxu0 0
        %13148 = vmatpush1.bf16.msra.mxu0 0
        %13149 = vmatprep.mubr.bf16.mxu0 0
        %13150 = vmatmul.mubr.bf16.gmra.mrb[0].mxu0 %v2222
        %v13151 = vpop.f32.mrb[0].mxu0
        %v13152 = vadd.f32 %v13111, %v13151
        %v13153 = vpop.f32.mrb[0].mxu0
        %v13154 = vadd.f32 %v13113, %v13153
        %v13155 = vpop.f32.mrb[0].mxu0
        %v13156 = vpop.f32.mrb[0].mxu0
        %13157 = vdwg.mxu0
        %13158 = vmatprep.subr.bf16.mxu0 %v7631
        %13159 = vmatpush1.bf16.msra.mxu0 %v7630
        %13160 = vmatprep.subr.bf16.mxu0 %v7663
        %13161 = vmatpush1.bf16.msra.mxu0 %v7662
        %13162 = vmatprep.subr.bf16.mxu0 %v7695
        %13163 = vmatpush1.bf16.msra.mxu0 %v7694
        %13164 = vmatprep.subr.bf16.mxu0 %v7727
        %13165 = vmatpush1.bf16.msra.mxu0 %v7726
        %13166 = vmatprep.subr.bf16.mxu0 %v7759
        %13167 = vmatpush1.bf16.msra.mxu0 %v7758
        %13168 = vmatprep.subr.bf16.mxu0 %v7791
        %13169 = vmatpush1.bf16.msra.mxu0 %v7790
        %13170 = vmatprep.subr.bf16.mxu0 %v7823
        %13171 = vmatpush1.bf16.msra.mxu0 %v7822
        %13172 = vmatprep.subr.bf16.mxu0 %v7855
        %13173 = vmatpush1.bf16.msra.mxu0 %v7854
        %13174 = vmatprep.subr.bf16.mxu0 %v7887
        %13175 = vmatpush1.bf16.msra.mxu0 %v7886
        %13176 = vmatprep.subr.bf16.mxu0 %v7919
        %13177 = vmatpush1.bf16.msra.mxu0 %v7918
        %13178 = vmatprep.subr.bf16.mxu0 %v7951
        %13179 = vmatpush1.bf16.msra.mxu0 %v7950
        %13180 = vmatprep.subr.bf16.mxu0 %v7983
        %13181 = vmatpush1.bf16.msra.mxu0 %v7982
        %13182 = vmatprep.subr.bf16.mxu0 %v8015
        %13183 = vmatpush1.bf16.msra.mxu0 %v8014
        %13184 = vmatprep.subr.bf16.mxu0 %v8047
        %13185 = vmatpush1.bf16.msra.mxu0 %v8046
        %13186 = vmatprep.subr.bf16.mxu0 %v8079
        %13187 = vmatpush1.bf16.msra.mxu0 %v8078
        %13188 = vmatprep.subr.bf16.mxu0 %v8111
        %13189 = vmatpush1.bf16.msra.mxu0 %v8110
        %13190 = vmatprep.mubr.bf16.mxu0 %v2217
        %13191 = vmatmul.mubr.bf16.gmra.mrb[0].mxu0 %v2216
        %v13192 = vpop.f32.mrb[0].mxu0
        %v13193 = vadd.f32 %v2144, %v13192
        %v13194 = vpop.f32.mrb[0].mxu0
        %v13195 = vadd.f32 %v2148, %v13194
        %v13196 = vpop.f32.mrb[0].mxu0
        %v13197 = vpop.f32.mrb[0].mxu0
        %13198 = vdwg.mxu0
        %13199 = vmatprep.subr.bf16.mxu0 %v8143
        %13200 = vmatpush1.bf16.msra.mxu0 %v8142
        %13201 = vmatprep.subr.bf16.mxu0 %v8175
        %13202 = vmatpush1.bf16.msra.mxu0 %v8174
        %13203 = vmatprep.subr.bf16.mxu0 %v8207
        %13204 = vmatpush1.bf16.msra.mxu0 %v8206
        %13205 = vmatprep.subr.bf16.mxu0 %v8239
        %13206 = vmatpush1.bf16.msra.mxu0 %v8238
        %13207 = vmatprep.subr.bf16.mxu0 %v8271
        %13208 = vmatpush1.bf16.msra.mxu0 %v8270
        %13209 = vmatprep.subr.bf16.mxu0 %v8303
        %13210 = vmatpush1.bf16.msra.mxu0 %v8302
        %13211 = vmatprep.subr.bf16.mxu0 %v8335
        %13212 = vmatpush1.bf16.msra.mxu0 %v8334
        %13213 = vmatprep.subr.bf16.mxu0 %v8367
        %13214 = vmatpush1.bf16.msra.mxu0 %v8366
        %13215 = vmatprep.subr.bf16.mxu0 %v8399
        %13216 = vmatpush1.bf16.msra.mxu0 %v8398
        %13217 = vmatprep.subr.bf16.mxu0 %v8431
        %13218 = vmatpush1.bf16.msra.mxu0 %v8430
        %13219 = vmatprep.subr.bf16.mxu0 %v8463
        %13220 = vmatpush1.bf16.msra.mxu0 %v8462
        %13221 = vmatprep.subr.bf16.mxu0 %v8495
        %13222 = vmatpush1.bf16.msra.mxu0 %v8494
        %13223 = vmatprep.subr.bf16.mxu0 %v8527
        %13224 = vmatpush1.bf16.msra.mxu0 %v8526
        %13225 = vmatprep.subr.bf16.mxu0 %v8559
        %13226 = vmatpush1.bf16.msra.mxu0 %v8558
        %13227 = vmatprep.subr.bf16.mxu0 %v8591
        %13228 = vmatpush1.bf16.msra.mxu0 %v8590
        %13229 = vmatprep.subr.bf16.mxu0 %v8623
        %13230 = vmatpush1.bf16.msra.mxu0 %v8622
        %13231 = vmatprep.mubr.bf16.mxu0 %v2219
        %13232 = vmatmul.mubr.bf16.gmra.mrb[0].mxu0 %v2218
        %v13233 = vpop.f32.mrb[0].mxu0
        %v13234 = vadd.f32 %v13193, %v13233
        %v13235 = vpop.f32.mrb[0].mxu0
        %v13236 = vadd.f32 %v13195, %v13235
        %v13237 = vpop.f32.mrb[0].mxu0
        %v13238 = vpop.f32.mrb[0].mxu0
        %13239 = vdwg.mxu0
        %13240 = vmatprep.subr.bf16.mxu0 %v8655
        %13241 = vmatpush1.bf16.msra.mxu0 %v8654
        %13242 = vmatprep.subr.bf16.mxu0 %v8687
        %13243 = vmatpush1.bf16.msra.mxu0 %v8686
        %13244 = vmatprep.subr.bf16.mxu0 %v8719
        %13245 = vmatpush1.bf16.msra.mxu0 %v8718
        %13246 = vmatprep.subr.bf16.mxu0 %v8751
        %13247 = vmatpush1.bf16.msra.mxu0 %v8750
        %13248 = vmatprep.subr.bf16.mxu0 %v8783
        %13249 = vmatpush1.bf16.msra.mxu0 %v8782
        %13250 = vmatprep.subr.bf16.mxu0 %v8815
        %13251 = vmatpush1.bf16.msra.mxu0 %v8814
        %13252 = vmatprep.subr.bf16.mxu0 %v8847
        %13253 = vmatpush1.bf16.msra.mxu0 %v8846
        %13254 = vmatprep.subr.bf16.mxu0 %v8879
        %13255 = vmatpush1.bf16.msra.mxu0 %v8878
        %13256 = vmatprep.subr.bf16.mxu0 %v8911
        %13257 = vmatpush1.bf16.msra.mxu0 %v8910
        %13258 = vmatprep.subr.bf16.mxu0 %v8943
        %13259 = vmatpush1.bf16.msra.mxu0 %v8942
        %13260 = vmatprep.subr.bf16.mxu0 %v8975
        %13261 = vmatpush1.bf16.msra.mxu0 %v8974
        %13262 = vmatprep.subr.bf16.mxu0 %v9007
        %13263 = vmatpush1.bf16.msra.mxu0 %v9006
        %13264 = vmatprep.subr.bf16.mxu0 %v9039
        %13265 = vmatpush1.bf16.msra.mxu0 %v9038
        %13266 = vmatprep.subr.bf16.mxu0 %v9071
        %13267 = vmatpush1.bf16.msra.mxu0 %v9070
        %13268 = vmatprep.subr.bf16.mxu0 %v9103
        %13269 = vmatpush1.bf16.msra.mxu0 %v9102
        %13270 = vmatprep.subr.bf16.mxu0 %v9135
        %13271 = vmatpush1.bf16.msra.mxu0 %v9134
        %13272 = vmatprep.mubr.bf16.mxu0 %v2221
        %13273 = vmatmul.mubr.bf16.gmra.mrb[0].mxu0 %v2220
        %v13274 = vpop.f32.mrb[0].mxu0
        %v13275 = vadd.f32 %v13234, %v13274
        %v13276 = vpop.f32.mrb[0].mxu0
        %v13277 = vadd.f32 %v13236, %v13276
        %v13278 = vpop.f32.mrb[0].mxu0
        %v13279 = vpop.f32.mrb[0].mxu0
        %13280 = vdwg.mxu0
        %13281 = vmatprep.subr.bf16.mxu0 %v9167
        %13282 = vmatpush1.bf16.msra.mxu0 %v9166
        %13283 = vmatprep.subr.bf16.mxu0 %v9199
        %13284 = vmatpush1.bf16.msra.mxu0 %v9198
        %13285 = vmatprep.subr.bf16.mxu0 %v9231
        %13286 = vmatpush1.bf16.msra.mxu0 %v9230
        %13287 = vmatprep.subr.bf16.mxu0 %v9263
        %13288 = vmatpush1.bf16.msra.mxu0 %v9262
        %13289 = vmatprep.subr.bf16.mxu0 %v9295
        %13290 = vmatpush1.bf16.msra.mxu0 %v9294
        %13291 = vmatprep.subr.bf16.mxu0 %v9327
        %13292 = vmatpush1.bf16.msra.mxu0 %v9326
        %13293 = vmatprep.subr.bf16.mxu0 %v9359
        %13294 = vmatpush1.bf16.msra.mxu0 %v9358
        %13295 = vmatprep.subr.bf16.mxu0 %v9391
        %13296 = vmatpush1.bf16.msra.mxu0 %v9390
        %13297 = vmatprep.subr.bf16.mxu0 0
        %13298 = vmatpush1.bf16.msra.mxu0 0
        %13299 = vmatprep.subr.bf16.mxu0 0
        %13300 = vmatpush1.bf16.msra.mxu0 0
        %13301 = vmatprep.subr.bf16.mxu0 0
        %13302 = vmatpush1.bf16.msra.mxu0 0
        %13303 = vmatprep.subr.bf16.mxu0 0
        %13304 = vmatpush1.bf16.msra.mxu0 0
        %13305 = vmatprep.subr.bf16.mxu0 0
        %13306 = vmatpush1.bf16.msra.mxu0 0
        %13307 = vmatprep.subr.bf16.mxu0 0
        %13308 = vmatpush1.bf16.msra.mxu0 0
        %13309 = vmatprep.subr.bf16.mxu0 0
        %13310 = vmatpush1.bf16.msra.mxu0 0
        %13311 = vmatprep.subr.bf16.mxu0 0
        %13312 = vmatpush1.bf16.msra.mxu0 0
        %13313 = vmatprep.mubr.bf16.mxu0 0
        %13314 = vmatmul.mubr.bf16.gmra.mrb[0].mxu0 %v2222
        %v13315 = vpop.f32.mrb[0].mxu0
        %v13316 = vadd.f32 %v13275, %v13315
        %v13317 = vpop.f32.mrb[0].mxu0
        %v13318 = vadd.f32 %v13277, %v13317
        %v13319 = vpop.f32.mrb[0].mxu0
        %v13320 = vpop.f32.mrb[0].mxu0
        %13321 = vdwg.mxu0
        %13322 = vmatprep.subr.bf16.mxu0 %v7633
        %13323 = vmatpush1.bf16.msra.mxu0 %v7632
        %13324 = vmatprep.subr.bf16.mxu0 %v7665
        %13325 = vmatpush1.bf16.msra.mxu0 %v7664
        %13326 = vmatprep.subr.bf16.mxu0 %v7697
        %13327 = vmatpush1.bf16.msra.mxu0 %v7696
        %13328 = vmatprep.subr.bf16.mxu0 %v7729
        %13329 = vmatpush1.bf16.msra.mxu0 %v7728
        %13330 = vmatprep.subr.bf16.mxu0 %v7761
        %13331 = vmatpush1.bf16.msra.mxu0 %v7760
        %13332 = vmatprep.subr.bf16.mxu0 %v7793
        %13333 = vmatpush1.bf16.msra.mxu0 %v7792
        %13334 = vmatprep.subr.bf16.mxu0 %v7825
        %13335 = vmatpush1.bf16.msra.mxu0 %v7824
        %13336 = vmatprep.subr.bf16.mxu0 %v7857
        %13337 = vmatpush1.bf16.msra.mxu0 %v7856
        %13338 = vmatprep.subr.bf16.mxu0 %v7889
        %13339 = vmatpush1.bf16.msra.mxu0 %v7888
        %13340 = vmatprep.subr.bf16.mxu0 %v7921
        %13341 = vmatpush1.bf16.msra.mxu0 %v7920
        %13342 = vmatprep.subr.bf16.mxu0 %v7953
        %13343 = vmatpush1.bf16.msra.mxu0 %v7952
        %13344 = vmatprep.subr.bf16.mxu0 %v7985
        %13345 = vmatpush1.bf16.msra.mxu0 %v7984
        %13346 = vmatprep.subr.bf16.mxu0 %v8017
        %13347 = vmatpush1.bf16.msra.mxu0 %v8016
        %13348 = vmatprep.subr.bf16.mxu0 %v8049
        %13349 = vmatpush1.bf16.msra.mxu0 %v8048
        %13350 = vmatprep.subr.bf16.mxu0 %v8081
        %13351 = vmatpush1.bf16.msra.mxu0 %v8080
        %13352 = vmatprep.subr.bf16.mxu0 %v8113
        %13353 = vmatpush1.bf16.msra.mxu0 %v8112
        %13354 = vmatprep.mubr.bf16.mxu0 %v2217
        %13355 = vmatmul.mubr.bf16.gmra.mrb[0].mxu0 %v2216
        %v13356 = vpop.f32.mrb[0].mxu0
        %v13357 = vadd.f32 %v2152, %v13356
        %v13358 = vpop.f32.mrb[0].mxu0
        %v13359 = vadd.f32 %v2156, %v13358
        %v13360 = vpop.f32.mrb[0].mxu0
        %v13361 = vpop.f32.mrb[0].mxu0
        %13362 = vdwg.mxu0
        %13363 = vmatprep.subr.bf16.mxu0 %v8145
        %13364 = vmatpush1.bf16.msra.mxu0 %v8144
        %13365 = vmatprep.subr.bf16.mxu0 %v8177
        %13366 = vmatpush1.bf16.msra.mxu0 %v8176
        %13367 = vmatprep.subr.bf16.mxu0 %v8209
        %13368 = vmatpush1.bf16.msra.mxu0 %v8208
        %13369 = vmatprep.subr.bf16.mxu0 %v8241
        %13370 = vmatpush1.bf16.msra.mxu0 %v8240
        %13371 = vmatprep.subr.bf16.mxu0 %v8273
        %13372 = vmatpush1.bf16.msra.mxu0 %v8272
        %13373 = vmatprep.subr.bf16.mxu0 %v8305
        %13374 = vmatpush1.bf16.msra.mxu0 %v8304
        %13375 = vmatprep.subr.bf16.mxu0 %v8337
        %13376 = vmatpush1.bf16.msra.mxu0 %v8336
        %13377 = vmatprep.subr.bf16.mxu0 %v8369
        %13378 = vmatpush1.bf16.msra.mxu0 %v8368
        %13379 = vmatprep.subr.bf16.mxu0 %v8401
        %13380 = vmatpush1.bf16.msra.mxu0 %v8400
        %13381 = vmatprep.subr.bf16.mxu0 %v8433
        %13382 = vmatpush1.bf16.msra.mxu0 %v8432
        %13383 = vmatprep.subr.bf16.mxu0 %v8465
        %13384 = vmatpush1.bf16.msra.mxu0 %v8464
        %13385 = vmatprep.subr.bf16.mxu0 %v8497
        %13386 = vmatpush1.bf16.msra.mxu0 %v8496
        %13387 = vmatprep.subr.bf16.mxu0 %v8529
        %13388 = vmatpush1.bf16.msra.mxu0 %v8528
        %13389 = vmatprep.subr.bf16.mxu0 %v8561
        %13390 = vmatpush1.bf16.msra.mxu0 %v8560
        %13391 = vmatprep.subr.bf16.mxu0 %v8593
        %13392 = vmatpush1.bf16.msra.mxu0 %v8592
        %13393 = vmatprep.subr.bf16.mxu0 %v8625
        %13394 = vmatpush1.bf16.msra.mxu0 %v8624
        %13395 = vmatprep.mubr.bf16.mxu0 %v2219
        %13396 = vmatmul.mubr.bf16.gmra.mrb[0].mxu0 %v2218
        %v13397 = vpop.f32.mrb[0].mxu0
        %v13398 = vadd.f32 %v13357, %v13397
        %v13399 = vpop.f32.mrb[0].mxu0
        %v13400 = vadd.f32 %v13359, %v13399
        %v13401 = vpop.f32.mrb[0].mxu0
        %v13402 = vpop.f32.mrb[0].mxu0
        %13403 = vdwg.mxu0
        %13404 = vmatprep.subr.bf16.mxu0 %v8657
        %13405 = vmatpush1.bf16.msra.mxu0 %v8656
        %13406 = vmatprep.subr.bf16.mxu0 %v8689
        %13407 = vmatpush1.bf16.msra.mxu0 %v8688
        %13408 = vmatprep.subr.bf16.mxu0 %v8721
        %13409 = vmatpush1.bf16.msra.mxu0 %v8720
        %13410 = vmatprep.subr.bf16.mxu0 %v8753
        %13411 = vmatpush1.bf16.msra.mxu0 %v8752
        %13412 = vmatprep.subr.bf16.mxu0 %v8785
        %13413 = vmatpush1.bf16.msra.mxu0 %v8784
        %13414 = vmatprep.subr.bf16.mxu0 %v8817
        %13415 = vmatpush1.bf16.msra.mxu0 %v8816
        %13416 = vmatprep.subr.bf16.mxu0 %v8849
        %13417 = vmatpush1.bf16.msra.mxu0 %v8848
        %13418 = vmatprep.subr.bf16.mxu0 %v8881
        %13419 = vmatpush1.bf16.msra.mxu0 %v8880
        %13420 = vmatprep.subr.bf16.mxu0 %v8913
        %13421 = vmatpush1.bf16.msra.mxu0 %v8912
        %13422 = vmatprep.subr.bf16.mxu0 %v8945
        %13423 = vmatpush1.bf16.msra.mxu0 %v8944
        %13424 = vmatprep.subr.bf16.mxu0 %v8977
        %13425 = vmatpush1.bf16.msra.mxu0 %v8976
        %13426 = vmatprep.subr.bf16.mxu0 %v9009
        %13427 = vmatpush1.bf16.msra.mxu0 %v9008
        %13428 = vmatprep.subr.bf16.mxu0 %v9041
        %13429 = vmatpush1.bf16.msra.mxu0 %v9040
        %13430 = vmatprep.subr.bf16.mxu0 %v9073
        %13431 = vmatpush1.bf16.msra.mxu0 %v9072
        %13432 = vmatprep.subr.bf16.mxu0 %v9105
        %13433 = vmatpush1.bf16.msra.mxu0 %v9104
        %13434 = vmatprep.subr.bf16.mxu0 %v9137
        %13435 = vmatpush1.bf16.msra.mxu0 %v9136
        %13436 = vmatprep.mubr.bf16.mxu0 %v2221
        %13437 = vmatmul.mubr.bf16.gmra.mrb[0].mxu0 %v2220
        %v13438 = vpop.f32.mrb[0].mxu0
        %v13439 = vadd.f32 %v13398, %v13438
        %v13440 = vpop.f32.mrb[0].mxu0
        %v13441 = vadd.f32 %v13400, %v13440
        %v13442 = vpop.f32.mrb[0].mxu0
        %v13443 = vpop.f32.mrb[0].mxu0
        %13444 = vdwg.mxu0
        %13445 = vmatprep.subr.bf16.mxu0 %v9169
        %13446 = vmatpush1.bf16.msra.mxu0 %v9168
        %13447 = vmatprep.subr.bf16.mxu0 %v9201
        %13448 = vmatpush1.bf16.msra.mxu0 %v9200
        %13449 = vmatprep.subr.bf16.mxu0 %v9233
        %13450 = vmatpush1.bf16.msra.mxu0 %v9232
        %13451 = vmatprep.subr.bf16.mxu0 %v9265
        %13452 = vmatpush1.bf16.msra.mxu0 %v9264
        %13453 = vmatprep.subr.bf16.mxu0 %v9297
        %13454 = vmatpush1.bf16.msra.mxu0 %v9296
        %13455 = vmatprep.subr.bf16.mxu0 %v9329
        %13456 = vmatpush1.bf16.msra.mxu0 %v9328
        %13457 = vmatprep.subr.bf16.mxu0 %v9361
        %13458 = vmatpush1.bf16.msra.mxu0 %v9360
        %13459 = vmatprep.subr.bf16.mxu0 %v9393
        %13460 = vmatpush1.bf16.msra.mxu0 %v9392
        %13461 = vmatprep.subr.bf16.mxu0 0
        %13462 = vmatpush1.bf16.msra.mxu0 0
        %13463 = vmatprep.subr.bf16.mxu0 0
        %13464 = vmatpush1.bf16.msra.mxu0 0
        %13465 = vmatprep.subr.bf16.mxu0 0
        %13466 = vmatpush1.bf16.msra.mxu0 0
        %13467 = vmatprep.subr.bf16.mxu0 0
        %13468 = vmatpush1.bf16.msra.mxu0 0
        %13469 = vmatprep.subr.bf16.mxu0 0
        %13470 = vmatpush1.bf16.msra.mxu0 0
        %13471 = vmatprep.subr.bf16.mxu0 0
        %13472 = vmatpush1.bf16.msra.mxu0 0
        %13473 = vmatprep.subr.bf16.mxu0 0
        %13474 = vmatpush1.bf16.msra.mxu0 0
        %13475 = vmatprep.subr.bf16.mxu0 0
        %13476 = vmatpush1.bf16.msra.mxu0 0
        %13477 = vmatprep.mubr.bf16.mxu0 0
        %13478 = vmatmul.mubr.bf16.gmra.mrb[0].mxu0 %v2222
        %v13479 = vpop.f32.mrb[0].mxu0
        %v13480 = vadd.f32 %v13439, %v13479
        %v13481 = vpop.f32.mrb[0].mxu0
        %v13482 = vadd.f32 %v13441, %v13481
        %v13483 = vpop.f32.mrb[0].mxu0
        %v13484 = vpop.f32.mrb[0].mxu0
        %13485 = vdwg.mxu0
        %13486 = vmatprep.subr.bf16.mxu0 %v7635
        %13487 = vmatpush1.bf16.msra.mxu0 %v7634
        %13488 = vmatprep.subr.bf16.mxu0 %v7667
        %13489 = vmatpush1.bf16.msra.mxu0 %v7666
        %13490 = vmatprep.subr.bf16.mxu0 %v7699
        %13491 = vmatpush1.bf16.msra.mxu0 %v7698
        %13492 = vmatprep.subr.bf16.mxu0 %v7731
        %13493 = vmatpush1.bf16.msra.mxu0 %v7730
        %13494 = vmatprep.subr.bf16.mxu0 %v7763
        %13495 = vmatpush1.bf16.msra.mxu0 %v7762
        %13496 = vmatprep.subr.bf16.mxu0 %v7795
        %13497 = vmatpush1.bf16.msra.mxu0 %v7794
        %13498 = vmatprep.subr.bf16.mxu0 %v7827
        %13499 = vmatpush1.bf16.msra.mxu0 %v7826
        %13500 = vmatprep.subr.bf16.mxu0 %v7859
        %13501 = vmatpush1.bf16.msra.mxu0 %v7858
        %13502 = vmatprep.subr.bf16.mxu0 %v7891
        %13503 = vmatpush1.bf16.msra.mxu0 %v7890
        %13504 = vmatprep.subr.bf16.mxu0 %v7923
        %13505 = vmatpush1.bf16.msra.mxu0 %v7922
        %13506 = vmatprep.subr.bf16.mxu0 %v7955
        %13507 = vmatpush1.bf16.msra.mxu0 %v7954
        %13508 = vmatprep.subr.bf16.mxu0 %v7987
        %13509 = vmatpush1.bf16.msra.mxu0 %v7986
        %13510 = vmatprep.subr.bf16.mxu0 %v8019
        %13511 = vmatpush1.bf16.msra.mxu0 %v8018
        %13512 = vmatprep.subr.bf16.mxu0 %v8051
        %13513 = vmatpush1.bf16.msra.mxu0 %v8050
        %13514 = vmatprep.subr.bf16.mxu0 %v8083
        %13515 = vmatpush1.bf16.msra.mxu0 %v8082
        %13516 = vmatprep.subr.bf16.mxu0 %v8115
        %13517 = vmatpush1.bf16.msra.mxu0 %v8114
        %13518 = vmatprep.mubr.bf16.mxu0 %v2217
        %13519 = vmatmul.mubr.bf16.gmra.mrb[0].mxu0 %v2216
        %v13520 = vpop.f32.mrb[0].mxu0
        %v13521 = vadd.f32 %v2160, %v13520
        %v13522 = vpop.f32.mrb[0].mxu0
        %v13523 = vadd.f32 %v2164, %v13522
        %v13524 = vpop.f32.mrb[0].mxu0
        %v13525 = vpop.f32.mrb[0].mxu0
        %13526 = vdwg.mxu0
        %13527 = vmatprep.subr.bf16.mxu0 %v8147
        %13528 = vmatpush1.bf16.msra.mxu0 %v8146
        %13529 = vmatprep.subr.bf16.mxu0 %v8179
        %13530 = vmatpush1.bf16.msra.mxu0 %v8178
        %13531 = vmatprep.subr.bf16.mxu0 %v8211
        %13532 = vmatpush1.bf16.msra.mxu0 %v8210
        %13533 = vmatprep.subr.bf16.mxu0 %v8243
        %13534 = vmatpush1.bf16.msra.mxu0 %v8242
        %13535 = vmatprep.subr.bf16.mxu0 %v8275
        %13536 = vmatpush1.bf16.msra.mxu0 %v8274
        %13537 = vmatprep.subr.bf16.mxu0 %v8307
        %13538 = vmatpush1.bf16.msra.mxu0 %v8306
        %13539 = vmatprep.subr.bf16.mxu0 %v8339
        %13540 = vmatpush1.bf16.msra.mxu0 %v8338
        %13541 = vmatprep.subr.bf16.mxu0 %v8371
        %13542 = vmatpush1.bf16.msra.mxu0 %v8370
        %13543 = vmatprep.subr.bf16.mxu0 %v8403
        %13544 = vmatpush1.bf16.msra.mxu0 %v8402
        %13545 = vmatprep.subr.bf16.mxu0 %v8435
        %13546 = vmatpush1.bf16.msra.mxu0 %v8434
        %13547 = vmatprep.subr.bf16.mxu0 %v8467
        %13548 = vmatpush1.bf16.msra.mxu0 %v8466
        %13549 = vmatprep.subr.bf16.mxu0 %v8499
        %13550 = vmatpush1.bf16.msra.mxu0 %v8498
        %13551 = vmatprep.subr.bf16.mxu0 %v8531
        %13552 = vmatpush1.bf16.msra.mxu0 %v8530
        %13553 = vmatprep.subr.bf16.mxu0 %v8563
        %13554 = vmatpush1.bf16.msra.mxu0 %v8562
        %13555 = vmatprep.subr.bf16.mxu0 %v8595
        %13556 = vmatpush1.bf16.msra.mxu0 %v8594
        %13557 = vmatprep.subr.bf16.mxu0 %v8627
        %13558 = vmatpush1.bf16.msra.mxu0 %v8626
        %13559 = vmatprep.mubr.bf16.mxu0 %v2219
        %13560 = vmatmul.mubr.bf16.gmra.mrb[0].mxu0 %v2218
        %v13561 = vpop.f32.mrb[0].mxu0
        %v13562 = vadd.f32 %v13521, %v13561
        %v13563 = vpop.f32.mrb[0].mxu0
        %v13564 = vadd.f32 %v13523, %v13563
        %v13565 = vpop.f32.mrb[0].mxu0
        %v13566 = vpop.f32.mrb[0].mxu0
        %13567 = vdwg.mxu0
        %13568 = vmatprep.subr.bf16.mxu0 %v8659
        %13569 = vmatpush1.bf16.msra.mxu0 %v8658
        %13570 = vmatprep.subr.bf16.mxu0 %v8691
        %13571 = vmatpush1.bf16.msra.mxu0 %v8690
        %13572 = vmatprep.subr.bf16.mxu0 %v8723
        %13573 = vmatpush1.bf16.msra.mxu0 %v8722
        %13574 = vmatprep.subr.bf16.mxu0 %v8755
        %13575 = vmatpush1.bf16.msra.mxu0 %v8754
        %13576 = vmatprep.subr.bf16.mxu0 %v8787
        %13577 = vmatpush1.bf16.msra.mxu0 %v8786
        %13578 = vmatprep.subr.bf16.mxu0 %v8819
        %13579 = vmatpush1.bf16.msra.mxu0 %v8818
        %13580 = vmatprep.subr.bf16.mxu0 %v8851
        %13581 = vmatpush1.bf16.msra.mxu0 %v8850
        %13582 = vmatprep.subr.bf16.mxu0 %v8883
        %13583 = vmatpush1.bf16.msra.mxu0 %v8882
        %13584 = vmatprep.subr.bf16.mxu0 %v8915
        %13585 = vmatpush1.bf16.msra.mxu0 %v8914
        %13586 = vmatprep.subr.bf16.mxu0 %v8947
        %13587 = vmatpush1.bf16.msra.mxu0 %v8946
        %13588 = vmatprep.subr.bf16.mxu0 %v8979
        %13589 = vmatpush1.bf16.msra.mxu0 %v8978
        %13590 = vmatprep.subr.bf16.mxu0 %v9011
        %13591 = vmatpush1.bf16.msra.mxu0 %v9010
        %13592 = vmatprep.subr.bf16.mxu0 %v9043
        %13593 = vmatpush1.bf16.msra.mxu0 %v9042
        %13594 = vmatprep.subr.bf16.mxu0 %v9075
        %13595 = vmatpush1.bf16.msra.mxu0 %v9074
        %13596 = vmatprep.subr.bf16.mxu0 %v9107
        %13597 = vmatpush1.bf16.msra.mxu0 %v9106
        %13598 = vmatprep.subr.bf16.mxu0 %v9139
        %13599 = vmatpush1.bf16.msra.mxu0 %v9138
        %13600 = vmatprep.mubr.bf16.mxu0 %v2221
        %13601 = vmatmul.mubr.bf16.gmra.mrb[0].mxu0 %v2220
        %v13602 = vpop.f32.mrb[0].mxu0
        %v13603 = vadd.f32 %v13562, %v13602
        %v13604 = vpop.f32.mrb[0].mxu0
        %v13605 = vadd.f32 %v13564, %v13604
        %v13606 = vpop.f32.mrb[0].mxu0
        %v13607 = vpop.f32.mrb[0].mxu0
        %13608 = vdwg.mxu0
        %13609 = vmatprep.subr.bf16.mxu0 %v9171
        %13610 = vmatpush1.bf16.msra.mxu0 %v9170
        %13611 = vmatprep.subr.bf16.mxu0 %v9203
        %13612 = vmatpush1.bf16.msra.mxu0 %v9202
        %13613 = vmatprep.subr.bf16.mxu0 %v9235
        %13614 = vmatpush1.bf16.msra.mxu0 %v9234
        %13615 = vmatprep.subr.bf16.mxu0 %v9267
        %13616 = vmatpush1.bf16.msra.mxu0 %v9266
        %13617 = vmatprep.subr.bf16.mxu0 %v9299
        %13618 = vmatpush1.bf16.msra.mxu0 %v9298
        %13619 = vmatprep.subr.bf16.mxu0 %v9331
        %13620 = vmatpush1.bf16.msra.mxu0 %v9330
        %13621 = vmatprep.subr.bf16.mxu0 %v9363
        %13622 = vmatpush1.bf16.msra.mxu0 %v9362
        %13623 = vmatprep.subr.bf16.mxu0 %v9395
        %13624 = vmatpush1.bf16.msra.mxu0 %v9394
        %13625 = vmatprep.subr.bf16.mxu0 0
        %13626 = vmatpush1.bf16.msra.mxu0 0
        %13627 = vmatprep.subr.bf16.mxu0 0
        %13628 = vmatpush1.bf16.msra.mxu0 0
        %13629 = vmatprep.subr.bf16.mxu0 0
        %13630 = vmatpush1.bf16.msra.mxu0 0
        %13631 = vmatprep.subr.bf16.mxu0 0
        %13632 = vmatpush1.bf16.msra.mxu0 0
        %13633 = vmatprep.subr.bf16.mxu0 0
        %13634 = vmatpush1.bf16.msra.mxu0 0
        %13635 = vmatprep.subr.bf16.mxu0 0
        %13636 = vmatpush1.bf16.msra.mxu0 0
        %13637 = vmatprep.subr.bf16.mxu0 0
        %13638 = vmatpush1.bf16.msra.mxu0 0
        %13639 = vmatprep.subr.bf16.mxu0 0
        %13640 = vmatpush1.bf16.msra.mxu0 0
        %13641 = vmatprep.mubr.bf16.mxu0 0
        %13642 = vmatmul.mubr.bf16.gmra.mrb[0].mxu0 %v2222
        %v13643 = vpop.f32.mrb[0].mxu0
        %v13644 = vadd.f32 %v13603, %v13643
        %v13645 = vpop.f32.mrb[0].mxu0
        %v13646 = vadd.f32 %v13605, %v13645
        %v13647 = vpop.f32.mrb[0].mxu0
        %v13648 = vpop.f32.mrb[0].mxu0
        %13649 = vdwg.mxu0
        %13650 = vmatprep.subr.bf16.mxu0 %v7637
        %13651 = vmatpush1.bf16.msra.mxu0 %v7636
        %13652 = vmatprep.subr.bf16.mxu0 %v7669
        %13653 = vmatpush1.bf16.msra.mxu0 %v7668
        %13654 = vmatprep.subr.bf16.mxu0 %v7701
        %13655 = vmatpush1.bf16.msra.mxu0 %v7700
        %13656 = vmatprep.subr.bf16.mxu0 %v7733
        %13657 = vmatpush1.bf16.msra.mxu0 %v7732
        %13658 = vmatprep.subr.bf16.mxu0 %v7765
        %13659 = vmatpush1.bf16.msra.mxu0 %v7764
        %13660 = vmatprep.subr.bf16.mxu0 %v7797
        %13661 = vmatpush1.bf16.msra.mxu0 %v7796
        %13662 = vmatprep.subr.bf16.mxu0 %v7829
        %13663 = vmatpush1.bf16.msra.mxu0 %v7828
        %13664 = vmatprep.subr.bf16.mxu0 %v7861
        %13665 = vmatpush1.bf16.msra.mxu0 %v7860
        %13666 = vmatprep.subr.bf16.mxu0 %v7893
        %13667 = vmatpush1.bf16.msra.mxu0 %v7892
        %13668 = vmatprep.subr.bf16.mxu0 %v7925
        %13669 = vmatpush1.bf16.msra.mxu0 %v7924
        %13670 = vmatprep.subr.bf16.mxu0 %v7957
        %13671 = vmatpush1.bf16.msra.mxu0 %v7956
        %13672 = vmatprep.subr.bf16.mxu0 %v7989
        %13673 = vmatpush1.bf16.msra.mxu0 %v7988
        %13674 = vmatprep.subr.bf16.mxu0 %v8021
        %13675 = vmatpush1.bf16.msra.mxu0 %v8020
        %13676 = vmatprep.subr.bf16.mxu0 %v8053
        %13677 = vmatpush1.bf16.msra.mxu0 %v8052
        %13678 = vmatprep.subr.bf16.mxu0 %v8085
        %13679 = vmatpush1.bf16.msra.mxu0 %v8084
        %13680 = vmatprep.subr.bf16.mxu0 %v8117
        %13681 = vmatpush1.bf16.msra.mxu0 %v8116
        %13682 = vmatprep.mubr.bf16.mxu0 %v2217
        %13683 = vmatmul.mubr.bf16.gmra.mrb[0].mxu0 %v2216
        %v13684 = vpop.f32.mrb[0].mxu0
        %v13685 = vadd.f32 %v2168, %v13684
        %v13686 = vpop.f32.mrb[0].mxu0
        %v13687 = vadd.f32 %v2172, %v13686
        %v13688 = vpop.f32.mrb[0].mxu0
        %v13689 = vpop.f32.mrb[0].mxu0
        %13690 = vdwg.mxu0
        %13691 = vmatprep.subr.bf16.mxu0 %v8149
        %13692 = vmatpush1.bf16.msra.mxu0 %v8148
        %13693 = vmatprep.subr.bf16.mxu0 %v8181
        %13694 = vmatpush1.bf16.msra.mxu0 %v8180
        %13695 = vmatprep.subr.bf16.mxu0 %v8213
        %13696 = vmatpush1.bf16.msra.mxu0 %v8212
        %13697 = vmatprep.subr.bf16.mxu0 %v8245
        %13698 = vmatpush1.bf16.msra.mxu0 %v8244
        %13699 = vmatprep.subr.bf16.mxu0 %v8277
        %13700 = vmatpush1.bf16.msra.mxu0 %v8276
        %13701 = vmatprep.subr.bf16.mxu0 %v8309
        %13702 = vmatpush1.bf16.msra.mxu0 %v8308
        %13703 = vmatprep.subr.bf16.mxu0 %v8341
        %13704 = vmatpush1.bf16.msra.mxu0 %v8340
        %13705 = vmatprep.subr.bf16.mxu0 %v8373
        %13706 = vmatpush1.bf16.msra.mxu0 %v8372
        %13707 = vmatprep.subr.bf16.mxu0 %v8405
        %13708 = vmatpush1.bf16.msra.mxu0 %v8404
        %13709 = vmatprep.subr.bf16.mxu0 %v8437
        %13710 = vmatpush1.bf16.msra.mxu0 %v8436
        %13711 = vmatprep.subr.bf16.mxu0 %v8469
        %13712 = vmatpush1.bf16.msra.mxu0 %v8468
        %13713 = vmatprep.subr.bf16.mxu0 %v8501
        %13714 = vmatpush1.bf16.msra.mxu0 %v8500
        %13715 = vmatprep.subr.bf16.mxu0 %v8533
        %13716 = vmatpush1.bf16.msra.mxu0 %v8532
        %13717 = vmatprep.subr.bf16.mxu0 %v8565
        %13718 = vmatpush1.bf16.msra.mxu0 %v8564
        %13719 = vmatprep.subr.bf16.mxu0 %v8597
        %13720 = vmatpush1.bf16.msra.mxu0 %v8596
        %13721 = vmatprep.subr.bf16.mxu0 %v8629
        %13722 = vmatpush1.bf16.msra.mxu0 %v8628
        %13723 = vmatprep.mubr.bf16.mxu0 %v2219
        %13724 = vmatmul.mubr.bf16.gmra.mrb[0].mxu0 %v2218
        %v13725 = vpop.f32.mrb[0].mxu0
        %v13726 = vadd.f32 %v13685, %v13725
        %v13727 = vpop.f32.mrb[0].mxu0
        %v13728 = vadd.f32 %v13687, %v13727
        %v13729 = vpop.f32.mrb[0].mxu0
        %v13730 = vpop.f32.mrb[0].mxu0
        %13731 = vdwg.mxu0
        %13732 = vmatprep.subr.bf16.mxu0 %v8661
        %13733 = vmatpush1.bf16.msra.mxu0 %v8660
        %13734 = vmatprep.subr.bf16.mxu0 %v8693
        %13735 = vmatpush1.bf16.msra.mxu0 %v8692
        %13736 = vmatprep.subr.bf16.mxu0 %v8725
        %13737 = vmatpush1.bf16.msra.mxu0 %v8724
        %13738 = vmatprep.subr.bf16.mxu0 %v8757
        %13739 = vmatpush1.bf16.msra.mxu0 %v8756
        %13740 = vmatprep.subr.bf16.mxu0 %v8789
        %13741 = vmatpush1.bf16.msra.mxu0 %v8788
        %13742 = vmatprep.subr.bf16.mxu0 %v8821
        %13743 = vmatpush1.bf16.msra.mxu0 %v8820
        %13744 = vmatprep.subr.bf16.mxu0 %v8853
        %13745 = vmatpush1.bf16.msra.mxu0 %v8852
        %13746 = vmatprep.subr.bf16.mxu0 %v8885
        %13747 = vmatpush1.bf16.msra.mxu0 %v8884
        %13748 = vmatprep.subr.bf16.mxu0 %v8917
        %13749 = vmatpush1.bf16.msra.mxu0 %v8916
        %13750 = vmatprep.subr.bf16.mxu0 %v8949
        %13751 = vmatpush1.bf16.msra.mxu0 %v8948
        %13752 = vmatprep.subr.bf16.mxu0 %v8981
        %13753 = vmatpush1.bf16.msra.mxu0 %v8980
        %13754 = vmatprep.subr.bf16.mxu0 %v9013
        %13755 = vmatpush1.bf16.msra.mxu0 %v9012
        %13756 = vmatprep.subr.bf16.mxu0 %v9045
        %13757 = vmatpush1.bf16.msra.mxu0 %v9044
        %13758 = vmatprep.subr.bf16.mxu0 %v9077
        %13759 = vmatpush1.bf16.msra.mxu0 %v9076
        %13760 = vmatprep.subr.bf16.mxu0 %v9109
        %13761 = vmatpush1.bf16.msra.mxu0 %v9108
        %13762 = vmatprep.subr.bf16.mxu0 %v9141
        %13763 = vmatpush1.bf16.msra.mxu0 %v9140
        %13764 = vmatprep.mubr.bf16.mxu0 %v2221
        %13765 = vmatmul.mubr.bf16.gmra.mrb[0].mxu0 %v2220
        %v13766 = vpop.f32.mrb[0].mxu0
        %v13767 = vadd.f32 %v13726, %v13766
        %v13768 = vpop.f32.mrb[0].mxu0
        %v13769 = vadd.f32 %v13728, %v13768
        %v13770 = vpop.f32.mrb[0].mxu0
        %v13771 = vpop.f32.mrb[0].mxu0
        %13772 = vdwg.mxu0
        %13773 = vmatprep.subr.bf16.mxu0 %v9173
        %13774 = vmatpush1.bf16.msra.mxu0 %v9172
        %13775 = vmatprep.subr.bf16.mxu0 %v9205
        %13776 = vmatpush1.bf16.msra.mxu0 %v9204
        %13777 = vmatprep.subr.bf16.mxu0 %v9237
        %13778 = vmatpush1.bf16.msra.mxu0 %v9236
        %13779 = vmatprep.subr.bf16.mxu0 %v9269
        %13780 = vmatpush1.bf16.msra.mxu0 %v9268
        %13781 = vmatprep.subr.bf16.mxu0 %v9301
        %13782 = vmatpush1.bf16.msra.mxu0 %v9300
        %13783 = vmatprep.subr.bf16.mxu0 %v9333
        %13784 = vmatpush1.bf16.msra.mxu0 %v9332
        %13785 = vmatprep.subr.bf16.mxu0 %v9365
        %13786 = vmatpush1.bf16.msra.mxu0 %v9364
        %13787 = vmatprep.subr.bf16.mxu0 %v9397
        %13788 = vmatpush1.bf16.msra.mxu0 %v9396
        %13789 = vmatprep.subr.bf16.mxu0 0
        %13790 = vmatpush1.bf16.msra.mxu0 0
        %13791 = vmatprep.subr.bf16.mxu0 0
        %13792 = vmatpush1.bf16.msra.mxu0 0
        %13793 = vmatprep.subr.bf16.mxu0 0
        %13794 = vmatpush1.bf16.msra.mxu0 0
        %13795 = vmatprep.subr.bf16.mxu0 0
        %13796 = vmatpush1.bf16.msra.mxu0 0
        %13797 = vmatprep.subr.bf16.mxu0 0
        %13798 = vmatpush1.bf16.msra.mxu0 0
        %13799 = vmatprep.subr.bf16.mxu0 0
        %13800 = vmatpush1.bf16.msra.mxu0 0
        %13801 = vmatprep.subr.bf16.mxu0 0
        %13802 = vmatpush1.bf16.msra.mxu0 0
        %13803 = vmatprep.subr.bf16.mxu0 0
        %13804 = vmatpush1.bf16.msra.mxu0 0
        %13805 = vmatprep.mubr.bf16.mxu0 0
        %13806 = vmatmul.mubr.bf16.gmra.mrb[0].mxu0 %v2222
        %v13807 = vpop.f32.mrb[0].mxu0
        %v13808 = vadd.f32 %v13767, %v13807
        %v13809 = vpop.f32.mrb[0].mxu0
        %v13810 = vadd.f32 %v13769, %v13809
        %v13811 = vpop.f32.mrb[0].mxu0
        %v13812 = vpop.f32.mrb[0].mxu0
        %13813 = vdwg.mxu0
        %v13814 = vmax.f32 %v11348, 0.0
        %v13815 = vmax.f32 %v11350, 0.0
        %v13816 = vmax.f32 %v11512, 0.0
        %v13817 = vmax.f32 %v11514, 0.0
        %v13818 = vmax.f32 %v11676, 0.0
        %v13819 = vmax.f32 %v11678, 0.0
        %v13820 = vmax.f32 %v11840, 0.0
        %v13821 = vmax.f32 %v11842, 0.0
        %v13822 = vmax.f32 %v12004, 0.0
        %v13823 = vmax.f32 %v12006, 0.0
        %v13824 = vmax.f32 %v12168, 0.0
        %v13825 = vmax.f32 %v12170, 0.0
        %v13826 = vmax.f32 %v12332, 0.0
        %v13827 = vmax.f32 %v12334, 0.0
        %v13828 = vmax.f32 %v12496, 0.0
        %v13829 = vmax.f32 %v12498, 0.0
        %v13830 = vmax.f32 %v12660, 0.0
        %v13831 = vmax.f32 %v12662, 0.0
        %v13832 = vmax.f32 %v12824, 0.0
        %v13833 = vmax.f32 %v12826, 0.0
        %v13834 = vmax.f32 %v12988, 0.0
        %v13835 = vmax.f32 %v12990, 0.0
        %v13836 = vmax.f32 %v13152, 0.0
        %v13837 = vmax.f32 %v13154, 0.0
        %v13838 = vmax.f32 %v13316, 0.0
        %v13839 = vmax.f32 %v13318, 0.0
        %v13840 = vmax.f32 %v13480, 0.0
        %v13841 = vmax.f32 %v13482, 0.0
        %v13842 = vmax.f32 %v13644, 0.0
        %v13843 = vmax.f32 %v13646, 0.0
        %v13844 = vmax.f32 %v13808, 0.0
        %v13845 = vmax.f32 %v13810, 0.0
        %v13846 = vpack.c.bf16 %v13814, %v13814
        %v13847 = vpack.c.bf16 %v13815, %v13815
        %v13848 = vpack.c.bf16 %v13816, %v13816
        %v13849 = vpack.c.bf16 %v13817, %v13817
        %v13850 = vpack.c.bf16 %v13818, %v13818
        %v13851 = vpack.c.bf16 %v13819, %v13819
        %v13852 = vpack.c.bf16 %v13820, %v13820
        %v13853 = vpack.c.bf16 %v13821, %v13821
        %v13854 = vpack.c.bf16 %v13822, %v13822
        %v13855 = vpack.c.bf16 %v13823, %v13823
        %v13856 = vpack.c.bf16 %v13824, %v13824
        %v13857 = vpack.c.bf16 %v13825, %v13825
        %v13858 = vpack.c.bf16 %v13826, %v13826
        %v13859 = vpack.c.bf16 %v13827, %v13827
        %v13860 = vpack.c.bf16 %v13828, %v13828
        %v13861 = vpack.c.bf16 %v13829, %v13829
        %v13862 = vpack.c.bf16 %v13830, %v13830
        %v13863 = vpack.c.bf16 %v13831, %v13831
        %v13864 = vpack.c.bf16 %v13832, %v13832
        %v13865 = vpack.c.bf16 %v13833, %v13833
        %v13866 = vpack.c.bf16 %v13834, %v13834
        %v13867 = vpack.c.bf16 %v13835, %v13835
        %v13868 = vpack.c.bf16 %v13836, %v13836
        %v13869 = vpack.c.bf16 %v13837, %v13837
        %v13870 = vpack.c.bf16 %v13838, %v13838
        %v13871 = vpack.c.bf16 %v13839, %v13839
        %v13872 = vpack.c.bf16 %v13840, %v13840
        %v13873 = vpack.c.bf16 %v13841, %v13841
        %v13874 = vpack.c.bf16 %v13842, %v13842
        %v13875 = vpack.c.bf16 %v13843, %v13843
        %v13876 = vpack.c.bf16 %v13844, %v13844
        %v13877 = vpack.c.bf16 %v13845, %v13845
        %v13910 = vunpack.c.l.b16 %v13846
        %v13911 = vunpack.c.l.b16 %v13847
        %v13912 = vunpack.c.l.b16 %v13848
        %v13913 = vunpack.c.l.b16 %v13849
        %v13914 = vunpack.c.l.b16 %v13850
        %v13915 = vunpack.c.l.b16 %v13851
        %v13916 = vunpack.c.l.b16 %v13852
        %v13917 = vunpack.c.l.b16 %v13853
        %v13918 = vunpack.c.l.b16 %v13854
        %v13919 = vunpack.c.l.b16 %v13855
        %v13920 = vunpack.c.l.b16 %v13856
        %v13921 = vunpack.c.l.b16 %v13857
        %v13922 = vunpack.c.l.b16 %v13858
        %v13923 = vunpack.c.l.b16 %v13859
        %v13924 = vunpack.c.l.b16 %v13860
        %v13925 = vunpack.c.l.b16 %v13861
        %v13926 = vunpack.c.l.b16 %v13862
        %v13927 = vunpack.c.l.b16 %v13863
        %v13928 = vunpack.c.l.b16 %v13864
        %v13929 = vunpack.c.l.b16 %v13865
        %v13930 = vunpack.c.l.b16 %v13866
        %v13931 = vunpack.c.l.b16 %v13867
        %v13932 = vunpack.c.l.b16 %v13868
        %v13933 = vunpack.c.l.b16 %v13869
        %v13934 = vunpack.c.l.b16 %v13870
        %v13935 = vunpack.c.l.b16 %v13871
        %v13936 = vunpack.c.l.b16 %v13872
        %v13937 = vunpack.c.l.b16 %v13873
        %v13938 = vunpack.c.l.b16 %v13874
        %v13939 = vunpack.c.l.b16 %v13875
        %v13940 = vunpack.c.l.b16 %v13876
        %v13941 = vunpack.c.l.b16 %v13877
        %v13942 = vpack.c.b16 %v13911, %v13910
        %v13943 = vpack.c.b16 %v13913, %v13912
        %v13944 = vpack.c.b16 %v13915, %v13914
        %v13945 = vpack.c.b16 %v13917, %v13916
        %v13946 = vpack.c.b16 %v13919, %v13918
        %v13947 = vpack.c.b16 %v13921, %v13920
        %v13948 = vpack.c.b16 %v13923, %v13922
        %v13949 = vpack.c.b16 %v13925, %v13924
        %v13950 = vpack.c.b16 %v13927, %v13926
        %v13951 = vpack.c.b16 %v13929, %v13928
        %v13952 = vpack.c.b16 %v13931, %v13930
        %v13953 = vpack.c.b16 %v13933, %v13932
        %v13954 = vpack.c.b16 %v13935, %v13934
        %v13955 = vpack.c.b16 %v13937, %v13936
        %v13956 = vpack.c.b16 %v13939, %v13938
        %v13957 = vpack.c.b16 %v13941, %v13940
        %13974 = vst [vmem:[%s236] sm:$0xff] %v13942
        %13975 = vst [vmem:[%s236 + $0x8] sm:$0xff] %v13943
        %13976 = vst [vmem:[%s236 + $0x10] sm:$0xff] %v13944
        %13977 = vst [vmem:[%s236 + $0x18] sm:$0xff] %v13945
        %13978 = vst [vmem:[%s236 + $0x20] sm:$0xff] %v13946
        %13979 = vst [vmem:[%s236 + $0x28] sm:$0xff] %v13947
        %13980 = vst [vmem:[%s236 + $0x30] sm:$0xff] %v13948
        %13981 = vst [vmem:[%s236 + $0x38] sm:$0xff] %v13949
        %13982 = vst [vmem:[%s236 + $0x40] sm:$0xff] %v13950
        %13983 = vst [vmem:[%s236 + $0x48] sm:$0xff] %v13951
        %13984 = vst [vmem:[%s236 + $0x50] sm:$0xff] %v13952
        %13985 = vst [vmem:[%s236 + $0x58] sm:$0xff] %v13953
        %13986 = vst [vmem:[%s236 + $0x60] sm:$0xff] %v13954
        %13987 = vst [vmem:[%s236 + $0x68] sm:$0xff] %v13955
        %13988 = vst [vmem:[%s236 + $0x70] sm:$0xff] %v13956
        %13989 = vst [vmem:[%s236 + $0x78] sm:$0xff] %v13957
        %s13990 = sand.u32 %s102, 1
        %s13991 = scalar_lea.sflag [#allocation4], %s13990
        %s13992 = sand.u32 %s102, 1
        %s13993 = smul.addr %s13992, 128
        %s13994 = scalar_lea.vmem [#allocation8], %s13993
        // Predicated region
        $region45: #{tpu_custom_call.1} parent=31 // pred_check
          %p13995 = pneg %p112
        $region46: #{tpu_custom_call.1} parent=31 // pred_check_branch
          %13997 = sbr.rel (%p13995) target = $region48
        $region47: #{tpu_custom_call.1} parent=31 // pred_region
          %s13998 = smul.u32 32, %s21
          %s14000 = ssub.s32 2048, 2048
          %14001 = vsyncadd %s13991, %s14000
          %s14002 = smul.addr %s13998, 64
          %s14003 = scalar_lea.hbm %s3, %s14002
          %s14005 = sshll.u32 %s13994, 4
          %s14006 = int_to_ptr.vmem [resolvable:$true] %s14005
          %14008 = dma.vmem_to_hbm [thread:$0]  %s14006, 2048, %s14003, %s13991
        $region48: #{tpu_custom_call.1} parent=31 // pred_fallthru
          _
      $region32: #{tpu_custom_call.1} parent=5 // pred_fallthru
        _
      %p14009 = scmp.le.s32.totalorder 2, %s16
      // Predicated region
      $region49: #{tpu_custom_call.1} parent=5 // pred_check
        %p14010 = pneg %p14009
      $region50: #{tpu_custom_call.1} parent=5 // pred_check_branch
        %14012 = sbr.rel (%p14010) target = $region52
      $region51: #{tpu_custom_call.1} parent=5 // pred_region
        %s14013 = ssub.s32 %s16, 2
        // Predicated region
        $region53: #{tpu_custom_call.1} parent=51 // pred_check
          %p14014 = pneg %p118
        $region54: #{tpu_custom_call.1} parent=51 // pred_check_branch
          %14016 = sbr.rel (%p14014) target = $region56
        $region55: #{tpu_custom_call.1} parent=51 // pred_region
          %s14017 = sand.u32 %s103, 1
          %s14018 = scalar_lea.sflag [#allocation4], %s14017
          %s14019 = sand.u32 %s103, 1
          %s14020 = smul.addr %s14019, 128
          %s14021 = scalar_lea.vmem [#allocation8], %s14020
          %14022 = dma.done %s14018, 2048
        $region56: #{tpu_custom_call.1} parent=51 // pred_fallthru
          _
      $region52: #{tpu_custom_call.1} parent=5 // pred_fallthru
        _
    $region6: #{tpu_custom_call.1} parent=1 // loop_footer
      %s20 = sadd.s32 1, %s16
    $region7: #{tpu_custom_call.1} parent=1 // loop_footer_branch
      %15 = sbr.rel target = $region3
    $region8: #{tpu_custom_call.1} parent=1 // loop_exit
      _
    %14023 = vsyncpa [#allocation3], 1
    %s14024 = scalar_lea.sflag [#allocation3], 1
    %14025 = vsyncpa %s14024, 1
    %14026 = vsyncpa [#allocation6], 1
    %s14027 = scalar_lea.sflag [#allocation6], 1
    %14028 = vsyncpa %s14027, 1
    %14029 = vsyncpa [#allocation4], 1
    %s14030 = scalar_lea.sflag [#allocation4], 1
    %14031 = vsyncpa %s14030, 1

</llo_original>
